<compile_context>
chip_gen: v7x
topology: tpu7x:2x2x1
jax: 0.10.0
libtpu: 0.0.40
codegen_flags: <defaults>
</compile_context>

<pallas_src>
import functools

import jax
import jax.numpy as jnp
from jax.experimental import pallas as pl
from jax.experimental.pallas import tpu as pltpu


LEAKY_SLOPE = 0.1
_ENC_DTYPE = jnp.bfloat16          # MXU operand dtype for the encoder matmuls
_VMEM_LIMIT = 32 * 1024 * 1024     # safe on v5e/v6e (128 MiB) and v7x (64 MiB)


# ----------------------------------------------------------------------------
# Fused forward kernel: encoder + visual head + 2-layer LSTM + regressor.
# ----------------------------------------------------------------------------
def _svio_forward_kernel(
        x_ref,                                   # (S*B, D0)  frame-pair rows
        m1_ref, b1_ref,                          # dense conv1  + bias row
        m2_ref, b2_ref,                          # dense conv2
        m3_ref, b3_ref,                          # dense conv3
        mh_ref, bh_ref,                          # visual head
        wih0_ref, bl0_ref, whh0_ref,             # LSTM layer 0
        wih1_ref, whh1_ref, bl1_ref,             # LSTM layer 1
        r1w_ref, r1b_ref, r2w_ref, r2b_ref,      # regressor H -> 128 -> 6
        h0_ref, c0_ref,                          # (2, B, H) initial states
        pose_ref,                                # (B, S*6) output
        *, batch, seq_len, hidden):

    def leaky(z):
        return jnp.where(z > 0, z, LEAKY_SLOPE * z)

    # ---- Encoder: 3 dense-unrolled convs + head (bf16 MXU, f32 accumulate).
    a = x_ref[...]
    for m_ref, b_ref in ((m1_ref, b1_ref), (m2_ref, b2_ref), (m3_ref, b3_ref)):
        z = jnp.dot(a, m_ref[...], preferred_element_type=jnp.float32)
        a = leaky(z + b_ref[...]).astype(_ENC_DTYPE)
    fv = (jnp.dot(a, mh_ref[...], preferred_element_type=jnp.float32)
          + bh_ref[...])                                    # (S*B, F)  f32

    # ---- Hoisted LSTM layer-0 input projection for ALL timesteps (1 matmul).
    gin0 = (jnp.dot(fv, wih0_ref[...], preferred_element_type=jnp.float32)
            + bl0_ref[...])                                 # (S*B, 4H) f32

    H = hidden
    h_0 = h0_ref[0]
    h_1 = h0_ref[1]
    c_0 = c0_ref[0]
    c_1 = c0_ref[1]

    def lstm_cell(gates, c):
        # Full 4H-lane activations (EUP), then slice; PyTorch gate order ifgo.
        sig = jax.nn.sigmoid(gates)
        tnh = jnp.tanh(gates)
        i_g = sig[:, 0 * H:1 * H]
        f_g = sig[:, 1 * H:2 * H]
        g_g = tnh[:, 2 * H:3 * H]
        o_g = sig[:, 3 * H:4 * H]
        c_new = f_g * c + i_g * g_g
        h_new = o_g * jnp.tanh(c_new)
        return h_new, c_new

    # Sequential recurrence; seq_len is small here so a static unroll is fine.
    # TODO(synk): for long sequences switch to lax.fori_loop with pl.ds slices.
    for t in range(seq_len):
        g0 = (gin0[t * batch:(t + 1) * batch, :]
              + jnp.dot(h_0, whh0_ref[...], preferred_element_type=jnp.float32))
        h_0, c_0 = lstm_cell(g0, c_0)

        g1 = (jnp.dot(h_0, wih1_ref[...], preferred_element_type=jnp.float32)
              + jnp.dot(h_1, whh1_ref[...], preferred_element_type=jnp.float32)
              + bl1_ref[...])
        h_1, c_1 = lstm_cell(g1, c_1)

        reg = leaky(jnp.dot(h_1, r1w_ref[...],
                            preferred_element_type=jnp.float32) + r1b_ref[...])
        pose = (jnp.dot(reg, r2w_ref[...], preferred_element_type=jnp.float32)
                + r2b_ref[...])                             # (B, 6)
        pose_ref[:, t * 6:(t + 1) * 6] = pose.astype(pose_ref.dtype)


# ----------------------------------------------------------------------------
# Parameter construction (deterministic, kaiming-like, torch layouts)
# ----------------------------------------------------------------------------
def _conv_out_hw(h, w, k=3, s=2, p=1):
    return (h + 2 * p - k) // s + 1, (w + 2 * p - k) // s + 1


def make_params(key, opt):
    H = opt["rnn_hidden_size"]
    v_f_len = opt["v_f_len"]

    def kaiming(key, shape, fan_in):
        return (jnp.sqrt(2.0 / fan_in)
                * jax.random.normal(key, shape, jnp.float32))

    keys = iter(jax.random.split(key, 16))
    p = {}

    # Encoder_VO_C: 3 strided convs on stacked frame pairs + visual head.
    conv_defs = [(16, 6, 3), (32, 16, 3), (64, 32, 3)]
    p["convs"] = []
    for (o, c, k) in conv_defs:
        w = kaiming(next(keys), (o, c, k, k), c * k * k)
        b = jnp.zeros((o,), jnp.float32)
        p["convs"].append((w, b))
    hh, ww = opt["img_h"], opt["img_w"]
    for _ in conv_defs:
        hh, ww = _conv_out_hw(hh, ww)
    flat = conv_defs[-1][0] * hh * ww
    # vh_w rows ordered (C, H, W) as in torch's NCHW .view(N, -1).
    p["vh_w"] = kaiming(next(keys), (flat, v_f_len), flat)
    p["vh_b"] = jnp.zeros((v_f_len,), jnp.float32)

    # Pose_RNN_VO: 2-layer LSTM (input v_f_len) + regressor (H->128->6).
    p["lstm"] = []
    in_size = v_f_len
    for _ in range(2):
        wih = kaiming(next(keys), (4 * H, in_size), in_size).T   # (in, 4H)
        whh = kaiming(next(keys), (4 * H, H), H).T               # (H, 4H)
        b_ih = jnp.zeros((4 * H,), jnp.float32)
        b_hh = jnp.zeros((4 * H,), jnp.float32)
        b_hh = b_hh.at[H:2 * H].set(1.0)   # forget-gate bias = 1 (per init fn)
        p["lstm"].append((wih, whh, (b_ih + b_hh).reshape(1, 4 * H)))
        in_size = H
    p["reg1_w"] = kaiming(next(keys), (H, 128), H)
    p["reg1_b"] = jnp.zeros((128,), jnp.float32)
    p["reg2_w"] = kaiming(next(keys), (128, 6), 128)
    p["reg2_b"] = jnp.zeros((6,), jnp.float32)
    return p


# ----------------------------------------------------------------------------
# One-time preparation: unroll each stride-2 conv into an equivalent dense
# matrix (rows ordered (h, w, c), columns ordered (h', w', c')), expand biases
# over spatial, and reorder the visual-head rows to match.
# ----------------------------------------------------------------------------
def conv_to_dense(w, b, H, W, stride=2, pad=1):
    O, C, k, _ = w.shape
    Ho = (H + 2 * pad - k) // stride + 1
    Wo = (W + 2 * pad - k) // stride + 1
    p_idx = jnp.arange(H)
    q_idx = jnp.arange(W)
    i_idx = jnp.arange(Ho)
    j_idx = jnp.arange(Wo)
    M = jnp.zeros((H, W, C, Ho, Wo, O), jnp.float32)
    for di in range(k):
        Sh = (p_idx[:, None] ==
              (stride * i_idx + di - pad)[None, :]).astype(jnp.float32)
        for dj in range(k):
            Sw = (q_idx[:, None] ==
                  (stride * j_idx + dj - pad)[None, :]).astype(jnp.float32)
            M = M + jnp.einsum('pi,qj,oc->pqcijo', Sh, Sw, w[:, :, di, dj])
    M2 = M.reshape(H * W * C, Ho * Wo * O)
    brow = jnp.broadcast_to(b[None, :], (Ho * Wo, O)).reshape(1, Ho * Wo * O)
    return M2, brow, Ho, Wo


def prepare_params(p, opt):
    """Convert torch-layout params into the operands of the fused kernel."""
    assert len(p["convs"]) == 3
    prep = {}
    H_cur, W_cur = opt["img_h"], opt["img_w"]
    dense = []
    for (w, b) in p["convs"]:
        M, brow, H_cur, W_cur = conv_to_dense(w, b, H_cur, W_cur)
        dense.append((M.astype(_ENC_DTYPE), brow))
    (prep["m1"], prep["bb1"]) = dense[0]
    (prep["m2"], prep["bb2"]) = dense[1]
    (prep["m3"], prep["bb3"]) = dense[2]

    Cf = p["convs"][-1][0].shape[0]
    F = p["vh_w"].shape[1]
    # Reorder head rows from torch NCHW flatten (c, h, w) to our (h, w, c).
    vh = (p["vh_w"].reshape(Cf, H_cur, W_cur, F)
          .transpose(1, 2, 0, 3).reshape(H_cur * W_cur * Cf, F))
    prep["mh"] = vh.astype(_ENC_DTYPE)
    prep["bh"] = p["vh_b"].reshape(1, F)

    (wih0, whh0, b0), (wih1, whh1, b1) = p["lstm"]
    prep.update(wih0=wih0, b0=b0, whh0=whh0,
                wih1=wih1, whh1=whh1, b1=b1,
                r1w=p["reg1_w"], r1b=p["reg1_b"].reshape(1, -1),
                r2w=p["reg2_w"], r2b=p["reg2_b"].reshape(1, -1))
    return prep


# ----------------------------------------------------------------------------
# Forward
# ----------------------------------------------------------------------------
def svio_vo_c_forward(prep, img, opt, is_first=True, hc=None):
    """img: (B, T, 3, H, W) -> poses (B, T-1, 6).  Whole forward = 1 pallas_call."""
    del is_first  # TODO(synk): Policy_net branch undefined in the reference.
    B, T, C, Hh, Ww = img.shape
    S = T - 1
    Hrnn = opt["rnn_hidden_size"]

    # Stack consecutive frame pairs along channels, flatten NHWC (h, w, c),
    # rows ordered timestep-major so the RNN loop slices contiguous row blocks.
    x = img.transpose(0, 1, 3, 4, 2)                          # (B, T, H, W, C)
    pairs = jnp.concatenate([x[:, :-1], x[:, 1:]], axis=-1)   # (B, S, H, W, 2C)
    pairs = pairs.transpose(1, 0, 2, 3, 4)                    # (S, B, H, W, 2C)
    x_flat = pairs.reshape(S * B, Hh * Ww * 2 * C).astype(_ENC_DTYPE)

    if hc is None:
        h0 = jnp.zeros((2, B, Hrnn), jnp.float32)
        c0 = jnp.zeros((2, B, Hrnn), jnp.float32)
    else:
        h0, c0 = hc

    kernel = functools.partial(_svio_forward_kernel,
                               batch=B, seq_len=S, hidden=Hrnn)
    poses2d = pl.pallas_call(
        kernel,
        out_shape=jax.ShapeDtypeStruct((B, S * 6), jnp.float32),
        compiler_params=pltpu.CompilerParams(vmem_limit_bytes=_VMEM_LIMIT),
    )(x_flat,
      prep["m1"], prep["bb1"], prep["m2"], prep["bb2"], prep["m3"], prep["bb3"],
      prep["mh"], prep["bh"],
      prep["wih0"], prep["b0"], prep["whh0"],
      prep["wih1"], prep["whh1"], prep["b1"],
      prep["r1w"], prep["r1b"], prep["r2w"], prep["r2b"],
      h0, c0)
    return poses2d.reshape(B, S, 6)       # free row-major split of the lane dim


# ----------------------------------------------------------------------------
if __name__ == "__main__":
    opt = {"v_f_len": 128, "rnn_hidden_size": 32, "img_w": 16, "img_h": 16}

    key = jax.random.PRNGKey(0)
    k_param, k_img = jax.random.split(key)
    params = make_params(k_param, opt)
    prep = prepare_params(params, opt)          # one-time weight preparation

    # (batch=2, frames=3 -> seq_len=2, channels=3, H=16, W=16)
    img = jax.random.normal(k_img, (2, 3, 3, 16, 16), jnp.float32)

    fwd = jax.jit(functools.partial(svio_vo_c_forward, opt=opt))
    poses = fwd(prep, img)
    poses = jax.block_until_ready(poses)
    assert poses.shape == (2, 2, 6), poses.shape
    assert bool(jnp.all(jnp.isfinite(poses)))
    print("KERNEL_OK")
</pallas_src>

<mosaic_0001>
module attributes {stable_mosaic.version = 11 : i64} {
  func.func @_svio_forward_kernel(%arg0: memref<4x1536xbf16, #tpu.memory_space<vmem>>, %arg1: memref<1536x1024xbf16, #tpu.memory_space<vmem>>, %arg2: memref<1x1024xf32, #tpu.memory_space<vmem>>, %arg3: memref<1024x512xbf16, #tpu.memory_space<vmem>>, %arg4: memref<1x512xf32, #tpu.memory_space<vmem>>, %arg5: memref<512x256xbf16, #tpu.memory_space<vmem>>, %arg6: memref<1x256xf32, #tpu.memory_space<vmem>>, %arg7: memref<256x128xbf16, #tpu.memory_space<vmem>>, %arg8: memref<1x128xf32, #tpu.memory_space<vmem>>, %arg9: memref<128x128xf32, #tpu.memory_space<vmem>>, %arg10: memref<1x128xf32, #tpu.memory_space<vmem>>, %arg11: memref<32x128xf32, #tpu.memory_space<vmem>>, %arg12: memref<32x128xf32, #tpu.memory_space<vmem>>, %arg13: memref<32x128xf32, #tpu.memory_space<vmem>>, %arg14: memref<1x128xf32, #tpu.memory_space<vmem>>, %arg15: memref<32x128xf32, #tpu.memory_space<vmem>>, %arg16: memref<1x128xf32, #tpu.memory_space<vmem>>, %arg17: memref<128x6xf32, #tpu.memory_space<vmem>>, %arg18: memref<1x6xf32, #tpu.memory_space<vmem>>, %arg19: memref<2x2x32xf32, #tpu.memory_space<vmem>>, %arg20: memref<2x2x32xf32, #tpu.memory_space<vmem>>, %arg21: memref<2x12xf32, #tpu.memory_space<vmem>>) attributes {dimension_semantics = [], scalar_prefetch = 0 : i64, scratch_operands = 0 : i64, tpu.core_type = #tpu.core_type<tc>} {
    %c0 = arith.constant 0 : index
    %c0_0 = arith.constant 0 : index
    %0 = vector.load %arg0[%c0, %c0_0] : memref<4x1536xbf16, #tpu.memory_space<vmem>>, vector<4x1536xbf16>
    %c0_1 = arith.constant 0 : index
    %c0_2 = arith.constant 0 : index
    %1 = vector.load %arg1[%c0_1, %c0_2] : memref<1536x1024xbf16, #tpu.memory_space<vmem>>, vector<1536x1024xbf16>
    %cst = arith.constant dense<0.000000e+00> : vector<4x1024xf32>
    %2 = tpu.matmul %0, %1, %cst {dimension_numbers = #tpu.dot_dimension_numbers<[1], [0], [0], [1], [0, 0, 1, 1], [], []>} : vector<4x1536xbf16>, vector<1536x1024xbf16>, vector<4x1024xf32> -> vector<4x1024xf32>
    %c0_3 = arith.constant 0 : index
    %c0_4 = arith.constant 0 : index
    %3 = vector.load %arg2[%c0_3, %c0_4] : memref<1x1024xf32, #tpu.memory_space<vmem>>, vector<1x1024xf32>
    %4 = vector.broadcast %3 : vector<1x1024xf32> to vector<4x1024xf32>
    %5 = arith.addf %2, %4 : vector<4x1024xf32>
    %cst_5 = arith.constant 0.000000e+00 : f32
    %6 = vector.broadcast %cst_5 : f32 to vector<4x1024xf32>
    %7 = arith.cmpf ogt, %5, %6 : vector<4x1024xf32>
    %cst_6 = arith.constant 1.000000e-01 : f32
    %8 = vector.broadcast %cst_6 : f32 to vector<4x1024xf32>
    %9 = arith.mulf %8, %5 : vector<4x1024xf32>
    %10 = arith.select %7, %5, %9 : vector<4x1024xi1>, vector<4x1024xf32>
    %11 = arith.truncf %10 : vector<4x1024xf32> to vector<4x1024xbf16>
    %c0_7 = arith.constant 0 : index
    %c0_8 = arith.constant 0 : index
    %12 = vector.load %arg3[%c0_7, %c0_8] : memref<1024x512xbf16, #tpu.memory_space<vmem>>, vector<1024x512xbf16>
    %cst_9 = arith.constant dense<0.000000e+00> : vector<4x512xf32>
    %13 = tpu.matmul %11, %12, %cst_9 {dimension_numbers = #tpu.dot_dimension_numbers<[1], [0], [0], [1], [0, 0, 1, 1], [], []>} : vector<4x1024xbf16>, vector<1024x512xbf16>, vector<4x512xf32> -> vector<4x512xf32>
    %c0_10 = arith.constant 0 : index
    %c0_11 = arith.constant 0 : index
    %14 = vector.load %arg4[%c0_10, %c0_11] : memref<1x512xf32, #tpu.memory_space<vmem>>, vector<1x512xf32>
    %15 = vector.broadcast %14 : vector<1x512xf32> to vector<4x512xf32>
    %16 = arith.addf %13, %15 : vector<4x512xf32>
    %cst_12 = arith.constant 0.000000e+00 : f32
    %17 = vector.broadcast %cst_12 : f32 to vector<4x512xf32>
    %18 = arith.cmpf ogt, %16, %17 : vector<4x512xf32>
    %cst_13 = arith.constant 1.000000e-01 : f32
    %19 = vector.broadcast %cst_13 : f32 to vector<4x512xf32>
    %20 = arith.mulf %19, %16 : vector<4x512xf32>
    %21 = arith.select %18, %16, %20 : vector<4x512xi1>, vector<4x512xf32>
    %22 = arith.truncf %21 : vector<4x512xf32> to vector<4x512xbf16>
    %c0_14 = arith.constant 0 : index
    %c0_15 = arith.constant 0 : index
    %23 = vector.load %arg5[%c0_14, %c0_15] : memref<512x256xbf16, #tpu.memory_space<vmem>>, vector<512x256xbf16>
    %cst_16 = arith.constant dense<0.000000e+00> : vector<4x256xf32>
    %24 = tpu.matmul %22, %23, %cst_16 {dimension_numbers = #tpu.dot_dimension_numbers<[1], [0], [0], [1], [0, 0, 1, 1], [], []>} : vector<4x512xbf16>, vector<512x256xbf16>, vector<4x256xf32> -> vector<4x256xf32>
    %c0_17 = arith.constant 0 : index
    %c0_18 = arith.constant 0 : index
    %25 = vector.load %arg6[%c0_17, %c0_18] : memref<1x256xf32, #tpu.memory_space<vmem>>, vector<1x256xf32>
    %26 = vector.broadcast %25 : vector<1x256xf32> to vector<4x256xf32>
    %27 = arith.addf %24, %26 : vector<4x256xf32>
    %cst_19 = arith.constant 0.000000e+00 : f32
    %28 = vector.broadcast %cst_19 : f32 to vector<4x256xf32>
    %29 = arith.cmpf ogt, %27, %28 : vector<4x256xf32>
    %cst_20 = arith.constant 1.000000e-01 : f32
    %30 = vector.broadcast %cst_20 : f32 to vector<4x256xf32>
    %31 = arith.mulf %30, %27 : vector<4x256xf32>
    %32 = arith.select %29, %27, %31 : vector<4x256xi1>, vector<4x256xf32>
    %33 = arith.truncf %32 : vector<4x256xf32> to vector<4x256xbf16>
    %c0_21 = arith.constant 0 : index
    %c0_22 = arith.constant 0 : index
    %34 = vector.load %arg7[%c0_21, %c0_22] : memref<256x128xbf16, #tpu.memory_space<vmem>>, vector<256x128xbf16>
    %cst_23 = arith.constant dense<0.000000e+00> : vector<4x128xf32>
    %35 = tpu.matmul %33, %34, %cst_23 {dimension_numbers = #tpu.dot_dimension_numbers<[1], [0], [0], [1], [0, 0, 1, 1], [], []>} : vector<4x256xbf16>, vector<256x128xbf16>, vector<4x128xf32> -> vector<4x128xf32>
    %c0_24 = arith.constant 0 : index
    %c0_25 = arith.constant 0 : index
    %36 = vector.load %arg8[%c0_24, %c0_25] : memref<1x128xf32, #tpu.memory_space<vmem>>, vector<1x128xf32>
    %37 = vector.broadcast %36 : vector<1x128xf32> to vector<4x128xf32>
    %38 = arith.addf %35, %37 : vector<4x128xf32>
    %c0_26 = arith.constant 0 : index
    %c0_27 = arith.constant 0 : index
    %39 = vector.load %arg9[%c0_26, %c0_27] : memref<128x128xf32, #tpu.memory_space<vmem>>, vector<128x128xf32>
    %cst_28 = arith.constant dense<0.000000e+00> : vector<4x128xf32>
    %40 = tpu.matmul %38, %39, %cst_28 {dimension_numbers = #tpu.dot_dimension_numbers<[1], [0], [0], [1], [0, 0, 1, 1], [], []>} : vector<4x128xf32>, vector<128x128xf32>, vector<4x128xf32> -> vector<4x128xf32>
    %c0_29 = arith.constant 0 : index
    %c0_30 = arith.constant 0 : index
    %41 = vector.load %arg10[%c0_29, %c0_30] : memref<1x128xf32, #tpu.memory_space<vmem>>, vector<1x128xf32>
    %42 = vector.broadcast %41 : vector<1x128xf32> to vector<4x128xf32>
    %43 = arith.addf %40, %42 : vector<4x128xf32>
    %c0_31 = arith.constant 0 : index
    %c0_32 = arith.constant 0 : index
    %c0_33 = arith.constant 0 : index
    %44 = vector.load %arg19[%c0_31, %c0_32, %c0_33] : memref<2x2x32xf32, #tpu.memory_space<vmem>>, vector<1x2x32xf32>
    %45 = vector.shape_cast %44 : vector<1x2x32xf32> to vector<2x32xf32>
    %c1 = arith.constant 1 : index
    %c0_34 = arith.constant 0 : index
    %c0_35 = arith.constant 0 : index
    %46 = vector.load %arg19[%c1, %c0_34, %c0_35] : memref<2x2x32xf32, #tpu.memory_space<vmem>>, vector<1x2x32xf32>
    %47 = vector.shape_cast %46 : vector<1x2x32xf32> to vector<2x32xf32>
    %c0_36 = arith.constant 0 : index
    %c0_37 = arith.constant 0 : index
    %c0_38 = arith.constant 0 : index
    %48 = vector.load %arg20[%c0_36, %c0_37, %c0_38] : memref<2x2x32xf32, #tpu.memory_space<vmem>>, vector<1x2x32xf32>
    %49 = vector.shape_cast %48 : vector<1x2x32xf32> to vector<2x32xf32>
    %c1_39 = arith.constant 1 : index
    %c0_40 = arith.constant 0 : index
    %c0_41 = arith.constant 0 : index
    %50 = vector.load %arg20[%c1_39, %c0_40, %c0_41] : memref<2x2x32xf32, #tpu.memory_space<vmem>>, vector<1x2x32xf32>
    %51 = vector.shape_cast %50 : vector<1x2x32xf32> to vector<2x32xf32>
    %52 = vector.extract_strided_slice %43 {offsets = [0, 0], sizes = [2, 128], strides = [1, 1]} : vector<4x128xf32> to vector<2x128xf32>
    %c0_42 = arith.constant 0 : index
    %c0_43 = arith.constant 0 : index
    %53 = vector.load %arg11[%c0_42, %c0_43] : memref<32x128xf32, #tpu.memory_space<vmem>>, vector<32x128xf32>
    %cst_44 = arith.constant dense<0.000000e+00> : vector<2x128xf32>
    %54 = tpu.matmul %45, %53, %cst_44 {dimension_numbers = #tpu.dot_dimension_numbers<[1], [0], [0], [1], [0, 0, 1, 1], [], []>} : vector<2x32xf32>, vector<32x128xf32>, vector<2x128xf32> -> vector<2x128xf32>
    %55 = arith.addf %52, %54 : vector<2x128xf32>
    %56 = arith.negf %55 : vector<2x128xf32>
    %57 = math.exp %56 : vector<2x128xf32>
    %cst_45 = arith.constant 1.000000e+00 : f32
    %58 = vector.broadcast %cst_45 : f32 to vector<2x128xf32>
    %59 = arith.addf %58, %57 : vector<2x128xf32>
    %60 = arith.divf %58, %59 : vector<2x128xf32>
    %61 = math.tanh %55 : vector<2x128xf32>
    %62 = vector.extract_strided_slice %60 {offsets = [0, 0], sizes = [2, 32], strides = [1, 1]} : vector<2x128xf32> to vector<2x32xf32>
    %63 = vector.extract_strided_slice %60 {offsets = [0, 32], sizes = [2, 32], strides = [1, 1]} : vector<2x128xf32> to vector<2x32xf32>
    %64 = vector.extract_strided_slice %61 {offsets = [0, 64], sizes = [2, 32], strides = [1, 1]} : vector<2x128xf32> to vector<2x32xf32>
    %65 = vector.extract_strided_slice %60 {offsets = [0, 96], sizes = [2, 32], strides = [1, 1]} : vector<2x128xf32> to vector<2x32xf32>
    %66 = arith.mulf %63, %49 : vector<2x32xf32>
    %67 = arith.mulf %62, %64 : vector<2x32xf32>
    %68 = arith.addf %66, %67 : vector<2x32xf32>
    %69 = math.tanh %68 : vector<2x32xf32>
    %70 = arith.mulf %65, %69 : vector<2x32xf32>
    %c0_46 = arith.constant 0 : index
    %c0_47 = arith.constant 0 : index
    %71 = vector.load %arg12[%c0_46, %c0_47] : memref<32x128xf32, #tpu.memory_space<vmem>>, vector<32x128xf32>
    %cst_48 = arith.constant dense<0.000000e+00> : vector<2x128xf32>
    %72 = tpu.matmul %70, %71, %cst_48 {dimension_numbers = #tpu.dot_dimension_numbers<[1], [0], [0], [1], [0, 0, 1, 1], [], []>} : vector<2x32xf32>, vector<32x128xf32>, vector<2x128xf32> -> vector<2x128xf32>
    %c0_49 = arith.constant 0 : index
    %c0_50 = arith.constant 0 : index
    %73 = vector.load %arg13[%c0_49, %c0_50] : memref<32x128xf32, #tpu.memory_space<vmem>>, vector<32x128xf32>
    %cst_51 = arith.constant dense<0.000000e+00> : vector<2x128xf32>
    %74 = tpu.matmul %47, %73, %cst_51 {dimension_numbers = #tpu.dot_dimension_numbers<[1], [0], [0], [1], [0, 0, 1, 1], [], []>} : vector<2x32xf32>, vector<32x128xf32>, vector<2x128xf32> -> vector<2x128xf32>
    %75 = arith.addf %72, %74 : vector<2x128xf32>
    %c0_52 = arith.constant 0 : index
    %c0_53 = arith.constant 0 : index
    %76 = vector.load %arg14[%c0_52, %c0_53] : memref<1x128xf32, #tpu.memory_space<vmem>>, vector<1x128xf32>
    %77 = vector.broadcast %76 : vector<1x128xf32> to vector<2x128xf32>
    %78 = arith.addf %75, %77 : vector<2x128xf32>
    %79 = arith.negf %78 : vector<2x128xf32>
    %80 = math.exp %79 : vector<2x128xf32>
    %cst_54 = arith.constant 1.000000e+00 : f32
    %81 = vector.broadcast %cst_54 : f32 to vector<2x128xf32>
    %82 = arith.addf %81, %80 : vector<2x128xf32>
    %83 = arith.divf %81, %82 : vector<2x128xf32>
    %84 = math.tanh %78 : vector<2x128xf32>
    %85 = vector.extract_strided_slice %83 {offsets = [0, 0], sizes = [2, 32], strides = [1, 1]} : vector<2x128xf32> to vector<2x32xf32>
    %86 = vector.extract_strided_slice %83 {offsets = [0, 32], sizes = [2, 32], strides = [1, 1]} : vector<2x128xf32> to vector<2x32xf32>
    %87 = vector.extract_strided_slice %84 {offsets = [0, 64], sizes = [2, 32], strides = [1, 1]} : vector<2x128xf32> to vector<2x32xf32>
    %88 = vector.extract_strided_slice %83 {offsets = [0, 96], sizes = [2, 32], strides = [1, 1]} : vector<2x128xf32> to vector<2x32xf32>
    %89 = arith.mulf %86, %51 : vector<2x32xf32>
    %90 = arith.mulf %85, %87 : vector<2x32xf32>
    %91 = arith.addf %89, %90 : vector<2x32xf32>
    %92 = math.tanh %91 : vector<2x32xf32>
    %93 = arith.mulf %88, %92 : vector<2x32xf32>
    %c0_55 = arith.constant 0 : index
    %c0_56 = arith.constant 0 : index
    %94 = vector.load %arg15[%c0_55, %c0_56] : memref<32x128xf32, #tpu.memory_space<vmem>>, vector<32x128xf32>
    %cst_57 = arith.constant dense<0.000000e+00> : vector<2x128xf32>
    %95 = tpu.matmul %93, %94, %cst_57 {dimension_numbers = #tpu.dot_dimension_numbers<[1], [0], [0], [1], [0, 0, 1, 1], [], []>} : vector<2x32xf32>, vector<32x128xf32>, vector<2x128xf32> -> vector<2x128xf32>
    %c0_58 = arith.constant 0 : index
    %c0_59 = arith.constant 0 : index
    %96 = vector.load %arg16[%c0_58, %c0_59] : memref<1x128xf32, #tpu.memory_space<vmem>>, vector<1x128xf32>
    %97 = vector.broadcast %96 : vector<1x128xf32> to vector<2x128xf32>
    %98 = arith.addf %95, %97 : vector<2x128xf32>
    %cst_60 = arith.constant 0.000000e+00 : f32
    %99 = vector.broadcast %cst_60 : f32 to vector<2x128xf32>
    %100 = arith.cmpf ogt, %98, %99 : vector<2x128xf32>
    %cst_61 = arith.constant 1.000000e-01 : f32
    %101 = vector.broadcast %cst_61 : f32 to vector<2x128xf32>
    %102 = arith.mulf %101, %98 : vector<2x128xf32>
    %103 = arith.select %100, %98, %102 : vector<2x128xi1>, vector<2x128xf32>
    %c0_62 = arith.constant 0 : index
    %c0_63 = arith.constant 0 : index
    %104 = vector.load %arg17[%c0_62, %c0_63] : memref<128x6xf32, #tpu.memory_space<vmem>>, vector<128x6xf32>
    %cst_64 = arith.constant dense<0.000000e+00> : vector<2x6xf32>
    %105 = tpu.matmul %103, %104, %cst_64 {dimension_numbers = #tpu.dot_dimension_numbers<[1], [0], [0], [1], [0, 0, 1, 1], [], []>} : vector<2x128xf32>, vector<128x6xf32>, vector<2x6xf32> -> vector<2x6xf32>
    %c0_65 = arith.constant 0 : index
    %c0_66 = arith.constant 0 : index
    %106 = vector.load %arg18[%c0_65, %c0_66] : memref<1x6xf32, #tpu.memory_space<vmem>>, vector<1x6xf32>
    %107 = vector.broadcast %106 : vector<1x6xf32> to vector<2x6xf32>
    %108 = arith.addf %105, %107 : vector<2x6xf32>
    %c0_67 = arith.constant 0 : index
    %c0_68 = arith.constant 0 : index
    %109 = vector.load %arg21[%c0_67, %c0_68] : memref<2x12xf32, #tpu.memory_space<vmem>>, vector<2x6xf32>
    tpu.vector_store %arg21[%c0_67, %c0_68], %108 {strides = array<i32>} : memref<2x12xf32, #tpu.memory_space<vmem>>, vector<2x6xf32>,
    %110 = vector.extract_strided_slice %43 {offsets = [2, 0], sizes = [2, 128], strides = [1, 1]} : vector<4x128xf32> to vector<2x128xf32>
    %c0_69 = arith.constant 0 : index
    %c0_70 = arith.constant 0 : index
    %111 = vector.load %arg11[%c0_69, %c0_70] : memref<32x128xf32, #tpu.memory_space<vmem>>, vector<32x128xf32>
    %cst_71 = arith.constant dense<0.000000e+00> : vector<2x128xf32>
    %112 = tpu.matmul %70, %111, %cst_71 {dimension_numbers = #tpu.dot_dimension_numbers<[1], [0], [0], [1], [0, 0, 1, 1], [], []>} : vector<2x32xf32>, vector<32x128xf32>, vector<2x128xf32> -> vector<2x128xf32>
    %113 = arith.addf %110, %112 : vector<2x128xf32>
    %114 = arith.negf %113 : vector<2x128xf32>
    %115 = math.exp %114 : vector<2x128xf32>
    %cst_72 = arith.constant 1.000000e+00 : f32
    %116 = vector.broadcast %cst_72 : f32 to vector<2x128xf32>
    %117 = arith.addf %116, %115 : vector<2x128xf32>
    %118 = arith.divf %116, %117 : vector<2x128xf32>
    %119 = math.tanh %113 : vector<2x128xf32>
    %120 = vector.extract_strided_slice %118 {offsets = [0, 0], sizes = [2, 32], strides = [1, 1]} : vector<2x128xf32> to vector<2x32xf32>
    %121 = vector.extract_strided_slice %118 {offsets = [0, 32], sizes = [2, 32], strides = [1, 1]} : vector<2x128xf32> to vector<2x32xf32>
    %122 = vector.extract_strided_slice %119 {offsets = [0, 64], sizes = [2, 32], strides = [1, 1]} : vector<2x128xf32> to vector<2x32xf32>
    %123 = vector.extract_strided_slice %118 {offsets = [0, 96], sizes = [2, 32], strides = [1, 1]} : vector<2x128xf32> to vector<2x32xf32>
    %124 = arith.mulf %121, %68 : vector<2x32xf32>
    %125 = arith.mulf %120, %122 : vector<2x32xf32>
    %126 = arith.addf %124, %125 : vector<2x32xf32>
    %127 = math.tanh %126 : vector<2x32xf32>
    %128 = arith.mulf %123, %127 : vector<2x32xf32>
    %c0_73 = arith.constant 0 : index
    %c0_74 = arith.constant 0 : index
    %129 = vector.load %arg12[%c0_73, %c0_74] : memref<32x128xf32, #tpu.memory_space<vmem>>, vector<32x128xf32>
    %cst_75 = arith.constant dense<0.000000e+00> : vector<2x128xf32>
    %130 = tpu.matmul %128, %129, %cst_75 {dimension_numbers = #tpu.dot_dimension_numbers<[1], [0], [0], [1], [0, 0, 1, 1], [], []>} : vector<2x32xf32>, vector<32x128xf32>, vector<2x128xf32> -> vector<2x128xf32>
    %c0_76 = arith.constant 0 : index
    %c0_77 = arith.constant 0 : index
    %131 = vector.load %arg13[%c0_76, %c0_77] : memref<32x128xf32, #tpu.memory_space<vmem>>, vector<32x128xf32>
    %cst_78 = arith.constant dense<0.000000e+00> : vector<2x128xf32>
    %132 = tpu.matmul %93, %131, %cst_78 {dimension_numbers = #tpu.dot_dimension_numbers<[1], [0], [0], [1], [0, 0, 1, 1], [], []>} : vector<2x32xf32>, vector<32x128xf32>, vector<2x128xf32> -> vector<2x128xf32>
    %133 = arith.addf %130, %132 : vector<2x128xf32>
    %c0_79 = arith.constant 0 : index
    %c0_80 = arith.constant 0 : index
    %134 = vector.load %arg14[%c0_79, %c0_80] : memref<1x128xf32, #tpu.memory_space<vmem>>, vector<1x128xf32>
    %135 = vector.broadcast %134 : vector<1x128xf32> to vector<2x128xf32>
    %136 = arith.addf %133, %135 : vector<2x128xf32>
    %137 = arith.negf %136 : vector<2x128xf32>
    %138 = math.exp %137 : vector<2x128xf32>
    %cst_81 = arith.constant 1.000000e+00 : f32
    %139 = vector.broadcast %cst_81 : f32 to vector<2x128xf32>
    %140 = arith.addf %139, %138 : vector<2x128xf32>
    %141 = arith.divf %139, %140 : vector<2x128xf32>
    %142 = math.tanh %136 : vector<2x128xf32>
    %143 = vector.extract_strided_slice %141 {offsets = [0, 0], sizes = [2, 32], strides = [1, 1]} : vector<2x128xf32> to vector<2x32xf32>
    %144 = vector.extract_strided_slice %141 {offsets = [0, 32], sizes = [2, 32], strides = [1, 1]} : vector<2x128xf32> to vector<2x32xf32>
    %145 = vector.extract_strided_slice %142 {offsets = [0, 64], sizes = [2, 32], strides = [1, 1]} : vector<2x128xf32> to vector<2x32xf32>
    %146 = vector.extract_strided_slice %141 {offsets = [0, 96], sizes = [2, 32], strides = [1, 1]} : vector<2x128xf32> to vector<2x32xf32>
    %147 = arith.mulf %144, %91 : vector<2x32xf32>
    %148 = arith.mulf %143, %145 : vector<2x32xf32>
    %149 = arith.addf %147, %148 : vector<2x32xf32>
    %150 = math.tanh %149 : vector<2x32xf32>
    %151 = arith.mulf %146, %150 : vector<2x32xf32>
    %c0_82 = arith.constant 0 : index
    %c0_83 = arith.constant 0 : index
    %152 = vector.load %arg15[%c0_82, %c0_83] : memref<32x128xf32, #tpu.memory_space<vmem>>, vector<32x128xf32>
    %cst_84 = arith.constant dense<0.000000e+00> : vector<2x128xf32>
    %153 = tpu.matmul %151, %152, %cst_84 {dimension_numbers = #tpu.dot_dimension_numbers<[1], [0], [0], [1], [0, 0, 1, 1], [], []>} : vector<2x32xf32>, vector<32x128xf32>, vector<2x128xf32> -> vector<2x128xf32>
    %c0_85 = arith.constant 0 : index
    %c0_86 = arith.constant 0 : index
    %154 = vector.load %arg16[%c0_85, %c0_86] : memref<1x128xf32, #tpu.memory_space<vmem>>, vector<1x128xf32>
    %155 = vector.broadcast %154 : vector<1x128xf32> to vector<2x128xf32>
    %156 = arith.addf %153, %155 : vector<2x128xf32>
    %cst_87 = arith.constant 0.000000e+00 : f32
    %157 = vector.broadcast %cst_87 : f32 to vector<2x128xf32>
    %158 = arith.cmpf ogt, %156, %157 : vector<2x128xf32>
    %cst_88 = arith.constant 1.000000e-01 : f32
    %159 = vector.broadcast %cst_88 : f32 to vector<2x128xf32>
    %160 = arith.mulf %159, %156 : vector<2x128xf32>
    %161 = arith.select %158, %156, %160 : vector<2x128xi1>, vector<2x128xf32>
    %c0_89 = arith.constant 0 : index
    %c0_90 = arith.constant 0 : index
    %162 = vector.load %arg17[%c0_89, %c0_90] : memref<128x6xf32, #tpu.memory_space<vmem>>, vector<128x6xf32>
    %cst_91 = arith.constant dense<0.000000e+00> : vector<2x6xf32>
    %163 = tpu.matmul %161, %162, %cst_91 {dimension_numbers = #tpu.dot_dimension_numbers<[1], [0], [0], [1], [0, 0, 1, 1], [], []>} : vector<2x128xf32>, vector<128x6xf32>, vector<2x6xf32> -> vector<2x6xf32>
    %c0_92 = arith.constant 0 : index
    %c0_93 = arith.constant 0 : index
    %164 = vector.load %arg18[%c0_92, %c0_93] : memref<1x6xf32, #tpu.memory_space<vmem>>, vector<1x6xf32>
    %165 = vector.broadcast %164 : vector<1x6xf32> to vector<2x6xf32>
    %166 = arith.addf %163, %165 : vector<2x6xf32>
    %c0_94 = arith.constant 0 : index
    %c6 = arith.constant 6 : index
    %167 = vector.load %arg21[%c0_94, %c6] : memref<2x12xf32, #tpu.memory_space<vmem>>, vector<2x6xf32>
    tpu.vector_store %arg21[%c0_94, %c6], %166 {strides = array<i32>} : memref<2x12xf32, #tpu.memory_space<vmem>>, vector<2x6xf32>,
    return
  }
}

</mosaic_0001>

<llo_original>
// kernel: svio_vo_c_forward.1
$region0: #{svio_vo_c_forward.1}
  #allocation0 [shape = 'u32[]', space=smem, size = 0x4, offset = 0x4, fixed_abs, tag = 'smem constant byte address 0x4 - core index']
  #allocation1 [shape = 'u32[144,128]{1,0:T(1,128)}', space=vmem, size = 0x12000, scoped, tag = 'internal scratch']
  %s0 = inlined_call_operand.vmem [shape: bf16[4,1536], index: 0, kind: input, shape index: {}]
  %s1 = inlined_call_operand.hbm [shape: bf16[1536,1024], index: 1, kind: input, shape index: {}]
  %s2 = inlined_call_operand.hbm [shape: f32[1,1024], index: 2, kind: input, shape index: {}]
  %s3 = inlined_call_operand.hbm [shape: bf16[1024,512], index: 3, kind: input, shape index: {}]
  %s4 = inlined_call_operand.hbm [shape: f32[1,512], index: 4, kind: input, shape index: {}]
  %s5 = inlined_call_operand.hbm [shape: bf16[512,256], index: 5, kind: input, shape index: {}]
  %s6 = inlined_call_operand.hbm [shape: f32[1,256], index: 6, kind: input, shape index: {}]
  %s7 = inlined_call_operand.hbm [shape: bf16[256,128], index: 7, kind: input, shape index: {}]
  %s8 = inlined_call_operand.hbm [shape: f32[1,128], index: 8, kind: input, shape index: {}]
  %s9 = inlined_call_operand.hbm [shape: f32[128,128], index: 9, kind: input, shape index: {}]
  %s10 = inlined_call_operand.hbm [shape: f32[1,128], index: 10, kind: input, shape index: {}]
  %s11 = inlined_call_operand.hbm [shape: f32[32,128], index: 11, kind: input, shape index: {}]
  %s12 = inlined_call_operand.hbm [shape: f32[32,128], index: 12, kind: input, shape index: {}]
  %s13 = inlined_call_operand.hbm [shape: f32[32,128], index: 13, kind: input, shape index: {}]
  %s14 = inlined_call_operand.hbm [shape: f32[1,128], index: 14, kind: input, shape index: {}]
  %s15 = inlined_call_operand.hbm [shape: f32[32,128], index: 15, kind: input, shape index: {}]
  %s16 = inlined_call_operand.hbm [shape: f32[1,128], index: 16, kind: input, shape index: {}]
  %s17 = inlined_call_operand.vmem [shape: f32[128,6], index: 17, kind: input, shape index: {}]
  %s18 = inlined_call_operand.hbm [shape: f32[1,6], index: 18, kind: input, shape index: {}]
  %s19 = inlined_call_operand.vmem [shape: f32[2,2,32], index: 19, kind: input, shape index: {}, may-alias: {19,20}]
  %s20 = inlined_call_operand.vmem [shape: f32[2,2,32], index: 20, kind: input, shape index: {}, may-alias: {19,20}]
  %s21 = inlined_call_operand.vmem [shape: f32[2,12], index: 21, kind: output, shape index: {}]
  %s22 = sld [smem:[#allocation0]]
  $region162: #{svio_vo_c_forward.1} parent=0
    _
  %s24 = ssub.s32 1, %s22
  %s25 = scalar_select 0, %s24, %s22
  $region1: #{svio_vo_c_forward.1} parent=0
    #allocation2 [shape = 'u8[3145728]{0}', space=vmem, size = 0x300000, scoped, tag = 'input window, operand 1, single buffered']
    #allocation3 [shape = 's32[1]{0}', space=sflag, size = 0x4, scoped, tag = 'scoped memory for svio_vo_c_forward.1']
    #allocation4 [shape = 'u8[4096]{0}', space=vmem, size = 0x1000, scoped, tag = 'input window, operand 2, single buffered']
    #allocation5 [shape = 's32[1]{0}', space=sflag, size = 0x4, scoped, tag = 'scoped memory for svio_vo_c_forward.1']
    #allocation6 [shape = 'u8[1048576]{0}', space=vmem, size = 0x100000, scoped, tag = 'input window, operand 3, single buffered']
    #allocation7 [shape = 'u8[2048]{0}', space=vmem, size = 0x800, scoped, tag = 'input window, operand 4, single buffered']
    #allocation8 [shape = 's32[1]{0}', space=sflag, size = 0x4, scoped, tag = 'scoped memory for svio_vo_c_forward.1']
    #allocation9 [shape = 'u8[262144]{0}', space=vmem, size = 0x40000, scoped, tag = 'input window, operand 5, single buffered']
    #allocation10 [shape = 'u8[1024]{0}', space=vmem, size = 0x400, scoped, tag = 'input window, operand 6, single buffered']
    #allocation11 [shape = 's32[1]{0}', space=sflag, size = 0x4, scoped, tag = 'scoped memory for svio_vo_c_forward.1']
    #allocation12 [shape = 'u8[65536]{0}', space=vmem, size = 0x10000, scoped, tag = 'input window, operand 7, single buffered']
    #allocation13 [shape = 'u8[512]{0}', space=vmem, size = 0x400, scoped, tag = 'input window, operand 8, single buffered']
    #allocation14 [shape = 's32[1]{0}', space=sflag, size = 0x4, scoped, tag = 'scoped memory for svio_vo_c_forward.1']
    #allocation15 [shape = 'u8[65536]{0}', space=vmem, size = 0x10000, scoped, tag = 'input window, operand 9, single buffered']
    #allocation16 [shape = 'u8[512]{0}', space=vmem, size = 0x400, scoped, tag = 'input window, operand 10, single buffered']
    #allocation17 [shape = 's32[1]{0}', space=sflag, size = 0x4, scoped, tag = 'scoped memory for svio_vo_c_forward.1']
    #allocation18 [shape = 'u8[16384]{0}', space=vmem, size = 0x4000, scoped, tag = 'input window, operand 11, single buffered']
    #allocation19 [shape = 'u8[16384]{0}', space=vmem, size = 0x4000, scoped, tag = 'input window, operand 12, single buffered']
    #allocation20 [shape = 's32[1]{0}', space=sflag, size = 0x4, scoped, tag = 'scoped memory for svio_vo_c_forward.1']
    #allocation21 [shape = 'u8[16384]{0}', space=vmem, size = 0x4000, scoped, tag = 'input window, operand 13, single buffered']
    #allocation22 [shape = 'u8[512]{0}', space=vmem, size = 0x400, scoped, tag = 'input window, operand 14, single buffered']
    #allocation23 [shape = 's32[1]{0}', space=sflag, size = 0x4, scoped, tag = 'scoped memory for svio_vo_c_forward.1']
    #allocation24 [shape = 'u8[16384]{0}', space=vmem, size = 0x4000, scoped, tag = 'input window, operand 15, single buffered']
    #allocation25 [shape = 'u8[512]{0}', space=vmem, size = 0x400, scoped, tag = 'input window, operand 16, single buffered']
    #allocation26 [shape = 's32[1]{0}', space=sflag, size = 0x4, scoped, tag = 'scoped memory for svio_vo_c_forward.1']
    #allocation27 [shape = 'u8[512]{0}', space=vmem, size = 0x400, scoped, tag = 'input window, operand 18, single buffered']
    %26 = vsyncpa [#allocation3], 0
    %27 = vsyncpa [#allocation5], 0
    %28 = vsyncpa [#allocation8], 0
    %29 = vsyncpa [#allocation11], 0
    %30 = vsyncpa [#allocation14], 0
    %31 = vsyncpa [#allocation17], 0
    %32 = vsyncpa [#allocation20], 0
    %33 = vsyncpa [#allocation23], 0
    %34 = vsyncpa [#allocation26], 0
    // Predicated region
    $region2: #{svio_vo_c_forward.1} parent=1 // pred_check
      _
    $region3: #{svio_vo_c_forward.1} parent=1 // pred_check_branch
      %36 = sbr.rel (0) target = $region5
    $region4: #{svio_vo_c_forward.1} parent=1 // pred_region
      _
    $region5: #{svio_vo_c_forward.1} parent=1 // pred_fallthru
      _
    // Predicated region
    $region6: #{svio_vo_c_forward.1} parent=1 // pred_check
      _
    $region7: #{svio_vo_c_forward.1} parent=1 // pred_check_branch
      %38 = sbr.rel (0) target = $region9
    $region8: #{svio_vo_c_forward.1} parent=1 // pred_region
      %s40 = ssub.s32 98304, 98304
      %41 = vsyncadd [#allocation3], %s40
      %s42 = sshll.u32 [#allocation2], 4
      %s43 = int_to_ptr.vmem [resolvable:$true] %s42
      %48 = dma.hbm_to_vmem [thread:$0]  %s1, 98304, %s43, [#allocation3], 512, 512, 32
    $region9: #{svio_vo_c_forward.1} parent=1 // pred_fallthru
      _
    // Predicated region
    $region10: #{svio_vo_c_forward.1} parent=1 // pred_check
      _
    $region11: #{svio_vo_c_forward.1} parent=1 // pred_check_branch
      %50 = sbr.rel (0) target = $region13
    $region12: #{svio_vo_c_forward.1} parent=1 // pred_region
      %s52 = ssub.s32 128, 128
      %53 = vsyncadd [#allocation5], %s52
      %s55 = sshll.u32 [#allocation4], 4
      %s56 = int_to_ptr.vmem [resolvable:$true] %s55
      %58 = dma.hbm_to_vmem [thread:$0]  %s2, 128, %s56, [#allocation5]
    $region13: #{svio_vo_c_forward.1} parent=1 // pred_fallthru
      _
    // Predicated region
    $region14: #{svio_vo_c_forward.1} parent=1 // pred_check
      _
    $region15: #{svio_vo_c_forward.1} parent=1 // pred_check_branch
      %60 = sbr.rel (0) target = $region17
    $region16: #{svio_vo_c_forward.1} parent=1 // pred_region
      %s62 = ssub.s32 32768, 32768
      %63 = vsyncadd [#allocation5], %s62
      %s64 = sshll.u32 [#allocation6], 4
      %s65 = int_to_ptr.vmem [resolvable:$true] %s64
      %70 = dma.hbm_to_vmem [thread:$0]  %s3, 32768, %s65, [#allocation5], 256, 256, 16
    $region17: #{svio_vo_c_forward.1} parent=1 // pred_fallthru
      _
    // Predicated region
    $region18: #{svio_vo_c_forward.1} parent=1 // pred_check
      _
    $region19: #{svio_vo_c_forward.1} parent=1 // pred_check_branch
      %72 = sbr.rel (0) target = $region21
    $region20: #{svio_vo_c_forward.1} parent=1 // pred_region
      %s74 = ssub.s32 64, 64
      %75 = vsyncadd [#allocation8], %s74
      %s77 = sshll.u32 [#allocation7], 4
      %s78 = int_to_ptr.vmem [resolvable:$true] %s77
      %80 = dma.hbm_to_vmem [thread:$0]  %s4, 64, %s78, [#allocation8]
    $region21: #{svio_vo_c_forward.1} parent=1 // pred_fallthru
      _
    // Predicated region
    $region22: #{svio_vo_c_forward.1} parent=1 // pred_check
      _
    $region23: #{svio_vo_c_forward.1} parent=1 // pred_check_branch
      %82 = sbr.rel (0) target = $region25
    $region24: #{svio_vo_c_forward.1} parent=1 // pred_region
      %s84 = ssub.s32 8192, 8192
      %85 = vsyncadd [#allocation8], %s84
      %s86 = sshll.u32 [#allocation9], 4
      %s87 = int_to_ptr.vmem [resolvable:$true] %s86
      %92 = dma.hbm_to_vmem [thread:$0]  %s5, 8192, %s87, [#allocation8], 128, 128, 8
    $region25: #{svio_vo_c_forward.1} parent=1 // pred_fallthru
      _
    // Predicated region
    $region26: #{svio_vo_c_forward.1} parent=1 // pred_check
      _
    $region27: #{svio_vo_c_forward.1} parent=1 // pred_check_branch
      %94 = sbr.rel (0) target = $region29
    $region28: #{svio_vo_c_forward.1} parent=1 // pred_region
      %s96 = ssub.s32 32, 32
      %97 = vsyncadd [#allocation11], %s96
      %s99 = sshll.u32 [#allocation10], 4
      %s100 = int_to_ptr.vmem [resolvable:$true] %s99
      %102 = dma.hbm_to_vmem [thread:$0]  %s6, 32, %s100, [#allocation11]
    $region29: #{svio_vo_c_forward.1} parent=1 // pred_fallthru
      _
    // Predicated region
    $region30: #{svio_vo_c_forward.1} parent=1 // pred_check
      _
    $region31: #{svio_vo_c_forward.1} parent=1 // pred_check_branch
      %104 = sbr.rel (0) target = $region33
    $region32: #{svio_vo_c_forward.1} parent=1 // pred_region
      %s106 = ssub.s32 2048, 2048
      %107 = vsyncadd [#allocation11], %s106
      %s108 = sshll.u32 [#allocation12], 4
      %s109 = int_to_ptr.vmem [resolvable:$true] %s108
      %114 = dma.hbm_to_vmem [thread:$0]  %s7, 2048, %s109, [#allocation11], 64, 64, 4
    $region33: #{svio_vo_c_forward.1} parent=1 // pred_fallthru
      _
    // Predicated region
    $region34: #{svio_vo_c_forward.1} parent=1 // pred_check
      _
    $region35: #{svio_vo_c_forward.1} parent=1 // pred_check_branch
      %116 = sbr.rel (0) target = $region37
    $region36: #{svio_vo_c_forward.1} parent=1 // pred_region
      %s118 = ssub.s32 16, 16
      %119 = vsyncadd [#allocation14], %s118
      %s121 = sshll.u32 [#allocation13], 4
      %s122 = int_to_ptr.vmem [resolvable:$true] %s121
      %124 = dma.hbm_to_vmem [thread:$0]  %s8, 16, %s122, [#allocation14]
    $region37: #{svio_vo_c_forward.1} parent=1 // pred_fallthru
      _
    // Predicated region
    $region38: #{svio_vo_c_forward.1} parent=1 // pred_check
      _
    $region39: #{svio_vo_c_forward.1} parent=1 // pred_check_branch
      %126 = sbr.rel (0) target = $region41
    $region40: #{svio_vo_c_forward.1} parent=1 // pred_region
      %s128 = ssub.s32 2048, 2048
      %129 = vsyncadd [#allocation14], %s128
      %s130 = sshll.u32 [#allocation15], 4
      %s131 = int_to_ptr.vmem [resolvable:$true] %s130
      %136 = dma.hbm_to_vmem [thread:$0]  %s9, 2048, %s131, [#allocation14], 128, 128, 8
    $region41: #{svio_vo_c_forward.1} parent=1 // pred_fallthru
      _
    // Predicated region
    $region42: #{svio_vo_c_forward.1} parent=1 // pred_check
      _
    $region43: #{svio_vo_c_forward.1} parent=1 // pred_check_branch
      %138 = sbr.rel (0) target = $region45
    $region44: #{svio_vo_c_forward.1} parent=1 // pred_region
      %s140 = ssub.s32 16, 16
      %141 = vsyncadd [#allocation17], %s140
      %s143 = sshll.u32 [#allocation16], 4
      %s144 = int_to_ptr.vmem [resolvable:$true] %s143
      %146 = dma.hbm_to_vmem [thread:$0]  %s10, 16, %s144, [#allocation17]
    $region45: #{svio_vo_c_forward.1} parent=1 // pred_fallthru
      _
    // Predicated region
    $region46: #{svio_vo_c_forward.1} parent=1 // pred_check
      _
    $region47: #{svio_vo_c_forward.1} parent=1 // pred_check_branch
      %148 = sbr.rel (0) target = $region49
    $region48: #{svio_vo_c_forward.1} parent=1 // pred_region
      %s150 = ssub.s32 512, 512
      %151 = vsyncadd [#allocation17], %s150
      %s152 = sshll.u32 [#allocation18], 4
      %s153 = int_to_ptr.vmem [resolvable:$true] %s152
      %158 = dma.hbm_to_vmem [thread:$0]  %s11, 512, %s153, [#allocation17], 128, 128, 8
    $region49: #{svio_vo_c_forward.1} parent=1 // pred_fallthru
      _
    // Predicated region
    $region50: #{svio_vo_c_forward.1} parent=1 // pred_check
      _
    $region51: #{svio_vo_c_forward.1} parent=1 // pred_check_branch
      %160 = sbr.rel (0) target = $region53
    $region52: #{svio_vo_c_forward.1} parent=1 // pred_region
      %s162 = ssub.s32 512, 512
      %163 = vsyncadd [#allocation20], %s162
      %s164 = sshll.u32 [#allocation19], 4
      %s165 = int_to_ptr.vmem [resolvable:$true] %s164
      %170 = dma.hbm_to_vmem [thread:$0]  %s12, 512, %s165, [#allocation20], 128, 128, 8
    $region53: #{svio_vo_c_forward.1} parent=1 // pred_fallthru
      _
    // Predicated region
    $region54: #{svio_vo_c_forward.1} parent=1 // pred_check
      _
    $region55: #{svio_vo_c_forward.1} parent=1 // pred_check_branch
      %172 = sbr.rel (0) target = $region57
    $region56: #{svio_vo_c_forward.1} parent=1 // pred_region
      %s174 = ssub.s32 512, 512
      %175 = vsyncadd [#allocation20], %s174
      %s176 = sshll.u32 [#allocation21], 4
      %s177 = int_to_ptr.vmem [resolvable:$true] %s176
      %182 = dma.hbm_to_vmem [thread:$0]  %s13, 512, %s177, [#allocation20], 128, 128, 8
    $region57: #{svio_vo_c_forward.1} parent=1 // pred_fallthru
      _
    // Predicated region
    $region58: #{svio_vo_c_forward.1} parent=1 // pred_check
      _
    $region59: #{svio_vo_c_forward.1} parent=1 // pred_check_branch
      %184 = sbr.rel (0) target = $region61
    $region60: #{svio_vo_c_forward.1} parent=1 // pred_region
      %s186 = ssub.s32 16, 16
      %187 = vsyncadd [#allocation23], %s186
      %s189 = sshll.u32 [#allocation22], 4
      %s190 = int_to_ptr.vmem [resolvable:$true] %s189
      %192 = dma.hbm_to_vmem [thread:$0]  %s14, 16, %s190, [#allocation23]
    $region61: #{svio_vo_c_forward.1} parent=1 // pred_fallthru
      _
    // Predicated region
    $region62: #{svio_vo_c_forward.1} parent=1 // pred_check
      _
    $region63: #{svio_vo_c_forward.1} parent=1 // pred_check_branch
      %194 = sbr.rel (0) target = $region65
    $region64: #{svio_vo_c_forward.1} parent=1 // pred_region
      %s196 = ssub.s32 512, 512
      %197 = vsyncadd [#allocation23], %s196
      %s198 = sshll.u32 [#allocation24], 4
      %s199 = int_to_ptr.vmem [resolvable:$true] %s198
      %204 = dma.hbm_to_vmem [thread:$0]  %s15, 512, %s199, [#allocation23], 128, 128, 8
    $region65: #{svio_vo_c_forward.1} parent=1 // pred_fallthru
      _
    // Predicated region
    $region66: #{svio_vo_c_forward.1} parent=1 // pred_check
      _
    $region67: #{svio_vo_c_forward.1} parent=1 // pred_check_branch
      %206 = sbr.rel (0) target = $region69
    $region68: #{svio_vo_c_forward.1} parent=1 // pred_region
      %s208 = ssub.s32 16, 16
      %209 = vsyncadd [#allocation26], %s208
      %s211 = sshll.u32 [#allocation25], 4
      %s212 = int_to_ptr.vmem [resolvable:$true] %s211
      %214 = dma.hbm_to_vmem [thread:$0]  %s16, 16, %s212, [#allocation26]
    $region69: #{svio_vo_c_forward.1} parent=1 // pred_fallthru
      _
    // Predicated region
    $region70: #{svio_vo_c_forward.1} parent=1 // pred_check
      _
    $region71: #{svio_vo_c_forward.1} parent=1 // pred_check_branch
      %216 = sbr.rel (0) target = $region73
    $region72: #{svio_vo_c_forward.1} parent=1 // pred_region
      _
    $region73: #{svio_vo_c_forward.1} parent=1 // pred_fallthru
      _
    // Predicated region
    $region74: #{svio_vo_c_forward.1} parent=1 // pred_check
      _
    $region75: #{svio_vo_c_forward.1} parent=1 // pred_check_branch
      %218 = sbr.rel (0) target = $region77
    $region76: #{svio_vo_c_forward.1} parent=1 // pred_region
      %s220 = ssub.s32 16, 16
      %221 = vsyncadd [#allocation26], %s220
      %s223 = sshll.u32 [#allocation27], 4
      %s224 = int_to_ptr.vmem [resolvable:$true] %s223
      %226 = dma.hbm_to_vmem [thread:$0]  %s18, 16, %s224, [#allocation26]
    $region77: #{svio_vo_c_forward.1} parent=1 // pred_fallthru
      _
    // Predicated region
    $region78: #{svio_vo_c_forward.1} parent=1 // pred_check
      _
    $region79: #{svio_vo_c_forward.1} parent=1 // pred_check_branch
      %228 = sbr.rel (0) target = $region81
    $region80: #{svio_vo_c_forward.1} parent=1 // pred_region
      _
    $region81: #{svio_vo_c_forward.1} parent=1 // pred_fallthru
      _
    // Predicated region
    $region82: #{svio_vo_c_forward.1} parent=1 // pred_check
      _
    $region83: #{svio_vo_c_forward.1} parent=1 // pred_check_branch
      %230 = sbr.rel (0) target = $region85
    $region84: #{svio_vo_c_forward.1} parent=1 // pred_region
      _
    $region85: #{svio_vo_c_forward.1} parent=1 // pred_fallthru
      _
    // Predicated region
    $region86: #{svio_vo_c_forward.1} parent=1 // pred_check
      _
    $region87: #{svio_vo_c_forward.1} parent=1 // pred_check_branch
      %232 = sbr.rel (0) target = $region89
    $region88: #{svio_vo_c_forward.1} parent=1 // pred_region
      %233 = dma.done [#allocation3], 98304
    $region89: #{svio_vo_c_forward.1} parent=1 // pred_fallthru
      _
    // Predicated region
    $region90: #{svio_vo_c_forward.1} parent=1 // pred_check
      _
    $region91: #{svio_vo_c_forward.1} parent=1 // pred_check_branch
      %235 = sbr.rel (0) target = $region93
    $region92: #{svio_vo_c_forward.1} parent=1 // pred_region
      %236 = dma.done [#allocation5], 128
    $region93: #{svio_vo_c_forward.1} parent=1 // pred_fallthru
      _
    // Predicated region
    $region94: #{svio_vo_c_forward.1} parent=1 // pred_check
      _
    $region95: #{svio_vo_c_forward.1} parent=1 // pred_check_branch
      %238 = sbr.rel (0) target = $region97
    $region96: #{svio_vo_c_forward.1} parent=1 // pred_region
      %239 = dma.done [#allocation5], 32768
    $region97: #{svio_vo_c_forward.1} parent=1 // pred_fallthru
      _
    // Predicated region
    $region98: #{svio_vo_c_forward.1} parent=1 // pred_check
      _
    $region99: #{svio_vo_c_forward.1} parent=1 // pred_check_branch
      %241 = sbr.rel (0) target = $region101
    $region100: #{svio_vo_c_forward.1} parent=1 // pred_region
      %242 = dma.done [#allocation8], 64
    $region101: #{svio_vo_c_forward.1} parent=1 // pred_fallthru
      _
    // Predicated region
    $region102: #{svio_vo_c_forward.1} parent=1 // pred_check
      _
    $region103: #{svio_vo_c_forward.1} parent=1 // pred_check_branch
      %244 = sbr.rel (0) target = $region105
    $region104: #{svio_vo_c_forward.1} parent=1 // pred_region
      %245 = dma.done [#allocation8], 8192
    $region105: #{svio_vo_c_forward.1} parent=1 // pred_fallthru
      _
    // Predicated region
    $region106: #{svio_vo_c_forward.1} parent=1 // pred_check
      _
    $region107: #{svio_vo_c_forward.1} parent=1 // pred_check_branch
      %247 = sbr.rel (0) target = $region109
    $region108: #{svio_vo_c_forward.1} parent=1 // pred_region
      %248 = dma.done [#allocation11], 32
    $region109: #{svio_vo_c_forward.1} parent=1 // pred_fallthru
      _
    // Predicated region
    $region110: #{svio_vo_c_forward.1} parent=1 // pred_check
      _
    $region111: #{svio_vo_c_forward.1} parent=1 // pred_check_branch
      %250 = sbr.rel (0) target = $region113
    $region112: #{svio_vo_c_forward.1} parent=1 // pred_region
      %251 = dma.done [#allocation11], 2048
    $region113: #{svio_vo_c_forward.1} parent=1 // pred_fallthru
      _
    // Predicated region
    $region114: #{svio_vo_c_forward.1} parent=1 // pred_check
      _
    $region115: #{svio_vo_c_forward.1} parent=1 // pred_check_branch
      %253 = sbr.rel (0) target = $region117
    $region116: #{svio_vo_c_forward.1} parent=1 // pred_region
      %254 = dma.done [#allocation14], 16
    $region117: #{svio_vo_c_forward.1} parent=1 // pred_fallthru
      _
    // Predicated region
    $region118: #{svio_vo_c_forward.1} parent=1 // pred_check
      _
    $region119: #{svio_vo_c_forward.1} parent=1 // pred_check_branch
      %256 = sbr.rel (0) target = $region121
    $region120: #{svio_vo_c_forward.1} parent=1 // pred_region
      %257 = dma.done [#allocation14], 2048
    $region121: #{svio_vo_c_forward.1} parent=1 // pred_fallthru
      _
    // Predicated region
    $region122: #{svio_vo_c_forward.1} parent=1 // pred_check
      _
    $region123: #{svio_vo_c_forward.1} parent=1 // pred_check_branch
      %259 = sbr.rel (0) target = $region125
    $region124: #{svio_vo_c_forward.1} parent=1 // pred_region
      %260 = dma.done [#allocation17], 16
    $region125: #{svio_vo_c_forward.1} parent=1 // pred_fallthru
      _
    // Predicated region
    $region126: #{svio_vo_c_forward.1} parent=1 // pred_check
      _
    $region127: #{svio_vo_c_forward.1} parent=1 // pred_check_branch
      %262 = sbr.rel (0) target = $region129
    $region128: #{svio_vo_c_forward.1} parent=1 // pred_region
      %263 = dma.done [#allocation17], 512
    $region129: #{svio_vo_c_forward.1} parent=1 // pred_fallthru
      _
    // Predicated region
    $region130: #{svio_vo_c_forward.1} parent=1 // pred_check
      _
    $region131: #{svio_vo_c_forward.1} parent=1 // pred_check_branch
      %265 = sbr.rel (0) target = $region133
    $region132: #{svio_vo_c_forward.1} parent=1 // pred_region
      %266 = dma.done [#allocation20], 512
    $region133: #{svio_vo_c_forward.1} parent=1 // pred_fallthru
      _
    // Predicated region
    $region134: #{svio_vo_c_forward.1} parent=1 // pred_check
      _
    $region135: #{svio_vo_c_forward.1} parent=1 // pred_check_branch
      %268 = sbr.rel (0) target = $region137
    $region136: #{svio_vo_c_forward.1} parent=1 // pred_region
      %269 = dma.done [#allocation20], 512
    $region137: #{svio_vo_c_forward.1} parent=1 // pred_fallthru
      _
    // Predicated region
    $region138: #{svio_vo_c_forward.1} parent=1 // pred_check
      _
    $region139: #{svio_vo_c_forward.1} parent=1 // pred_check_branch
      %271 = sbr.rel (0) target = $region141
    $region140: #{svio_vo_c_forward.1} parent=1 // pred_region
      %272 = dma.done [#allocation23], 16
    $region141: #{svio_vo_c_forward.1} parent=1 // pred_fallthru
      _
    // Predicated region
    $region142: #{svio_vo_c_forward.1} parent=1 // pred_check
      _
    $region143: #{svio_vo_c_forward.1} parent=1 // pred_check_branch
      %274 = sbr.rel (0) target = $region145
    $region144: #{svio_vo_c_forward.1} parent=1 // pred_region
      %275 = dma.done [#allocation23], 512
    $region145: #{svio_vo_c_forward.1} parent=1 // pred_fallthru
      _
    // Predicated region
    $region146: #{svio_vo_c_forward.1} parent=1 // pred_check
      _
    $region147: #{svio_vo_c_forward.1} parent=1 // pred_check_branch
      %277 = sbr.rel (0) target = $region149
    $region148: #{svio_vo_c_forward.1} parent=1 // pred_region
      %278 = dma.done [#allocation26], 16
    $region149: #{svio_vo_c_forward.1} parent=1 // pred_fallthru
      _
    // Predicated region
    $region150: #{svio_vo_c_forward.1} parent=1 // pred_check
      _
    $region151: #{svio_vo_c_forward.1} parent=1 // pred_check_branch
      %280 = sbr.rel (0) target = $region153
    $region152: #{svio_vo_c_forward.1} parent=1 // pred_region
      %281 = dma.done [#allocation26], 16
    $region153: #{svio_vo_c_forward.1} parent=1 // pred_fallthru
      _
    %v283 = vld [vmem:[%s0] sm:$0xff]
    %v284 = vld [vmem:[%s0 + $0x8] sm:$0xff]
    %v285 = vld [vmem:[%s0 + $0x10] sm:$0xff]
    %v286 = vld [vmem:[#allocation2] sm:$0xff]
    %v287 = vld [vmem:[#allocation2 + $0x8] sm:$0xff]
    %v288 = vld [vmem:[#allocation2 + $0x10] sm:$0xff]
    %v289 = vld [vmem:[#allocation2 + $0x18] sm:$0xff]
    %v290 = vld [vmem:[#allocation2 + $0x20] sm:$0xff]
    %v291 = vld [vmem:[#allocation2 + $0x28] sm:$0xff]
    %v292 = vld [vmem:[#allocation2 + $0x30] sm:$0xff]
    %v293 = vld [vmem:[#allocation2 + $0x38] sm:$0xff]
    %v294 = vld [vmem:[#allocation2 + $0x40] sm:$0xff]
    %v295 = vld [vmem:[#allocation2 + $0x48] sm:$0xff]
    %v296 = vld [vmem:[#allocation2 + $0x50] sm:$0xff]
    %v297 = vld [vmem:[#allocation2 + $0x58] sm:$0xff]
    %v298 = vld [vmem:[#allocation2 + $0x60] sm:$0xff]
    %v299 = vld [vmem:[#allocation2 + $0x68] sm:$0xff]
    %v300 = vld [vmem:[#allocation2 + $0x70] sm:$0xff]
    %v301 = vld [vmem:[#allocation2 + $0x78] sm:$0xff]
    %v302 = vld [vmem:[#allocation2 + $0x80] sm:$0xff]
    %v303 = vld [vmem:[#allocation2 + $0x88] sm:$0xff]
    %v304 = vld [vmem:[#allocation2 + $0x90] sm:$0xff]
    %v305 = vld [vmem:[#allocation2 + $0x98] sm:$0xff]
    %v306 = vld [vmem:[#allocation2 + $0xa0] sm:$0xff]
    %v307 = vld [vmem:[#allocation2 + $0xa8] sm:$0xff]
    %v308 = vld [vmem:[#allocation2 + $0xb0] sm:$0xff]
    %v309 = vld [vmem:[#allocation2 + $0xb8] sm:$0xff]
    %v310 = vld [vmem:[#allocation2 + $0xc0] sm:$0xff]
    %v311 = vld [vmem:[#allocation2 + $0xc8] sm:$0xff]
    %v312 = vld [vmem:[#allocation2 + $0xd0] sm:$0xff]
    %v313 = vld [vmem:[#allocation2 + $0xd8] sm:$0xff]
    %v314 = vld [vmem:[#allocation2 + $0xe0] sm:$0xff]
    %v315 = vld [vmem:[#allocation2 + $0xe8] sm:$0xff]
    %v316 = vld [vmem:[#allocation2 + $0xf0] sm:$0xff]
    %v317 = vld [vmem:[#allocation2 + $0xf8] sm:$0xff]
    %v318 = vld [vmem:[#allocation2 + $0x100] sm:$0xff]
    %v319 = vld [vmem:[#allocation2 + $0x108] sm:$0xff]
    %v320 = vld [vmem:[#allocation2 + $0x110] sm:$0xff]
    %v321 = vld [vmem:[#allocation2 + $0x118] sm:$0xff]
    %v322 = vld [vmem:[#allocation2 + $0x120] sm:$0xff]
    %v323 = vld [vmem:[#allocation2 + $0x128] sm:$0xff]
    %v324 = vld [vmem:[#allocation2 + $0x130] sm:$0xff]
    %v325 = vld [vmem:[#allocation2 + $0x138] sm:$0xff]
    %v326 = vld [vmem:[#allocation2 + $0x140] sm:$0xff]
    %v327 = vld [vmem:[#allocation2 + $0x148] sm:$0xff]
    %v328 = vld [vmem:[#allocation2 + $0x150] sm:$0xff]
    %v329 = vld [vmem:[#allocation2 + $0x158] sm:$0xff]
    %v330 = vld [vmem:[#allocation2 + $0x160] sm:$0xff]
    %v331 = vld [vmem:[#allocation2 + $0x168] sm:$0xff]
    %v332 = vld [vmem:[#allocation2 + $0x170] sm:$0xff]
    %v333 = vld [vmem:[#allocation2 + $0x178] sm:$0xff]
    %v334 = vld [vmem:[#allocation2 + $0x180] sm:$0xff]
    %v335 = vld [vmem:[#allocation2 + $0x188] sm:$0xff]
    %v336 = vld [vmem:[#allocation2 + $0x190] sm:$0xff]
    %v337 = vld [vmem:[#allocation2 + $0x198] sm:$0xff]
    %v338 = vld [vmem:[#allocation2 + $0x1a0] sm:$0xff]
    %v339 = vld [vmem:[#allocation2 + $0x1a8] sm:$0xff]
    %v340 = vld [vmem:[#allocation2 + $0x1b0] sm:$0xff]
    %v341 = vld [vmem:[#allocation2 + $0x1b8] sm:$0xff]
    %v342 = vld [vmem:[#allocation2 + $0x1c0] sm:$0xff]
    %v343 = vld [vmem:[#allocation2 + $0x1c8] sm:$0xff]
    %v344 = vld [vmem:[#allocation2 + $0x1d0] sm:$0xff]
    %v345 = vld [vmem:[#allocation2 + $0x1d8] sm:$0xff]
    %v346 = vld [vmem:[#allocation2 + $0x1e0] sm:$0xff]
    %v347 = vld [vmem:[#allocation2 + $0x1e8] sm:$0xff]
    %v348 = vld [vmem:[#allocation2 + $0x1f0] sm:$0xff]
    %v349 = vld [vmem:[#allocation2 + $0x1f8] sm:$0xff]
    %v350 = vld [vmem:[#allocation2 + $0x200] sm:$0xff]
    %v351 = vld [vmem:[#allocation2 + $0x208] sm:$0xff]
    %v352 = vld [vmem:[#allocation2 + $0x210] sm:$0xff]
    %v353 = vld [vmem:[#allocation2 + $0x218] sm:$0xff]
    %v354 = vld [vmem:[#allocation2 + $0x220] sm:$0xff]
    %v355 = vld [vmem:[#allocation2 + $0x228] sm:$0xff]
    %v356 = vld [vmem:[#allocation2 + $0x230] sm:$0xff]
    %v357 = vld [vmem:[#allocation2 + $0x238] sm:$0xff]
    %v358 = vld [vmem:[#allocation2 + $0x240] sm:$0xff]
    %v359 = vld [vmem:[#allocation2 + $0x248] sm:$0xff]
    %v360 = vld [vmem:[#allocation2 + $0x250] sm:$0xff]
    %v361 = vld [vmem:[#allocation2 + $0x258] sm:$0xff]
    %v362 = vld [vmem:[#allocation2 + $0x260] sm:$0xff]
    %v363 = vld [vmem:[#allocation2 + $0x268] sm:$0xff]
    %v364 = vld [vmem:[#allocation2 + $0x270] sm:$0xff]
    %v365 = vld [vmem:[#allocation2 + $0x278] sm:$0xff]
    %v366 = vld [vmem:[#allocation2 + $0x280] sm:$0xff]
    %v367 = vld [vmem:[#allocation2 + $0x288] sm:$0xff]
    %v368 = vld [vmem:[#allocation2 + $0x290] sm:$0xff]
    %v369 = vld [vmem:[#allocation2 + $0x298] sm:$0xff]
    %v370 = vld [vmem:[#allocation2 + $0x2a0] sm:$0xff]
    %v371 = vld [vmem:[#allocation2 + $0x2a8] sm:$0xff]
    %v372 = vld [vmem:[#allocation2 + $0x2b0] sm:$0xff]
    %v373 = vld [vmem:[#allocation2 + $0x2b8] sm:$0xff]
    %v374 = vld [vmem:[#allocation2 + $0x2c0] sm:$0xff]
    %v375 = vld [vmem:[#allocation2 + $0x2c8] sm:$0xff]
    %v376 = vld [vmem:[#allocation2 + $0x2d0] sm:$0xff]
    %v377 = vld [vmem:[#allocation2 + $0x2d8] sm:$0xff]
    %v378 = vld [vmem:[#allocation2 + $0x2e0] sm:$0xff]
    %v379 = vld [vmem:[#allocation2 + $0x2e8] sm:$0xff]
    %v380 = vld [vmem:[#allocation2 + $0x2f0] sm:$0xff]
    %v381 = vld [vmem:[#allocation2 + $0x2f8] sm:$0xff]
    %v382 = vld [vmem:[#allocation2 + $0x300] sm:$0xff]
    %v383 = vld [vmem:[#allocation2 + $0x308] sm:$0xff]
    %v384 = vld [vmem:[#allocation2 + $0x310] sm:$0xff]
    %v385 = vld [vmem:[#allocation2 + $0x318] sm:$0xff]
    %v386 = vld [vmem:[#allocation2 + $0x320] sm:$0xff]
    %v387 = vld [vmem:[#allocation2 + $0x328] sm:$0xff]
    %v388 = vld [vmem:[#allocation2 + $0x330] sm:$0xff]
    %v389 = vld [vmem:[#allocation2 + $0x338] sm:$0xff]
    %v390 = vld [vmem:[#allocation2 + $0x340] sm:$0xff]
    %v391 = vld [vmem:[#allocation2 + $0x348] sm:$0xff]
    %v392 = vld [vmem:[#allocation2 + $0x350] sm:$0xff]
    %v393 = vld [vmem:[#allocation2 + $0x358] sm:$0xff]
    %v394 = vld [vmem:[#allocation2 + $0x360] sm:$0xff]
    %v395 = vld [vmem:[#allocation2 + $0x368] sm:$0xff]
    %v396 = vld [vmem:[#allocation2 + $0x370] sm:$0xff]
    %v397 = vld [vmem:[#allocation2 + $0x378] sm:$0xff]
    %v398 = vld [vmem:[#allocation2 + $0x380] sm:$0xff]
    %v399 = vld [vmem:[#allocation2 + $0x388] sm:$0xff]
    %v400 = vld [vmem:[#allocation2 + $0x390] sm:$0xff]
    %v401 = vld [vmem:[#allocation2 + $0x398] sm:$0xff]
    %v402 = vld [vmem:[#allocation2 + $0x3a0] sm:$0xff]
    %v403 = vld [vmem:[#allocation2 + $0x3a8] sm:$0xff]
    %v404 = vld [vmem:[#allocation2 + $0x3b0] sm:$0xff]
    %v405 = vld [vmem:[#allocation2 + $0x3b8] sm:$0xff]
    %v406 = vld [vmem:[#allocation2 + $0x3c0] sm:$0xff]
    %v407 = vld [vmem:[#allocation2 + $0x3c8] sm:$0xff]
    %v408 = vld [vmem:[#allocation2 + $0x3d0] sm:$0xff]
    %v409 = vld [vmem:[#allocation2 + $0x3d8] sm:$0xff]
    %v410 = vld [vmem:[#allocation2 + $0x3e0] sm:$0xff]
    %v411 = vld [vmem:[#allocation2 + $0x3e8] sm:$0xff]
    %v412 = vld [vmem:[#allocation2 + $0x3f0] sm:$0xff]
    %v413 = vld [vmem:[#allocation2 + $0x3f8] sm:$0xff]
    %v414 = vld [vmem:[#allocation2 + $0x400] sm:$0xff]
    %v415 = vld [vmem:[#allocation2 + $0x408] sm:$0xff]
    %v416 = vld [vmem:[#allocation2 + $0x410] sm:$0xff]
    %v417 = vld [vmem:[#allocation2 + $0x418] sm:$0xff]
    %v418 = vld [vmem:[#allocation2 + $0x420] sm:$0xff]
    %v419 = vld [vmem:[#allocation2 + $0x428] sm:$0xff]
    %v420 = vld [vmem:[#allocation2 + $0x430] sm:$0xff]
    %v421 = vld [vmem:[#allocation2 + $0x438] sm:$0xff]
    %v422 = vld [vmem:[#allocation2 + $0x440] sm:$0xff]
    %v423 = vld [vmem:[#allocation2 + $0x448] sm:$0xff]
    %v424 = vld [vmem:[#allocation2 + $0x450] sm:$0xff]
    %v425 = vld [vmem:[#allocation2 + $0x458] sm:$0xff]
    %v426 = vld [vmem:[#allocation2 + $0x460] sm:$0xff]
    %v427 = vld [vmem:[#allocation2 + $0x468] sm:$0xff]
    %v428 = vld [vmem:[#allocation2 + $0x470] sm:$0xff]
    %v429 = vld [vmem:[#allocation2 + $0x478] sm:$0xff]
    %v430 = vld [vmem:[#allocation2 + $0x480] sm:$0xff]
    %v431 = vld [vmem:[#allocation2 + $0x488] sm:$0xff]
    %v432 = vld [vmem:[#allocation2 + $0x490] sm:$0xff]
    %v433 = vld [vmem:[#allocation2 + $0x498] sm:$0xff]
    %v434 = vld [vmem:[#allocation2 + $0x4a0] sm:$0xff]
    %v435 = vld [vmem:[#allocation2 + $0x4a8] sm:$0xff]
    %v436 = vld [vmem:[#allocation2 + $0x4b0] sm:$0xff]
    %v437 = vld [vmem:[#allocation2 + $0x4b8] sm:$0xff]
    %v438 = vld [vmem:[#allocation2 + $0x4c0] sm:$0xff]
    %v439 = vld [vmem:[#allocation2 + $0x4c8] sm:$0xff]
    %v440 = vld [vmem:[#allocation2 + $0x4d0] sm:$0xff]
    %v441 = vld [vmem:[#allocation2 + $0x4d8] sm:$0xff]
    %v442 = vld [vmem:[#allocation2 + $0x4e0] sm:$0xff]
    %v443 = vld [vmem:[#allocation2 + $0x4e8] sm:$0xff]
    %v444 = vld [vmem:[#allocation2 + $0x4f0] sm:$0xff]
    %v445 = vld [vmem:[#allocation2 + $0x4f8] sm:$0xff]
    %v446 = vld [vmem:[#allocation2 + $0x500] sm:$0xff]
    %v447 = vld [vmem:[#allocation2 + $0x508] sm:$0xff]
    %v448 = vld [vmem:[#allocation2 + $0x510] sm:$0xff]
    %v449 = vld [vmem:[#allocation2 + $0x518] sm:$0xff]
    %v450 = vld [vmem:[#allocation2 + $0x520] sm:$0xff]
    %v451 = vld [vmem:[#allocation2 + $0x528] sm:$0xff]
    %v452 = vld [vmem:[#allocation2 + $0x530] sm:$0xff]
    %v453 = vld [vmem:[#allocation2 + $0x538] sm:$0xff]
    %v454 = vld [vmem:[#allocation2 + $0x540] sm:$0xff]
    %v455 = vld [vmem:[#allocation2 + $0x548] sm:$0xff]
    %v456 = vld [vmem:[#allocation2 + $0x550] sm:$0xff]
    %v457 = vld [vmem:[#allocation2 + $0x558] sm:$0xff]
    %v458 = vld [vmem:[#allocation2 + $0x560] sm:$0xff]
    %v459 = vld [vmem:[#allocation2 + $0x568] sm:$0xff]
    %v460 = vld [vmem:[#allocation2 + $0x570] sm:$0xff]
    %v461 = vld [vmem:[#allocation2 + $0x578] sm:$0xff]
    %v462 = vld [vmem:[#allocation2 + $0x580] sm:$0xff]
    %v463 = vld [vmem:[#allocation2 + $0x588] sm:$0xff]
    %v464 = vld [vmem:[#allocation2 + $0x590] sm:$0xff]
    %v465 = vld [vmem:[#allocation2 + $0x598] sm:$0xff]
    %v466 = vld [vmem:[#allocation2 + $0x5a0] sm:$0xff]
    %v467 = vld [vmem:[#allocation2 + $0x5a8] sm:$0xff]
    %v468 = vld [vmem:[#allocation2 + $0x5b0] sm:$0xff]
    %v469 = vld [vmem:[#allocation2 + $0x5b8] sm:$0xff]
    %v470 = vld [vmem:[#allocation2 + $0x5c0] sm:$0xff]
    %v471 = vld [vmem:[#allocation2 + $0x5c8] sm:$0xff]
    %v472 = vld [vmem:[#allocation2 + $0x5d0] sm:$0xff]
    %v473 = vld [vmem:[#allocation2 + $0x5d8] sm:$0xff]
    %v474 = vld [vmem:[#allocation2 + $0x5e0] sm:$0xff]
    %v475 = vld [vmem:[#allocation2 + $0x5e8] sm:$0xff]
    %v476 = vld [vmem:[#allocation2 + $0x5f0] sm:$0xff]
    %v477 = vld [vmem:[#allocation2 + $0x5f8] sm:$0xff]
    %v478 = vld [vmem:[#allocation2 + $0x600] sm:$0xff]
    %v479 = vld [vmem:[#allocation2 + $0x608] sm:$0xff]
    %v480 = vld [vmem:[#allocation2 + $0x610] sm:$0xff]
    %v481 = vld [vmem:[#allocation2 + $0x618] sm:$0xff]
    %v482 = vld [vmem:[#allocation2 + $0x620] sm:$0xff]
    %v483 = vld [vmem:[#allocation2 + $0x628] sm:$0xff]
    %v484 = vld [vmem:[#allocation2 + $0x630] sm:$0xff]
    %v485 = vld [vmem:[#allocation2 + $0x638] sm:$0xff]
    %v486 = vld [vmem:[#allocation2 + $0x640] sm:$0xff]
    %v487 = vld [vmem:[#allocation2 + $0x648] sm:$0xff]
    %v488 = vld [vmem:[#allocation2 + $0x650] sm:$0xff]
    %v489 = vld [vmem:[#allocation2 + $0x658] sm:$0xff]
    %v490 = vld [vmem:[#allocation2 + $0x660] sm:$0xff]
    %v491 = vld [vmem:[#allocation2 + $0x668] sm:$0xff]
    %v492 = vld [vmem:[#allocation2 + $0x670] sm:$0xff]
    %v493 = vld [vmem:[#allocation2 + $0x678] sm:$0xff]
    %v494 = vld [vmem:[#allocation2 + $0x680] sm:$0xff]
    %v495 = vld [vmem:[#allocation2 + $0x688] sm:$0xff]
    %v496 = vld [vmem:[#allocation2 + $0x690] sm:$0xff]
    %v497 = vld [vmem:[#allocation2 + $0x698] sm:$0xff]
    %v498 = vld [vmem:[#allocation2 + $0x6a0] sm:$0xff]
    %v499 = vld [vmem:[#allocation2 + $0x6a8] sm:$0xff]
    %v500 = vld [vmem:[#allocation2 + $0x6b0] sm:$0xff]
    %v501 = vld [vmem:[#allocation2 + $0x6b8] sm:$0xff]
    %v502 = vld [vmem:[#allocation2 + $0x6c0] sm:$0xff]
    %v503 = vld [vmem:[#allocation2 + $0x6c8] sm:$0xff]
    %v504 = vld [vmem:[#allocation2 + $0x6d0] sm:$0xff]
    %v505 = vld [vmem:[#allocation2 + $0x6d8] sm:$0xff]
    %v506 = vld [vmem:[#allocation2 + $0x6e0] sm:$0xff]
    %v507 = vld [vmem:[#allocation2 + $0x6e8] sm:$0xff]
    %v508 = vld [vmem:[#allocation2 + $0x6f0] sm:$0xff]
    %v509 = vld [vmem:[#allocation2 + $0x6f8] sm:$0xff]
    %v510 = vld [vmem:[#allocation2 + $0x700] sm:$0xff]
    %v511 = vld [vmem:[#allocation2 + $0x708] sm:$0xff]
    %v512 = vld [vmem:[#allocation2 + $0x710] sm:$0xff]
    %v513 = vld [vmem:[#allocation2 + $0x718] sm:$0xff]
    %v514 = vld [vmem:[#allocation2 + $0x720] sm:$0xff]
    %v515 = vld [vmem:[#allocation2 + $0x728] sm:$0xff]
    %v516 = vld [vmem:[#allocation2 + $0x730] sm:$0xff]
    %v517 = vld [vmem:[#allocation2 + $0x738] sm:$0xff]
    %v518 = vld [vmem:[#allocation2 + $0x740] sm:$0xff]
    %v519 = vld [vmem:[#allocation2 + $0x748] sm:$0xff]
    %v520 = vld [vmem:[#allocation2 + $0x750] sm:$0xff]
    %v521 = vld [vmem:[#allocation2 + $0x758] sm:$0xff]
    %v522 = vld [vmem:[#allocation2 + $0x760] sm:$0xff]
    %v523 = vld [vmem:[#allocation2 + $0x768] sm:$0xff]
    %v524 = vld [vmem:[#allocation2 + $0x770] sm:$0xff]
    %v525 = vld [vmem:[#allocation2 + $0x778] sm:$0xff]
    %v526 = vld [vmem:[#allocation2 + $0x780] sm:$0xff]
    %v527 = vld [vmem:[#allocation2 + $0x788] sm:$0xff]
    %v528 = vld [vmem:[#allocation2 + $0x790] sm:$0xff]
    %v529 = vld [vmem:[#allocation2 + $0x798] sm:$0xff]
    %v530 = vld [vmem:[#allocation2 + $0x7a0] sm:$0xff]
    %v531 = vld [vmem:[#allocation2 + $0x7a8] sm:$0xff]
    %v532 = vld [vmem:[#allocation2 + $0x7b0] sm:$0xff]
    %v533 = vld [vmem:[#allocation2 + $0x7b8] sm:$0xff]
    %v534 = vld [vmem:[#allocation2 + $0x7c0] sm:$0xff]
    %v535 = vld [vmem:[#allocation2 + $0x7c8] sm:$0xff]
    %v536 = vld [vmem:[#allocation2 + $0x7d0] sm:$0xff]
    %v537 = vld [vmem:[#allocation2 + $0x7d8] sm:$0xff]
    %v538 = vld [vmem:[#allocation2 + $0x7e0] sm:$0xff]
    %v539 = vld [vmem:[#allocation2 + $0x7e8] sm:$0xff]
    %v540 = vld [vmem:[#allocation2 + $0x7f0] sm:$0xff]
    %v541 = vld [vmem:[#allocation2 + $0x7f8] sm:$0xff]
    %v542 = vld [vmem:[#allocation2 + $0x800] sm:$0xff]
    %v543 = vld [vmem:[#allocation2 + $0x808] sm:$0xff]
    %v544 = vld [vmem:[#allocation2 + $0x810] sm:$0xff]
    %v545 = vld [vmem:[#allocation2 + $0x818] sm:$0xff]
    %v546 = vld [vmem:[#allocation2 + $0x820] sm:$0xff]
    %v547 = vld [vmem:[#allocation2 + $0x828] sm:$0xff]
    %v548 = vld [vmem:[#allocation2 + $0x830] sm:$0xff]
    %v549 = vld [vmem:[#allocation2 + $0x838] sm:$0xff]
    %v550 = vld [vmem:[#allocation2 + $0x840] sm:$0xff]
    %v551 = vld [vmem:[#allocation2 + $0x848] sm:$0xff]
    %v552 = vld [vmem:[#allocation2 + $0x850] sm:$0xff]
    %v553 = vld [vmem:[#allocation2 + $0x858] sm:$0xff]
    %v554 = vld [vmem:[#allocation2 + $0x860] sm:$0xff]
    %v555 = vld [vmem:[#allocation2 + $0x868] sm:$0xff]
    %v556 = vld [vmem:[#allocation2 + $0x870] sm:$0xff]
    %v557 = vld [vmem:[#allocation2 + $0x878] sm:$0xff]
    %v558 = vld [vmem:[#allocation2 + $0x880] sm:$0xff]
    %v559 = vld [vmem:[#allocation2 + $0x888] sm:$0xff]
    %v560 = vld [vmem:[#allocation2 + $0x890] sm:$0xff]
    %v561 = vld [vmem:[#allocation2 + $0x898] sm:$0xff]
    %v562 = vld [vmem:[#allocation2 + $0x8a0] sm:$0xff]
    %v563 = vld [vmem:[#allocation2 + $0x8a8] sm:$0xff]
    %v564 = vld [vmem:[#allocation2 + $0x8b0] sm:$0xff]
    %v565 = vld [vmem:[#allocation2 + $0x8b8] sm:$0xff]
    %v566 = vld [vmem:[#allocation2 + $0x8c0] sm:$0xff]
    %v567 = vld [vmem:[#allocation2 + $0x8c8] sm:$0xff]
    %v568 = vld [vmem:[#allocation2 + $0x8d0] sm:$0xff]
    %v569 = vld [vmem:[#allocation2 + $0x8d8] sm:$0xff]
    %v570 = vld [vmem:[#allocation2 + $0x8e0] sm:$0xff]
    %v571 = vld [vmem:[#allocation2 + $0x8e8] sm:$0xff]
    %v572 = vld [vmem:[#allocation2 + $0x8f0] sm:$0xff]
    %v573 = vld [vmem:[#allocation2 + $0x8f8] sm:$0xff]
    %v574 = vld [vmem:[#allocation2 + $0x900] sm:$0xff]
    %v575 = vld [vmem:[#allocation2 + $0x908] sm:$0xff]
    %v576 = vld [vmem:[#allocation2 + $0x910] sm:$0xff]
    %v577 = vld [vmem:[#allocation2 + $0x918] sm:$0xff]
    %v578 = vld [vmem:[#allocation2 + $0x920] sm:$0xff]
    %v579 = vld [vmem:[#allocation2 + $0x928] sm:$0xff]
    %v580 = vld [vmem:[#allocation2 + $0x930] sm:$0xff]
    %v581 = vld [vmem:[#allocation2 + $0x938] sm:$0xff]
    %v582 = vld [vmem:[#allocation2 + $0x940] sm:$0xff]
    %v583 = vld [vmem:[#allocation2 + $0x948] sm:$0xff]
    %v584 = vld [vmem:[#allocation2 + $0x950] sm:$0xff]
    %v585 = vld [vmem:[#allocation2 + $0x958] sm:$0xff]
    %v586 = vld [vmem:[#allocation2 + $0x960] sm:$0xff]
    %v587 = vld [vmem:[#allocation2 + $0x968] sm:$0xff]
    %v588 = vld [vmem:[#allocation2 + $0x970] sm:$0xff]
    %v589 = vld [vmem:[#allocation2 + $0x978] sm:$0xff]
    %v590 = vld [vmem:[#allocation2 + $0x980] sm:$0xff]
    %v591 = vld [vmem:[#allocation2 + $0x988] sm:$0xff]
    %v592 = vld [vmem:[#allocation2 + $0x990] sm:$0xff]
    %v593 = vld [vmem:[#allocation2 + $0x998] sm:$0xff]
    %v594 = vld [vmem:[#allocation2 + $0x9a0] sm:$0xff]
    %v595 = vld [vmem:[#allocation2 + $0x9a8] sm:$0xff]
    %v596 = vld [vmem:[#allocation2 + $0x9b0] sm:$0xff]
    %v597 = vld [vmem:[#allocation2 + $0x9b8] sm:$0xff]
    %v598 = vld [vmem:[#allocation2 + $0x9c0] sm:$0xff]
    %v599 = vld [vmem:[#allocation2 + $0x9c8] sm:$0xff]
    %v600 = vld [vmem:[#allocation2 + $0x9d0] sm:$0xff]
    %v601 = vld [vmem:[#allocation2 + $0x9d8] sm:$0xff]
    %v602 = vld [vmem:[#allocation2 + $0x9e0] sm:$0xff]
    %v603 = vld [vmem:[#allocation2 + $0x9e8] sm:$0xff]
    %v604 = vld [vmem:[#allocation2 + $0x9f0] sm:$0xff]
    %v605 = vld [vmem:[#allocation2 + $0x9f8] sm:$0xff]
    %v606 = vld [vmem:[#allocation2 + $0xa00] sm:$0xff]
    %v607 = vld [vmem:[#allocation2 + $0xa08] sm:$0xff]
    %v608 = vld [vmem:[#allocation2 + $0xa10] sm:$0xff]
    %v609 = vld [vmem:[#allocation2 + $0xa18] sm:$0xff]
    %v610 = vld [vmem:[#allocation2 + $0xa20] sm:$0xff]
    %v611 = vld [vmem:[#allocation2 + $0xa28] sm:$0xff]
    %v612 = vld [vmem:[#allocation2 + $0xa30] sm:$0xff]
    %v613 = vld [vmem:[#allocation2 + $0xa38] sm:$0xff]
    %v614 = vld [vmem:[#allocation2 + $0xa40] sm:$0xff]
    %v615 = vld [vmem:[#allocation2 + $0xa48] sm:$0xff]
    %v616 = vld [vmem:[#allocation2 + $0xa50] sm:$0xff]
    %v617 = vld [vmem:[#allocation2 + $0xa58] sm:$0xff]
    %v618 = vld [vmem:[#allocation2 + $0xa60] sm:$0xff]
    %v619 = vld [vmem:[#allocation2 + $0xa68] sm:$0xff]
    %v620 = vld [vmem:[#allocation2 + $0xa70] sm:$0xff]
    %v621 = vld [vmem:[#allocation2 + $0xa78] sm:$0xff]
    %v622 = vld [vmem:[#allocation2 + $0xa80] sm:$0xff]
    %v623 = vld [vmem:[#allocation2 + $0xa88] sm:$0xff]
    %v624 = vld [vmem:[#allocation2 + $0xa90] sm:$0xff]
    %v625 = vld [vmem:[#allocation2 + $0xa98] sm:$0xff]
    %v626 = vld [vmem:[#allocation2 + $0xaa0] sm:$0xff]
    %v627 = vld [vmem:[#allocation2 + $0xaa8] sm:$0xff]
    %v628 = vld [vmem:[#allocation2 + $0xab0] sm:$0xff]
    %v629 = vld [vmem:[#allocation2 + $0xab8] sm:$0xff]
    %v630 = vld [vmem:[#allocation2 + $0xac0] sm:$0xff]
    %v631 = vld [vmem:[#allocation2 + $0xac8] sm:$0xff]
    %v632 = vld [vmem:[#allocation2 + $0xad0] sm:$0xff]
    %v633 = vld [vmem:[#allocation2 + $0xad8] sm:$0xff]
    %v634 = vld [vmem:[#allocation2 + $0xae0] sm:$0xff]
    %v635 = vld [vmem:[#allocation2 + $0xae8] sm:$0xff]
    %v636 = vld [vmem:[#allocation2 + $0xaf0] sm:$0xff]
    %v637 = vld [vmem:[#allocation2 + $0xaf8] sm:$0xff]
    %v638 = vld [vmem:[#allocation2 + $0xb00] sm:$0xff]
    %v639 = vld [vmem:[#allocation2 + $0xb08] sm:$0xff]
    %v640 = vld [vmem:[#allocation2 + $0xb10] sm:$0xff]
    %v641 = vld [vmem:[#allocation2 + $0xb18] sm:$0xff]
    %v642 = vld [vmem:[#allocation2 + $0xb20] sm:$0xff]
    %v643 = vld [vmem:[#allocation2 + $0xb28] sm:$0xff]
    %v644 = vld [vmem:[#allocation2 + $0xb30] sm:$0xff]
    %v645 = vld [vmem:[#allocation2 + $0xb38] sm:$0xff]
    %v646 = vld [vmem:[#allocation2 + $0xb40] sm:$0xff]
    %v647 = vld [vmem:[#allocation2 + $0xb48] sm:$0xff]
    %v648 = vld [vmem:[#allocation2 + $0xb50] sm:$0xff]
    %v649 = vld [vmem:[#allocation2 + $0xb58] sm:$0xff]
    %v650 = vld [vmem:[#allocation2 + $0xb60] sm:$0xff]
    %v651 = vld [vmem:[#allocation2 + $0xb68] sm:$0xff]
    %v652 = vld [vmem:[#allocation2 + $0xb70] sm:$0xff]
    %v653 = vld [vmem:[#allocation2 + $0xb78] sm:$0xff]
    %v654 = vld [vmem:[#allocation2 + $0xb80] sm:$0xff]
    %v655 = vld [vmem:[#allocation2 + $0xb88] sm:$0xff]
    %v656 = vld [vmem:[#allocation2 + $0xb90] sm:$0xff]
    %v657 = vld [vmem:[#allocation2 + $0xb98] sm:$0xff]
    %v658 = vld [vmem:[#allocation2 + $0xba0] sm:$0xff]
    %v659 = vld [vmem:[#allocation2 + $0xba8] sm:$0xff]
    %v660 = vld [vmem:[#allocation2 + $0xbb0] sm:$0xff]
    %v661 = vld [vmem:[#allocation2 + $0xbb8] sm:$0xff]
    %v662 = vld [vmem:[#allocation2 + $0xbc0] sm:$0xff]
    %v663 = vld [vmem:[#allocation2 + $0xbc8] sm:$0xff]
    %v664 = vld [vmem:[#allocation2 + $0xbd0] sm:$0xff]
    %v665 = vld [vmem:[#allocation2 + $0xbd8] sm:$0xff]
    %v666 = vld [vmem:[#allocation2 + $0xbe0] sm:$0xff]
    %v667 = vld [vmem:[#allocation2 + $0xbe8] sm:$0xff]
    %v668 = vld [vmem:[#allocation2 + $0xbf0] sm:$0xff]
    %v669 = vld [vmem:[#allocation2 + $0xbf8] sm:$0xff]
    %v670 = vld [vmem:[#allocation2 + $0xc00] sm:$0xff]
    %v671 = vld [vmem:[#allocation2 + $0xc08] sm:$0xff]
    %v672 = vld [vmem:[#allocation2 + $0xc10] sm:$0xff]
    %v673 = vld [vmem:[#allocation2 + $0xc18] sm:$0xff]
    %v674 = vld [vmem:[#allocation2 + $0xc20] sm:$0xff]
    %v675 = vld [vmem:[#allocation2 + $0xc28] sm:$0xff]
    %v676 = vld [vmem:[#allocation2 + $0xc30] sm:$0xff]
    %v677 = vld [vmem:[#allocation2 + $0xc38] sm:$0xff]
    %v678 = vld [vmem:[#allocation2 + $0xc40] sm:$0xff]
    %v679 = vld [vmem:[#allocation2 + $0xc48] sm:$0xff]
    %v680 = vld [vmem:[#allocation2 + $0xc50] sm:$0xff]
    %v681 = vld [vmem:[#allocation2 + $0xc58] sm:$0xff]
    %v682 = vld [vmem:[#allocation2 + $0xc60] sm:$0xff]
    %v683 = vld [vmem:[#allocation2 + $0xc68] sm:$0xff]
    %v684 = vld [vmem:[#allocation2 + $0xc70] sm:$0xff]
    %v685 = vld [vmem:[#allocation2 + $0xc78] sm:$0xff]
    %v686 = vld [vmem:[#allocation2 + $0xc80] sm:$0xff]
    %v687 = vld [vmem:[#allocation2 + $0xc88] sm:$0xff]
    %v688 = vld [vmem:[#allocation2 + $0xc90] sm:$0xff]
    %v689 = vld [vmem:[#allocation2 + $0xc98] sm:$0xff]
    %v690 = vld [vmem:[#allocation2 + $0xca0] sm:$0xff]
    %v691 = vld [vmem:[#allocation2 + $0xca8] sm:$0xff]
    %v692 = vld [vmem:[#allocation2 + $0xcb0] sm:$0xff]
    %v693 = vld [vmem:[#allocation2 + $0xcb8] sm:$0xff]
    %v694 = vld [vmem:[#allocation2 + $0xcc0] sm:$0xff]
    %v695 = vld [vmem:[#allocation2 + $0xcc8] sm:$0xff]
    %v696 = vld [vmem:[#allocation2 + $0xcd0] sm:$0xff]
    %v697 = vld [vmem:[#allocation2 + $0xcd8] sm:$0xff]
    %v698 = vld [vmem:[#allocation2 + $0xce0] sm:$0xff]
    %v699 = vld [vmem:[#allocation2 + $0xce8] sm:$0xff]
    %v700 = vld [vmem:[#allocation2 + $0xcf0] sm:$0xff]
    %v701 = vld [vmem:[#allocation2 + $0xcf8] sm:$0xff]
    %v702 = vld [vmem:[#allocation2 + $0xd00] sm:$0xff]
    %v703 = vld [vmem:[#allocation2 + $0xd08] sm:$0xff]
    %v704 = vld [vmem:[#allocation2 + $0xd10] sm:$0xff]
    %v705 = vld [vmem:[#allocation2 + $0xd18] sm:$0xff]
    %v706 = vld [vmem:[#allocation2 + $0xd20] sm:$0xff]
    %v707 = vld [vmem:[#allocation2 + $0xd28] sm:$0xff]
    %v708 = vld [vmem:[#allocation2 + $0xd30] sm:$0xff]
    %v709 = vld [vmem:[#allocation2 + $0xd38] sm:$0xff]
    %v710 = vld [vmem:[#allocation2 + $0xd40] sm:$0xff]
    %v711 = vld [vmem:[#allocation2 + $0xd48] sm:$0xff]
    %v712 = vld [vmem:[#allocation2 + $0xd50] sm:$0xff]
    %v713 = vld [vmem:[#allocation2 + $0xd58] sm:$0xff]
    %v714 = vld [vmem:[#allocation2 + $0xd60] sm:$0xff]
    %v715 = vld [vmem:[#allocation2 + $0xd68] sm:$0xff]
    %v716 = vld [vmem:[#allocation2 + $0xd70] sm:$0xff]
    %v717 = vld [vmem:[#allocation2 + $0xd78] sm:$0xff]
    %v718 = vld [vmem:[#allocation2 + $0xd80] sm:$0xff]
    %v719 = vld [vmem:[#allocation2 + $0xd88] sm:$0xff]
    %v720 = vld [vmem:[#allocation2 + $0xd90] sm:$0xff]
    %v721 = vld [vmem:[#allocation2 + $0xd98] sm:$0xff]
    %v722 = vld [vmem:[#allocation2 + $0xda0] sm:$0xff]
    %v723 = vld [vmem:[#allocation2 + $0xda8] sm:$0xff]
    %v724 = vld [vmem:[#allocation2 + $0xdb0] sm:$0xff]
    %v725 = vld [vmem:[#allocation2 + $0xdb8] sm:$0xff]
    %v726 = vld [vmem:[#allocation2 + $0xdc0] sm:$0xff]
    %v727 = vld [vmem:[#allocation2 + $0xdc8] sm:$0xff]
    %v728 = vld [vmem:[#allocation2 + $0xdd0] sm:$0xff]
    %v729 = vld [vmem:[#allocation2 + $0xdd8] sm:$0xff]
    %v730 = vld [vmem:[#allocation2 + $0xde0] sm:$0xff]
    %v731 = vld [vmem:[#allocation2 + $0xde8] sm:$0xff]
    %v732 = vld [vmem:[#allocation2 + $0xdf0] sm:$0xff]
    %v733 = vld [vmem:[#allocation2 + $0xdf8] sm:$0xff]
    %v734 = vld [vmem:[#allocation2 + $0xe00] sm:$0xff]
    %v735 = vld [vmem:[#allocation2 + $0xe08] sm:$0xff]
    %v736 = vld [vmem:[#allocation2 + $0xe10] sm:$0xff]
    %v737 = vld [vmem:[#allocation2 + $0xe18] sm:$0xff]
    %v738 = vld [vmem:[#allocation2 + $0xe20] sm:$0xff]
    %v739 = vld [vmem:[#allocation2 + $0xe28] sm:$0xff]
    %v740 = vld [vmem:[#allocation2 + $0xe30] sm:$0xff]
    %v741 = vld [vmem:[#allocation2 + $0xe38] sm:$0xff]
    %v742 = vld [vmem:[#allocation2 + $0xe40] sm:$0xff]
    %v743 = vld [vmem:[#allocation2 + $0xe48] sm:$0xff]
    %v744 = vld [vmem:[#allocation2 + $0xe50] sm:$0xff]
    %v745 = vld [vmem:[#allocation2 + $0xe58] sm:$0xff]
    %v746 = vld [vmem:[#allocation2 + $0xe60] sm:$0xff]
    %v747 = vld [vmem:[#allocation2 + $0xe68] sm:$0xff]
    %v748 = vld [vmem:[#allocation2 + $0xe70] sm:$0xff]
    %v749 = vld [vmem:[#allocation2 + $0xe78] sm:$0xff]
    %v750 = vld [vmem:[#allocation2 + $0xe80] sm:$0xff]
    %v751 = vld [vmem:[#allocation2 + $0xe88] sm:$0xff]
    %v752 = vld [vmem:[#allocation2 + $0xe90] sm:$0xff]
    %v753 = vld [vmem:[#allocation2 + $0xe98] sm:$0xff]
    %v754 = vld [vmem:[#allocation2 + $0xea0] sm:$0xff]
    %v755 = vld [vmem:[#allocation2 + $0xea8] sm:$0xff]
    %v756 = vld [vmem:[#allocation2 + $0xeb0] sm:$0xff]
    %v757 = vld [vmem:[#allocation2 + $0xeb8] sm:$0xff]
    %v758 = vld [vmem:[#allocation2 + $0xec0] sm:$0xff]
    %v759 = vld [vmem:[#allocation2 + $0xec8] sm:$0xff]
    %v760 = vld [vmem:[#allocation2 + $0xed0] sm:$0xff]
    %v761 = vld [vmem:[#allocation2 + $0xed8] sm:$0xff]
    %v762 = vld [vmem:[#allocation2 + $0xee0] sm:$0xff]
    %v763 = vld [vmem:[#allocation2 + $0xee8] sm:$0xff]
    %v764 = vld [vmem:[#allocation2 + $0xef0] sm:$0xff]
    %v765 = vld [vmem:[#allocation2 + $0xef8] sm:$0xff]
    %v766 = vld [vmem:[#allocation2 + $0xf00] sm:$0xff]
    %v767 = vld [vmem:[#allocation2 + $0xf08] sm:$0xff]
    %v768 = vld [vmem:[#allocation2 + $0xf10] sm:$0xff]
    %v769 = vld [vmem:[#allocation2 + $0xf18] sm:$0xff]
    %v770 = vld [vmem:[#allocation2 + $0xf20] sm:$0xff]
    %v771 = vld [vmem:[#allocation2 + $0xf28] sm:$0xff]
    %v772 = vld [vmem:[#allocation2 + $0xf30] sm:$0xff]
    %v773 = vld [vmem:[#allocation2 + $0xf38] sm:$0xff]
    %v774 = vld [vmem:[#allocation2 + $0xf40] sm:$0xff]
    %v775 = vld [vmem:[#allocation2 + $0xf48] sm:$0xff]
    %v776 = vld [vmem:[#allocation2 + $0xf50] sm:$0xff]
    %v777 = vld [vmem:[#allocation2 + $0xf58] sm:$0xff]
    %v778 = vld [vmem:[#allocation2 + $0xf60] sm:$0xff]
    %v779 = vld [vmem:[#allocation2 + $0xf68] sm:$0xff]
    %v780 = vld [vmem:[#allocation2 + $0xf70] sm:$0xff]
    %v781 = vld [vmem:[#allocation2 + $0xf78] sm:$0xff]
    %v782 = vld [vmem:[#allocation2 + $0xf80] sm:$0xff]
    %v783 = vld [vmem:[#allocation2 + $0xf88] sm:$0xff]
    %v784 = vld [vmem:[#allocation2 + $0xf90] sm:$0xff]
    %v785 = vld [vmem:[#allocation2 + $0xf98] sm:$0xff]
    %v786 = vld [vmem:[#allocation2 + $0xfa0] sm:$0xff]
    %v787 = vld [vmem:[#allocation2 + $0xfa8] sm:$0xff]
    %v788 = vld [vmem:[#allocation2 + $0xfb0] sm:$0xff]
    %v789 = vld [vmem:[#allocation2 + $0xfb8] sm:$0xff]
    %v790 = vld [vmem:[#allocation2 + $0xfc0] sm:$0xff]
    %v791 = vld [vmem:[#allocation2 + $0xfc8] sm:$0xff]
    %v792 = vld [vmem:[#allocation2 + $0xfd0] sm:$0xff]
    %v793 = vld [vmem:[#allocation2 + $0xfd8] sm:$0xff]
    %v794 = vld [vmem:[#allocation2 + $0xfe0] sm:$0xff]
    %v795 = vld [vmem:[#allocation2 + $0xfe8] sm:$0xff]
    %v796 = vld [vmem:[#allocation2 + $0xff0] sm:$0xff]
    %v797 = vld [vmem:[#allocation2 + $0xff8] sm:$0xff]
    %v798 = vld [vmem:[#allocation2 + $0x1000] sm:$0xff]
    %v799 = vld [vmem:[#allocation2 + $0x1008] sm:$0xff]
    %v800 = vld [vmem:[#allocation2 + $0x1010] sm:$0xff]
    %v801 = vld [vmem:[#allocation2 + $0x1018] sm:$0xff]
    %v802 = vld [vmem:[#allocation2 + $0x1020] sm:$0xff]
    %v803 = vld [vmem:[#allocation2 + $0x1028] sm:$0xff]
    %v804 = vld [vmem:[#allocation2 + $0x1030] sm:$0xff]
    %v805 = vld [vmem:[#allocation2 + $0x1038] sm:$0xff]
    %v806 = vld [vmem:[#allocation2 + $0x1040] sm:$0xff]
    %v807 = vld [vmem:[#allocation2 + $0x1048] sm:$0xff]
    %v808 = vld [vmem:[#allocation2 + $0x1050] sm:$0xff]
    %v809 = vld [vmem:[#allocation2 + $0x1058] sm:$0xff]
    %v810 = vld [vmem:[#allocation2 + $0x1060] sm:$0xff]
    %v811 = vld [vmem:[#allocation2 + $0x1068] sm:$0xff]
    %v812 = vld [vmem:[#allocation2 + $0x1070] sm:$0xff]
    %v813 = vld [vmem:[#allocation2 + $0x1078] sm:$0xff]
    %v814 = vld [vmem:[#allocation2 + $0x1080] sm:$0xff]
    %v815 = vld [vmem:[#allocation2 + $0x1088] sm:$0xff]
    %v816 = vld [vmem:[#allocation2 + $0x1090] sm:$0xff]
    %v817 = vld [vmem:[#allocation2 + $0x1098] sm:$0xff]
    %v818 = vld [vmem:[#allocation2 + $0x10a0] sm:$0xff]
    %v819 = vld [vmem:[#allocation2 + $0x10a8] sm:$0xff]
    %v820 = vld [vmem:[#allocation2 + $0x10b0] sm:$0xff]
    %v821 = vld [vmem:[#allocation2 + $0x10b8] sm:$0xff]
    %v822 = vld [vmem:[#allocation2 + $0x10c0] sm:$0xff]
    %v823 = vld [vmem:[#allocation2 + $0x10c8] sm:$0xff]
    %v824 = vld [vmem:[#allocation2 + $0x10d0] sm:$0xff]
    %v825 = vld [vmem:[#allocation2 + $0x10d8] sm:$0xff]
    %v826 = vld [vmem:[#allocation2 + $0x10e0] sm:$0xff]
    %v827 = vld [vmem:[#allocation2 + $0x10e8] sm:$0xff]
    %v828 = vld [vmem:[#allocation2 + $0x10f0] sm:$0xff]
    %v829 = vld [vmem:[#allocation2 + $0x10f8] sm:$0xff]
    %v830 = vld [vmem:[#allocation2 + $0x1100] sm:$0xff]
    %v831 = vld [vmem:[#allocation2 + $0x1108] sm:$0xff]
    %v832 = vld [vmem:[#allocation2 + $0x1110] sm:$0xff]
    %v833 = vld [vmem:[#allocation2 + $0x1118] sm:$0xff]
    %v834 = vld [vmem:[#allocation2 + $0x1120] sm:$0xff]
    %v835 = vld [vmem:[#allocation2 + $0x1128] sm:$0xff]
    %v836 = vld [vmem:[#allocation2 + $0x1130] sm:$0xff]
    %v837 = vld [vmem:[#allocation2 + $0x1138] sm:$0xff]
    %v838 = vld [vmem:[#allocation2 + $0x1140] sm:$0xff]
    %v839 = vld [vmem:[#allocation2 + $0x1148] sm:$0xff]
    %v840 = vld [vmem:[#allocation2 + $0x1150] sm:$0xff]
    %v841 = vld [vmem:[#allocation2 + $0x1158] sm:$0xff]
    %v842 = vld [vmem:[#allocation2 + $0x1160] sm:$0xff]
    %v843 = vld [vmem:[#allocation2 + $0x1168] sm:$0xff]
    %v844 = vld [vmem:[#allocation2 + $0x1170] sm:$0xff]
    %v845 = vld [vmem:[#allocation2 + $0x1178] sm:$0xff]
    %v846 = vld [vmem:[#allocation2 + $0x1180] sm:$0xff]
    %v847 = vld [vmem:[#allocation2 + $0x1188] sm:$0xff]
    %v848 = vld [vmem:[#allocation2 + $0x1190] sm:$0xff]
    %v849 = vld [vmem:[#allocation2 + $0x1198] sm:$0xff]
    %v850 = vld [vmem:[#allocation2 + $0x11a0] sm:$0xff]
    %v851 = vld [vmem:[#allocation2 + $0x11a8] sm:$0xff]
    %v852 = vld [vmem:[#allocation2 + $0x11b0] sm:$0xff]
    %v853 = vld [vmem:[#allocation2 + $0x11b8] sm:$0xff]
    %v854 = vld [vmem:[#allocation2 + $0x11c0] sm:$0xff]
    %v855 = vld [vmem:[#allocation2 + $0x11c8] sm:$0xff]
    %v856 = vld [vmem:[#allocation2 + $0x11d0] sm:$0xff]
    %v857 = vld [vmem:[#allocation2 + $0x11d8] sm:$0xff]
    %v858 = vld [vmem:[#allocation2 + $0x11e0] sm:$0xff]
    %v859 = vld [vmem:[#allocation2 + $0x11e8] sm:$0xff]
    %v860 = vld [vmem:[#allocation2 + $0x11f0] sm:$0xff]
    %v861 = vld [vmem:[#allocation2 + $0x11f8] sm:$0xff]
    %v862 = vld [vmem:[#allocation2 + $0x1200] sm:$0xff]
    %v863 = vld [vmem:[#allocation2 + $0x1208] sm:$0xff]
    %v864 = vld [vmem:[#allocation2 + $0x1210] sm:$0xff]
    %v865 = vld [vmem:[#allocation2 + $0x1218] sm:$0xff]
    %v866 = vld [vmem:[#allocation2 + $0x1220] sm:$0xff]
    %v867 = vld [vmem:[#allocation2 + $0x1228] sm:$0xff]
    %v868 = vld [vmem:[#allocation2 + $0x1230] sm:$0xff]
    %v869 = vld [vmem:[#allocation2 + $0x1238] sm:$0xff]
    %v870 = vld [vmem:[#allocation2 + $0x1240] sm:$0xff]
    %v871 = vld [vmem:[#allocation2 + $0x1248] sm:$0xff]
    %v872 = vld [vmem:[#allocation2 + $0x1250] sm:$0xff]
    %v873 = vld [vmem:[#allocation2 + $0x1258] sm:$0xff]
    %v874 = vld [vmem:[#allocation2 + $0x1260] sm:$0xff]
    %v875 = vld [vmem:[#allocation2 + $0x1268] sm:$0xff]
    %v876 = vld [vmem:[#allocation2 + $0x1270] sm:$0xff]
    %v877 = vld [vmem:[#allocation2 + $0x1278] sm:$0xff]
    %v878 = vld [vmem:[#allocation2 + $0x1280] sm:$0xff]
    %v879 = vld [vmem:[#allocation2 + $0x1288] sm:$0xff]
    %v880 = vld [vmem:[#allocation2 + $0x1290] sm:$0xff]
    %v881 = vld [vmem:[#allocation2 + $0x1298] sm:$0xff]
    %v882 = vld [vmem:[#allocation2 + $0x12a0] sm:$0xff]
    %v883 = vld [vmem:[#allocation2 + $0x12a8] sm:$0xff]
    %v884 = vld [vmem:[#allocation2 + $0x12b0] sm:$0xff]
    %v885 = vld [vmem:[#allocation2 + $0x12b8] sm:$0xff]
    %v886 = vld [vmem:[#allocation2 + $0x12c0] sm:$0xff]
    %v887 = vld [vmem:[#allocation2 + $0x12c8] sm:$0xff]
    %v888 = vld [vmem:[#allocation2 + $0x12d0] sm:$0xff]
    %v889 = vld [vmem:[#allocation2 + $0x12d8] sm:$0xff]
    %v890 = vld [vmem:[#allocation2 + $0x12e0] sm:$0xff]
    %v891 = vld [vmem:[#allocation2 + $0x12e8] sm:$0xff]
    %v892 = vld [vmem:[#allocation2 + $0x12f0] sm:$0xff]
    %v893 = vld [vmem:[#allocation2 + $0x12f8] sm:$0xff]
    %v894 = vld [vmem:[#allocation2 + $0x1300] sm:$0xff]
    %v895 = vld [vmem:[#allocation2 + $0x1308] sm:$0xff]
    %v896 = vld [vmem:[#allocation2 + $0x1310] sm:$0xff]
    %v897 = vld [vmem:[#allocation2 + $0x1318] sm:$0xff]
    %v898 = vld [vmem:[#allocation2 + $0x1320] sm:$0xff]
    %v899 = vld [vmem:[#allocation2 + $0x1328] sm:$0xff]
    %v900 = vld [vmem:[#allocation2 + $0x1330] sm:$0xff]
    %v901 = vld [vmem:[#allocation2 + $0x1338] sm:$0xff]
    %v902 = vld [vmem:[#allocation2 + $0x1340] sm:$0xff]
    %v903 = vld [vmem:[#allocation2 + $0x1348] sm:$0xff]
    %v904 = vld [vmem:[#allocation2 + $0x1350] sm:$0xff]
    %v905 = vld [vmem:[#allocation2 + $0x1358] sm:$0xff]
    %v906 = vld [vmem:[#allocation2 + $0x1360] sm:$0xff]
    %v907 = vld [vmem:[#allocation2 + $0x1368] sm:$0xff]
    %v908 = vld [vmem:[#allocation2 + $0x1370] sm:$0xff]
    %v909 = vld [vmem:[#allocation2 + $0x1378] sm:$0xff]
    %v910 = vld [vmem:[#allocation2 + $0x1380] sm:$0xff]
    %v911 = vld [vmem:[#allocation2 + $0x1388] sm:$0xff]
    %v912 = vld [vmem:[#allocation2 + $0x1390] sm:$0xff]
    %v913 = vld [vmem:[#allocation2 + $0x1398] sm:$0xff]
    %v914 = vld [vmem:[#allocation2 + $0x13a0] sm:$0xff]
    %v915 = vld [vmem:[#allocation2 + $0x13a8] sm:$0xff]
    %v916 = vld [vmem:[#allocation2 + $0x13b0] sm:$0xff]
    %v917 = vld [vmem:[#allocation2 + $0x13b8] sm:$0xff]
    %v918 = vld [vmem:[#allocation2 + $0x13c0] sm:$0xff]
    %v919 = vld [vmem:[#allocation2 + $0x13c8] sm:$0xff]
    %v920 = vld [vmem:[#allocation2 + $0x13d0] sm:$0xff]
    %v921 = vld [vmem:[#allocation2 + $0x13d8] sm:$0xff]
    %v922 = vld [vmem:[#allocation2 + $0x13e0] sm:$0xff]
    %v923 = vld [vmem:[#allocation2 + $0x13e8] sm:$0xff]
    %v924 = vld [vmem:[#allocation2 + $0x13f0] sm:$0xff]
    %v925 = vld [vmem:[#allocation2 + $0x13f8] sm:$0xff]
    %v926 = vld [vmem:[#allocation2 + $0x1400] sm:$0xff]
    %v927 = vld [vmem:[#allocation2 + $0x1408] sm:$0xff]
    %v928 = vld [vmem:[#allocation2 + $0x1410] sm:$0xff]
    %v929 = vld [vmem:[#allocation2 + $0x1418] sm:$0xff]
    %v930 = vld [vmem:[#allocation2 + $0x1420] sm:$0xff]
    %v931 = vld [vmem:[#allocation2 + $0x1428] sm:$0xff]
    %v932 = vld [vmem:[#allocation2 + $0x1430] sm:$0xff]
    %v933 = vld [vmem:[#allocation2 + $0x1438] sm:$0xff]
    %v934 = vld [vmem:[#allocation2 + $0x1440] sm:$0xff]
    %v935 = vld [vmem:[#allocation2 + $0x1448] sm:$0xff]
    %v936 = vld [vmem:[#allocation2 + $0x1450] sm:$0xff]
    %v937 = vld [vmem:[#allocation2 + $0x1458] sm:$0xff]
    %v938 = vld [vmem:[#allocation2 + $0x1460] sm:$0xff]
    %v939 = vld [vmem:[#allocation2 + $0x1468] sm:$0xff]
    %v940 = vld [vmem:[#allocation2 + $0x1470] sm:$0xff]
    %v941 = vld [vmem:[#allocation2 + $0x1478] sm:$0xff]
    %v942 = vld [vmem:[#allocation2 + $0x1480] sm:$0xff]
    %v943 = vld [vmem:[#allocation2 + $0x1488] sm:$0xff]
    %v944 = vld [vmem:[#allocation2 + $0x1490] sm:$0xff]
    %v945 = vld [vmem:[#allocation2 + $0x1498] sm:$0xff]
    %v946 = vld [vmem:[#allocation2 + $0x14a0] sm:$0xff]
    %v947 = vld [vmem:[#allocation2 + $0x14a8] sm:$0xff]
    %v948 = vld [vmem:[#allocation2 + $0x14b0] sm:$0xff]
    %v949 = vld [vmem:[#allocation2 + $0x14b8] sm:$0xff]
    %v950 = vld [vmem:[#allocation2 + $0x14c0] sm:$0xff]
    %v951 = vld [vmem:[#allocation2 + $0x14c8] sm:$0xff]
    %v952 = vld [vmem:[#allocation2 + $0x14d0] sm:$0xff]
    %v953 = vld [vmem:[#allocation2 + $0x14d8] sm:$0xff]
    %v954 = vld [vmem:[#allocation2 + $0x14e0] sm:$0xff]
    %v955 = vld [vmem:[#allocation2 + $0x14e8] sm:$0xff]
    %v956 = vld [vmem:[#allocation2 + $0x14f0] sm:$0xff]
    %v957 = vld [vmem:[#allocation2 + $0x14f8] sm:$0xff]
    %v958 = vld [vmem:[#allocation2 + $0x1500] sm:$0xff]
    %v959 = vld [vmem:[#allocation2 + $0x1508] sm:$0xff]
    %v960 = vld [vmem:[#allocation2 + $0x1510] sm:$0xff]
    %v961 = vld [vmem:[#allocation2 + $0x1518] sm:$0xff]
    %v962 = vld [vmem:[#allocation2 + $0x1520] sm:$0xff]
    %v963 = vld [vmem:[#allocation2 + $0x1528] sm:$0xff]
    %v964 = vld [vmem:[#allocation2 + $0x1530] sm:$0xff]
    %v965 = vld [vmem:[#allocation2 + $0x1538] sm:$0xff]
    %v966 = vld [vmem:[#allocation2 + $0x1540] sm:$0xff]
    %v967 = vld [vmem:[#allocation2 + $0x1548] sm:$0xff]
    %v968 = vld [vmem:[#allocation2 + $0x1550] sm:$0xff]
    %v969 = vld [vmem:[#allocation2 + $0x1558] sm:$0xff]
    %v970 = vld [vmem:[#allocation2 + $0x1560] sm:$0xff]
    %v971 = vld [vmem:[#allocation2 + $0x1568] sm:$0xff]
    %v972 = vld [vmem:[#allocation2 + $0x1570] sm:$0xff]
    %v973 = vld [vmem:[#allocation2 + $0x1578] sm:$0xff]
    %v974 = vld [vmem:[#allocation2 + $0x1580] sm:$0xff]
    %v975 = vld [vmem:[#allocation2 + $0x1588] sm:$0xff]
    %v976 = vld [vmem:[#allocation2 + $0x1590] sm:$0xff]
    %v977 = vld [vmem:[#allocation2 + $0x1598] sm:$0xff]
    %v978 = vld [vmem:[#allocation2 + $0x15a0] sm:$0xff]
    %v979 = vld [vmem:[#allocation2 + $0x15a8] sm:$0xff]
    %v980 = vld [vmem:[#allocation2 + $0x15b0] sm:$0xff]
    %v981 = vld [vmem:[#allocation2 + $0x15b8] sm:$0xff]
    %v982 = vld [vmem:[#allocation2 + $0x15c0] sm:$0xff]
    %v983 = vld [vmem:[#allocation2 + $0x15c8] sm:$0xff]
    %v984 = vld [vmem:[#allocation2 + $0x15d0] sm:$0xff]
    %v985 = vld [vmem:[#allocation2 + $0x15d8] sm:$0xff]
    %v986 = vld [vmem:[#allocation2 + $0x15e0] sm:$0xff]
    %v987 = vld [vmem:[#allocation2 + $0x15e8] sm:$0xff]
    %v988 = vld [vmem:[#allocation2 + $0x15f0] sm:$0xff]
    %v989 = vld [vmem:[#allocation2 + $0x15f8] sm:$0xff]
    %v990 = vld [vmem:[#allocation2 + $0x1600] sm:$0xff]
    %v991 = vld [vmem:[#allocation2 + $0x1608] sm:$0xff]
    %v992 = vld [vmem:[#allocation2 + $0x1610] sm:$0xff]
    %v993 = vld [vmem:[#allocation2 + $0x1618] sm:$0xff]
    %v994 = vld [vmem:[#allocation2 + $0x1620] sm:$0xff]
    %v995 = vld [vmem:[#allocation2 + $0x1628] sm:$0xff]
    %v996 = vld [vmem:[#allocation2 + $0x1630] sm:$0xff]
    %v997 = vld [vmem:[#allocation2 + $0x1638] sm:$0xff]
    %v998 = vld [vmem:[#allocation2 + $0x1640] sm:$0xff]
    %v999 = vld [vmem:[#allocation2 + $0x1648] sm:$0xff]
    %v1000 = vld [vmem:[#allocation2 + $0x1650] sm:$0xff]
    %v1001 = vld [vmem:[#allocation2 + $0x1658] sm:$0xff]
    %v1002 = vld [vmem:[#allocation2 + $0x1660] sm:$0xff]
    %v1003 = vld [vmem:[#allocation2 + $0x1668] sm:$0xff]
    %v1004 = vld [vmem:[#allocation2 + $0x1670] sm:$0xff]
    %v1005 = vld [vmem:[#allocation2 + $0x1678] sm:$0xff]
    %v1006 = vld [vmem:[#allocation2 + $0x1680] sm:$0xff]
    %v1007 = vld [vmem:[#allocation2 + $0x1688] sm:$0xff]
    %v1008 = vld [vmem:[#allocation2 + $0x1690] sm:$0xff]
    %v1009 = vld [vmem:[#allocation2 + $0x1698] sm:$0xff]
    %v1010 = vld [vmem:[#allocation2 + $0x16a0] sm:$0xff]
    %v1011 = vld [vmem:[#allocation2 + $0x16a8] sm:$0xff]
    %v1012 = vld [vmem:[#allocation2 + $0x16b0] sm:$0xff]
    %v1013 = vld [vmem:[#allocation2 + $0x16b8] sm:$0xff]
    %v1014 = vld [vmem:[#allocation2 + $0x16c0] sm:$0xff]
    %v1015 = vld [vmem:[#allocation2 + $0x16c8] sm:$0xff]
    %v1016 = vld [vmem:[#allocation2 + $0x16d0] sm:$0xff]
    %v1017 = vld [vmem:[#allocation2 + $0x16d8] sm:$0xff]
    %v1018 = vld [vmem:[#allocation2 + $0x16e0] sm:$0xff]
    %v1019 = vld [vmem:[#allocation2 + $0x16e8] sm:$0xff]
    %v1020 = vld [vmem:[#allocation2 + $0x16f0] sm:$0xff]
    %v1021 = vld [vmem:[#allocation2 + $0x16f8] sm:$0xff]
    %v1022 = vld [vmem:[#allocation2 + $0x1700] sm:$0xff]
    %v1023 = vld [vmem:[#allocation2 + $0x1708] sm:$0xff]
    %v1024 = vld [vmem:[#allocation2 + $0x1710] sm:$0xff]
    %v1025 = vld [vmem:[#allocation2 + $0x1718] sm:$0xff]
    %v1026 = vld [vmem:[#allocation2 + $0x1720] sm:$0xff]
    %v1027 = vld [vmem:[#allocation2 + $0x1728] sm:$0xff]
    %v1028 = vld [vmem:[#allocation2 + $0x1730] sm:$0xff]
    %v1029 = vld [vmem:[#allocation2 + $0x1738] sm:$0xff]
    %v1030 = vld [vmem:[#allocation2 + $0x1740] sm:$0xff]
    %v1031 = vld [vmem:[#allocation2 + $0x1748] sm:$0xff]
    %v1032 = vld [vmem:[#allocation2 + $0x1750] sm:$0xff]
    %v1033 = vld [vmem:[#allocation2 + $0x1758] sm:$0xff]
    %v1034 = vld [vmem:[#allocation2 + $0x1760] sm:$0xff]
    %v1035 = vld [vmem:[#allocation2 + $0x1768] sm:$0xff]
    %v1036 = vld [vmem:[#allocation2 + $0x1770] sm:$0xff]
    %v1037 = vld [vmem:[#allocation2 + $0x1778] sm:$0xff]
    %v1038 = vld [vmem:[#allocation2 + $0x1780] sm:$0xff]
    %v1039 = vld [vmem:[#allocation2 + $0x1788] sm:$0xff]
    %v1040 = vld [vmem:[#allocation2 + $0x1790] sm:$0xff]
    %v1041 = vld [vmem:[#allocation2 + $0x1798] sm:$0xff]
    %v1042 = vld [vmem:[#allocation2 + $0x17a0] sm:$0xff]
    %v1043 = vld [vmem:[#allocation2 + $0x17a8] sm:$0xff]
    %v1044 = vld [vmem:[#allocation2 + $0x17b0] sm:$0xff]
    %v1045 = vld [vmem:[#allocation2 + $0x17b8] sm:$0xff]
    %v1046 = vld [vmem:[#allocation2 + $0x17c0] sm:$0xff]
    %v1047 = vld [vmem:[#allocation2 + $0x17c8] sm:$0xff]
    %v1048 = vld [vmem:[#allocation2 + $0x17d0] sm:$0xff]
    %v1049 = vld [vmem:[#allocation2 + $0x17d8] sm:$0xff]
    %v1050 = vld [vmem:[#allocation2 + $0x17e0] sm:$0xff]
    %v1051 = vld [vmem:[#allocation2 + $0x17e8] sm:$0xff]
    %v1052 = vld [vmem:[#allocation2 + $0x17f0] sm:$0xff]
    %v1053 = vld [vmem:[#allocation2 + $0x17f8] sm:$0xff]
    %v1054 = vld [vmem:[#allocation4] sm:$0xff]
    %v1056 = vlaneseq
    %v1057 = vshrl.u32 %v1056, 7
    %v1058 = vsub.s32 0, %v1057
    %v1059 = vrot.slane %v1054, %v1058
    %v1060 = vlaneseq
    %v1061 = vshrl.u32 %v1060, 7
    %v1062 = vsub.s32 1, %v1061
    %v1063 = vrot.slane %v1054, %v1062
    %v1064 = vlaneseq
    %v1065 = vshrl.u32 %v1064, 7
    %v1066 = vsub.s32 2, %v1065
    %v1067 = vrot.slane %v1054, %v1066
    %v1068 = vlaneseq
    %v1069 = vshrl.u32 %v1068, 7
    %v1070 = vsub.s32 3, %v1069
    %v1071 = vrot.slane %v1054, %v1070
    %v1072 = vlaneseq
    %v1073 = vshrl.u32 %v1072, 7
    %v1074 = vsub.s32 4, %v1073
    %v1075 = vrot.slane %v1054, %v1074
    %v1076 = vlaneseq
    %v1077 = vshrl.u32 %v1076, 7
    %v1078 = vsub.s32 5, %v1077
    %v1079 = vrot.slane %v1054, %v1078
    %v1080 = vlaneseq
    %v1081 = vshrl.u32 %v1080, 7
    %v1082 = vsub.s32 6, %v1081
    %v1083 = vrot.slane %v1054, %v1082
    %v1084 = vlaneseq
    %v1085 = vshrl.u32 %v1084, 7
    %v1086 = vsub.s32 7, %v1085
    %v1087 = vrot.slane %v1054, %v1086
    %v1099 = vcombine.high %v283, %v283
    %v1101 = vunpack.c.l.s4 1983009808
    %v1102 = vunpack.c.0.s8 %v1101
    %v1103 = vlaneseq
    %v1104 = vshrl.u32 %v1103, 7
    %v1105 = vsub.s32 %v1102, %v1104
    %v1106 = vrot.slane %v283, %v1105
    %v1108 = vunpack.c.l.s4 1983009808
    %v1109 = vunpack.c.0.s8 %v1108
    %v1110 = vlaneseq
    %v1111 = vshrl.u32 %v1110, 7
    %v1112 = vsub.s32 %v1109, %v1111
    %v1113 = vrot.slane %v1099, %v1112
    %v1114 = vcombine.high %v1106, %v1106
    %v1115 = vcombine.high %v1113, %v1113
    %v1116 = vcombine.high %v284, %v284
    %v1118 = vunpack.c.l.s4 1983009808
    %v1119 = vunpack.c.0.s8 %v1118
    %v1120 = vlaneseq
    %v1121 = vshrl.u32 %v1120, 7
    %v1122 = vsub.s32 %v1119, %v1121
    %v1123 = vrot.slane %v284, %v1122
    %v1125 = vunpack.c.l.s4 1983009808
    %v1126 = vunpack.c.0.s8 %v1125
    %v1127 = vlaneseq
    %v1128 = vshrl.u32 %v1127, 7
    %v1129 = vsub.s32 %v1126, %v1128
    %v1130 = vrot.slane %v1116, %v1129
    %v1131 = vcombine.high %v1123, %v1123
    %v1132 = vcombine.high %v1130, %v1130
    %v1133 = vcombine.high %v285, %v285
    %v1135 = vunpack.c.l.s4 1983009808
    %v1136 = vunpack.c.0.s8 %v1135
    %v1137 = vlaneseq
    %v1138 = vshrl.u32 %v1137, 7
    %v1139 = vsub.s32 %v1136, %v1138
    %v1140 = vrot.slane %v285, %v1139
    %v1142 = vunpack.c.l.s4 1983009808
    %v1143 = vunpack.c.0.s8 %v1142
    %v1144 = vlaneseq
    %v1145 = vshrl.u32 %v1144, 7
    %v1146 = vsub.s32 %v1143, %v1145
    %v1147 = vrot.slane %v1133, %v1146
    %v1148 = vcombine.high %v1140, %v1140
    %v1149 = vcombine.high %v1147, %v1147
    %v1930 = vunpack.c.l.b16 %v286
    %v1931 = vunpack.c.h.b16 %v286
    %v1932 = vunpack.c.l.b16 %v287
    %v1933 = vunpack.c.h.b16 %v287
    %v1934 = vunpack.c.l.b16 %v288
    %v1935 = vunpack.c.h.b16 %v288
    %v1936 = vunpack.c.l.b16 %v289
    %v1937 = vunpack.c.h.b16 %v289
    %v1938 = vunpack.c.l.b16 %v290
    %v1939 = vunpack.c.h.b16 %v290
    %v1940 = vunpack.c.l.b16 %v291
    %v1941 = vunpack.c.h.b16 %v291
    %v1942 = vunpack.c.l.b16 %v292
    %v1943 = vunpack.c.h.b16 %v292
    %v1944 = vunpack.c.l.b16 %v293
    %v1945 = vunpack.c.h.b16 %v293
    %v1946 = vunpack.c.l.b16 %v294
    %v1947 = vunpack.c.h.b16 %v294
    %v1948 = vunpack.c.l.b16 %v295
    %v1949 = vunpack.c.h.b16 %v295
    %v1950 = vunpack.c.l.b16 %v296
    %v1951 = vunpack.c.h.b16 %v296
    %v1952 = vunpack.c.l.b16 %v297
    %v1953 = vunpack.c.h.b16 %v297
    %v1954 = vunpack.c.l.b16 %v298
    %v1955 = vunpack.c.h.b16 %v298
    %v1956 = vunpack.c.l.b16 %v299
    %v1957 = vunpack.c.h.b16 %v299
    %v1958 = vunpack.c.l.b16 %v300
    %v1959 = vunpack.c.h.b16 %v300
    %v1960 = vunpack.c.l.b16 %v301
    %v1961 = vunpack.c.h.b16 %v301
    %v1962 = vunpack.c.l.b16 %v302
    %v1963 = vunpack.c.h.b16 %v302
    %v1964 = vunpack.c.l.b16 %v303
    %v1965 = vunpack.c.h.b16 %v303
    %v1966 = vunpack.c.l.b16 %v304
    %v1967 = vunpack.c.h.b16 %v304
    %v1968 = vunpack.c.l.b16 %v305
    %v1969 = vunpack.c.h.b16 %v305
    %v1970 = vunpack.c.l.b16 %v306
    %v1971 = vunpack.c.h.b16 %v306
    %v1972 = vunpack.c.l.b16 %v307
    %v1973 = vunpack.c.h.b16 %v307
    %v1974 = vunpack.c.l.b16 %v308
    %v1975 = vunpack.c.h.b16 %v308
    %v1976 = vunpack.c.l.b16 %v309
    %v1977 = vunpack.c.h.b16 %v309
    %v1978 = vunpack.c.l.b16 %v310
    %v1979 = vunpack.c.h.b16 %v310
    %v1980 = vunpack.c.l.b16 %v311
    %v1981 = vunpack.c.h.b16 %v311
    %v1982 = vunpack.c.l.b16 %v312
    %v1983 = vunpack.c.h.b16 %v312
    %v1984 = vunpack.c.l.b16 %v313
    %v1985 = vunpack.c.h.b16 %v313
    %v1986 = vunpack.c.l.b16 %v314
    %v1987 = vunpack.c.h.b16 %v314
    %v1988 = vunpack.c.l.b16 %v315
    %v1989 = vunpack.c.h.b16 %v315
    %v1990 = vunpack.c.l.b16 %v316
    %v1991 = vunpack.c.h.b16 %v316
    %v1992 = vunpack.c.l.b16 %v317
    %v1993 = vunpack.c.h.b16 %v317
    %v1994 = vunpack.c.l.b16 %v318
    %v1995 = vunpack.c.h.b16 %v318
    %v1996 = vunpack.c.l.b16 %v319
    %v1997 = vunpack.c.h.b16 %v319
    %v1998 = vunpack.c.l.b16 %v320
    %v1999 = vunpack.c.h.b16 %v320
    %v2000 = vunpack.c.l.b16 %v321
    %v2001 = vunpack.c.h.b16 %v321
    %v2002 = vunpack.c.l.b16 %v322
    %v2003 = vunpack.c.h.b16 %v322
    %v2004 = vunpack.c.l.b16 %v323
    %v2005 = vunpack.c.h.b16 %v323
    %v2006 = vunpack.c.l.b16 %v324
    %v2007 = vunpack.c.h.b16 %v324
    %v2008 = vunpack.c.l.b16 %v325
    %v2009 = vunpack.c.h.b16 %v325
    %v2010 = vunpack.c.l.b16 %v326
    %v2011 = vunpack.c.h.b16 %v326
    %v2012 = vunpack.c.l.b16 %v327
    %v2013 = vunpack.c.h.b16 %v327
    %v2014 = vunpack.c.l.b16 %v328
    %v2015 = vunpack.c.h.b16 %v328
    %v2016 = vunpack.c.l.b16 %v329
    %v2017 = vunpack.c.h.b16 %v329
    %v2018 = vunpack.c.l.b16 %v330
    %v2019 = vunpack.c.h.b16 %v330
    %v2020 = vunpack.c.l.b16 %v331
    %v2021 = vunpack.c.h.b16 %v331
    %v2022 = vunpack.c.l.b16 %v332
    %v2023 = vunpack.c.h.b16 %v332
    %v2024 = vunpack.c.l.b16 %v333
    %v2025 = vunpack.c.h.b16 %v333
    %v2026 = vunpack.c.l.b16 %v334
    %v2027 = vunpack.c.h.b16 %v334
    %v2028 = vunpack.c.l.b16 %v335
    %v2029 = vunpack.c.h.b16 %v335
    %v2030 = vunpack.c.l.b16 %v336
    %v2031 = vunpack.c.h.b16 %v336
    %v2032 = vunpack.c.l.b16 %v337
    %v2033 = vunpack.c.h.b16 %v337
    %v2034 = vunpack.c.l.b16 %v338
    %v2035 = vunpack.c.h.b16 %v338
    %v2036 = vunpack.c.l.b16 %v339
    %v2037 = vunpack.c.h.b16 %v339
    %v2038 = vunpack.c.l.b16 %v340
    %v2039 = vunpack.c.h.b16 %v340
    %v2040 = vunpack.c.l.b16 %v341
    %v2041 = vunpack.c.h.b16 %v341
    %v2042 = vunpack.c.l.b16 %v342
    %v2043 = vunpack.c.h.b16 %v342
    %v2044 = vunpack.c.l.b16 %v343
    %v2045 = vunpack.c.h.b16 %v343
    %v2046 = vunpack.c.l.b16 %v344
    %v2047 = vunpack.c.h.b16 %v344
    %v2048 = vunpack.c.l.b16 %v345
    %v2049 = vunpack.c.h.b16 %v345
    %v2050 = vunpack.c.l.b16 %v346
    %v2051 = vunpack.c.h.b16 %v346
    %v2052 = vunpack.c.l.b16 %v347
    %v2053 = vunpack.c.h.b16 %v347
    %v2054 = vunpack.c.l.b16 %v348
    %v2055 = vunpack.c.h.b16 %v348
    %v2056 = vunpack.c.l.b16 %v349
    %v2057 = vunpack.c.h.b16 %v349
    %v2058 = vunpack.c.l.b16 %v350
    %v2059 = vunpack.c.h.b16 %v350
    %v2060 = vunpack.c.l.b16 %v351
    %v2061 = vunpack.c.h.b16 %v351
    %v2062 = vunpack.c.l.b16 %v352
    %v2063 = vunpack.c.h.b16 %v352
    %v2064 = vunpack.c.l.b16 %v353
    %v2065 = vunpack.c.h.b16 %v353
    %v2066 = vunpack.c.l.b16 %v354
    %v2067 = vunpack.c.h.b16 %v354
    %v2068 = vunpack.c.l.b16 %v355
    %v2069 = vunpack.c.h.b16 %v355
    %v2070 = vunpack.c.l.b16 %v356
    %v2071 = vunpack.c.h.b16 %v356
    %v2072 = vunpack.c.l.b16 %v357
    %v2073 = vunpack.c.h.b16 %v357
    %v2074 = vunpack.c.l.b16 %v358
    %v2075 = vunpack.c.h.b16 %v358
    %v2076 = vunpack.c.l.b16 %v359
    %v2077 = vunpack.c.h.b16 %v359
    %v2078 = vunpack.c.l.b16 %v360
    %v2079 = vunpack.c.h.b16 %v360
    %v2080 = vunpack.c.l.b16 %v361
    %v2081 = vunpack.c.h.b16 %v361
    %v2082 = vunpack.c.l.b16 %v362
    %v2083 = vunpack.c.h.b16 %v362
    %v2084 = vunpack.c.l.b16 %v363
    %v2085 = vunpack.c.h.b16 %v363
    %v2086 = vunpack.c.l.b16 %v364
    %v2087 = vunpack.c.h.b16 %v364
    %v2088 = vunpack.c.l.b16 %v365
    %v2089 = vunpack.c.h.b16 %v365
    %v2090 = vunpack.c.l.b16 %v366
    %v2091 = vunpack.c.h.b16 %v366
    %v2092 = vunpack.c.l.b16 %v367
    %v2093 = vunpack.c.h.b16 %v367
    %v2094 = vunpack.c.l.b16 %v368
    %v2095 = vunpack.c.h.b16 %v368
    %v2096 = vunpack.c.l.b16 %v369
    %v2097 = vunpack.c.h.b16 %v369
    %v2098 = vunpack.c.l.b16 %v370
    %v2099 = vunpack.c.h.b16 %v370
    %v2100 = vunpack.c.l.b16 %v371
    %v2101 = vunpack.c.h.b16 %v371
    %v2102 = vunpack.c.l.b16 %v372
    %v2103 = vunpack.c.h.b16 %v372
    %v2104 = vunpack.c.l.b16 %v373
    %v2105 = vunpack.c.h.b16 %v373
    %v2106 = vunpack.c.l.b16 %v374
    %v2107 = vunpack.c.h.b16 %v374
    %v2108 = vunpack.c.l.b16 %v375
    %v2109 = vunpack.c.h.b16 %v375
    %v2110 = vunpack.c.l.b16 %v376
    %v2111 = vunpack.c.h.b16 %v376
    %v2112 = vunpack.c.l.b16 %v377
    %v2113 = vunpack.c.h.b16 %v377
    %v2114 = vunpack.c.l.b16 %v378
    %v2115 = vunpack.c.h.b16 %v378
    %v2116 = vunpack.c.l.b16 %v379
    %v2117 = vunpack.c.h.b16 %v379
    %v2118 = vunpack.c.l.b16 %v380
    %v2119 = vunpack.c.h.b16 %v380
    %v2120 = vunpack.c.l.b16 %v381
    %v2121 = vunpack.c.h.b16 %v381
    %v2122 = vunpack.c.l.b16 %v382
    %v2123 = vunpack.c.h.b16 %v382
    %v2124 = vunpack.c.l.b16 %v383
    %v2125 = vunpack.c.h.b16 %v383
    %v2126 = vunpack.c.l.b16 %v384
    %v2127 = vunpack.c.h.b16 %v384
    %v2128 = vunpack.c.l.b16 %v385
    %v2129 = vunpack.c.h.b16 %v385
    %v2130 = vunpack.c.l.b16 %v386
    %v2131 = vunpack.c.h.b16 %v386
    %v2132 = vunpack.c.l.b16 %v387
    %v2133 = vunpack.c.h.b16 %v387
    %v2134 = vunpack.c.l.b16 %v388
    %v2135 = vunpack.c.h.b16 %v388
    %v2136 = vunpack.c.l.b16 %v389
    %v2137 = vunpack.c.h.b16 %v389
    %v2138 = vunpack.c.l.b16 %v390
    %v2139 = vunpack.c.h.b16 %v390
    %v2140 = vunpack.c.l.b16 %v391
    %v2141 = vunpack.c.h.b16 %v391
    %v2142 = vunpack.c.l.b16 %v392
    %v2143 = vunpack.c.h.b16 %v392
    %v2144 = vunpack.c.l.b16 %v393
    %v2145 = vunpack.c.h.b16 %v393
    %v2146 = vunpack.c.l.b16 %v394
    %v2147 = vunpack.c.h.b16 %v394
    %v2148 = vunpack.c.l.b16 %v395
    %v2149 = vunpack.c.h.b16 %v395
    %v2150 = vunpack.c.l.b16 %v396
    %v2151 = vunpack.c.h.b16 %v396
    %v2152 = vunpack.c.l.b16 %v397
    %v2153 = vunpack.c.h.b16 %v397
    %v2154 = vunpack.c.l.b16 %v398
    %v2155 = vunpack.c.h.b16 %v398
    %v2156 = vunpack.c.l.b16 %v399
    %v2157 = vunpack.c.h.b16 %v399
    %v2158 = vunpack.c.l.b16 %v400
    %v2159 = vunpack.c.h.b16 %v400
    %v2160 = vunpack.c.l.b16 %v401
    %v2161 = vunpack.c.h.b16 %v401
    %v2162 = vunpack.c.l.b16 %v402
    %v2163 = vunpack.c.h.b16 %v402
    %v2164 = vunpack.c.l.b16 %v403
    %v2165 = vunpack.c.h.b16 %v403
    %v2166 = vunpack.c.l.b16 %v404
    %v2167 = vunpack.c.h.b16 %v404
    %v2168 = vunpack.c.l.b16 %v405
    %v2169 = vunpack.c.h.b16 %v405
    %v2170 = vunpack.c.l.b16 %v406
    %v2171 = vunpack.c.h.b16 %v406
    %v2172 = vunpack.c.l.b16 %v407
    %v2173 = vunpack.c.h.b16 %v407
    %v2174 = vunpack.c.l.b16 %v408
    %v2175 = vunpack.c.h.b16 %v408
    %v2176 = vunpack.c.l.b16 %v409
    %v2177 = vunpack.c.h.b16 %v409
    %v2178 = vunpack.c.l.b16 %v410
    %v2179 = vunpack.c.h.b16 %v410
    %v2180 = vunpack.c.l.b16 %v411
    %v2181 = vunpack.c.h.b16 %v411
    %v2182 = vunpack.c.l.b16 %v412
    %v2183 = vunpack.c.h.b16 %v412
    %v2184 = vunpack.c.l.b16 %v413
    %v2185 = vunpack.c.h.b16 %v413
    %v2186 = vunpack.c.l.b16 %v414
    %v2187 = vunpack.c.h.b16 %v414
    %v2188 = vunpack.c.l.b16 %v415
    %v2189 = vunpack.c.h.b16 %v415
    %v2190 = vunpack.c.l.b16 %v416
    %v2191 = vunpack.c.h.b16 %v416
    %v2192 = vunpack.c.l.b16 %v417
    %v2193 = vunpack.c.h.b16 %v417
    %v2194 = vunpack.c.l.b16 %v418
    %v2195 = vunpack.c.h.b16 %v418
    %v2196 = vunpack.c.l.b16 %v419
    %v2197 = vunpack.c.h.b16 %v419
    %v2198 = vunpack.c.l.b16 %v420
    %v2199 = vunpack.c.h.b16 %v420
    %v2200 = vunpack.c.l.b16 %v421
    %v2201 = vunpack.c.h.b16 %v421
    %v2202 = vunpack.c.l.b16 %v422
    %v2203 = vunpack.c.h.b16 %v422
    %v2204 = vunpack.c.l.b16 %v423
    %v2205 = vunpack.c.h.b16 %v423
    %v2206 = vunpack.c.l.b16 %v424
    %v2207 = vunpack.c.h.b16 %v424
    %v2208 = vunpack.c.l.b16 %v425
    %v2209 = vunpack.c.h.b16 %v425
    %v2210 = vunpack.c.l.b16 %v426
    %v2211 = vunpack.c.h.b16 %v426
    %v2212 = vunpack.c.l.b16 %v427
    %v2213 = vunpack.c.h.b16 %v427
    %v2214 = vunpack.c.l.b16 %v428
    %v2215 = vunpack.c.h.b16 %v428
    %v2216 = vunpack.c.l.b16 %v429
    %v2217 = vunpack.c.h.b16 %v429
    %v2218 = vunpack.c.l.b16 %v430
    %v2219 = vunpack.c.h.b16 %v430
    %v2220 = vunpack.c.l.b16 %v431
    %v2221 = vunpack.c.h.b16 %v431
    %v2222 = vunpack.c.l.b16 %v432
    %v2223 = vunpack.c.h.b16 %v432
    %v2224 = vunpack.c.l.b16 %v433
    %v2225 = vunpack.c.h.b16 %v433
    %v2226 = vunpack.c.l.b16 %v434
    %v2227 = vunpack.c.h.b16 %v434
    %v2228 = vunpack.c.l.b16 %v435
    %v2229 = vunpack.c.h.b16 %v435
    %v2230 = vunpack.c.l.b16 %v436
    %v2231 = vunpack.c.h.b16 %v436
    %v2232 = vunpack.c.l.b16 %v437
    %v2233 = vunpack.c.h.b16 %v437
    %v2234 = vunpack.c.l.b16 %v438
    %v2235 = vunpack.c.h.b16 %v438
    %v2236 = vunpack.c.l.b16 %v439
    %v2237 = vunpack.c.h.b16 %v439
    %v2238 = vunpack.c.l.b16 %v440
    %v2239 = vunpack.c.h.b16 %v440
    %v2240 = vunpack.c.l.b16 %v441
    %v2241 = vunpack.c.h.b16 %v441
    %v2242 = vunpack.c.l.b16 %v442
    %v2243 = vunpack.c.h.b16 %v442
    %v2244 = vunpack.c.l.b16 %v443
    %v2245 = vunpack.c.h.b16 %v443
    %v2246 = vunpack.c.l.b16 %v444
    %v2247 = vunpack.c.h.b16 %v444
    %v2248 = vunpack.c.l.b16 %v445
    %v2249 = vunpack.c.h.b16 %v445
    %v2250 = vunpack.c.l.b16 %v446
    %v2251 = vunpack.c.h.b16 %v446
    %v2252 = vunpack.c.l.b16 %v447
    %v2253 = vunpack.c.h.b16 %v447
    %v2254 = vunpack.c.l.b16 %v448
    %v2255 = vunpack.c.h.b16 %v448
    %v2256 = vunpack.c.l.b16 %v449
    %v2257 = vunpack.c.h.b16 %v449
    %v2258 = vunpack.c.l.b16 %v450
    %v2259 = vunpack.c.h.b16 %v450
    %v2260 = vunpack.c.l.b16 %v451
    %v2261 = vunpack.c.h.b16 %v451
    %v2262 = vunpack.c.l.b16 %v452
    %v2263 = vunpack.c.h.b16 %v452
    %v2264 = vunpack.c.l.b16 %v453
    %v2265 = vunpack.c.h.b16 %v453
    %v2266 = vunpack.c.l.b16 %v454
    %v2267 = vunpack.c.h.b16 %v454
    %v2268 = vunpack.c.l.b16 %v455
    %v2269 = vunpack.c.h.b16 %v455
    %v2270 = vunpack.c.l.b16 %v456
    %v2271 = vunpack.c.h.b16 %v456
    %v2272 = vunpack.c.l.b16 %v457
    %v2273 = vunpack.c.h.b16 %v457
    %v2274 = vunpack.c.l.b16 %v458
    %v2275 = vunpack.c.h.b16 %v458
    %v2276 = vunpack.c.l.b16 %v459
    %v2277 = vunpack.c.h.b16 %v459
    %v2278 = vunpack.c.l.b16 %v460
    %v2279 = vunpack.c.h.b16 %v460
    %v2280 = vunpack.c.l.b16 %v461
    %v2281 = vunpack.c.h.b16 %v461
    %v2282 = vunpack.c.l.b16 %v462
    %v2283 = vunpack.c.h.b16 %v462
    %v2284 = vunpack.c.l.b16 %v463
    %v2285 = vunpack.c.h.b16 %v463
    %v2286 = vunpack.c.l.b16 %v464
    %v2287 = vunpack.c.h.b16 %v464
    %v2288 = vunpack.c.l.b16 %v465
    %v2289 = vunpack.c.h.b16 %v465
    %v2290 = vunpack.c.l.b16 %v466
    %v2291 = vunpack.c.h.b16 %v466
    %v2292 = vunpack.c.l.b16 %v467
    %v2293 = vunpack.c.h.b16 %v467
    %v2294 = vunpack.c.l.b16 %v468
    %v2295 = vunpack.c.h.b16 %v468
    %v2296 = vunpack.c.l.b16 %v469
    %v2297 = vunpack.c.h.b16 %v469
    %v2298 = vunpack.c.l.b16 %v470
    %v2299 = vunpack.c.h.b16 %v470
    %v2300 = vunpack.c.l.b16 %v471
    %v2301 = vunpack.c.h.b16 %v471
    %v2302 = vunpack.c.l.b16 %v472
    %v2303 = vunpack.c.h.b16 %v472
    %v2304 = vunpack.c.l.b16 %v473
    %v2305 = vunpack.c.h.b16 %v473
    %v2306 = vunpack.c.l.b16 %v474
    %v2307 = vunpack.c.h.b16 %v474
    %v2308 = vunpack.c.l.b16 %v475
    %v2309 = vunpack.c.h.b16 %v475
    %v2310 = vunpack.c.l.b16 %v476
    %v2311 = vunpack.c.h.b16 %v476
    %v2312 = vunpack.c.l.b16 %v477
    %v2313 = vunpack.c.h.b16 %v477
    %v2314 = vunpack.c.l.b16 %v478
    %v2315 = vunpack.c.h.b16 %v478
    %v2316 = vunpack.c.l.b16 %v479
    %v2317 = vunpack.c.h.b16 %v479
    %v2318 = vunpack.c.l.b16 %v480
    %v2319 = vunpack.c.h.b16 %v480
    %v2320 = vunpack.c.l.b16 %v481
    %v2321 = vunpack.c.h.b16 %v481
    %v2322 = vunpack.c.l.b16 %v482
    %v2323 = vunpack.c.h.b16 %v482
    %v2324 = vunpack.c.l.b16 %v483
    %v2325 = vunpack.c.h.b16 %v483
    %v2326 = vunpack.c.l.b16 %v484
    %v2327 = vunpack.c.h.b16 %v484
    %v2328 = vunpack.c.l.b16 %v485
    %v2329 = vunpack.c.h.b16 %v485
    %v2330 = vunpack.c.l.b16 %v486
    %v2331 = vunpack.c.h.b16 %v486
    %v2332 = vunpack.c.l.b16 %v487
    %v2333 = vunpack.c.h.b16 %v487
    %v2334 = vunpack.c.l.b16 %v488
    %v2335 = vunpack.c.h.b16 %v488
    %v2336 = vunpack.c.l.b16 %v489
    %v2337 = vunpack.c.h.b16 %v489
    %v2338 = vunpack.c.l.b16 %v490
    %v2339 = vunpack.c.h.b16 %v490
    %v2340 = vunpack.c.l.b16 %v491
    %v2341 = vunpack.c.h.b16 %v491
    %v2342 = vunpack.c.l.b16 %v492
    %v2343 = vunpack.c.h.b16 %v492
    %v2344 = vunpack.c.l.b16 %v493
    %v2345 = vunpack.c.h.b16 %v493
    %v2346 = vunpack.c.l.b16 %v494
    %v2347 = vunpack.c.h.b16 %v494
    %v2348 = vunpack.c.l.b16 %v495
    %v2349 = vunpack.c.h.b16 %v495
    %v2350 = vunpack.c.l.b16 %v496
    %v2351 = vunpack.c.h.b16 %v496
    %v2352 = vunpack.c.l.b16 %v497
    %v2353 = vunpack.c.h.b16 %v497
    %v2354 = vunpack.c.l.b16 %v498
    %v2355 = vunpack.c.h.b16 %v498
    %v2356 = vunpack.c.l.b16 %v499
    %v2357 = vunpack.c.h.b16 %v499
    %v2358 = vunpack.c.l.b16 %v500
    %v2359 = vunpack.c.h.b16 %v500
    %v2360 = vunpack.c.l.b16 %v501
    %v2361 = vunpack.c.h.b16 %v501
    %v2362 = vunpack.c.l.b16 %v502
    %v2363 = vunpack.c.h.b16 %v502
    %v2364 = vunpack.c.l.b16 %v503
    %v2365 = vunpack.c.h.b16 %v503
    %v2366 = vunpack.c.l.b16 %v504
    %v2367 = vunpack.c.h.b16 %v504
    %v2368 = vunpack.c.l.b16 %v505
    %v2369 = vunpack.c.h.b16 %v505
    %v2370 = vunpack.c.l.b16 %v506
    %v2371 = vunpack.c.h.b16 %v506
    %v2372 = vunpack.c.l.b16 %v507
    %v2373 = vunpack.c.h.b16 %v507
    %v2374 = vunpack.c.l.b16 %v508
    %v2375 = vunpack.c.h.b16 %v508
    %v2376 = vunpack.c.l.b16 %v509
    %v2377 = vunpack.c.h.b16 %v509
    %v2378 = vunpack.c.l.b16 %v510
    %v2379 = vunpack.c.h.b16 %v510
    %v2380 = vunpack.c.l.b16 %v511
    %v2381 = vunpack.c.h.b16 %v511
    %v2382 = vunpack.c.l.b16 %v512
    %v2383 = vunpack.c.h.b16 %v512
    %v2384 = vunpack.c.l.b16 %v513
    %v2385 = vunpack.c.h.b16 %v513
    %v2386 = vunpack.c.l.b16 %v514
    %v2387 = vunpack.c.h.b16 %v514
    %v2388 = vunpack.c.l.b16 %v515
    %v2389 = vunpack.c.h.b16 %v515
    %v2390 = vunpack.c.l.b16 %v516
    %v2391 = vunpack.c.h.b16 %v516
    %v2392 = vunpack.c.l.b16 %v517
    %v2393 = vunpack.c.h.b16 %v517
    %v2394 = vunpack.c.l.b16 %v518
    %v2395 = vunpack.c.h.b16 %v518
    %v2396 = vunpack.c.l.b16 %v519
    %v2397 = vunpack.c.h.b16 %v519
    %v2398 = vunpack.c.l.b16 %v520
    %v2399 = vunpack.c.h.b16 %v520
    %v2400 = vunpack.c.l.b16 %v521
    %v2401 = vunpack.c.h.b16 %v521
    %v2402 = vunpack.c.l.b16 %v522
    %v2403 = vunpack.c.h.b16 %v522
    %v2404 = vunpack.c.l.b16 %v523
    %v2405 = vunpack.c.h.b16 %v523
    %v2406 = vunpack.c.l.b16 %v524
    %v2407 = vunpack.c.h.b16 %v524
    %v2408 = vunpack.c.l.b16 %v525
    %v2409 = vunpack.c.h.b16 %v525
    %v2410 = vunpack.c.l.b16 %v526
    %v2411 = vunpack.c.h.b16 %v526
    %v2412 = vunpack.c.l.b16 %v527
    %v2413 = vunpack.c.h.b16 %v527
    %v2414 = vunpack.c.l.b16 %v528
    %v2415 = vunpack.c.h.b16 %v528
    %v2416 = vunpack.c.l.b16 %v529
    %v2417 = vunpack.c.h.b16 %v529
    %v2418 = vunpack.c.l.b16 %v530
    %v2419 = vunpack.c.h.b16 %v530
    %v2420 = vunpack.c.l.b16 %v531
    %v2421 = vunpack.c.h.b16 %v531
    %v2422 = vunpack.c.l.b16 %v532
    %v2423 = vunpack.c.h.b16 %v532
    %v2424 = vunpack.c.l.b16 %v533
    %v2425 = vunpack.c.h.b16 %v533
    %v2426 = vunpack.c.l.b16 %v534
    %v2427 = vunpack.c.h.b16 %v534
    %v2428 = vunpack.c.l.b16 %v535
    %v2429 = vunpack.c.h.b16 %v535
    %v2430 = vunpack.c.l.b16 %v536
    %v2431 = vunpack.c.h.b16 %v536
    %v2432 = vunpack.c.l.b16 %v537
    %v2433 = vunpack.c.h.b16 %v537
    %v2434 = vunpack.c.l.b16 %v538
    %v2435 = vunpack.c.h.b16 %v538
    %v2436 = vunpack.c.l.b16 %v539
    %v2437 = vunpack.c.h.b16 %v539
    %v2438 = vunpack.c.l.b16 %v540
    %v2439 = vunpack.c.h.b16 %v540
    %v2440 = vunpack.c.l.b16 %v541
    %v2441 = vunpack.c.h.b16 %v541
    %v2442 = vunpack.c.l.b16 %v542
    %v2443 = vunpack.c.h.b16 %v542
    %v2444 = vunpack.c.l.b16 %v543
    %v2445 = vunpack.c.h.b16 %v543
    %v2446 = vunpack.c.l.b16 %v544
    %v2447 = vunpack.c.h.b16 %v544
    %v2448 = vunpack.c.l.b16 %v545
    %v2449 = vunpack.c.h.b16 %v545
    %v2450 = vunpack.c.l.b16 %v546
    %v2451 = vunpack.c.h.b16 %v546
    %v2452 = vunpack.c.l.b16 %v547
    %v2453 = vunpack.c.h.b16 %v547
    %v2454 = vunpack.c.l.b16 %v548
    %v2455 = vunpack.c.h.b16 %v548
    %v2456 = vunpack.c.l.b16 %v549
    %v2457 = vunpack.c.h.b16 %v549
    %v2458 = vunpack.c.l.b16 %v550
    %v2459 = vunpack.c.h.b16 %v550
    %v2460 = vunpack.c.l.b16 %v551
    %v2461 = vunpack.c.h.b16 %v551
    %v2462 = vunpack.c.l.b16 %v552
    %v2463 = vunpack.c.h.b16 %v552
    %v2464 = vunpack.c.l.b16 %v553
    %v2465 = vunpack.c.h.b16 %v553
    %v2466 = vunpack.c.l.b16 %v554
    %v2467 = vunpack.c.h.b16 %v554
    %v2468 = vunpack.c.l.b16 %v555
    %v2469 = vunpack.c.h.b16 %v555
    %v2470 = vunpack.c.l.b16 %v556
    %v2471 = vunpack.c.h.b16 %v556
    %v2472 = vunpack.c.l.b16 %v557
    %v2473 = vunpack.c.h.b16 %v557
    %v2474 = vunpack.c.l.b16 %v558
    %v2475 = vunpack.c.h.b16 %v558
    %v2476 = vunpack.c.l.b16 %v559
    %v2477 = vunpack.c.h.b16 %v559
    %v2478 = vunpack.c.l.b16 %v560
    %v2479 = vunpack.c.h.b16 %v560
    %v2480 = vunpack.c.l.b16 %v561
    %v2481 = vunpack.c.h.b16 %v561
    %v2482 = vunpack.c.l.b16 %v562
    %v2483 = vunpack.c.h.b16 %v562
    %v2484 = vunpack.c.l.b16 %v563
    %v2485 = vunpack.c.h.b16 %v563
    %v2486 = vunpack.c.l.b16 %v564
    %v2487 = vunpack.c.h.b16 %v564
    %v2488 = vunpack.c.l.b16 %v565
    %v2489 = vunpack.c.h.b16 %v565
    %v2490 = vunpack.c.l.b16 %v566
    %v2491 = vunpack.c.h.b16 %v566
    %v2492 = vunpack.c.l.b16 %v567
    %v2493 = vunpack.c.h.b16 %v567
    %v2494 = vunpack.c.l.b16 %v568
    %v2495 = vunpack.c.h.b16 %v568
    %v2496 = vunpack.c.l.b16 %v569
    %v2497 = vunpack.c.h.b16 %v569
    %v2498 = vunpack.c.l.b16 %v570
    %v2499 = vunpack.c.h.b16 %v570
    %v2500 = vunpack.c.l.b16 %v571
    %v2501 = vunpack.c.h.b16 %v571
    %v2502 = vunpack.c.l.b16 %v572
    %v2503 = vunpack.c.h.b16 %v572
    %v2504 = vunpack.c.l.b16 %v573
    %v2505 = vunpack.c.h.b16 %v573
    %v2506 = vunpack.c.l.b16 %v574
    %v2507 = vunpack.c.h.b16 %v574
    %v2508 = vunpack.c.l.b16 %v575
    %v2509 = vunpack.c.h.b16 %v575
    %v2510 = vunpack.c.l.b16 %v576
    %v2511 = vunpack.c.h.b16 %v576
    %v2512 = vunpack.c.l.b16 %v577
    %v2513 = vunpack.c.h.b16 %v577
    %v2514 = vunpack.c.l.b16 %v578
    %v2515 = vunpack.c.h.b16 %v578
    %v2516 = vunpack.c.l.b16 %v579
    %v2517 = vunpack.c.h.b16 %v579
    %v2518 = vunpack.c.l.b16 %v580
    %v2519 = vunpack.c.h.b16 %v580
    %v2520 = vunpack.c.l.b16 %v581
    %v2521 = vunpack.c.h.b16 %v581
    %v2522 = vunpack.c.l.b16 %v582
    %v2523 = vunpack.c.h.b16 %v582
    %v2524 = vunpack.c.l.b16 %v583
    %v2525 = vunpack.c.h.b16 %v583
    %v2526 = vunpack.c.l.b16 %v584
    %v2527 = vunpack.c.h.b16 %v584
    %v2528 = vunpack.c.l.b16 %v585
    %v2529 = vunpack.c.h.b16 %v585
    %v2530 = vunpack.c.l.b16 %v586
    %v2531 = vunpack.c.h.b16 %v586
    %v2532 = vunpack.c.l.b16 %v587
    %v2533 = vunpack.c.h.b16 %v587
    %v2534 = vunpack.c.l.b16 %v588
    %v2535 = vunpack.c.h.b16 %v588
    %v2536 = vunpack.c.l.b16 %v589
    %v2537 = vunpack.c.h.b16 %v589
    %v2538 = vunpack.c.l.b16 %v590
    %v2539 = vunpack.c.h.b16 %v590
    %v2540 = vunpack.c.l.b16 %v591
    %v2541 = vunpack.c.h.b16 %v591
    %v2542 = vunpack.c.l.b16 %v592
    %v2543 = vunpack.c.h.b16 %v592
    %v2544 = vunpack.c.l.b16 %v593
    %v2545 = vunpack.c.h.b16 %v593
    %v2546 = vunpack.c.l.b16 %v594
    %v2547 = vunpack.c.h.b16 %v594
    %v2548 = vunpack.c.l.b16 %v595
    %v2549 = vunpack.c.h.b16 %v595
    %v2550 = vunpack.c.l.b16 %v596
    %v2551 = vunpack.c.h.b16 %v596
    %v2552 = vunpack.c.l.b16 %v597
    %v2553 = vunpack.c.h.b16 %v597
    %v2554 = vunpack.c.l.b16 %v598
    %v2555 = vunpack.c.h.b16 %v598
    %v2556 = vunpack.c.l.b16 %v599
    %v2557 = vunpack.c.h.b16 %v599
    %v2558 = vunpack.c.l.b16 %v600
    %v2559 = vunpack.c.h.b16 %v600
    %v2560 = vunpack.c.l.b16 %v601
    %v2561 = vunpack.c.h.b16 %v601
    %v2562 = vunpack.c.l.b16 %v602
    %v2563 = vunpack.c.h.b16 %v602
    %v2564 = vunpack.c.l.b16 %v603
    %v2565 = vunpack.c.h.b16 %v603
    %v2566 = vunpack.c.l.b16 %v604
    %v2567 = vunpack.c.h.b16 %v604
    %v2568 = vunpack.c.l.b16 %v605
    %v2569 = vunpack.c.h.b16 %v605
    %v2570 = vunpack.c.l.b16 %v606
    %v2571 = vunpack.c.h.b16 %v606
    %v2572 = vunpack.c.l.b16 %v607
    %v2573 = vunpack.c.h.b16 %v607
    %v2574 = vunpack.c.l.b16 %v608
    %v2575 = vunpack.c.h.b16 %v608
    %v2576 = vunpack.c.l.b16 %v609
    %v2577 = vunpack.c.h.b16 %v609
    %v2578 = vunpack.c.l.b16 %v610
    %v2579 = vunpack.c.h.b16 %v610
    %v2580 = vunpack.c.l.b16 %v611
    %v2581 = vunpack.c.h.b16 %v611
    %v2582 = vunpack.c.l.b16 %v612
    %v2583 = vunpack.c.h.b16 %v612
    %v2584 = vunpack.c.l.b16 %v613
    %v2585 = vunpack.c.h.b16 %v613
    %v2586 = vunpack.c.l.b16 %v614
    %v2587 = vunpack.c.h.b16 %v614
    %v2588 = vunpack.c.l.b16 %v615
    %v2589 = vunpack.c.h.b16 %v615
    %v2590 = vunpack.c.l.b16 %v616
    %v2591 = vunpack.c.h.b16 %v616
    %v2592 = vunpack.c.l.b16 %v617
    %v2593 = vunpack.c.h.b16 %v617
    %v2594 = vunpack.c.l.b16 %v618
    %v2595 = vunpack.c.h.b16 %v618
    %v2596 = vunpack.c.l.b16 %v619
    %v2597 = vunpack.c.h.b16 %v619
    %v2598 = vunpack.c.l.b16 %v620
    %v2599 = vunpack.c.h.b16 %v620
    %v2600 = vunpack.c.l.b16 %v621
    %v2601 = vunpack.c.h.b16 %v621
    %v2602 = vunpack.c.l.b16 %v622
    %v2603 = vunpack.c.h.b16 %v622
    %v2604 = vunpack.c.l.b16 %v623
    %v2605 = vunpack.c.h.b16 %v623
    %v2606 = vunpack.c.l.b16 %v624
    %v2607 = vunpack.c.h.b16 %v624
    %v2608 = vunpack.c.l.b16 %v625
    %v2609 = vunpack.c.h.b16 %v625
    %v2610 = vunpack.c.l.b16 %v626
    %v2611 = vunpack.c.h.b16 %v626
    %v2612 = vunpack.c.l.b16 %v627
    %v2613 = vunpack.c.h.b16 %v627
    %v2614 = vunpack.c.l.b16 %v628
    %v2615 = vunpack.c.h.b16 %v628
    %v2616 = vunpack.c.l.b16 %v629
    %v2617 = vunpack.c.h.b16 %v629
    %v2618 = vunpack.c.l.b16 %v630
    %v2619 = vunpack.c.h.b16 %v630
    %v2620 = vunpack.c.l.b16 %v631
    %v2621 = vunpack.c.h.b16 %v631
    %v2622 = vunpack.c.l.b16 %v632
    %v2623 = vunpack.c.h.b16 %v632
    %v2624 = vunpack.c.l.b16 %v633
    %v2625 = vunpack.c.h.b16 %v633
    %v2626 = vunpack.c.l.b16 %v634
    %v2627 = vunpack.c.h.b16 %v634
    %v2628 = vunpack.c.l.b16 %v635
    %v2629 = vunpack.c.h.b16 %v635
    %v2630 = vunpack.c.l.b16 %v636
    %v2631 = vunpack.c.h.b16 %v636
    %v2632 = vunpack.c.l.b16 %v637
    %v2633 = vunpack.c.h.b16 %v637
    %v2634 = vunpack.c.l.b16 %v638
    %v2635 = vunpack.c.h.b16 %v638
    %v2636 = vunpack.c.l.b16 %v639
    %v2637 = vunpack.c.h.b16 %v639
    %v2638 = vunpack.c.l.b16 %v640
    %v2639 = vunpack.c.h.b16 %v640
    %v2640 = vunpack.c.l.b16 %v641
    %v2641 = vunpack.c.h.b16 %v641
    %v2642 = vunpack.c.l.b16 %v642
    %v2643 = vunpack.c.h.b16 %v642
    %v2644 = vunpack.c.l.b16 %v643
    %v2645 = vunpack.c.h.b16 %v643
    %v2646 = vunpack.c.l.b16 %v644
    %v2647 = vunpack.c.h.b16 %v644
    %v2648 = vunpack.c.l.b16 %v645
    %v2649 = vunpack.c.h.b16 %v645
    %v2650 = vunpack.c.l.b16 %v646
    %v2651 = vunpack.c.h.b16 %v646
    %v2652 = vunpack.c.l.b16 %v647
    %v2653 = vunpack.c.h.b16 %v647
    %v2654 = vunpack.c.l.b16 %v648
    %v2655 = vunpack.c.h.b16 %v648
    %v2656 = vunpack.c.l.b16 %v649
    %v2657 = vunpack.c.h.b16 %v649
    %v2658 = vunpack.c.l.b16 %v650
    %v2659 = vunpack.c.h.b16 %v650
    %v2660 = vunpack.c.l.b16 %v651
    %v2661 = vunpack.c.h.b16 %v651
    %v2662 = vunpack.c.l.b16 %v652
    %v2663 = vunpack.c.h.b16 %v652
    %v2664 = vunpack.c.l.b16 %v653
    %v2665 = vunpack.c.h.b16 %v653
    %v2666 = vunpack.c.l.b16 %v654
    %v2667 = vunpack.c.h.b16 %v654
    %v2668 = vunpack.c.l.b16 %v655
    %v2669 = vunpack.c.h.b16 %v655
    %v2670 = vunpack.c.l.b16 %v656
    %v2671 = vunpack.c.h.b16 %v656
    %v2672 = vunpack.c.l.b16 %v657
    %v2673 = vunpack.c.h.b16 %v657
    %v2674 = vunpack.c.l.b16 %v658
    %v2675 = vunpack.c.h.b16 %v658
    %v2676 = vunpack.c.l.b16 %v659
    %v2677 = vunpack.c.h.b16 %v659
    %v2678 = vunpack.c.l.b16 %v660
    %v2679 = vunpack.c.h.b16 %v660
    %v2680 = vunpack.c.l.b16 %v661
    %v2681 = vunpack.c.h.b16 %v661
    %v2682 = vunpack.c.l.b16 %v662
    %v2683 = vunpack.c.h.b16 %v662
    %v2684 = vunpack.c.l.b16 %v663
    %v2685 = vunpack.c.h.b16 %v663
    %v2686 = vunpack.c.l.b16 %v664
    %v2687 = vunpack.c.h.b16 %v664
    %v2688 = vunpack.c.l.b16 %v665
    %v2689 = vunpack.c.h.b16 %v665
    %v2690 = vunpack.c.l.b16 %v666
    %v2691 = vunpack.c.h.b16 %v666
    %v2692 = vunpack.c.l.b16 %v667
    %v2693 = vunpack.c.h.b16 %v667
    %v2694 = vunpack.c.l.b16 %v668
    %v2695 = vunpack.c.h.b16 %v668
    %v2696 = vunpack.c.l.b16 %v669
    %v2697 = vunpack.c.h.b16 %v669
    %v2698 = vunpack.c.l.b16 %v670
    %v2699 = vunpack.c.h.b16 %v670
    %v2700 = vunpack.c.l.b16 %v671
    %v2701 = vunpack.c.h.b16 %v671
    %v2702 = vunpack.c.l.b16 %v672
    %v2703 = vunpack.c.h.b16 %v672
    %v2704 = vunpack.c.l.b16 %v673
    %v2705 = vunpack.c.h.b16 %v673
    %v2706 = vunpack.c.l.b16 %v674
    %v2707 = vunpack.c.h.b16 %v674
    %v2708 = vunpack.c.l.b16 %v675
    %v2709 = vunpack.c.h.b16 %v675
    %v2710 = vunpack.c.l.b16 %v676
    %v2711 = vunpack.c.h.b16 %v676
    %v2712 = vunpack.c.l.b16 %v677
    %v2713 = vunpack.c.h.b16 %v677
    %v2714 = vunpack.c.l.b16 %v678
    %v2715 = vunpack.c.h.b16 %v678
    %v2716 = vunpack.c.l.b16 %v679
    %v2717 = vunpack.c.h.b16 %v679
    %v2718 = vunpack.c.l.b16 %v680
    %v2719 = vunpack.c.h.b16 %v680
    %v2720 = vunpack.c.l.b16 %v681
    %v2721 = vunpack.c.h.b16 %v681
    %v2722 = vunpack.c.l.b16 %v682
    %v2723 = vunpack.c.h.b16 %v682
    %v2724 = vunpack.c.l.b16 %v683
    %v2725 = vunpack.c.h.b16 %v683
    %v2726 = vunpack.c.l.b16 %v684
    %v2727 = vunpack.c.h.b16 %v684
    %v2728 = vunpack.c.l.b16 %v685
    %v2729 = vunpack.c.h.b16 %v685
    %v2730 = vunpack.c.l.b16 %v686
    %v2731 = vunpack.c.h.b16 %v686
    %v2732 = vunpack.c.l.b16 %v687
    %v2733 = vunpack.c.h.b16 %v687
    %v2734 = vunpack.c.l.b16 %v688
    %v2735 = vunpack.c.h.b16 %v688
    %v2736 = vunpack.c.l.b16 %v689
    %v2737 = vunpack.c.h.b16 %v689
    %v2738 = vunpack.c.l.b16 %v690
    %v2739 = vunpack.c.h.b16 %v690
    %v2740 = vunpack.c.l.b16 %v691
    %v2741 = vunpack.c.h.b16 %v691
    %v2742 = vunpack.c.l.b16 %v692
    %v2743 = vunpack.c.h.b16 %v692
    %v2744 = vunpack.c.l.b16 %v693
    %v2745 = vunpack.c.h.b16 %v693
    %v2746 = vunpack.c.l.b16 %v694
    %v2747 = vunpack.c.h.b16 %v694
    %v2748 = vunpack.c.l.b16 %v695
    %v2749 = vunpack.c.h.b16 %v695
    %v2750 = vunpack.c.l.b16 %v696
    %v2751 = vunpack.c.h.b16 %v696
    %v2752 = vunpack.c.l.b16 %v697
    %v2753 = vunpack.c.h.b16 %v697
    %v2754 = vunpack.c.l.b16 %v698
    %v2755 = vunpack.c.h.b16 %v698
    %v2756 = vunpack.c.l.b16 %v699
    %v2757 = vunpack.c.h.b16 %v699
    %v2758 = vunpack.c.l.b16 %v700
    %v2759 = vunpack.c.h.b16 %v700
    %v2760 = vunpack.c.l.b16 %v701
    %v2761 = vunpack.c.h.b16 %v701
    %v2762 = vunpack.c.l.b16 %v702
    %v2763 = vunpack.c.h.b16 %v702
    %v2764 = vunpack.c.l.b16 %v703
    %v2765 = vunpack.c.h.b16 %v703
    %v2766 = vunpack.c.l.b16 %v704
    %v2767 = vunpack.c.h.b16 %v704
    %v2768 = vunpack.c.l.b16 %v705
    %v2769 = vunpack.c.h.b16 %v705
    %v2770 = vunpack.c.l.b16 %v706
    %v2771 = vunpack.c.h.b16 %v706
    %v2772 = vunpack.c.l.b16 %v707
    %v2773 = vunpack.c.h.b16 %v707
    %v2774 = vunpack.c.l.b16 %v708
    %v2775 = vunpack.c.h.b16 %v708
    %v2776 = vunpack.c.l.b16 %v709
    %v2777 = vunpack.c.h.b16 %v709
    %v2778 = vunpack.c.l.b16 %v710
    %v2779 = vunpack.c.h.b16 %v710
    %v2780 = vunpack.c.l.b16 %v711
    %v2781 = vunpack.c.h.b16 %v711
    %v2782 = vunpack.c.l.b16 %v712
    %v2783 = vunpack.c.h.b16 %v712
    %v2784 = vunpack.c.l.b16 %v713
    %v2785 = vunpack.c.h.b16 %v713
    %v2786 = vunpack.c.l.b16 %v714
    %v2787 = vunpack.c.h.b16 %v714
    %v2788 = vunpack.c.l.b16 %v715
    %v2789 = vunpack.c.h.b16 %v715
    %v2790 = vunpack.c.l.b16 %v716
    %v2791 = vunpack.c.h.b16 %v716
    %v2792 = vunpack.c.l.b16 %v717
    %v2793 = vunpack.c.h.b16 %v717
    %v2794 = vunpack.c.l.b16 %v718
    %v2795 = vunpack.c.h.b16 %v718
    %v2796 = vunpack.c.l.b16 %v719
    %v2797 = vunpack.c.h.b16 %v719
    %v2798 = vunpack.c.l.b16 %v720
    %v2799 = vunpack.c.h.b16 %v720
    %v2800 = vunpack.c.l.b16 %v721
    %v2801 = vunpack.c.h.b16 %v721
    %v2802 = vunpack.c.l.b16 %v722
    %v2803 = vunpack.c.h.b16 %v722
    %v2804 = vunpack.c.l.b16 %v723
    %v2805 = vunpack.c.h.b16 %v723
    %v2806 = vunpack.c.l.b16 %v724
    %v2807 = vunpack.c.h.b16 %v724
    %v2808 = vunpack.c.l.b16 %v725
    %v2809 = vunpack.c.h.b16 %v725
    %v2810 = vunpack.c.l.b16 %v726
    %v2811 = vunpack.c.h.b16 %v726
    %v2812 = vunpack.c.l.b16 %v727
    %v2813 = vunpack.c.h.b16 %v727
    %v2814 = vunpack.c.l.b16 %v728
    %v2815 = vunpack.c.h.b16 %v728
    %v2816 = vunpack.c.l.b16 %v729
    %v2817 = vunpack.c.h.b16 %v729
    %v2818 = vunpack.c.l.b16 %v730
    %v2819 = vunpack.c.h.b16 %v730
    %v2820 = vunpack.c.l.b16 %v731
    %v2821 = vunpack.c.h.b16 %v731
    %v2822 = vunpack.c.l.b16 %v732
    %v2823 = vunpack.c.h.b16 %v732
    %v2824 = vunpack.c.l.b16 %v733
    %v2825 = vunpack.c.h.b16 %v733
    %v2826 = vunpack.c.l.b16 %v734
    %v2827 = vunpack.c.h.b16 %v734
    %v2828 = vunpack.c.l.b16 %v735
    %v2829 = vunpack.c.h.b16 %v735
    %v2830 = vunpack.c.l.b16 %v736
    %v2831 = vunpack.c.h.b16 %v736
    %v2832 = vunpack.c.l.b16 %v737
    %v2833 = vunpack.c.h.b16 %v737
    %v2834 = vunpack.c.l.b16 %v738
    %v2835 = vunpack.c.h.b16 %v738
    %v2836 = vunpack.c.l.b16 %v739
    %v2837 = vunpack.c.h.b16 %v739
    %v2838 = vunpack.c.l.b16 %v740
    %v2839 = vunpack.c.h.b16 %v740
    %v2840 = vunpack.c.l.b16 %v741
    %v2841 = vunpack.c.h.b16 %v741
    %v2842 = vunpack.c.l.b16 %v742
    %v2843 = vunpack.c.h.b16 %v742
    %v2844 = vunpack.c.l.b16 %v743
    %v2845 = vunpack.c.h.b16 %v743
    %v2846 = vunpack.c.l.b16 %v744
    %v2847 = vunpack.c.h.b16 %v744
    %v2848 = vunpack.c.l.b16 %v745
    %v2849 = vunpack.c.h.b16 %v745
    %v2850 = vunpack.c.l.b16 %v746
    %v2851 = vunpack.c.h.b16 %v746
    %v2852 = vunpack.c.l.b16 %v747
    %v2853 = vunpack.c.h.b16 %v747
    %v2854 = vunpack.c.l.b16 %v748
    %v2855 = vunpack.c.h.b16 %v748
    %v2856 = vunpack.c.l.b16 %v749
    %v2857 = vunpack.c.h.b16 %v749
    %v2858 = vunpack.c.l.b16 %v750
    %v2859 = vunpack.c.h.b16 %v750
    %v2860 = vunpack.c.l.b16 %v751
    %v2861 = vunpack.c.h.b16 %v751
    %v2862 = vunpack.c.l.b16 %v752
    %v2863 = vunpack.c.h.b16 %v752
    %v2864 = vunpack.c.l.b16 %v753
    %v2865 = vunpack.c.h.b16 %v753
    %v2866 = vunpack.c.l.b16 %v754
    %v2867 = vunpack.c.h.b16 %v754
    %v2868 = vunpack.c.l.b16 %v755
    %v2869 = vunpack.c.h.b16 %v755
    %v2870 = vunpack.c.l.b16 %v756
    %v2871 = vunpack.c.h.b16 %v756
    %v2872 = vunpack.c.l.b16 %v757
    %v2873 = vunpack.c.h.b16 %v757
    %v2874 = vunpack.c.l.b16 %v758
    %v2875 = vunpack.c.h.b16 %v758
    %v2876 = vunpack.c.l.b16 %v759
    %v2877 = vunpack.c.h.b16 %v759
    %v2878 = vunpack.c.l.b16 %v760
    %v2879 = vunpack.c.h.b16 %v760
    %v2880 = vunpack.c.l.b16 %v761
    %v2881 = vunpack.c.h.b16 %v761
    %v2882 = vunpack.c.l.b16 %v762
    %v2883 = vunpack.c.h.b16 %v762
    %v2884 = vunpack.c.l.b16 %v763
    %v2885 = vunpack.c.h.b16 %v763
    %v2886 = vunpack.c.l.b16 %v764
    %v2887 = vunpack.c.h.b16 %v764
    %v2888 = vunpack.c.l.b16 %v765
    %v2889 = vunpack.c.h.b16 %v765
    %v2890 = vunpack.c.l.b16 %v766
    %v2891 = vunpack.c.h.b16 %v766
    %v2892 = vunpack.c.l.b16 %v767
    %v2893 = vunpack.c.h.b16 %v767
    %v2894 = vunpack.c.l.b16 %v768
    %v2895 = vunpack.c.h.b16 %v768
    %v2896 = vunpack.c.l.b16 %v769
    %v2897 = vunpack.c.h.b16 %v769
    %v2898 = vunpack.c.l.b16 %v770
    %v2899 = vunpack.c.h.b16 %v770
    %v2900 = vunpack.c.l.b16 %v771
    %v2901 = vunpack.c.h.b16 %v771
    %v2902 = vunpack.c.l.b16 %v772
    %v2903 = vunpack.c.h.b16 %v772
    %v2904 = vunpack.c.l.b16 %v773
    %v2905 = vunpack.c.h.b16 %v773
    %v2906 = vunpack.c.l.b16 %v774
    %v2907 = vunpack.c.h.b16 %v774
    %v2908 = vunpack.c.l.b16 %v775
    %v2909 = vunpack.c.h.b16 %v775
    %v2910 = vunpack.c.l.b16 %v776
    %v2911 = vunpack.c.h.b16 %v776
    %v2912 = vunpack.c.l.b16 %v777
    %v2913 = vunpack.c.h.b16 %v777
    %v2914 = vunpack.c.l.b16 %v778
    %v2915 = vunpack.c.h.b16 %v778
    %v2916 = vunpack.c.l.b16 %v779
    %v2917 = vunpack.c.h.b16 %v779
    %v2918 = vunpack.c.l.b16 %v780
    %v2919 = vunpack.c.h.b16 %v780
    %v2920 = vunpack.c.l.b16 %v781
    %v2921 = vunpack.c.h.b16 %v781
    %v2922 = vunpack.c.l.b16 %v782
    %v2923 = vunpack.c.h.b16 %v782
    %v2924 = vunpack.c.l.b16 %v783
    %v2925 = vunpack.c.h.b16 %v783
    %v2926 = vunpack.c.l.b16 %v784
    %v2927 = vunpack.c.h.b16 %v784
    %v2928 = vunpack.c.l.b16 %v785
    %v2929 = vunpack.c.h.b16 %v785
    %v2930 = vunpack.c.l.b16 %v786
    %v2931 = vunpack.c.h.b16 %v786
    %v2932 = vunpack.c.l.b16 %v787
    %v2933 = vunpack.c.h.b16 %v787
    %v2934 = vunpack.c.l.b16 %v788
    %v2935 = vunpack.c.h.b16 %v788
    %v2936 = vunpack.c.l.b16 %v789
    %v2937 = vunpack.c.h.b16 %v789
    %v2938 = vunpack.c.l.b16 %v790
    %v2939 = vunpack.c.h.b16 %v790
    %v2940 = vunpack.c.l.b16 %v791
    %v2941 = vunpack.c.h.b16 %v791
    %v2942 = vunpack.c.l.b16 %v792
    %v2943 = vunpack.c.h.b16 %v792
    %v2944 = vunpack.c.l.b16 %v793
    %v2945 = vunpack.c.h.b16 %v793
    %v2946 = vunpack.c.l.b16 %v794
    %v2947 = vunpack.c.h.b16 %v794
    %v2948 = vunpack.c.l.b16 %v795
    %v2949 = vunpack.c.h.b16 %v795
    %v2950 = vunpack.c.l.b16 %v796
    %v2951 = vunpack.c.h.b16 %v796
    %v2952 = vunpack.c.l.b16 %v797
    %v2953 = vunpack.c.h.b16 %v797
    %v2954 = vunpack.c.l.b16 %v798
    %v2955 = vunpack.c.h.b16 %v798
    %v2956 = vunpack.c.l.b16 %v799
    %v2957 = vunpack.c.h.b16 %v799
    %v2958 = vunpack.c.l.b16 %v800
    %v2959 = vunpack.c.h.b16 %v800
    %v2960 = vunpack.c.l.b16 %v801
    %v2961 = vunpack.c.h.b16 %v801
    %v2962 = vunpack.c.l.b16 %v802
    %v2963 = vunpack.c.h.b16 %v802
    %v2964 = vunpack.c.l.b16 %v803
    %v2965 = vunpack.c.h.b16 %v803
    %v2966 = vunpack.c.l.b16 %v804
    %v2967 = vunpack.c.h.b16 %v804
    %v2968 = vunpack.c.l.b16 %v805
    %v2969 = vunpack.c.h.b16 %v805
    %v2970 = vunpack.c.l.b16 %v806
    %v2971 = vunpack.c.h.b16 %v806
    %v2972 = vunpack.c.l.b16 %v807
    %v2973 = vunpack.c.h.b16 %v807
    %v2974 = vunpack.c.l.b16 %v808
    %v2975 = vunpack.c.h.b16 %v808
    %v2976 = vunpack.c.l.b16 %v809
    %v2977 = vunpack.c.h.b16 %v809
    %v2978 = vunpack.c.l.b16 %v810
    %v2979 = vunpack.c.h.b16 %v810
    %v2980 = vunpack.c.l.b16 %v811
    %v2981 = vunpack.c.h.b16 %v811
    %v2982 = vunpack.c.l.b16 %v812
    %v2983 = vunpack.c.h.b16 %v812
    %v2984 = vunpack.c.l.b16 %v813
    %v2985 = vunpack.c.h.b16 %v813
    %v2986 = vunpack.c.l.b16 %v814
    %v2987 = vunpack.c.h.b16 %v814
    %v2988 = vunpack.c.l.b16 %v815
    %v2989 = vunpack.c.h.b16 %v815
    %v2990 = vunpack.c.l.b16 %v816
    %v2991 = vunpack.c.h.b16 %v816
    %v2992 = vunpack.c.l.b16 %v817
    %v2993 = vunpack.c.h.b16 %v817
    %v2994 = vunpack.c.l.b16 %v818
    %v2995 = vunpack.c.h.b16 %v818
    %v2996 = vunpack.c.l.b16 %v819
    %v2997 = vunpack.c.h.b16 %v819
    %v2998 = vunpack.c.l.b16 %v820
    %v2999 = vunpack.c.h.b16 %v820
    %v3000 = vunpack.c.l.b16 %v821
    %v3001 = vunpack.c.h.b16 %v821
    %v3002 = vunpack.c.l.b16 %v822
    %v3003 = vunpack.c.h.b16 %v822
    %v3004 = vunpack.c.l.b16 %v823
    %v3005 = vunpack.c.h.b16 %v823
    %v3006 = vunpack.c.l.b16 %v824
    %v3007 = vunpack.c.h.b16 %v824
    %v3008 = vunpack.c.l.b16 %v825
    %v3009 = vunpack.c.h.b16 %v825
    %v3010 = vunpack.c.l.b16 %v826
    %v3011 = vunpack.c.h.b16 %v826
    %v3012 = vunpack.c.l.b16 %v827
    %v3013 = vunpack.c.h.b16 %v827
    %v3014 = vunpack.c.l.b16 %v828
    %v3015 = vunpack.c.h.b16 %v828
    %v3016 = vunpack.c.l.b16 %v829
    %v3017 = vunpack.c.h.b16 %v829
    %v3018 = vunpack.c.l.b16 %v830
    %v3019 = vunpack.c.h.b16 %v830
    %v3020 = vunpack.c.l.b16 %v831
    %v3021 = vunpack.c.h.b16 %v831
    %v3022 = vunpack.c.l.b16 %v832
    %v3023 = vunpack.c.h.b16 %v832
    %v3024 = vunpack.c.l.b16 %v833
    %v3025 = vunpack.c.h.b16 %v833
    %v3026 = vunpack.c.l.b16 %v834
    %v3027 = vunpack.c.h.b16 %v834
    %v3028 = vunpack.c.l.b16 %v835
    %v3029 = vunpack.c.h.b16 %v835
    %v3030 = vunpack.c.l.b16 %v836
    %v3031 = vunpack.c.h.b16 %v836
    %v3032 = vunpack.c.l.b16 %v837
    %v3033 = vunpack.c.h.b16 %v837
    %v3034 = vunpack.c.l.b16 %v838
    %v3035 = vunpack.c.h.b16 %v838
    %v3036 = vunpack.c.l.b16 %v839
    %v3037 = vunpack.c.h.b16 %v839
    %v3038 = vunpack.c.l.b16 %v840
    %v3039 = vunpack.c.h.b16 %v840
    %v3040 = vunpack.c.l.b16 %v841
    %v3041 = vunpack.c.h.b16 %v841
    %v3042 = vunpack.c.l.b16 %v842
    %v3043 = vunpack.c.h.b16 %v842
    %v3044 = vunpack.c.l.b16 %v843
    %v3045 = vunpack.c.h.b16 %v843
    %v3046 = vunpack.c.l.b16 %v844
    %v3047 = vunpack.c.h.b16 %v844
    %v3048 = vunpack.c.l.b16 %v845
    %v3049 = vunpack.c.h.b16 %v845
    %v3050 = vunpack.c.l.b16 %v846
    %v3051 = vunpack.c.h.b16 %v846
    %v3052 = vunpack.c.l.b16 %v847
    %v3053 = vunpack.c.h.b16 %v847
    %v3054 = vunpack.c.l.b16 %v848
    %v3055 = vunpack.c.h.b16 %v848
    %v3056 = vunpack.c.l.b16 %v849
    %v3057 = vunpack.c.h.b16 %v849
    %v3058 = vunpack.c.l.b16 %v850
    %v3059 = vunpack.c.h.b16 %v850
    %v3060 = vunpack.c.l.b16 %v851
    %v3061 = vunpack.c.h.b16 %v851
    %v3062 = vunpack.c.l.b16 %v852
    %v3063 = vunpack.c.h.b16 %v852
    %v3064 = vunpack.c.l.b16 %v853
    %v3065 = vunpack.c.h.b16 %v853
    %v3066 = vunpack.c.l.b16 %v854
    %v3067 = vunpack.c.h.b16 %v854
    %v3068 = vunpack.c.l.b16 %v855
    %v3069 = vunpack.c.h.b16 %v855
    %v3070 = vunpack.c.l.b16 %v856
    %v3071 = vunpack.c.h.b16 %v856
    %v3072 = vunpack.c.l.b16 %v857
    %v3073 = vunpack.c.h.b16 %v857
    %v3074 = vunpack.c.l.b16 %v858
    %v3075 = vunpack.c.h.b16 %v858
    %v3076 = vunpack.c.l.b16 %v859
    %v3077 = vunpack.c.h.b16 %v859
    %v3078 = vunpack.c.l.b16 %v860
    %v3079 = vunpack.c.h.b16 %v860
    %v3080 = vunpack.c.l.b16 %v861
    %v3081 = vunpack.c.h.b16 %v861
    %v3082 = vunpack.c.l.b16 %v862
    %v3083 = vunpack.c.h.b16 %v862
    %v3084 = vunpack.c.l.b16 %v863
    %v3085 = vunpack.c.h.b16 %v863
    %v3086 = vunpack.c.l.b16 %v864
    %v3087 = vunpack.c.h.b16 %v864
    %v3088 = vunpack.c.l.b16 %v865
    %v3089 = vunpack.c.h.b16 %v865
    %v3090 = vunpack.c.l.b16 %v866
    %v3091 = vunpack.c.h.b16 %v866
    %v3092 = vunpack.c.l.b16 %v867
    %v3093 = vunpack.c.h.b16 %v867
    %v3094 = vunpack.c.l.b16 %v868
    %v3095 = vunpack.c.h.b16 %v868
    %v3096 = vunpack.c.l.b16 %v869
    %v3097 = vunpack.c.h.b16 %v869
    %v3098 = vunpack.c.l.b16 %v870
    %v3099 = vunpack.c.h.b16 %v870
    %v3100 = vunpack.c.l.b16 %v871
    %v3101 = vunpack.c.h.b16 %v871
    %v3102 = vunpack.c.l.b16 %v872
    %v3103 = vunpack.c.h.b16 %v872
    %v3104 = vunpack.c.l.b16 %v873
    %v3105 = vunpack.c.h.b16 %v873
    %v3106 = vunpack.c.l.b16 %v874
    %v3107 = vunpack.c.h.b16 %v874
    %v3108 = vunpack.c.l.b16 %v875
    %v3109 = vunpack.c.h.b16 %v875
    %v3110 = vunpack.c.l.b16 %v876
    %v3111 = vunpack.c.h.b16 %v876
    %v3112 = vunpack.c.l.b16 %v877
    %v3113 = vunpack.c.h.b16 %v877
    %v3114 = vunpack.c.l.b16 %v878
    %v3115 = vunpack.c.h.b16 %v878
    %v3116 = vunpack.c.l.b16 %v879
    %v3117 = vunpack.c.h.b16 %v879
    %v3118 = vunpack.c.l.b16 %v880
    %v3119 = vunpack.c.h.b16 %v880
    %v3120 = vunpack.c.l.b16 %v881
    %v3121 = vunpack.c.h.b16 %v881
    %v3122 = vunpack.c.l.b16 %v882
    %v3123 = vunpack.c.h.b16 %v882
    %v3124 = vunpack.c.l.b16 %v883
    %v3125 = vunpack.c.h.b16 %v883
    %v3126 = vunpack.c.l.b16 %v884
    %v3127 = vunpack.c.h.b16 %v884
    %v3128 = vunpack.c.l.b16 %v885
    %v3129 = vunpack.c.h.b16 %v885
    %v3130 = vunpack.c.l.b16 %v886
    %v3131 = vunpack.c.h.b16 %v886
    %v3132 = vunpack.c.l.b16 %v887
    %v3133 = vunpack.c.h.b16 %v887
    %v3134 = vunpack.c.l.b16 %v888
    %v3135 = vunpack.c.h.b16 %v888
    %v3136 = vunpack.c.l.b16 %v889
    %v3137 = vunpack.c.h.b16 %v889
    %v3138 = vunpack.c.l.b16 %v890
    %v3139 = vunpack.c.h.b16 %v890
    %v3140 = vunpack.c.l.b16 %v891
    %v3141 = vunpack.c.h.b16 %v891
    %v3142 = vunpack.c.l.b16 %v892
    %v3143 = vunpack.c.h.b16 %v892
    %v3144 = vunpack.c.l.b16 %v893
    %v3145 = vunpack.c.h.b16 %v893
    %v3146 = vunpack.c.l.b16 %v894
    %v3147 = vunpack.c.h.b16 %v894
    %v3148 = vunpack.c.l.b16 %v895
    %v3149 = vunpack.c.h.b16 %v895
    %v3150 = vunpack.c.l.b16 %v896
    %v3151 = vunpack.c.h.b16 %v896
    %v3152 = vunpack.c.l.b16 %v897
    %v3153 = vunpack.c.h.b16 %v897
    %v3154 = vunpack.c.l.b16 %v898
    %v3155 = vunpack.c.h.b16 %v898
    %v3156 = vunpack.c.l.b16 %v899
    %v3157 = vunpack.c.h.b16 %v899
    %v3158 = vunpack.c.l.b16 %v900
    %v3159 = vunpack.c.h.b16 %v900
    %v3160 = vunpack.c.l.b16 %v901
    %v3161 = vunpack.c.h.b16 %v901
    %v3162 = vunpack.c.l.b16 %v902
    %v3163 = vunpack.c.h.b16 %v902
    %v3164 = vunpack.c.l.b16 %v903
    %v3165 = vunpack.c.h.b16 %v903
    %v3166 = vunpack.c.l.b16 %v904
    %v3167 = vunpack.c.h.b16 %v904
    %v3168 = vunpack.c.l.b16 %v905
    %v3169 = vunpack.c.h.b16 %v905
    %v3170 = vunpack.c.l.b16 %v906
    %v3171 = vunpack.c.h.b16 %v906
    %v3172 = vunpack.c.l.b16 %v907
    %v3173 = vunpack.c.h.b16 %v907
    %v3174 = vunpack.c.l.b16 %v908
    %v3175 = vunpack.c.h.b16 %v908
    %v3176 = vunpack.c.l.b16 %v909
    %v3177 = vunpack.c.h.b16 %v909
    %v3178 = vunpack.c.l.b16 %v910
    %v3179 = vunpack.c.h.b16 %v910
    %v3180 = vunpack.c.l.b16 %v911
    %v3181 = vunpack.c.h.b16 %v911
    %v3182 = vunpack.c.l.b16 %v912
    %v3183 = vunpack.c.h.b16 %v912
    %v3184 = vunpack.c.l.b16 %v913
    %v3185 = vunpack.c.h.b16 %v913
    %v3186 = vunpack.c.l.b16 %v914
    %v3187 = vunpack.c.h.b16 %v914
    %v3188 = vunpack.c.l.b16 %v915
    %v3189 = vunpack.c.h.b16 %v915
    %v3190 = vunpack.c.l.b16 %v916
    %v3191 = vunpack.c.h.b16 %v916
    %v3192 = vunpack.c.l.b16 %v917
    %v3193 = vunpack.c.h.b16 %v917
    %v3194 = vunpack.c.l.b16 %v918
    %v3195 = vunpack.c.h.b16 %v918
    %v3196 = vunpack.c.l.b16 %v919
    %v3197 = vunpack.c.h.b16 %v919
    %v3198 = vunpack.c.l.b16 %v920
    %v3199 = vunpack.c.h.b16 %v920
    %v3200 = vunpack.c.l.b16 %v921
    %v3201 = vunpack.c.h.b16 %v921
    %v3202 = vunpack.c.l.b16 %v922
    %v3203 = vunpack.c.h.b16 %v922
    %v3204 = vunpack.c.l.b16 %v923
    %v3205 = vunpack.c.h.b16 %v923
    %v3206 = vunpack.c.l.b16 %v924
    %v3207 = vunpack.c.h.b16 %v924
    %v3208 = vunpack.c.l.b16 %v925
    %v3209 = vunpack.c.h.b16 %v925
    %v3210 = vunpack.c.l.b16 %v926
    %v3211 = vunpack.c.h.b16 %v926
    %v3212 = vunpack.c.l.b16 %v927
    %v3213 = vunpack.c.h.b16 %v927
    %v3214 = vunpack.c.l.b16 %v928
    %v3215 = vunpack.c.h.b16 %v928
    %v3216 = vunpack.c.l.b16 %v929
    %v3217 = vunpack.c.h.b16 %v929
    %v3218 = vunpack.c.l.b16 %v930
    %v3219 = vunpack.c.h.b16 %v930
    %v3220 = vunpack.c.l.b16 %v931
    %v3221 = vunpack.c.h.b16 %v931
    %v3222 = vunpack.c.l.b16 %v932
    %v3223 = vunpack.c.h.b16 %v932
    %v3224 = vunpack.c.l.b16 %v933
    %v3225 = vunpack.c.h.b16 %v933
    %v3226 = vunpack.c.l.b16 %v934
    %v3227 = vunpack.c.h.b16 %v934
    %v3228 = vunpack.c.l.b16 %v935
    %v3229 = vunpack.c.h.b16 %v935
    %v3230 = vunpack.c.l.b16 %v936
    %v3231 = vunpack.c.h.b16 %v936
    %v3232 = vunpack.c.l.b16 %v937
    %v3233 = vunpack.c.h.b16 %v937
    %v3234 = vunpack.c.l.b16 %v938
    %v3235 = vunpack.c.h.b16 %v938
    %v3236 = vunpack.c.l.b16 %v939
    %v3237 = vunpack.c.h.b16 %v939
    %v3238 = vunpack.c.l.b16 %v940
    %v3239 = vunpack.c.h.b16 %v940
    %v3240 = vunpack.c.l.b16 %v941
    %v3241 = vunpack.c.h.b16 %v941
    %v3242 = vunpack.c.l.b16 %v942
    %v3243 = vunpack.c.h.b16 %v942
    %v3244 = vunpack.c.l.b16 %v943
    %v3245 = vunpack.c.h.b16 %v943
    %v3246 = vunpack.c.l.b16 %v944
    %v3247 = vunpack.c.h.b16 %v944
    %v3248 = vunpack.c.l.b16 %v945
    %v3249 = vunpack.c.h.b16 %v945
    %v3250 = vunpack.c.l.b16 %v946
    %v3251 = vunpack.c.h.b16 %v946
    %v3252 = vunpack.c.l.b16 %v947
    %v3253 = vunpack.c.h.b16 %v947
    %v3254 = vunpack.c.l.b16 %v948
    %v3255 = vunpack.c.h.b16 %v948
    %v3256 = vunpack.c.l.b16 %v949
    %v3257 = vunpack.c.h.b16 %v949
    %v3258 = vunpack.c.l.b16 %v950
    %v3259 = vunpack.c.h.b16 %v950
    %v3260 = vunpack.c.l.b16 %v951
    %v3261 = vunpack.c.h.b16 %v951
    %v3262 = vunpack.c.l.b16 %v952
    %v3263 = vunpack.c.h.b16 %v952
    %v3264 = vunpack.c.l.b16 %v953
    %v3265 = vunpack.c.h.b16 %v953
    %v3266 = vunpack.c.l.b16 %v954
    %v3267 = vunpack.c.h.b16 %v954
    %v3268 = vunpack.c.l.b16 %v955
    %v3269 = vunpack.c.h.b16 %v955
    %v3270 = vunpack.c.l.b16 %v956
    %v3271 = vunpack.c.h.b16 %v956
    %v3272 = vunpack.c.l.b16 %v957
    %v3273 = vunpack.c.h.b16 %v957
    %v3274 = vunpack.c.l.b16 %v958
    %v3275 = vunpack.c.h.b16 %v958
    %v3276 = vunpack.c.l.b16 %v959
    %v3277 = vunpack.c.h.b16 %v959
    %v3278 = vunpack.c.l.b16 %v960
    %v3279 = vunpack.c.h.b16 %v960
    %v3280 = vunpack.c.l.b16 %v961
    %v3281 = vunpack.c.h.b16 %v961
    %v3282 = vunpack.c.l.b16 %v962
    %v3283 = vunpack.c.h.b16 %v962
    %v3284 = vunpack.c.l.b16 %v963
    %v3285 = vunpack.c.h.b16 %v963
    %v3286 = vunpack.c.l.b16 %v964
    %v3287 = vunpack.c.h.b16 %v964
    %v3288 = vunpack.c.l.b16 %v965
    %v3289 = vunpack.c.h.b16 %v965
    %v3290 = vunpack.c.l.b16 %v966
    %v3291 = vunpack.c.h.b16 %v966
    %v3292 = vunpack.c.l.b16 %v967
    %v3293 = vunpack.c.h.b16 %v967
    %v3294 = vunpack.c.l.b16 %v968
    %v3295 = vunpack.c.h.b16 %v968
    %v3296 = vunpack.c.l.b16 %v969
    %v3297 = vunpack.c.h.b16 %v969
    %v3298 = vunpack.c.l.b16 %v970
    %v3299 = vunpack.c.h.b16 %v970
    %v3300 = vunpack.c.l.b16 %v971
    %v3301 = vunpack.c.h.b16 %v971
    %v3302 = vunpack.c.l.b16 %v972
    %v3303 = vunpack.c.h.b16 %v972
    %v3304 = vunpack.c.l.b16 %v973
    %v3305 = vunpack.c.h.b16 %v973
    %v3306 = vunpack.c.l.b16 %v974
    %v3307 = vunpack.c.h.b16 %v974
    %v3308 = vunpack.c.l.b16 %v975
    %v3309 = vunpack.c.h.b16 %v975
    %v3310 = vunpack.c.l.b16 %v976
    %v3311 = vunpack.c.h.b16 %v976
    %v3312 = vunpack.c.l.b16 %v977
    %v3313 = vunpack.c.h.b16 %v977
    %v3314 = vunpack.c.l.b16 %v978
    %v3315 = vunpack.c.h.b16 %v978
    %v3316 = vunpack.c.l.b16 %v979
    %v3317 = vunpack.c.h.b16 %v979
    %v3318 = vunpack.c.l.b16 %v980
    %v3319 = vunpack.c.h.b16 %v980
    %v3320 = vunpack.c.l.b16 %v981
    %v3321 = vunpack.c.h.b16 %v981
    %v3322 = vunpack.c.l.b16 %v982
    %v3323 = vunpack.c.h.b16 %v982
    %v3324 = vunpack.c.l.b16 %v983
    %v3325 = vunpack.c.h.b16 %v983
    %v3326 = vunpack.c.l.b16 %v984
    %v3327 = vunpack.c.h.b16 %v984
    %v3328 = vunpack.c.l.b16 %v985
    %v3329 = vunpack.c.h.b16 %v985
    %v3330 = vunpack.c.l.b16 %v986
    %v3331 = vunpack.c.h.b16 %v986
    %v3332 = vunpack.c.l.b16 %v987
    %v3333 = vunpack.c.h.b16 %v987
    %v3334 = vunpack.c.l.b16 %v988
    %v3335 = vunpack.c.h.b16 %v988
    %v3336 = vunpack.c.l.b16 %v989
    %v3337 = vunpack.c.h.b16 %v989
    %v3338 = vunpack.c.l.b16 %v990
    %v3339 = vunpack.c.h.b16 %v990
    %v3340 = vunpack.c.l.b16 %v991
    %v3341 = vunpack.c.h.b16 %v991
    %v3342 = vunpack.c.l.b16 %v992
    %v3343 = vunpack.c.h.b16 %v992
    %v3344 = vunpack.c.l.b16 %v993
    %v3345 = vunpack.c.h.b16 %v993
    %v3346 = vunpack.c.l.b16 %v994
    %v3347 = vunpack.c.h.b16 %v994
    %v3348 = vunpack.c.l.b16 %v995
    %v3349 = vunpack.c.h.b16 %v995
    %v3350 = vunpack.c.l.b16 %v996
    %v3351 = vunpack.c.h.b16 %v996
    %v3352 = vunpack.c.l.b16 %v997
    %v3353 = vunpack.c.h.b16 %v997
    %v3354 = vunpack.c.l.b16 %v998
    %v3355 = vunpack.c.h.b16 %v998
    %v3356 = vunpack.c.l.b16 %v999
    %v3357 = vunpack.c.h.b16 %v999
    %v3358 = vunpack.c.l.b16 %v1000
    %v3359 = vunpack.c.h.b16 %v1000
    %v3360 = vunpack.c.l.b16 %v1001
    %v3361 = vunpack.c.h.b16 %v1001
    %v3362 = vunpack.c.l.b16 %v1002
    %v3363 = vunpack.c.h.b16 %v1002
    %v3364 = vunpack.c.l.b16 %v1003
    %v3365 = vunpack.c.h.b16 %v1003
    %v3366 = vunpack.c.l.b16 %v1004
    %v3367 = vunpack.c.h.b16 %v1004
    %v3368 = vunpack.c.l.b16 %v1005
    %v3369 = vunpack.c.h.b16 %v1005
    %v3370 = vunpack.c.l.b16 %v1006
    %v3371 = vunpack.c.h.b16 %v1006
    %v3372 = vunpack.c.l.b16 %v1007
    %v3373 = vunpack.c.h.b16 %v1007
    %v3374 = vunpack.c.l.b16 %v1008
    %v3375 = vunpack.c.h.b16 %v1008
    %v3376 = vunpack.c.l.b16 %v1009
    %v3377 = vunpack.c.h.b16 %v1009
    %v3378 = vunpack.c.l.b16 %v1010
    %v3379 = vunpack.c.h.b16 %v1010
    %v3380 = vunpack.c.l.b16 %v1011
    %v3381 = vunpack.c.h.b16 %v1011
    %v3382 = vunpack.c.l.b16 %v1012
    %v3383 = vunpack.c.h.b16 %v1012
    %v3384 = vunpack.c.l.b16 %v1013
    %v3385 = vunpack.c.h.b16 %v1013
    %v3386 = vunpack.c.l.b16 %v1014
    %v3387 = vunpack.c.h.b16 %v1014
    %v3388 = vunpack.c.l.b16 %v1015
    %v3389 = vunpack.c.h.b16 %v1015
    %v3390 = vunpack.c.l.b16 %v1016
    %v3391 = vunpack.c.h.b16 %v1016
    %v3392 = vunpack.c.l.b16 %v1017
    %v3393 = vunpack.c.h.b16 %v1017
    %v3394 = vunpack.c.l.b16 %v1018
    %v3395 = vunpack.c.h.b16 %v1018
    %v3396 = vunpack.c.l.b16 %v1019
    %v3397 = vunpack.c.h.b16 %v1019
    %v3398 = vunpack.c.l.b16 %v1020
    %v3399 = vunpack.c.h.b16 %v1020
    %v3400 = vunpack.c.l.b16 %v1021
    %v3401 = vunpack.c.h.b16 %v1021
    %v3402 = vunpack.c.l.b16 %v1022
    %v3403 = vunpack.c.h.b16 %v1022
    %v3404 = vunpack.c.l.b16 %v1023
    %v3405 = vunpack.c.h.b16 %v1023
    %v3406 = vunpack.c.l.b16 %v1024
    %v3407 = vunpack.c.h.b16 %v1024
    %v3408 = vunpack.c.l.b16 %v1025
    %v3409 = vunpack.c.h.b16 %v1025
    %v3410 = vunpack.c.l.b16 %v1026
    %v3411 = vunpack.c.h.b16 %v1026
    %v3412 = vunpack.c.l.b16 %v1027
    %v3413 = vunpack.c.h.b16 %v1027
    %v3414 = vunpack.c.l.b16 %v1028
    %v3415 = vunpack.c.h.b16 %v1028
    %v3416 = vunpack.c.l.b16 %v1029
    %v3417 = vunpack.c.h.b16 %v1029
    %v3418 = vunpack.c.l.b16 %v1030
    %v3419 = vunpack.c.h.b16 %v1030
    %v3420 = vunpack.c.l.b16 %v1031
    %v3421 = vunpack.c.h.b16 %v1031
    %v3422 = vunpack.c.l.b16 %v1032
    %v3423 = vunpack.c.h.b16 %v1032
    %v3424 = vunpack.c.l.b16 %v1033
    %v3425 = vunpack.c.h.b16 %v1033
    %v3426 = vunpack.c.l.b16 %v1034
    %v3427 = vunpack.c.h.b16 %v1034
    %v3428 = vunpack.c.l.b16 %v1035
    %v3429 = vunpack.c.h.b16 %v1035
    %v3430 = vunpack.c.l.b16 %v1036
    %v3431 = vunpack.c.h.b16 %v1036
    %v3432 = vunpack.c.l.b16 %v1037
    %v3433 = vunpack.c.h.b16 %v1037
    %v3434 = vunpack.c.l.b16 %v1038
    %v3435 = vunpack.c.h.b16 %v1038
    %v3436 = vunpack.c.l.b16 %v1039
    %v3437 = vunpack.c.h.b16 %v1039
    %v3438 = vunpack.c.l.b16 %v1040
    %v3439 = vunpack.c.h.b16 %v1040
    %v3440 = vunpack.c.l.b16 %v1041
    %v3441 = vunpack.c.h.b16 %v1041
    %v3442 = vunpack.c.l.b16 %v1042
    %v3443 = vunpack.c.h.b16 %v1042
    %v3444 = vunpack.c.l.b16 %v1043
    %v3445 = vunpack.c.h.b16 %v1043
    %v3446 = vunpack.c.l.b16 %v1044
    %v3447 = vunpack.c.h.b16 %v1044
    %v3448 = vunpack.c.l.b16 %v1045
    %v3449 = vunpack.c.h.b16 %v1045
    %v3450 = vunpack.c.l.b16 %v1046
    %v3451 = vunpack.c.h.b16 %v1046
    %v3452 = vunpack.c.l.b16 %v1047
    %v3453 = vunpack.c.h.b16 %v1047
    %v3454 = vunpack.c.l.b16 %v1048
    %v3455 = vunpack.c.h.b16 %v1048
    %v3456 = vunpack.c.l.b16 %v1049
    %v3457 = vunpack.c.h.b16 %v1049
    %v3458 = vunpack.c.l.b16 %v1050
    %v3459 = vunpack.c.h.b16 %v1050
    %v3460 = vunpack.c.l.b16 %v1051
    %v3461 = vunpack.c.h.b16 %v1051
    %v3462 = vunpack.c.l.b16 %v1052
    %v3463 = vunpack.c.h.b16 %v1052
    %v3464 = vunpack.c.l.b16 %v1053
    %v3465 = vunpack.c.h.b16 %v1053
    %v3466 = vpack.c.b16 %v1938, %v1930
    %v3467 = vpack.c.b16 %v1939, %v1931
    %v3468 = vpack.c.b16 %v1940, %v1932
    %v3469 = vpack.c.b16 %v1941, %v1933
    %v3470 = vpack.c.b16 %v1942, %v1934
    %v3471 = vpack.c.b16 %v1943, %v1935
    %v3472 = vpack.c.b16 %v1944, %v1936
    %v3473 = vpack.c.b16 %v1945, %v1937
    %v3474 = vpack.c.b16 %v1954, %v1946
    %v3475 = vpack.c.b16 %v1955, %v1947
    %v3476 = vpack.c.b16 %v1956, %v1948
    %v3477 = vpack.c.b16 %v1957, %v1949
    %v3478 = vpack.c.b16 %v1958, %v1950
    %v3479 = vpack.c.b16 %v1959, %v1951
    %v3480 = vpack.c.b16 %v1960, %v1952
    %v3481 = vpack.c.b16 %v1961, %v1953
    %v3482 = vpack.c.b16 %v1970, %v1962
    %v3483 = vpack.c.b16 %v1971, %v1963
    %v3484 = vpack.c.b16 %v1972, %v1964
    %v3485 = vpack.c.b16 %v1973, %v1965
    %v3486 = vpack.c.b16 %v1974, %v1966
    %v3487 = vpack.c.b16 %v1975, %v1967
    %v3488 = vpack.c.b16 %v1976, %v1968
    %v3489 = vpack.c.b16 %v1977, %v1969
    %v3490 = vpack.c.b16 %v1986, %v1978
    %v3491 = vpack.c.b16 %v1987, %v1979
    %v3492 = vpack.c.b16 %v1988, %v1980
    %v3493 = vpack.c.b16 %v1989, %v1981
    %v3494 = vpack.c.b16 %v1990, %v1982
    %v3495 = vpack.c.b16 %v1991, %v1983
    %v3496 = vpack.c.b16 %v1992, %v1984
    %v3497 = vpack.c.b16 %v1993, %v1985
    %v3498 = vpack.c.b16 %v2002, %v1994
    %v3499 = vpack.c.b16 %v2003, %v1995
    %v3500 = vpack.c.b16 %v2004, %v1996
    %v3501 = vpack.c.b16 %v2005, %v1997
    %v3502 = vpack.c.b16 %v2006, %v1998
    %v3503 = vpack.c.b16 %v2007, %v1999
    %v3504 = vpack.c.b16 %v2008, %v2000
    %v3505 = vpack.c.b16 %v2009, %v2001
    %v3506 = vpack.c.b16 %v2018, %v2010
    %v3507 = vpack.c.b16 %v2019, %v2011
    %v3508 = vpack.c.b16 %v2020, %v2012
    %v3509 = vpack.c.b16 %v2021, %v2013
    %v3510 = vpack.c.b16 %v2022, %v2014
    %v3511 = vpack.c.b16 %v2023, %v2015
    %v3512 = vpack.c.b16 %v2024, %v2016
    %v3513 = vpack.c.b16 %v2025, %v2017
    %v3514 = vpack.c.b16 %v2034, %v2026
    %v3515 = vpack.c.b16 %v2035, %v2027
    %v3516 = vpack.c.b16 %v2036, %v2028
    %v3517 = vpack.c.b16 %v2037, %v2029
    %v3518 = vpack.c.b16 %v2038, %v2030
    %v3519 = vpack.c.b16 %v2039, %v2031
    %v3520 = vpack.c.b16 %v2040, %v2032
    %v3521 = vpack.c.b16 %v2041, %v2033
    %v3522 = vpack.c.b16 %v2050, %v2042
    %v3523 = vpack.c.b16 %v2051, %v2043
    %v3524 = vpack.c.b16 %v2052, %v2044
    %v3525 = vpack.c.b16 %v2053, %v2045
    %v3526 = vpack.c.b16 %v2054, %v2046
    %v3527 = vpack.c.b16 %v2055, %v2047
    %v3528 = vpack.c.b16 %v2056, %v2048
    %v3529 = vpack.c.b16 %v2057, %v2049
    %v3530 = vpack.c.b16 %v2066, %v2058
    %v3531 = vpack.c.b16 %v2067, %v2059
    %v3532 = vpack.c.b16 %v2068, %v2060
    %v3533 = vpack.c.b16 %v2069, %v2061
    %v3534 = vpack.c.b16 %v2070, %v2062
    %v3535 = vpack.c.b16 %v2071, %v2063
    %v3536 = vpack.c.b16 %v2072, %v2064
    %v3537 = vpack.c.b16 %v2073, %v2065
    %v3538 = vpack.c.b16 %v2082, %v2074
    %v3539 = vpack.c.b16 %v2083, %v2075
    %v3540 = vpack.c.b16 %v2084, %v2076
    %v3541 = vpack.c.b16 %v2085, %v2077
    %v3542 = vpack.c.b16 %v2086, %v2078
    %v3543 = vpack.c.b16 %v2087, %v2079
    %v3544 = vpack.c.b16 %v2088, %v2080
    %v3545 = vpack.c.b16 %v2089, %v2081
    %v3546 = vpack.c.b16 %v2098, %v2090
    %v3547 = vpack.c.b16 %v2099, %v2091
    %v3548 = vpack.c.b16 %v2100, %v2092
    %v3549 = vpack.c.b16 %v2101, %v2093
    %v3550 = vpack.c.b16 %v2102, %v2094
    %v3551 = vpack.c.b16 %v2103, %v2095
    %v3552 = vpack.c.b16 %v2104, %v2096
    %v3553 = vpack.c.b16 %v2105, %v2097
    %v3554 = vpack.c.b16 %v2114, %v2106
    %v3555 = vpack.c.b16 %v2115, %v2107
    %v3556 = vpack.c.b16 %v2116, %v2108
    %v3557 = vpack.c.b16 %v2117, %v2109
    %v3558 = vpack.c.b16 %v2118, %v2110
    %v3559 = vpack.c.b16 %v2119, %v2111
    %v3560 = vpack.c.b16 %v2120, %v2112
    %v3561 = vpack.c.b16 %v2121, %v2113
    %v3562 = vpack.c.b16 %v2130, %v2122
    %v3563 = vpack.c.b16 %v2131, %v2123
    %v3564 = vpack.c.b16 %v2132, %v2124
    %v3565 = vpack.c.b16 %v2133, %v2125
    %v3566 = vpack.c.b16 %v2134, %v2126
    %v3567 = vpack.c.b16 %v2135, %v2127
    %v3568 = vpack.c.b16 %v2136, %v2128
    %v3569 = vpack.c.b16 %v2137, %v2129
    %v3570 = vpack.c.b16 %v2146, %v2138
    %v3571 = vpack.c.b16 %v2147, %v2139
    %v3572 = vpack.c.b16 %v2148, %v2140
    %v3573 = vpack.c.b16 %v2149, %v2141
    %v3574 = vpack.c.b16 %v2150, %v2142
    %v3575 = vpack.c.b16 %v2151, %v2143
    %v3576 = vpack.c.b16 %v2152, %v2144
    %v3577 = vpack.c.b16 %v2153, %v2145
    %v3578 = vpack.c.b16 %v2162, %v2154
    %v3579 = vpack.c.b16 %v2163, %v2155
    %v3580 = vpack.c.b16 %v2164, %v2156
    %v3581 = vpack.c.b16 %v2165, %v2157
    %v3582 = vpack.c.b16 %v2166, %v2158
    %v3583 = vpack.c.b16 %v2167, %v2159
    %v3584 = vpack.c.b16 %v2168, %v2160
    %v3585 = vpack.c.b16 %v2169, %v2161
    %v3586 = vpack.c.b16 %v2178, %v2170
    %v3587 = vpack.c.b16 %v2179, %v2171
    %v3588 = vpack.c.b16 %v2180, %v2172
    %v3589 = vpack.c.b16 %v2181, %v2173
    %v3590 = vpack.c.b16 %v2182, %v2174
    %v3591 = vpack.c.b16 %v2183, %v2175
    %v3592 = vpack.c.b16 %v2184, %v2176
    %v3593 = vpack.c.b16 %v2185, %v2177
    %v3594 = vpack.c.b16 %v2194, %v2186
    %v3595 = vpack.c.b16 %v2195, %v2187
    %v3596 = vpack.c.b16 %v2196, %v2188
    %v3597 = vpack.c.b16 %v2197, %v2189
    %v3598 = vpack.c.b16 %v2198, %v2190
    %v3599 = vpack.c.b16 %v2199, %v2191
    %v3600 = vpack.c.b16 %v2200, %v2192
    %v3601 = vpack.c.b16 %v2201, %v2193
    %v3602 = vpack.c.b16 %v2210, %v2202
    %v3603 = vpack.c.b16 %v2211, %v2203
    %v3604 = vpack.c.b16 %v2212, %v2204
    %v3605 = vpack.c.b16 %v2213, %v2205
    %v3606 = vpack.c.b16 %v2214, %v2206
    %v3607 = vpack.c.b16 %v2215, %v2207
    %v3608 = vpack.c.b16 %v2216, %v2208
    %v3609 = vpack.c.b16 %v2217, %v2209
    %v3610 = vpack.c.b16 %v2226, %v2218
    %v3611 = vpack.c.b16 %v2227, %v2219
    %v3612 = vpack.c.b16 %v2228, %v2220
    %v3613 = vpack.c.b16 %v2229, %v2221
    %v3614 = vpack.c.b16 %v2230, %v2222
    %v3615 = vpack.c.b16 %v2231, %v2223
    %v3616 = vpack.c.b16 %v2232, %v2224
    %v3617 = vpack.c.b16 %v2233, %v2225
    %v3618 = vpack.c.b16 %v2242, %v2234
    %v3619 = vpack.c.b16 %v2243, %v2235
    %v3620 = vpack.c.b16 %v2244, %v2236
    %v3621 = vpack.c.b16 %v2245, %v2237
    %v3622 = vpack.c.b16 %v2246, %v2238
    %v3623 = vpack.c.b16 %v2247, %v2239
    %v3624 = vpack.c.b16 %v2248, %v2240
    %v3625 = vpack.c.b16 %v2249, %v2241
    %v3626 = vpack.c.b16 %v2258, %v2250
    %v3627 = vpack.c.b16 %v2259, %v2251
    %v3628 = vpack.c.b16 %v2260, %v2252
    %v3629 = vpack.c.b16 %v2261, %v2253
    %v3630 = vpack.c.b16 %v2262, %v2254
    %v3631 = vpack.c.b16 %v2263, %v2255
    %v3632 = vpack.c.b16 %v2264, %v2256
    %v3633 = vpack.c.b16 %v2265, %v2257
    %v3634 = vpack.c.b16 %v2274, %v2266
    %v3635 = vpack.c.b16 %v2275, %v2267
    %v3636 = vpack.c.b16 %v2276, %v2268
    %v3637 = vpack.c.b16 %v2277, %v2269
    %v3638 = vpack.c.b16 %v2278, %v2270
    %v3639 = vpack.c.b16 %v2279, %v2271
    %v3640 = vpack.c.b16 %v2280, %v2272
    %v3641 = vpack.c.b16 %v2281, %v2273
    %v3642 = vpack.c.b16 %v2290, %v2282
    %v3643 = vpack.c.b16 %v2291, %v2283
    %v3644 = vpack.c.b16 %v2292, %v2284
    %v3645 = vpack.c.b16 %v2293, %v2285
    %v3646 = vpack.c.b16 %v2294, %v2286
    %v3647 = vpack.c.b16 %v2295, %v2287
    %v3648 = vpack.c.b16 %v2296, %v2288
    %v3649 = vpack.c.b16 %v2297, %v2289
    %v3650 = vpack.c.b16 %v2306, %v2298
    %v3651 = vpack.c.b16 %v2307, %v2299
    %v3652 = vpack.c.b16 %v2308, %v2300
    %v3653 = vpack.c.b16 %v2309, %v2301
    %v3654 = vpack.c.b16 %v2310, %v2302
    %v3655 = vpack.c.b16 %v2311, %v2303
    %v3656 = vpack.c.b16 %v2312, %v2304
    %v3657 = vpack.c.b16 %v2313, %v2305
    %v3658 = vpack.c.b16 %v2322, %v2314
    %v3659 = vpack.c.b16 %v2323, %v2315
    %v3660 = vpack.c.b16 %v2324, %v2316
    %v3661 = vpack.c.b16 %v2325, %v2317
    %v3662 = vpack.c.b16 %v2326, %v2318
    %v3663 = vpack.c.b16 %v2327, %v2319
    %v3664 = vpack.c.b16 %v2328, %v2320
    %v3665 = vpack.c.b16 %v2329, %v2321
    %v3666 = vpack.c.b16 %v2338, %v2330
    %v3667 = vpack.c.b16 %v2339, %v2331
    %v3668 = vpack.c.b16 %v2340, %v2332
    %v3669 = vpack.c.b16 %v2341, %v2333
    %v3670 = vpack.c.b16 %v2342, %v2334
    %v3671 = vpack.c.b16 %v2343, %v2335
    %v3672 = vpack.c.b16 %v2344, %v2336
    %v3673 = vpack.c.b16 %v2345, %v2337
    %v3674 = vpack.c.b16 %v2354, %v2346
    %v3675 = vpack.c.b16 %v2355, %v2347
    %v3676 = vpack.c.b16 %v2356, %v2348
    %v3677 = vpack.c.b16 %v2357, %v2349
    %v3678 = vpack.c.b16 %v2358, %v2350
    %v3679 = vpack.c.b16 %v2359, %v2351
    %v3680 = vpack.c.b16 %v2360, %v2352
    %v3681 = vpack.c.b16 %v2361, %v2353
    %v3682 = vpack.c.b16 %v2370, %v2362
    %v3683 = vpack.c.b16 %v2371, %v2363
    %v3684 = vpack.c.b16 %v2372, %v2364
    %v3685 = vpack.c.b16 %v2373, %v2365
    %v3686 = vpack.c.b16 %v2374, %v2366
    %v3687 = vpack.c.b16 %v2375, %v2367
    %v3688 = vpack.c.b16 %v2376, %v2368
    %v3689 = vpack.c.b16 %v2377, %v2369
    %v3690 = vpack.c.b16 %v2386, %v2378
    %v3691 = vpack.c.b16 %v2387, %v2379
    %v3692 = vpack.c.b16 %v2388, %v2380
    %v3693 = vpack.c.b16 %v2389, %v2381
    %v3694 = vpack.c.b16 %v2390, %v2382
    %v3695 = vpack.c.b16 %v2391, %v2383
    %v3696 = vpack.c.b16 %v2392, %v2384
    %v3697 = vpack.c.b16 %v2393, %v2385
    %v3698 = vpack.c.b16 %v2402, %v2394
    %v3699 = vpack.c.b16 %v2403, %v2395
    %v3700 = vpack.c.b16 %v2404, %v2396
    %v3701 = vpack.c.b16 %v2405, %v2397
    %v3702 = vpack.c.b16 %v2406, %v2398
    %v3703 = vpack.c.b16 %v2407, %v2399
    %v3704 = vpack.c.b16 %v2408, %v2400
    %v3705 = vpack.c.b16 %v2409, %v2401
    %v3706 = vpack.c.b16 %v2418, %v2410
    %v3707 = vpack.c.b16 %v2419, %v2411
    %v3708 = vpack.c.b16 %v2420, %v2412
    %v3709 = vpack.c.b16 %v2421, %v2413
    %v3710 = vpack.c.b16 %v2422, %v2414
    %v3711 = vpack.c.b16 %v2423, %v2415
    %v3712 = vpack.c.b16 %v2424, %v2416
    %v3713 = vpack.c.b16 %v2425, %v2417
    %v3714 = vpack.c.b16 %v2434, %v2426
    %v3715 = vpack.c.b16 %v2435, %v2427
    %v3716 = vpack.c.b16 %v2436, %v2428
    %v3717 = vpack.c.b16 %v2437, %v2429
    %v3718 = vpack.c.b16 %v2438, %v2430
    %v3719 = vpack.c.b16 %v2439, %v2431
    %v3720 = vpack.c.b16 %v2440, %v2432
    %v3721 = vpack.c.b16 %v2441, %v2433
    %v3722 = vpack.c.b16 %v2450, %v2442
    %v3723 = vpack.c.b16 %v2451, %v2443
    %v3724 = vpack.c.b16 %v2452, %v2444
    %v3725 = vpack.c.b16 %v2453, %v2445
    %v3726 = vpack.c.b16 %v2454, %v2446
    %v3727 = vpack.c.b16 %v2455, %v2447
    %v3728 = vpack.c.b16 %v2456, %v2448
    %v3729 = vpack.c.b16 %v2457, %v2449
    %v3730 = vpack.c.b16 %v2466, %v2458
    %v3731 = vpack.c.b16 %v2467, %v2459
    %v3732 = vpack.c.b16 %v2468, %v2460
    %v3733 = vpack.c.b16 %v2469, %v2461
    %v3734 = vpack.c.b16 %v2470, %v2462
    %v3735 = vpack.c.b16 %v2471, %v2463
    %v3736 = vpack.c.b16 %v2472, %v2464
    %v3737 = vpack.c.b16 %v2473, %v2465
    %v3738 = vpack.c.b16 %v2482, %v2474
    %v3739 = vpack.c.b16 %v2483, %v2475
    %v3740 = vpack.c.b16 %v2484, %v2476
    %v3741 = vpack.c.b16 %v2485, %v2477
    %v3742 = vpack.c.b16 %v2486, %v2478
    %v3743 = vpack.c.b16 %v2487, %v2479
    %v3744 = vpack.c.b16 %v2488, %v2480
    %v3745 = vpack.c.b16 %v2489, %v2481
    %v3746 = vpack.c.b16 %v2498, %v2490
    %v3747 = vpack.c.b16 %v2499, %v2491
    %v3748 = vpack.c.b16 %v2500, %v2492
    %v3749 = vpack.c.b16 %v2501, %v2493
    %v3750 = vpack.c.b16 %v2502, %v2494
    %v3751 = vpack.c.b16 %v2503, %v2495
    %v3752 = vpack.c.b16 %v2504, %v2496
    %v3753 = vpack.c.b16 %v2505, %v2497
    %v3754 = vpack.c.b16 %v2514, %v2506
    %v3755 = vpack.c.b16 %v2515, %v2507
    %v3756 = vpack.c.b16 %v2516, %v2508
    %v3757 = vpack.c.b16 %v2517, %v2509
    %v3758 = vpack.c.b16 %v2518, %v2510
    %v3759 = vpack.c.b16 %v2519, %v2511
    %v3760 = vpack.c.b16 %v2520, %v2512
    %v3761 = vpack.c.b16 %v2521, %v2513
    %v3762 = vpack.c.b16 %v2530, %v2522
    %v3763 = vpack.c.b16 %v2531, %v2523
    %v3764 = vpack.c.b16 %v2532, %v2524
    %v3765 = vpack.c.b16 %v2533, %v2525
    %v3766 = vpack.c.b16 %v2534, %v2526
    %v3767 = vpack.c.b16 %v2535, %v2527
    %v3768 = vpack.c.b16 %v2536, %v2528
    %v3769 = vpack.c.b16 %v2537, %v2529
    %v3770 = vpack.c.b16 %v2546, %v2538
    %v3771 = vpack.c.b16 %v2547, %v2539
    %v3772 = vpack.c.b16 %v2548, %v2540
    %v3773 = vpack.c.b16 %v2549, %v2541
    %v3774 = vpack.c.b16 %v2550, %v2542
    %v3775 = vpack.c.b16 %v2551, %v2543
    %v3776 = vpack.c.b16 %v2552, %v2544
    %v3777 = vpack.c.b16 %v2553, %v2545
    %v3778 = vpack.c.b16 %v2562, %v2554
    %v3779 = vpack.c.b16 %v2563, %v2555
    %v3780 = vpack.c.b16 %v2564, %v2556
    %v3781 = vpack.c.b16 %v2565, %v2557
    %v3782 = vpack.c.b16 %v2566, %v2558
    %v3783 = vpack.c.b16 %v2567, %v2559
    %v3784 = vpack.c.b16 %v2568, %v2560
    %v3785 = vpack.c.b16 %v2569, %v2561
    %v3786 = vpack.c.b16 %v2578, %v2570
    %v3787 = vpack.c.b16 %v2579, %v2571
    %v3788 = vpack.c.b16 %v2580, %v2572
    %v3789 = vpack.c.b16 %v2581, %v2573
    %v3790 = vpack.c.b16 %v2582, %v2574
    %v3791 = vpack.c.b16 %v2583, %v2575
    %v3792 = vpack.c.b16 %v2584, %v2576
    %v3793 = vpack.c.b16 %v2585, %v2577
    %v3794 = vpack.c.b16 %v2594, %v2586
    %v3795 = vpack.c.b16 %v2595, %v2587
    %v3796 = vpack.c.b16 %v2596, %v2588
    %v3797 = vpack.c.b16 %v2597, %v2589
    %v3798 = vpack.c.b16 %v2598, %v2590
    %v3799 = vpack.c.b16 %v2599, %v2591
    %v3800 = vpack.c.b16 %v2600, %v2592
    %v3801 = vpack.c.b16 %v2601, %v2593
    %v3802 = vpack.c.b16 %v2610, %v2602
    %v3803 = vpack.c.b16 %v2611, %v2603
    %v3804 = vpack.c.b16 %v2612, %v2604
    %v3805 = vpack.c.b16 %v2613, %v2605
    %v3806 = vpack.c.b16 %v2614, %v2606
    %v3807 = vpack.c.b16 %v2615, %v2607
    %v3808 = vpack.c.b16 %v2616, %v2608
    %v3809 = vpack.c.b16 %v2617, %v2609
    %v3810 = vpack.c.b16 %v2626, %v2618
    %v3811 = vpack.c.b16 %v2627, %v2619
    %v3812 = vpack.c.b16 %v2628, %v2620
    %v3813 = vpack.c.b16 %v2629, %v2621
    %v3814 = vpack.c.b16 %v2630, %v2622
    %v3815 = vpack.c.b16 %v2631, %v2623
    %v3816 = vpack.c.b16 %v2632, %v2624
    %v3817 = vpack.c.b16 %v2633, %v2625
    %v3818 = vpack.c.b16 %v2642, %v2634
    %v3819 = vpack.c.b16 %v2643, %v2635
    %v3820 = vpack.c.b16 %v2644, %v2636
    %v3821 = vpack.c.b16 %v2645, %v2637
    %v3822 = vpack.c.b16 %v2646, %v2638
    %v3823 = vpack.c.b16 %v2647, %v2639
    %v3824 = vpack.c.b16 %v2648, %v2640
    %v3825 = vpack.c.b16 %v2649, %v2641
    %v3826 = vpack.c.b16 %v2658, %v2650
    %v3827 = vpack.c.b16 %v2659, %v2651
    %v3828 = vpack.c.b16 %v2660, %v2652
    %v3829 = vpack.c.b16 %v2661, %v2653
    %v3830 = vpack.c.b16 %v2662, %v2654
    %v3831 = vpack.c.b16 %v2663, %v2655
    %v3832 = vpack.c.b16 %v2664, %v2656
    %v3833 = vpack.c.b16 %v2665, %v2657
    %v3834 = vpack.c.b16 %v2674, %v2666
    %v3835 = vpack.c.b16 %v2675, %v2667
    %v3836 = vpack.c.b16 %v2676, %v2668
    %v3837 = vpack.c.b16 %v2677, %v2669
    %v3838 = vpack.c.b16 %v2678, %v2670
    %v3839 = vpack.c.b16 %v2679, %v2671
    %v3840 = vpack.c.b16 %v2680, %v2672
    %v3841 = vpack.c.b16 %v2681, %v2673
    %v3842 = vpack.c.b16 %v2690, %v2682
    %v3843 = vpack.c.b16 %v2691, %v2683
    %v3844 = vpack.c.b16 %v2692, %v2684
    %v3845 = vpack.c.b16 %v2693, %v2685
    %v3846 = vpack.c.b16 %v2694, %v2686
    %v3847 = vpack.c.b16 %v2695, %v2687
    %v3848 = vpack.c.b16 %v2696, %v2688
    %v3849 = vpack.c.b16 %v2697, %v2689
    %v3850 = vpack.c.b16 %v2706, %v2698
    %v3851 = vpack.c.b16 %v2707, %v2699
    %v3852 = vpack.c.b16 %v2708, %v2700
    %v3853 = vpack.c.b16 %v2709, %v2701
    %v3854 = vpack.c.b16 %v2710, %v2702
    %v3855 = vpack.c.b16 %v2711, %v2703
    %v3856 = vpack.c.b16 %v2712, %v2704
    %v3857 = vpack.c.b16 %v2713, %v2705
    %v3858 = vpack.c.b16 %v2722, %v2714
    %v3859 = vpack.c.b16 %v2723, %v2715
    %v3860 = vpack.c.b16 %v2724, %v2716
    %v3861 = vpack.c.b16 %v2725, %v2717
    %v3862 = vpack.c.b16 %v2726, %v2718
    %v3863 = vpack.c.b16 %v2727, %v2719
    %v3864 = vpack.c.b16 %v2728, %v2720
    %v3865 = vpack.c.b16 %v2729, %v2721
    %v3866 = vpack.c.b16 %v2738, %v2730
    %v3867 = vpack.c.b16 %v2739, %v2731
    %v3868 = vpack.c.b16 %v2740, %v2732
    %v3869 = vpack.c.b16 %v2741, %v2733
    %v3870 = vpack.c.b16 %v2742, %v2734
    %v3871 = vpack.c.b16 %v2743, %v2735
    %v3872 = vpack.c.b16 %v2744, %v2736
    %v3873 = vpack.c.b16 %v2745, %v2737
    %v3874 = vpack.c.b16 %v2754, %v2746
    %v3875 = vpack.c.b16 %v2755, %v2747
    %v3876 = vpack.c.b16 %v2756, %v2748
    %v3877 = vpack.c.b16 %v2757, %v2749
    %v3878 = vpack.c.b16 %v2758, %v2750
    %v3879 = vpack.c.b16 %v2759, %v2751
    %v3880 = vpack.c.b16 %v2760, %v2752
    %v3881 = vpack.c.b16 %v2761, %v2753
    %v3882 = vpack.c.b16 %v2770, %v2762
    %v3883 = vpack.c.b16 %v2771, %v2763
    %v3884 = vpack.c.b16 %v2772, %v2764
    %v3885 = vpack.c.b16 %v2773, %v2765
    %v3886 = vpack.c.b16 %v2774, %v2766
    %v3887 = vpack.c.b16 %v2775, %v2767
    %v3888 = vpack.c.b16 %v2776, %v2768
    %v3889 = vpack.c.b16 %v2777, %v2769
    %v3890 = vpack.c.b16 %v2786, %v2778
    %v3891 = vpack.c.b16 %v2787, %v2779
    %v3892 = vpack.c.b16 %v2788, %v2780
    %v3893 = vpack.c.b16 %v2789, %v2781
    %v3894 = vpack.c.b16 %v2790, %v2782
    %v3895 = vpack.c.b16 %v2791, %v2783
    %v3896 = vpack.c.b16 %v2792, %v2784
    %v3897 = vpack.c.b16 %v2793, %v2785
    %v3898 = vpack.c.b16 %v2802, %v2794
    %v3899 = vpack.c.b16 %v2803, %v2795
    %v3900 = vpack.c.b16 %v2804, %v2796
    %v3901 = vpack.c.b16 %v2805, %v2797
    %v3902 = vpack.c.b16 %v2806, %v2798
    %v3903 = vpack.c.b16 %v2807, %v2799
    %v3904 = vpack.c.b16 %v2808, %v2800
    %v3905 = vpack.c.b16 %v2809, %v2801
    %v3906 = vpack.c.b16 %v2818, %v2810
    %v3907 = vpack.c.b16 %v2819, %v2811
    %v3908 = vpack.c.b16 %v2820, %v2812
    %v3909 = vpack.c.b16 %v2821, %v2813
    %v3910 = vpack.c.b16 %v2822, %v2814
    %v3911 = vpack.c.b16 %v2823, %v2815
    %v3912 = vpack.c.b16 %v2824, %v2816
    %v3913 = vpack.c.b16 %v2825, %v2817
    %v3914 = vpack.c.b16 %v2834, %v2826
    %v3915 = vpack.c.b16 %v2835, %v2827
    %v3916 = vpack.c.b16 %v2836, %v2828
    %v3917 = vpack.c.b16 %v2837, %v2829
    %v3918 = vpack.c.b16 %v2838, %v2830
    %v3919 = vpack.c.b16 %v2839, %v2831
    %v3920 = vpack.c.b16 %v2840, %v2832
    %v3921 = vpack.c.b16 %v2841, %v2833
    %v3922 = vpack.c.b16 %v2850, %v2842
    %v3923 = vpack.c.b16 %v2851, %v2843
    %v3924 = vpack.c.b16 %v2852, %v2844
    %v3925 = vpack.c.b16 %v2853, %v2845
    %v3926 = vpack.c.b16 %v2854, %v2846
    %v3927 = vpack.c.b16 %v2855, %v2847
    %v3928 = vpack.c.b16 %v2856, %v2848
    %v3929 = vpack.c.b16 %v2857, %v2849
    %v3930 = vpack.c.b16 %v2866, %v2858
    %v3931 = vpack.c.b16 %v2867, %v2859
    %v3932 = vpack.c.b16 %v2868, %v2860
    %v3933 = vpack.c.b16 %v2869, %v2861
    %v3934 = vpack.c.b16 %v2870, %v2862
    %v3935 = vpack.c.b16 %v2871, %v2863
    %v3936 = vpack.c.b16 %v2872, %v2864
    %v3937 = vpack.c.b16 %v2873, %v2865
    %v3938 = vpack.c.b16 %v2882, %v2874
    %v3939 = vpack.c.b16 %v2883, %v2875
    %v3940 = vpack.c.b16 %v2884, %v2876
    %v3941 = vpack.c.b16 %v2885, %v2877
    %v3942 = vpack.c.b16 %v2886, %v2878
    %v3943 = vpack.c.b16 %v2887, %v2879
    %v3944 = vpack.c.b16 %v2888, %v2880
    %v3945 = vpack.c.b16 %v2889, %v2881
    %v3946 = vpack.c.b16 %v2898, %v2890
    %v3947 = vpack.c.b16 %v2899, %v2891
    %v3948 = vpack.c.b16 %v2900, %v2892
    %v3949 = vpack.c.b16 %v2901, %v2893
    %v3950 = vpack.c.b16 %v2902, %v2894
    %v3951 = vpack.c.b16 %v2903, %v2895
    %v3952 = vpack.c.b16 %v2904, %v2896
    %v3953 = vpack.c.b16 %v2905, %v2897
    %v3954 = vpack.c.b16 %v2914, %v2906
    %v3955 = vpack.c.b16 %v2915, %v2907
    %v3956 = vpack.c.b16 %v2916, %v2908
    %v3957 = vpack.c.b16 %v2917, %v2909
    %v3958 = vpack.c.b16 %v2918, %v2910
    %v3959 = vpack.c.b16 %v2919, %v2911
    %v3960 = vpack.c.b16 %v2920, %v2912
    %v3961 = vpack.c.b16 %v2921, %v2913
    %v3962 = vpack.c.b16 %v2930, %v2922
    %v3963 = vpack.c.b16 %v2931, %v2923
    %v3964 = vpack.c.b16 %v2932, %v2924
    %v3965 = vpack.c.b16 %v2933, %v2925
    %v3966 = vpack.c.b16 %v2934, %v2926
    %v3967 = vpack.c.b16 %v2935, %v2927
    %v3968 = vpack.c.b16 %v2936, %v2928
    %v3969 = vpack.c.b16 %v2937, %v2929
    %v3970 = vpack.c.b16 %v2946, %v2938
    %v3971 = vpack.c.b16 %v2947, %v2939
    %v3972 = vpack.c.b16 %v2948, %v2940
    %v3973 = vpack.c.b16 %v2949, %v2941
    %v3974 = vpack.c.b16 %v2950, %v2942
    %v3975 = vpack.c.b16 %v2951, %v2943
    %v3976 = vpack.c.b16 %v2952, %v2944
    %v3977 = vpack.c.b16 %v2953, %v2945
    %v3978 = vpack.c.b16 %v2962, %v2954
    %v3979 = vpack.c.b16 %v2963, %v2955
    %v3980 = vpack.c.b16 %v2964, %v2956
    %v3981 = vpack.c.b16 %v2965, %v2957
    %v3982 = vpack.c.b16 %v2966, %v2958
    %v3983 = vpack.c.b16 %v2967, %v2959
    %v3984 = vpack.c.b16 %v2968, %v2960
    %v3985 = vpack.c.b16 %v2969, %v2961
    %v3986 = vpack.c.b16 %v2978, %v2970
    %v3987 = vpack.c.b16 %v2979, %v2971
    %v3988 = vpack.c.b16 %v2980, %v2972
    %v3989 = vpack.c.b16 %v2981, %v2973
    %v3990 = vpack.c.b16 %v2982, %v2974
    %v3991 = vpack.c.b16 %v2983, %v2975
    %v3992 = vpack.c.b16 %v2984, %v2976
    %v3993 = vpack.c.b16 %v2985, %v2977
    %v3994 = vpack.c.b16 %v2994, %v2986
    %v3995 = vpack.c.b16 %v2995, %v2987
    %v3996 = vpack.c.b16 %v2996, %v2988
    %v3997 = vpack.c.b16 %v2997, %v2989
    %v3998 = vpack.c.b16 %v2998, %v2990
    %v3999 = vpack.c.b16 %v2999, %v2991
    %v4000 = vpack.c.b16 %v3000, %v2992
    %v4001 = vpack.c.b16 %v3001, %v2993
    %v4002 = vpack.c.b16 %v3010, %v3002
    %v4003 = vpack.c.b16 %v3011, %v3003
    %v4004 = vpack.c.b16 %v3012, %v3004
    %v4005 = vpack.c.b16 %v3013, %v3005
    %v4006 = vpack.c.b16 %v3014, %v3006
    %v4007 = vpack.c.b16 %v3015, %v3007
    %v4008 = vpack.c.b16 %v3016, %v3008
    %v4009 = vpack.c.b16 %v3017, %v3009
    %v4010 = vpack.c.b16 %v3026, %v3018
    %v4011 = vpack.c.b16 %v3027, %v3019
    %v4012 = vpack.c.b16 %v3028, %v3020
    %v4013 = vpack.c.b16 %v3029, %v3021
    %v4014 = vpack.c.b16 %v3030, %v3022
    %v4015 = vpack.c.b16 %v3031, %v3023
    %v4016 = vpack.c.b16 %v3032, %v3024
    %v4017 = vpack.c.b16 %v3033, %v3025
    %v4018 = vpack.c.b16 %v3042, %v3034
    %v4019 = vpack.c.b16 %v3043, %v3035
    %v4020 = vpack.c.b16 %v3044, %v3036
    %v4021 = vpack.c.b16 %v3045, %v3037
    %v4022 = vpack.c.b16 %v3046, %v3038
    %v4023 = vpack.c.b16 %v3047, %v3039
    %v4024 = vpack.c.b16 %v3048, %v3040
    %v4025 = vpack.c.b16 %v3049, %v3041
    %v4026 = vpack.c.b16 %v3058, %v3050
    %v4027 = vpack.c.b16 %v3059, %v3051
    %v4028 = vpack.c.b16 %v3060, %v3052
    %v4029 = vpack.c.b16 %v3061, %v3053
    %v4030 = vpack.c.b16 %v3062, %v3054
    %v4031 = vpack.c.b16 %v3063, %v3055
    %v4032 = vpack.c.b16 %v3064, %v3056
    %v4033 = vpack.c.b16 %v3065, %v3057
    %v4034 = vpack.c.b16 %v3074, %v3066
    %v4035 = vpack.c.b16 %v3075, %v3067
    %v4036 = vpack.c.b16 %v3076, %v3068
    %v4037 = vpack.c.b16 %v3077, %v3069
    %v4038 = vpack.c.b16 %v3078, %v3070
    %v4039 = vpack.c.b16 %v3079, %v3071
    %v4040 = vpack.c.b16 %v3080, %v3072
    %v4041 = vpack.c.b16 %v3081, %v3073
    %v4042 = vpack.c.b16 %v3090, %v3082
    %v4043 = vpack.c.b16 %v3091, %v3083
    %v4044 = vpack.c.b16 %v3092, %v3084
    %v4045 = vpack.c.b16 %v3093, %v3085
    %v4046 = vpack.c.b16 %v3094, %v3086
    %v4047 = vpack.c.b16 %v3095, %v3087
    %v4048 = vpack.c.b16 %v3096, %v3088
    %v4049 = vpack.c.b16 %v3097, %v3089
    %v4050 = vpack.c.b16 %v3106, %v3098
    %v4051 = vpack.c.b16 %v3107, %v3099
    %v4052 = vpack.c.b16 %v3108, %v3100
    %v4053 = vpack.c.b16 %v3109, %v3101
    %v4054 = vpack.c.b16 %v3110, %v3102
    %v4055 = vpack.c.b16 %v3111, %v3103
    %v4056 = vpack.c.b16 %v3112, %v3104
    %v4057 = vpack.c.b16 %v3113, %v3105
    %v4058 = vpack.c.b16 %v3122, %v3114
    %v4059 = vpack.c.b16 %v3123, %v3115
    %v4060 = vpack.c.b16 %v3124, %v3116
    %v4061 = vpack.c.b16 %v3125, %v3117
    %v4062 = vpack.c.b16 %v3126, %v3118
    %v4063 = vpack.c.b16 %v3127, %v3119
    %v4064 = vpack.c.b16 %v3128, %v3120
    %v4065 = vpack.c.b16 %v3129, %v3121
    %v4066 = vpack.c.b16 %v3138, %v3130
    %v4067 = vpack.c.b16 %v3139, %v3131
    %v4068 = vpack.c.b16 %v3140, %v3132
    %v4069 = vpack.c.b16 %v3141, %v3133
    %v4070 = vpack.c.b16 %v3142, %v3134
    %v4071 = vpack.c.b16 %v3143, %v3135
    %v4072 = vpack.c.b16 %v3144, %v3136
    %v4073 = vpack.c.b16 %v3145, %v3137
    %v4074 = vpack.c.b16 %v3154, %v3146
    %v4075 = vpack.c.b16 %v3155, %v3147
    %v4076 = vpack.c.b16 %v3156, %v3148
    %v4077 = vpack.c.b16 %v3157, %v3149
    %v4078 = vpack.c.b16 %v3158, %v3150
    %v4079 = vpack.c.b16 %v3159, %v3151
    %v4080 = vpack.c.b16 %v3160, %v3152
    %v4081 = vpack.c.b16 %v3161, %v3153
    %v4082 = vpack.c.b16 %v3170, %v3162
    %v4083 = vpack.c.b16 %v3171, %v3163
    %v4084 = vpack.c.b16 %v3172, %v3164
    %v4085 = vpack.c.b16 %v3173, %v3165
    %v4086 = vpack.c.b16 %v3174, %v3166
    %v4087 = vpack.c.b16 %v3175, %v3167
    %v4088 = vpack.c.b16 %v3176, %v3168
    %v4089 = vpack.c.b16 %v3177, %v3169
    %v4090 = vpack.c.b16 %v3186, %v3178
    %v4091 = vpack.c.b16 %v3187, %v3179
    %v4092 = vpack.c.b16 %v3188, %v3180
    %v4093 = vpack.c.b16 %v3189, %v3181
    %v4094 = vpack.c.b16 %v3190, %v3182
    %v4095 = vpack.c.b16 %v3191, %v3183
    %v4096 = vpack.c.b16 %v3192, %v3184
    %v4097 = vpack.c.b16 %v3193, %v3185
    %v4098 = vpack.c.b16 %v3202, %v3194
    %v4099 = vpack.c.b16 %v3203, %v3195
    %v4100 = vpack.c.b16 %v3204, %v3196
    %v4101 = vpack.c.b16 %v3205, %v3197
    %v4102 = vpack.c.b16 %v3206, %v3198
    %v4103 = vpack.c.b16 %v3207, %v3199
    %v4104 = vpack.c.b16 %v3208, %v3200
    %v4105 = vpack.c.b16 %v3209, %v3201
    %v4106 = vpack.c.b16 %v3218, %v3210
    %v4107 = vpack.c.b16 %v3219, %v3211
    %v4108 = vpack.c.b16 %v3220, %v3212
    %v4109 = vpack.c.b16 %v3221, %v3213
    %v4110 = vpack.c.b16 %v3222, %v3214
    %v4111 = vpack.c.b16 %v3223, %v3215
    %v4112 = vpack.c.b16 %v3224, %v3216
    %v4113 = vpack.c.b16 %v3225, %v3217
    %v4114 = vpack.c.b16 %v3234, %v3226
    %v4115 = vpack.c.b16 %v3235, %v3227
    %v4116 = vpack.c.b16 %v3236, %v3228
    %v4117 = vpack.c.b16 %v3237, %v3229
    %v4118 = vpack.c.b16 %v3238, %v3230
    %v4119 = vpack.c.b16 %v3239, %v3231
    %v4120 = vpack.c.b16 %v3240, %v3232
    %v4121 = vpack.c.b16 %v3241, %v3233
    %v4122 = vpack.c.b16 %v3250, %v3242
    %v4123 = vpack.c.b16 %v3251, %v3243
    %v4124 = vpack.c.b16 %v3252, %v3244
    %v4125 = vpack.c.b16 %v3253, %v3245
    %v4126 = vpack.c.b16 %v3254, %v3246
    %v4127 = vpack.c.b16 %v3255, %v3247
    %v4128 = vpack.c.b16 %v3256, %v3248
    %v4129 = vpack.c.b16 %v3257, %v3249
    %v4130 = vpack.c.b16 %v3266, %v3258
    %v4131 = vpack.c.b16 %v3267, %v3259
    %v4132 = vpack.c.b16 %v3268, %v3260
    %v4133 = vpack.c.b16 %v3269, %v3261
    %v4134 = vpack.c.b16 %v3270, %v3262
    %v4135 = vpack.c.b16 %v3271, %v3263
    %v4136 = vpack.c.b16 %v3272, %v3264
    %v4137 = vpack.c.b16 %v3273, %v3265
    %v4138 = vpack.c.b16 %v3282, %v3274
    %v4139 = vpack.c.b16 %v3283, %v3275
    %v4140 = vpack.c.b16 %v3284, %v3276
    %v4141 = vpack.c.b16 %v3285, %v3277
    %v4142 = vpack.c.b16 %v3286, %v3278
    %v4143 = vpack.c.b16 %v3287, %v3279
    %v4144 = vpack.c.b16 %v3288, %v3280
    %v4145 = vpack.c.b16 %v3289, %v3281
    %v4146 = vpack.c.b16 %v3298, %v3290
    %v4147 = vpack.c.b16 %v3299, %v3291
    %v4148 = vpack.c.b16 %v3300, %v3292
    %v4149 = vpack.c.b16 %v3301, %v3293
    %v4150 = vpack.c.b16 %v3302, %v3294
    %v4151 = vpack.c.b16 %v3303, %v3295
    %v4152 = vpack.c.b16 %v3304, %v3296
    %v4153 = vpack.c.b16 %v3305, %v3297
    %v4154 = vpack.c.b16 %v3314, %v3306
    %v4155 = vpack.c.b16 %v3315, %v3307
    %v4156 = vpack.c.b16 %v3316, %v3308
    %v4157 = vpack.c.b16 %v3317, %v3309
    %v4158 = vpack.c.b16 %v3318, %v3310
    %v4159 = vpack.c.b16 %v3319, %v3311
    %v4160 = vpack.c.b16 %v3320, %v3312
    %v4161 = vpack.c.b16 %v3321, %v3313
    %v4162 = vpack.c.b16 %v3330, %v3322
    %v4163 = vpack.c.b16 %v3331, %v3323
    %v4164 = vpack.c.b16 %v3332, %v3324
    %v4165 = vpack.c.b16 %v3333, %v3325
    %v4166 = vpack.c.b16 %v3334, %v3326
    %v4167 = vpack.c.b16 %v3335, %v3327
    %v4168 = vpack.c.b16 %v3336, %v3328
    %v4169 = vpack.c.b16 %v3337, %v3329
    %v4170 = vpack.c.b16 %v3346, %v3338
    %v4171 = vpack.c.b16 %v3347, %v3339
    %v4172 = vpack.c.b16 %v3348, %v3340
    %v4173 = vpack.c.b16 %v3349, %v3341
    %v4174 = vpack.c.b16 %v3350, %v3342
    %v4175 = vpack.c.b16 %v3351, %v3343
    %v4176 = vpack.c.b16 %v3352, %v3344
    %v4177 = vpack.c.b16 %v3353, %v3345
    %v4178 = vpack.c.b16 %v3362, %v3354
    %v4179 = vpack.c.b16 %v3363, %v3355
    %v4180 = vpack.c.b16 %v3364, %v3356
    %v4181 = vpack.c.b16 %v3365, %v3357
    %v4182 = vpack.c.b16 %v3366, %v3358
    %v4183 = vpack.c.b16 %v3367, %v3359
    %v4184 = vpack.c.b16 %v3368, %v3360
    %v4185 = vpack.c.b16 %v3369, %v3361
    %v4186 = vpack.c.b16 %v3378, %v3370
    %v4187 = vpack.c.b16 %v3379, %v3371
    %v4188 = vpack.c.b16 %v3380, %v3372
    %v4189 = vpack.c.b16 %v3381, %v3373
    %v4190 = vpack.c.b16 %v3382, %v3374
    %v4191 = vpack.c.b16 %v3383, %v3375
    %v4192 = vpack.c.b16 %v3384, %v3376
    %v4193 = vpack.c.b16 %v3385, %v3377
    %v4194 = vpack.c.b16 %v3394, %v3386
    %v4195 = vpack.c.b16 %v3395, %v3387
    %v4196 = vpack.c.b16 %v3396, %v3388
    %v4197 = vpack.c.b16 %v3397, %v3389
    %v4198 = vpack.c.b16 %v3398, %v3390
    %v4199 = vpack.c.b16 %v3399, %v3391
    %v4200 = vpack.c.b16 %v3400, %v3392
    %v4201 = vpack.c.b16 %v3401, %v3393
    %v4202 = vpack.c.b16 %v3410, %v3402
    %v4203 = vpack.c.b16 %v3411, %v3403
    %v4204 = vpack.c.b16 %v3412, %v3404
    %v4205 = vpack.c.b16 %v3413, %v3405
    %v4206 = vpack.c.b16 %v3414, %v3406
    %v4207 = vpack.c.b16 %v3415, %v3407
    %v4208 = vpack.c.b16 %v3416, %v3408
    %v4209 = vpack.c.b16 %v3417, %v3409
    %v4210 = vpack.c.b16 %v3426, %v3418
    %v4211 = vpack.c.b16 %v3427, %v3419
    %v4212 = vpack.c.b16 %v3428, %v3420
    %v4213 = vpack.c.b16 %v3429, %v3421
    %v4214 = vpack.c.b16 %v3430, %v3422
    %v4215 = vpack.c.b16 %v3431, %v3423
    %v4216 = vpack.c.b16 %v3432, %v3424
    %v4217 = vpack.c.b16 %v3433, %v3425
    %v4218 = vpack.c.b16 %v3442, %v3434
    %v4219 = vpack.c.b16 %v3443, %v3435
    %v4220 = vpack.c.b16 %v3444, %v3436
    %v4221 = vpack.c.b16 %v3445, %v3437
    %v4222 = vpack.c.b16 %v3446, %v3438
    %v4223 = vpack.c.b16 %v3447, %v3439
    %v4224 = vpack.c.b16 %v3448, %v3440
    %v4225 = vpack.c.b16 %v3449, %v3441
    %v4226 = vpack.c.b16 %v3458, %v3450
    %v4227 = vpack.c.b16 %v3459, %v3451
    %v4228 = vpack.c.b16 %v3460, %v3452
    %v4229 = vpack.c.b16 %v3461, %v3453
    %v4230 = vpack.c.b16 %v3462, %v3454
    %v4231 = vpack.c.b16 %v3463, %v3455
    %v4232 = vpack.c.b16 %v3464, %v3456
    %v4233 = vpack.c.b16 %v3465, %v3457
    %5002 = vmatprep.subr.bf16.mxu0 %v3467
    %5003 = vmatpush1.bf16.msra.mxu0 %v3466
    %5004 = vmatprep.subr.bf16.mxu0 %v3475
    %5005 = vmatpush1.bf16.msra.mxu0 %v3474
    %5006 = vmatprep.subr.bf16.mxu0 %v3483
    %5007 = vmatpush1.bf16.msra.mxu0 %v3482
    %5008 = vmatprep.subr.bf16.mxu0 %v3491
    %5009 = vmatpush1.bf16.msra.mxu0 %v3490
    %5010 = vmatprep.subr.bf16.mxu0 %v3499
    %5011 = vmatpush1.bf16.msra.mxu0 %v3498
    %5012 = vmatprep.subr.bf16.mxu0 %v3507
    %5013 = vmatpush1.bf16.msra.mxu0 %v3506
    %5014 = vmatprep.subr.bf16.mxu0 %v3515
    %5015 = vmatpush1.bf16.msra.mxu0 %v3514
    %5016 = vmatprep.subr.bf16.mxu0 %v3523
    %5017 = vmatpush1.bf16.msra.mxu0 %v3522
    %5018 = vmatprep.subr.bf16.mxu0 %v3531
    %5019 = vmatpush1.bf16.msra.mxu0 %v3530
    %5020 = vmatprep.subr.bf16.mxu0 %v3539
    %5021 = vmatpush1.bf16.msra.mxu0 %v3538
    %5022 = vmatprep.subr.bf16.mxu0 %v3547
    %5023 = vmatpush1.bf16.msra.mxu0 %v3546
    %5024 = vmatprep.subr.bf16.mxu0 %v3555
    %5025 = vmatpush1.bf16.msra.mxu0 %v3554
    %5026 = vmatprep.subr.bf16.mxu0 %v3563
    %5027 = vmatpush1.bf16.msra.mxu0 %v3562
    %5028 = vmatprep.subr.bf16.mxu0 %v3571
    %5029 = vmatpush1.bf16.msra.mxu0 %v3570
    %5030 = vmatprep.subr.bf16.mxu0 %v3579
    %5031 = vmatpush1.bf16.msra.mxu0 %v3578
    %5032 = vmatprep.subr.bf16.mxu0 %v3587
    %5033 = vmatpush1.bf16.msra.mxu0 %v3586
    %5034 = vmatprep.mubr.bf16.mxu0 %v1114
    %5035 = vmatmul.mubr.bf16.gmra.mrb[0].mxu0 %v1106
    %v5036 = vpop.f32.mrb[0].mxu0
    %v5037 = vadd.f32 %v1059, %v5036
    %v5038 = vpop.f32.mrb[0].mxu0
    %v5039 = vadd.f32 %v1063, %v5038
    %v5040 = vpop.f32.mrb[0].mxu0
    %v5041 = vpop.f32.mrb[0].mxu0
    %5042 = vdwg.mxu0
    %5043 = vmatprep.subr.bf16.mxu0 %v3595
    %5044 = vmatpush1.bf16.msra.mxu0 %v3594
    %5045 = vmatprep.subr.bf16.mxu0 %v3603
    %5046 = vmatpush1.bf16.msra.mxu0 %v3602
    %5047 = vmatprep.subr.bf16.mxu0 %v3611
    %5048 = vmatpush1.bf16.msra.mxu0 %v3610
    %5049 = vmatprep.subr.bf16.mxu0 %v3619
    %5050 = vmatpush1.bf16.msra.mxu0 %v3618
    %5051 = vmatprep.subr.bf16.mxu0 %v3627
    %5052 = vmatpush1.bf16.msra.mxu0 %v3626
    %5053 = vmatprep.subr.bf16.mxu0 %v3635
    %5054 = vmatpush1.bf16.msra.mxu0 %v3634
    %5055 = vmatprep.subr.bf16.mxu0 %v3643
    %5056 = vmatpush1.bf16.msra.mxu0 %v3642
    %5057 = vmatprep.subr.bf16.mxu0 %v3651
    %5058 = vmatpush1.bf16.msra.mxu0 %v3650
    %5059 = vmatprep.subr.bf16.mxu0 %v3659
    %5060 = vmatpush1.bf16.msra.mxu0 %v3658
    %5061 = vmatprep.subr.bf16.mxu0 %v3667
    %5062 = vmatpush1.bf16.msra.mxu0 %v3666
    %5063 = vmatprep.subr.bf16.mxu0 %v3675
    %5064 = vmatpush1.bf16.msra.mxu0 %v3674
    %5065 = vmatprep.subr.bf16.mxu0 %v3683
    %5066 = vmatpush1.bf16.msra.mxu0 %v3682
    %5067 = vmatprep.subr.bf16.mxu0 %v3691
    %5068 = vmatpush1.bf16.msra.mxu0 %v3690
    %5069 = vmatprep.subr.bf16.mxu0 %v3699
    %5070 = vmatpush1.bf16.msra.mxu0 %v3698
    %5071 = vmatprep.subr.bf16.mxu0 %v3707
    %5072 = vmatpush1.bf16.msra.mxu0 %v3706
    %5073 = vmatprep.subr.bf16.mxu0 %v3715
    %5074 = vmatpush1.bf16.msra.mxu0 %v3714
    %5075 = vmatprep.mubr.bf16.mxu0 %v1115
    %5076 = vmatmul.mubr.bf16.gmra.mrb[0].mxu0 %v1113
    %v5077 = vpop.f32.mrb[0].mxu0
    %v5078 = vadd.f32 %v5037, %v5077
    %v5079 = vpop.f32.mrb[0].mxu0
    %v5080 = vadd.f32 %v5039, %v5079
    %v5081 = vpop.f32.mrb[0].mxu0
    %v5082 = vpop.f32.mrb[0].mxu0
    %5083 = vdwg.mxu0
    %5084 = vmatprep.subr.bf16.mxu0 %v3723
    %5085 = vmatpush1.bf16.msra.mxu0 %v3722
    %5086 = vmatprep.subr.bf16.mxu0 %v3731
    %5087 = vmatpush1.bf16.msra.mxu0 %v3730
    %5088 = vmatprep.subr.bf16.mxu0 %v3739
    %5089 = vmatpush1.bf16.msra.mxu0 %v3738
    %5090 = vmatprep.subr.bf16.mxu0 %v3747
    %5091 = vmatpush1.bf16.msra.mxu0 %v3746
    %5092 = vmatprep.subr.bf16.mxu0 %v3755
    %5093 = vmatpush1.bf16.msra.mxu0 %v3754
    %5094 = vmatprep.subr.bf16.mxu0 %v3763
    %5095 = vmatpush1.bf16.msra.mxu0 %v3762
    %5096 = vmatprep.subr.bf16.mxu0 %v3771
    %5097 = vmatpush1.bf16.msra.mxu0 %v3770
    %5098 = vmatprep.subr.bf16.mxu0 %v3779
    %5099 = vmatpush1.bf16.msra.mxu0 %v3778
    %5100 = vmatprep.subr.bf16.mxu0 %v3787
    %5101 = vmatpush1.bf16.msra.mxu0 %v3786
    %5102 = vmatprep.subr.bf16.mxu0 %v3795
    %5103 = vmatpush1.bf16.msra.mxu0 %v3794
    %5104 = vmatprep.subr.bf16.mxu0 %v3803
    %5105 = vmatpush1.bf16.msra.mxu0 %v3802
    %5106 = vmatprep.subr.bf16.mxu0 %v3811
    %5107 = vmatpush1.bf16.msra.mxu0 %v3810
    %5108 = vmatprep.subr.bf16.mxu0 %v3819
    %5109 = vmatpush1.bf16.msra.mxu0 %v3818
    %5110 = vmatprep.subr.bf16.mxu0 %v3827
    %5111 = vmatpush1.bf16.msra.mxu0 %v3826
    %5112 = vmatprep.subr.bf16.mxu0 %v3835
    %5113 = vmatpush1.bf16.msra.mxu0 %v3834
    %5114 = vmatprep.subr.bf16.mxu0 %v3843
    %5115 = vmatpush1.bf16.msra.mxu0 %v3842
    %5116 = vmatprep.mubr.bf16.mxu0 %v1131
    %5117 = vmatmul.mubr.bf16.gmra.mrb[0].mxu0 %v1123
    %v5118 = vpop.f32.mrb[0].mxu0
    %v5119 = vadd.f32 %v5078, %v5118
    %v5120 = vpop.f32.mrb[0].mxu0
    %v5121 = vadd.f32 %v5080, %v5120
    %v5122 = vpop.f32.mrb[0].mxu0
    %v5123 = vpop.f32.mrb[0].mxu0
    %5124 = vdwg.mxu0
    %5125 = vmatprep.subr.bf16.mxu0 %v3851
    %5126 = vmatpush1.bf16.msra.mxu0 %v3850
    %5127 = vmatprep.subr.bf16.mxu0 %v3859
    %5128 = vmatpush1.bf16.msra.mxu0 %v3858
    %5129 = vmatprep.subr.bf16.mxu0 %v3867
    %5130 = vmatpush1.bf16.msra.mxu0 %v3866
    %5131 = vmatprep.subr.bf16.mxu0 %v3875
    %5132 = vmatpush1.bf16.msra.mxu0 %v3874
    %5133 = vmatprep.subr.bf16.mxu0 %v3883
    %5134 = vmatpush1.bf16.msra.mxu0 %v3882
    %5135 = vmatprep.subr.bf16.mxu0 %v3891
    %5136 = vmatpush1.bf16.msra.mxu0 %v3890
    %5137 = vmatprep.subr.bf16.mxu0 %v3899
    %5138 = vmatpush1.bf16.msra.mxu0 %v3898
    %5139 = vmatprep.subr.bf16.mxu0 %v3907
    %5140 = vmatpush1.bf16.msra.mxu0 %v3906
    %5141 = vmatprep.subr.bf16.mxu0 %v3915
    %5142 = vmatpush1.bf16.msra.mxu0 %v3914
    %5143 = vmatprep.subr.bf16.mxu0 %v3923
    %5144 = vmatpush1.bf16.msra.mxu0 %v3922
    %5145 = vmatprep.subr.bf16.mxu0 %v3931
    %5146 = vmatpush1.bf16.msra.mxu0 %v3930
    %5147 = vmatprep.subr.bf16.mxu0 %v3939
    %5148 = vmatpush1.bf16.msra.mxu0 %v3938
    %5149 = vmatprep.subr.bf16.mxu0 %v3947
    %5150 = vmatpush1.bf16.msra.mxu0 %v3946
    %5151 = vmatprep.subr.bf16.mxu0 %v3955
    %5152 = vmatpush1.bf16.msra.mxu0 %v3954
    %5153 = vmatprep.subr.bf16.mxu0 %v3963
    %5154 = vmatpush1.bf16.msra.mxu0 %v3962
    %5155 = vmatprep.subr.bf16.mxu0 %v3971
    %5156 = vmatpush1.bf16.msra.mxu0 %v3970
    %5157 = vmatprep.mubr.bf16.mxu0 %v1132
    %5158 = vmatmul.mubr.bf16.gmra.mrb[0].mxu0 %v1130
    %v5159 = vpop.f32.mrb[0].mxu0
    %v5160 = vadd.f32 %v5119, %v5159
    %v5161 = vpop.f32.mrb[0].mxu0
    %v5162 = vadd.f32 %v5121, %v5161
    %v5163 = vpop.f32.mrb[0].mxu0
    %v5164 = vpop.f32.mrb[0].mxu0
    %5165 = vdwg.mxu0
    %5166 = vmatprep.subr.bf16.mxu0 %v3979
    %5167 = vmatpush1.bf16.msra.mxu0 %v3978
    %5168 = vmatprep.subr.bf16.mxu0 %v3987
    %5169 = vmatpush1.bf16.msra.mxu0 %v3986
    %5170 = vmatprep.subr.bf16.mxu0 %v3995
    %5171 = vmatpush1.bf16.msra.mxu0 %v3994
    %5172 = vmatprep.subr.bf16.mxu0 %v4003
    %5173 = vmatpush1.bf16.msra.mxu0 %v4002
    %5174 = vmatprep.subr.bf16.mxu0 %v4011
    %5175 = vmatpush1.bf16.msra.mxu0 %v4010
    %5176 = vmatprep.subr.bf16.mxu0 %v4019
    %5177 = vmatpush1.bf16.msra.mxu0 %v4018
    %5178 = vmatprep.subr.bf16.mxu0 %v4027
    %5179 = vmatpush1.bf16.msra.mxu0 %v4026
    %5180 = vmatprep.subr.bf16.mxu0 %v4035
    %5181 = vmatpush1.bf16.msra.mxu0 %v4034
    %5182 = vmatprep.subr.bf16.mxu0 %v4043
    %5183 = vmatpush1.bf16.msra.mxu0 %v4042
    %5184 = vmatprep.subr.bf16.mxu0 %v4051
    %5185 = vmatpush1.bf16.msra.mxu0 %v4050
    %5186 = vmatprep.subr.bf16.mxu0 %v4059
    %5187 = vmatpush1.bf16.msra.mxu0 %v4058
    %5188 = vmatprep.subr.bf16.mxu0 %v4067
    %5189 = vmatpush1.bf16.msra.mxu0 %v4066
    %5190 = vmatprep.subr.bf16.mxu0 %v4075
    %5191 = vmatpush1.bf16.msra.mxu0 %v4074
    %5192 = vmatprep.subr.bf16.mxu0 %v4083
    %5193 = vmatpush1.bf16.msra.mxu0 %v4082
    %5194 = vmatprep.subr.bf16.mxu0 %v4091
    %5195 = vmatpush1.bf16.msra.mxu0 %v4090
    %5196 = vmatprep.subr.bf16.mxu0 %v4099
    %5197 = vmatpush1.bf16.msra.mxu0 %v4098
    %5198 = vmatprep.mubr.bf16.mxu0 %v1148
    %5199 = vmatmul.mubr.bf16.gmra.mrb[0].mxu0 %v1140
    %v5200 = vpop.f32.mrb[0].mxu0
    %v5201 = vadd.f32 %v5160, %v5200
    %v5202 = vpop.f32.mrb[0].mxu0
    %v5203 = vadd.f32 %v5162, %v5202
    %v5204 = vpop.f32.mrb[0].mxu0
    %v5205 = vpop.f32.mrb[0].mxu0
    %5206 = vdwg.mxu0
    %5207 = vmatprep.subr.bf16.mxu0 %v4107
    %5208 = vmatpush1.bf16.msra.mxu0 %v4106
    %5209 = vmatprep.subr.bf16.mxu0 %v4115
    %5210 = vmatpush1.bf16.msra.mxu0 %v4114
    %5211 = vmatprep.subr.bf16.mxu0 %v4123
    %5212 = vmatpush1.bf16.msra.mxu0 %v4122
    %5213 = vmatprep.subr.bf16.mxu0 %v4131
    %5214 = vmatpush1.bf16.msra.mxu0 %v4130
    %5215 = vmatprep.subr.bf16.mxu0 %v4139
    %5216 = vmatpush1.bf16.msra.mxu0 %v4138
    %5217 = vmatprep.subr.bf16.mxu0 %v4147
    %5218 = vmatpush1.bf16.msra.mxu0 %v4146
    %5219 = vmatprep.subr.bf16.mxu0 %v4155
    %5220 = vmatpush1.bf16.msra.mxu0 %v4154
    %5221 = vmatprep.subr.bf16.mxu0 %v4163
    %5222 = vmatpush1.bf16.msra.mxu0 %v4162
    %5223 = vmatprep.subr.bf16.mxu0 %v4171
    %5224 = vmatpush1.bf16.msra.mxu0 %v4170
    %5225 = vmatprep.subr.bf16.mxu0 %v4179
    %5226 = vmatpush1.bf16.msra.mxu0 %v4178
    %5227 = vmatprep.subr.bf16.mxu0 %v4187
    %5228 = vmatpush1.bf16.msra.mxu0 %v4186
    %5229 = vmatprep.subr.bf16.mxu0 %v4195
    %5230 = vmatpush1.bf16.msra.mxu0 %v4194
    %5231 = vmatprep.subr.bf16.mxu0 %v4203
    %5232 = vmatpush1.bf16.msra.mxu0 %v4202
    %5233 = vmatprep.subr.bf16.mxu0 %v4211
    %5234 = vmatpush1.bf16.msra.mxu0 %v4210
    %5235 = vmatprep.subr.bf16.mxu0 %v4219
    %5236 = vmatpush1.bf16.msra.mxu0 %v4218
    %5237 = vmatprep.subr.bf16.mxu0 %v4227
    %5238 = vmatpush1.bf16.msra.mxu0 %v4226
    %5239 = vmatprep.mubr.bf16.mxu0 %v1149
    %5240 = vmatmul.mubr.bf16.gmra.mrb[0].mxu0 %v1147
    %v5241 = vpop.f32.mrb[0].mxu0
    %v5242 = vadd.f32 %v5201, %v5241
    %v5243 = vpop.f32.mrb[0].mxu0
    %v5244 = vadd.f32 %v5203, %v5243
    %v5245 = vpop.f32.mrb[0].mxu0
    %v5246 = vpop.f32.mrb[0].mxu0
    %5247 = vdwg.mxu0
    %5248 = vmatprep.subr.bf16.mxu0 %v3469
    %5249 = vmatpush1.bf16.msra.mxu0 %v3468
    %5250 = vmatprep.subr.bf16.mxu0 %v3477
    %5251 = vmatpush1.bf16.msra.mxu0 %v3476
    %5252 = vmatprep.subr.bf16.mxu0 %v3485
    %5253 = vmatpush1.bf16.msra.mxu0 %v3484
    %5254 = vmatprep.subr.bf16.mxu0 %v3493
    %5255 = vmatpush1.bf16.msra.mxu0 %v3492
    %5256 = vmatprep.subr.bf16.mxu0 %v3501
    %5257 = vmatpush1.bf16.msra.mxu0 %v3500
    %5258 = vmatprep.subr.bf16.mxu0 %v3509
    %5259 = vmatpush1.bf16.msra.mxu0 %v3508
    %5260 = vmatprep.subr.bf16.mxu0 %v3517
    %5261 = vmatpush1.bf16.msra.mxu0 %v3516
    %5262 = vmatprep.subr.bf16.mxu0 %v3525
    %5263 = vmatpush1.bf16.msra.mxu0 %v3524
    %5264 = vmatprep.subr.bf16.mxu0 %v3533
    %5265 = vmatpush1.bf16.msra.mxu0 %v3532
    %5266 = vmatprep.subr.bf16.mxu0 %v3541
    %5267 = vmatpush1.bf16.msra.mxu0 %v3540
    %5268 = vmatprep.subr.bf16.mxu0 %v3549
    %5269 = vmatpush1.bf16.msra.mxu0 %v3548
    %5270 = vmatprep.subr.bf16.mxu0 %v3557
    %5271 = vmatpush1.bf16.msra.mxu0 %v3556
    %5272 = vmatprep.subr.bf16.mxu0 %v3565
    %5273 = vmatpush1.bf16.msra.mxu0 %v3564
    %5274 = vmatprep.subr.bf16.mxu0 %v3573
    %5275 = vmatpush1.bf16.msra.mxu0 %v3572
    %5276 = vmatprep.subr.bf16.mxu0 %v3581
    %5277 = vmatpush1.bf16.msra.mxu0 %v3580
    %5278 = vmatprep.subr.bf16.mxu0 %v3589
    %5279 = vmatpush1.bf16.msra.mxu0 %v3588
    %5280 = vmatprep.mubr.bf16.mxu0 %v1114
    %5281 = vmatmul.mubr.bf16.gmra.mrb[0].mxu0 %v1106
    %v5282 = vpop.f32.mrb[0].mxu0
    %v5283 = vadd.f32 %v1067, %v5282
    %v5284 = vpop.f32.mrb[0].mxu0
    %v5285 = vadd.f32 %v1071, %v5284
    %v5286 = vpop.f32.mrb[0].mxu0
    %v5287 = vpop.f32.mrb[0].mxu0
    %5288 = vdwg.mxu0
    %5289 = vmatprep.subr.bf16.mxu0 %v3597
    %5290 = vmatpush1.bf16.msra.mxu0 %v3596
    %5291 = vmatprep.subr.bf16.mxu0 %v3605
    %5292 = vmatpush1.bf16.msra.mxu0 %v3604
    %5293 = vmatprep.subr.bf16.mxu0 %v3613
    %5294 = vmatpush1.bf16.msra.mxu0 %v3612
    %5295 = vmatprep.subr.bf16.mxu0 %v3621
    %5296 = vmatpush1.bf16.msra.mxu0 %v3620
    %5297 = vmatprep.subr.bf16.mxu0 %v3629
    %5298 = vmatpush1.bf16.msra.mxu0 %v3628
    %5299 = vmatprep.subr.bf16.mxu0 %v3637
    %5300 = vmatpush1.bf16.msra.mxu0 %v3636
    %5301 = vmatprep.subr.bf16.mxu0 %v3645
    %5302 = vmatpush1.bf16.msra.mxu0 %v3644
    %5303 = vmatprep.subr.bf16.mxu0 %v3653
    %5304 = vmatpush1.bf16.msra.mxu0 %v3652
    %5305 = vmatprep.subr.bf16.mxu0 %v3661
    %5306 = vmatpush1.bf16.msra.mxu0 %v3660
    %5307 = vmatprep.subr.bf16.mxu0 %v3669
    %5308 = vmatpush1.bf16.msra.mxu0 %v3668
    %5309 = vmatprep.subr.bf16.mxu0 %v3677
    %5310 = vmatpush1.bf16.msra.mxu0 %v3676
    %5311 = vmatprep.subr.bf16.mxu0 %v3685
    %5312 = vmatpush1.bf16.msra.mxu0 %v3684
    %5313 = vmatprep.subr.bf16.mxu0 %v3693
    %5314 = vmatpush1.bf16.msra.mxu0 %v3692
    %5315 = vmatprep.subr.bf16.mxu0 %v3701
    %5316 = vmatpush1.bf16.msra.mxu0 %v3700
    %5317 = vmatprep.subr.bf16.mxu0 %v3709
    %5318 = vmatpush1.bf16.msra.mxu0 %v3708
    %5319 = vmatprep.subr.bf16.mxu0 %v3717
    %5320 = vmatpush1.bf16.msra.mxu0 %v3716
    %5321 = vmatprep.mubr.bf16.mxu0 %v1115
    %5322 = vmatmul.mubr.bf16.gmra.mrb[0].mxu0 %v1113
    %v5323 = vpop.f32.mrb[0].mxu0
    %v5324 = vadd.f32 %v5283, %v5323
    %v5325 = vpop.f32.mrb[0].mxu0
    %v5326 = vadd.f32 %v5285, %v5325
    %v5327 = vpop.f32.mrb[0].mxu0
    %v5328 = vpop.f32.mrb[0].mxu0
    %5329 = vdwg.mxu0
    %5330 = vmatprep.subr.bf16.mxu0 %v3725
    %5331 = vmatpush1.bf16.msra.mxu0 %v3724
    %5332 = vmatprep.subr.bf16.mxu0 %v3733
    %5333 = vmatpush1.bf16.msra.mxu0 %v3732
    %5334 = vmatprep.subr.bf16.mxu0 %v3741
    %5335 = vmatpush1.bf16.msra.mxu0 %v3740
    %5336 = vmatprep.subr.bf16.mxu0 %v3749
    %5337 = vmatpush1.bf16.msra.mxu0 %v3748
    %5338 = vmatprep.subr.bf16.mxu0 %v3757
    %5339 = vmatpush1.bf16.msra.mxu0 %v3756
    %5340 = vmatprep.subr.bf16.mxu0 %v3765
    %5341 = vmatpush1.bf16.msra.mxu0 %v3764
    %5342 = vmatprep.subr.bf16.mxu0 %v3773
    %5343 = vmatpush1.bf16.msra.mxu0 %v3772
    %5344 = vmatprep.subr.bf16.mxu0 %v3781
    %5345 = vmatpush1.bf16.msra.mxu0 %v3780
    %5346 = vmatprep.subr.bf16.mxu0 %v3789
    %5347 = vmatpush1.bf16.msra.mxu0 %v3788
    %5348 = vmatprep.subr.bf16.mxu0 %v3797
    %5349 = vmatpush1.bf16.msra.mxu0 %v3796
    %5350 = vmatprep.subr.bf16.mxu0 %v3805
    %5351 = vmatpush1.bf16.msra.mxu0 %v3804
    %5352 = vmatprep.subr.bf16.mxu0 %v3813
    %5353 = vmatpush1.bf16.msra.mxu0 %v3812
    %5354 = vmatprep.subr.bf16.mxu0 %v3821
    %5355 = vmatpush1.bf16.msra.mxu0 %v3820
    %5356 = vmatprep.subr.bf16.mxu0 %v3829
    %5357 = vmatpush1.bf16.msra.mxu0 %v3828
    %5358 = vmatprep.subr.bf16.mxu0 %v3837
    %5359 = vmatpush1.bf16.msra.mxu0 %v3836
    %5360 = vmatprep.subr.bf16.mxu0 %v3845
    %5361 = vmatpush1.bf16.msra.mxu0 %v3844
    %5362 = vmatprep.mubr.bf16.mxu0 %v1131
    %5363 = vmatmul.mubr.bf16.gmra.mrb[0].mxu0 %v1123
    %v5364 = vpop.f32.mrb[0].mxu0
    %v5365 = vadd.f32 %v5324, %v5364
    %v5366 = vpop.f32.mrb[0].mxu0
    %v5367 = vadd.f32 %v5326, %v5366
    %v5368 = vpop.f32.mrb[0].mxu0
    %v5369 = vpop.f32.mrb[0].mxu0
    %5370 = vdwg.mxu0
    %5371 = vmatprep.subr.bf16.mxu0 %v3853
    %5372 = vmatpush1.bf16.msra.mxu0 %v3852
    %5373 = vmatprep.subr.bf16.mxu0 %v3861
    %5374 = vmatpush1.bf16.msra.mxu0 %v3860
    %5375 = vmatprep.subr.bf16.mxu0 %v3869
    %5376 = vmatpush1.bf16.msra.mxu0 %v3868
    %5377 = vmatprep.subr.bf16.mxu0 %v3877
    %5378 = vmatpush1.bf16.msra.mxu0 %v3876
    %5379 = vmatprep.subr.bf16.mxu0 %v3885
    %5380 = vmatpush1.bf16.msra.mxu0 %v3884
    %5381 = vmatprep.subr.bf16.mxu0 %v3893
    %5382 = vmatpush1.bf16.msra.mxu0 %v3892
    %5383 = vmatprep.subr.bf16.mxu0 %v3901
    %5384 = vmatpush1.bf16.msra.mxu0 %v3900
    %5385 = vmatprep.subr.bf16.mxu0 %v3909
    %5386 = vmatpush1.bf16.msra.mxu0 %v3908
    %5387 = vmatprep.subr.bf16.mxu0 %v3917
    %5388 = vmatpush1.bf16.msra.mxu0 %v3916
    %5389 = vmatprep.subr.bf16.mxu0 %v3925
    %5390 = vmatpush1.bf16.msra.mxu0 %v3924
    %5391 = vmatprep.subr.bf16.mxu0 %v3933
    %5392 = vmatpush1.bf16.msra.mxu0 %v3932
    %5393 = vmatprep.subr.bf16.mxu0 %v3941
    %5394 = vmatpush1.bf16.msra.mxu0 %v3940
    %5395 = vmatprep.subr.bf16.mxu0 %v3949
    %5396 = vmatpush1.bf16.msra.mxu0 %v3948
    %5397 = vmatprep.subr.bf16.mxu0 %v3957
    %5398 = vmatpush1.bf16.msra.mxu0 %v3956
    %5399 = vmatprep.subr.bf16.mxu0 %v3965
    %5400 = vmatpush1.bf16.msra.mxu0 %v3964
    %5401 = vmatprep.subr.bf16.mxu0 %v3973
    %5402 = vmatpush1.bf16.msra.mxu0 %v3972
    %5403 = vmatprep.mubr.bf16.mxu0 %v1132
    %5404 = vmatmul.mubr.bf16.gmra.mrb[0].mxu0 %v1130
    %v5405 = vpop.f32.mrb[0].mxu0
    %v5406 = vadd.f32 %v5365, %v5405
    %v5407 = vpop.f32.mrb[0].mxu0
    %v5408 = vadd.f32 %v5367, %v5407
    %v5409 = vpop.f32.mrb[0].mxu0
    %v5410 = vpop.f32.mrb[0].mxu0
    %5411 = vdwg.mxu0
    %5412 = vmatprep.subr.bf16.mxu0 %v3981
    %5413 = vmatpush1.bf16.msra.mxu0 %v3980
    %5414 = vmatprep.subr.bf16.mxu0 %v3989
    %5415 = vmatpush1.bf16.msra.mxu0 %v3988
    %5416 = vmatprep.subr.bf16.mxu0 %v3997
    %5417 = vmatpush1.bf16.msra.mxu0 %v3996
    %5418 = vmatprep.subr.bf16.mxu0 %v4005
    %5419 = vmatpush1.bf16.msra.mxu0 %v4004
    %5420 = vmatprep.subr.bf16.mxu0 %v4013
    %5421 = vmatpush1.bf16.msra.mxu0 %v4012
    %5422 = vmatprep.subr.bf16.mxu0 %v4021
    %5423 = vmatpush1.bf16.msra.mxu0 %v4020
    %5424 = vmatprep.subr.bf16.mxu0 %v4029
    %5425 = vmatpush1.bf16.msra.mxu0 %v4028
    %5426 = vmatprep.subr.bf16.mxu0 %v4037
    %5427 = vmatpush1.bf16.msra.mxu0 %v4036
    %5428 = vmatprep.subr.bf16.mxu0 %v4045
    %5429 = vmatpush1.bf16.msra.mxu0 %v4044
    %5430 = vmatprep.subr.bf16.mxu0 %v4053
    %5431 = vmatpush1.bf16.msra.mxu0 %v4052
    %5432 = vmatprep.subr.bf16.mxu0 %v4061
    %5433 = vmatpush1.bf16.msra.mxu0 %v4060
    %5434 = vmatprep.subr.bf16.mxu0 %v4069
    %5435 = vmatpush1.bf16.msra.mxu0 %v4068
    %5436 = vmatprep.subr.bf16.mxu0 %v4077
    %5437 = vmatpush1.bf16.msra.mxu0 %v4076
    %5438 = vmatprep.subr.bf16.mxu0 %v4085
    %5439 = vmatpush1.bf16.msra.mxu0 %v4084
    %5440 = vmatprep.subr.bf16.mxu0 %v4093
    %5441 = vmatpush1.bf16.msra.mxu0 %v4092
    %5442 = vmatprep.subr.bf16.mxu0 %v4101
    %5443 = vmatpush1.bf16.msra.mxu0 %v4100
    %5444 = vmatprep.mubr.bf16.mxu0 %v1148
    %5445 = vmatmul.mubr.bf16.gmra.mrb[0].mxu0 %v1140
    %v5446 = vpop.f32.mrb[0].mxu0
    %v5447 = vadd.f32 %v5406, %v5446
    %v5448 = vpop.f32.mrb[0].mxu0
    %v5449 = vadd.f32 %v5408, %v5448
    %v5450 = vpop.f32.mrb[0].mxu0
    %v5451 = vpop.f32.mrb[0].mxu0
    %5452 = vdwg.mxu0
    %5453 = vmatprep.subr.bf16.mxu0 %v4109
    %5454 = vmatpush1.bf16.msra.mxu0 %v4108
    %5455 = vmatprep.subr.bf16.mxu0 %v4117
    %5456 = vmatpush1.bf16.msra.mxu0 %v4116
    %5457 = vmatprep.subr.bf16.mxu0 %v4125
    %5458 = vmatpush1.bf16.msra.mxu0 %v4124
    %5459 = vmatprep.subr.bf16.mxu0 %v4133
    %5460 = vmatpush1.bf16.msra.mxu0 %v4132
    %5461 = vmatprep.subr.bf16.mxu0 %v4141
    %5462 = vmatpush1.bf16.msra.mxu0 %v4140
    %5463 = vmatprep.subr.bf16.mxu0 %v4149
    %5464 = vmatpush1.bf16.msra.mxu0 %v4148
    %5465 = vmatprep.subr.bf16.mxu0 %v4157
    %5466 = vmatpush1.bf16.msra.mxu0 %v4156
    %5467 = vmatprep.subr.bf16.mxu0 %v4165
    %5468 = vmatpush1.bf16.msra.mxu0 %v4164
    %5469 = vmatprep.subr.bf16.mxu0 %v4173
    %5470 = vmatpush1.bf16.msra.mxu0 %v4172
    %5471 = vmatprep.subr.bf16.mxu0 %v4181
    %5472 = vmatpush1.bf16.msra.mxu0 %v4180
    %5473 = vmatprep.subr.bf16.mxu0 %v4189
    %5474 = vmatpush1.bf16.msra.mxu0 %v4188
    %5475 = vmatprep.subr.bf16.mxu0 %v4197
    %5476 = vmatpush1.bf16.msra.mxu0 %v4196
    %5477 = vmatprep.subr.bf16.mxu0 %v4205
    %5478 = vmatpush1.bf16.msra.mxu0 %v4204
    %5479 = vmatprep.subr.bf16.mxu0 %v4213
    %5480 = vmatpush1.bf16.msra.mxu0 %v4212
    %5481 = vmatprep.subr.bf16.mxu0 %v4221
    %5482 = vmatpush1.bf16.msra.mxu0 %v4220
    %5483 = vmatprep.subr.bf16.mxu0 %v4229
    %5484 = vmatpush1.bf16.msra.mxu0 %v4228
    %5485 = vmatprep.mubr.bf16.mxu0 %v1149
    %5486 = vmatmul.mubr.bf16.gmra.mrb[0].mxu0 %v1147
    %v5487 = vpop.f32.mrb[0].mxu0
    %v5488 = vadd.f32 %v5447, %v5487
    %v5489 = vpop.f32.mrb[0].mxu0
    %v5490 = vadd.f32 %v5449, %v5489
    %v5491 = vpop.f32.mrb[0].mxu0
    %v5492 = vpop.f32.mrb[0].mxu0
    %5493 = vdwg.mxu0
    %5494 = vmatprep.subr.bf16.mxu0 %v3471
    %5495 = vmatpush1.bf16.msra.mxu0 %v3470
    %5496 = vmatprep.subr.bf16.mxu0 %v3479
    %5497 = vmatpush1.bf16.msra.mxu0 %v3478
    %5498 = vmatprep.subr.bf16.mxu0 %v3487
    %5499 = vmatpush1.bf16.msra.mxu0 %v3486
    %5500 = vmatprep.subr.bf16.mxu0 %v3495
    %5501 = vmatpush1.bf16.msra.mxu0 %v3494
    %5502 = vmatprep.subr.bf16.mxu0 %v3503
    %5503 = vmatpush1.bf16.msra.mxu0 %v3502
    %5504 = vmatprep.subr.bf16.mxu0 %v3511
    %5505 = vmatpush1.bf16.msra.mxu0 %v3510
    %5506 = vmatprep.subr.bf16.mxu0 %v3519
    %5507 = vmatpush1.bf16.msra.mxu0 %v3518
    %5508 = vmatprep.subr.bf16.mxu0 %v3527
    %5509 = vmatpush1.bf16.msra.mxu0 %v3526
    %5510 = vmatprep.subr.bf16.mxu0 %v3535
    %5511 = vmatpush1.bf16.msra.mxu0 %v3534
    %5512 = vmatprep.subr.bf16.mxu0 %v3543
    %5513 = vmatpush1.bf16.msra.mxu0 %v3542
    %5514 = vmatprep.subr.bf16.mxu0 %v3551
    %5515 = vmatpush1.bf16.msra.mxu0 %v3550
    %5516 = vmatprep.subr.bf16.mxu0 %v3559
    %5517 = vmatpush1.bf16.msra.mxu0 %v3558
    %5518 = vmatprep.subr.bf16.mxu0 %v3567
    %5519 = vmatpush1.bf16.msra.mxu0 %v3566
    %5520 = vmatprep.subr.bf16.mxu0 %v3575
    %5521 = vmatpush1.bf16.msra.mxu0 %v3574
    %5522 = vmatprep.subr.bf16.mxu0 %v3583
    %5523 = vmatpush1.bf16.msra.mxu0 %v3582
    %5524 = vmatprep.subr.bf16.mxu0 %v3591
    %5525 = vmatpush1.bf16.msra.mxu0 %v3590
    %5526 = vmatprep.mubr.bf16.mxu0 %v1114
    %5527 = vmatmul.mubr.bf16.gmra.mrb[0].mxu0 %v1106
    %v5528 = vpop.f32.mrb[0].mxu0
    %v5529 = vadd.f32 %v1075, %v5528
    %v5530 = vpop.f32.mrb[0].mxu0
    %v5531 = vadd.f32 %v1079, %v5530
    %v5532 = vpop.f32.mrb[0].mxu0
    %v5533 = vpop.f32.mrb[0].mxu0
    %5534 = vdwg.mxu0
    %5535 = vmatprep.subr.bf16.mxu0 %v3599
    %5536 = vmatpush1.bf16.msra.mxu0 %v3598
    %5537 = vmatprep.subr.bf16.mxu0 %v3607
    %5538 = vmatpush1.bf16.msra.mxu0 %v3606
    %5539 = vmatprep.subr.bf16.mxu0 %v3615
    %5540 = vmatpush1.bf16.msra.mxu0 %v3614
    %5541 = vmatprep.subr.bf16.mxu0 %v3623
    %5542 = vmatpush1.bf16.msra.mxu0 %v3622
    %5543 = vmatprep.subr.bf16.mxu0 %v3631
    %5544 = vmatpush1.bf16.msra.mxu0 %v3630
    %5545 = vmatprep.subr.bf16.mxu0 %v3639
    %5546 = vmatpush1.bf16.msra.mxu0 %v3638
    %5547 = vmatprep.subr.bf16.mxu0 %v3647
    %5548 = vmatpush1.bf16.msra.mxu0 %v3646
    %5549 = vmatprep.subr.bf16.mxu0 %v3655
    %5550 = vmatpush1.bf16.msra.mxu0 %v3654
    %5551 = vmatprep.subr.bf16.mxu0 %v3663
    %5552 = vmatpush1.bf16.msra.mxu0 %v3662
    %5553 = vmatprep.subr.bf16.mxu0 %v3671
    %5554 = vmatpush1.bf16.msra.mxu0 %v3670
    %5555 = vmatprep.subr.bf16.mxu0 %v3679
    %5556 = vmatpush1.bf16.msra.mxu0 %v3678
    %5557 = vmatprep.subr.bf16.mxu0 %v3687
    %5558 = vmatpush1.bf16.msra.mxu0 %v3686
    %5559 = vmatprep.subr.bf16.mxu0 %v3695
    %5560 = vmatpush1.bf16.msra.mxu0 %v3694
    %5561 = vmatprep.subr.bf16.mxu0 %v3703
    %5562 = vmatpush1.bf16.msra.mxu0 %v3702
    %5563 = vmatprep.subr.bf16.mxu0 %v3711
    %5564 = vmatpush1.bf16.msra.mxu0 %v3710
    %5565 = vmatprep.subr.bf16.mxu0 %v3719
    %5566 = vmatpush1.bf16.msra.mxu0 %v3718
    %5567 = vmatprep.mubr.bf16.mxu0 %v1115
    %5568 = vmatmul.mubr.bf16.gmra.mrb[0].mxu0 %v1113
    %v5569 = vpop.f32.mrb[0].mxu0
    %v5570 = vadd.f32 %v5529, %v5569
    %v5571 = vpop.f32.mrb[0].mxu0
    %v5572 = vadd.f32 %v5531, %v5571
    %v5573 = vpop.f32.mrb[0].mxu0
    %v5574 = vpop.f32.mrb[0].mxu0
    %5575 = vdwg.mxu0
    %5576 = vmatprep.subr.bf16.mxu0 %v3727
    %5577 = vmatpush1.bf16.msra.mxu0 %v3726
    %5578 = vmatprep.subr.bf16.mxu0 %v3735
    %5579 = vmatpush1.bf16.msra.mxu0 %v3734
    %5580 = vmatprep.subr.bf16.mxu0 %v3743
    %5581 = vmatpush1.bf16.msra.mxu0 %v3742
    %5582 = vmatprep.subr.bf16.mxu0 %v3751
    %5583 = vmatpush1.bf16.msra.mxu0 %v3750
    %5584 = vmatprep.subr.bf16.mxu0 %v3759
    %5585 = vmatpush1.bf16.msra.mxu0 %v3758
    %5586 = vmatprep.subr.bf16.mxu0 %v3767
    %5587 = vmatpush1.bf16.msra.mxu0 %v3766
    %5588 = vmatprep.subr.bf16.mxu0 %v3775
    %5589 = vmatpush1.bf16.msra.mxu0 %v3774
    %5590 = vmatprep.subr.bf16.mxu0 %v3783
    %5591 = vmatpush1.bf16.msra.mxu0 %v3782
    %5592 = vmatprep.subr.bf16.mxu0 %v3791
    %5593 = vmatpush1.bf16.msra.mxu0 %v3790
    %5594 = vmatprep.subr.bf16.mxu0 %v3799
    %5595 = vmatpush1.bf16.msra.mxu0 %v3798
    %5596 = vmatprep.subr.bf16.mxu0 %v3807
    %5597 = vmatpush1.bf16.msra.mxu0 %v3806
    %5598 = vmatprep.subr.bf16.mxu0 %v3815
    %5599 = vmatpush1.bf16.msra.mxu0 %v3814
    %5600 = vmatprep.subr.bf16.mxu0 %v3823
    %5601 = vmatpush1.bf16.msra.mxu0 %v3822
    %5602 = vmatprep.subr.bf16.mxu0 %v3831
    %5603 = vmatpush1.bf16.msra.mxu0 %v3830
    %5604 = vmatprep.subr.bf16.mxu0 %v3839
    %5605 = vmatpush1.bf16.msra.mxu0 %v3838
    %5606 = vmatprep.subr.bf16.mxu0 %v3847
    %5607 = vmatpush1.bf16.msra.mxu0 %v3846
    %5608 = vmatprep.mubr.bf16.mxu0 %v1131
    %5609 = vmatmul.mubr.bf16.gmra.mrb[0].mxu0 %v1123
    %v5610 = vpop.f32.mrb[0].mxu0
    %v5611 = vadd.f32 %v5570, %v5610
    %v5612 = vpop.f32.mrb[0].mxu0
    %v5613 = vadd.f32 %v5572, %v5612
    %v5614 = vpop.f32.mrb[0].mxu0
    %v5615 = vpop.f32.mrb[0].mxu0
    %5616 = vdwg.mxu0
    %5617 = vmatprep.subr.bf16.mxu0 %v3855
    %5618 = vmatpush1.bf16.msra.mxu0 %v3854
    %5619 = vmatprep.subr.bf16.mxu0 %v3863
    %5620 = vmatpush1.bf16.msra.mxu0 %v3862
    %5621 = vmatprep.subr.bf16.mxu0 %v3871
    %5622 = vmatpush1.bf16.msra.mxu0 %v3870
    %5623 = vmatprep.subr.bf16.mxu0 %v3879
    %5624 = vmatpush1.bf16.msra.mxu0 %v3878
    %5625 = vmatprep.subr.bf16.mxu0 %v3887
    %5626 = vmatpush1.bf16.msra.mxu0 %v3886
    %5627 = vmatprep.subr.bf16.mxu0 %v3895
    %5628 = vmatpush1.bf16.msra.mxu0 %v3894
    %5629 = vmatprep.subr.bf16.mxu0 %v3903
    %5630 = vmatpush1.bf16.msra.mxu0 %v3902
    %5631 = vmatprep.subr.bf16.mxu0 %v3911
    %5632 = vmatpush1.bf16.msra.mxu0 %v3910
    %5633 = vmatprep.subr.bf16.mxu0 %v3919
    %5634 = vmatpush1.bf16.msra.mxu0 %v3918
    %5635 = vmatprep.subr.bf16.mxu0 %v3927
    %5636 = vmatpush1.bf16.msra.mxu0 %v3926
    %5637 = vmatprep.subr.bf16.mxu0 %v3935
    %5638 = vmatpush1.bf16.msra.mxu0 %v3934
    %5639 = vmatprep.subr.bf16.mxu0 %v3943
    %5640 = vmatpush1.bf16.msra.mxu0 %v3942
    %5641 = vmatprep.subr.bf16.mxu0 %v3951
    %5642 = vmatpush1.bf16.msra.mxu0 %v3950
    %5643 = vmatprep.subr.bf16.mxu0 %v3959
    %5644 = vmatpush1.bf16.msra.mxu0 %v3958
    %5645 = vmatprep.subr.bf16.mxu0 %v3967
    %5646 = vmatpush1.bf16.msra.mxu0 %v3966
    %5647 = vmatprep.subr.bf16.mxu0 %v3975
    %5648 = vmatpush1.bf16.msra.mxu0 %v3974
    %5649 = vmatprep.mubr.bf16.mxu0 %v1132
    %5650 = vmatmul.mubr.bf16.gmra.mrb[0].mxu0 %v1130
    %v5651 = vpop.f32.mrb[0].mxu0
    %v5652 = vadd.f32 %v5611, %v5651
    %v5653 = vpop.f32.mrb[0].mxu0
    %v5654 = vadd.f32 %v5613, %v5653
    %v5655 = vpop.f32.mrb[0].mxu0
    %v5656 = vpop.f32.mrb[0].mxu0
    %5657 = vdwg.mxu0
    %5658 = vmatprep.subr.bf16.mxu0 %v3983
    %5659 = vmatpush1.bf16.msra.mxu0 %v3982
    %5660 = vmatprep.subr.bf16.mxu0 %v3991
    %5661 = vmatpush1.bf16.msra.mxu0 %v3990
    %5662 = vmatprep.subr.bf16.mxu0 %v3999
    %5663 = vmatpush1.bf16.msra.mxu0 %v3998
    %5664 = vmatprep.subr.bf16.mxu0 %v4007
    %5665 = vmatpush1.bf16.msra.mxu0 %v4006
    %5666 = vmatprep.subr.bf16.mxu0 %v4015
    %5667 = vmatpush1.bf16.msra.mxu0 %v4014
    %5668 = vmatprep.subr.bf16.mxu0 %v4023
    %5669 = vmatpush1.bf16.msra.mxu0 %v4022
    %5670 = vmatprep.subr.bf16.mxu0 %v4031
    %5671 = vmatpush1.bf16.msra.mxu0 %v4030
    %5672 = vmatprep.subr.bf16.mxu0 %v4039
    %5673 = vmatpush1.bf16.msra.mxu0 %v4038
    %5674 = vmatprep.subr.bf16.mxu0 %v4047
    %5675 = vmatpush1.bf16.msra.mxu0 %v4046
    %5676 = vmatprep.subr.bf16.mxu0 %v4055
    %5677 = vmatpush1.bf16.msra.mxu0 %v4054
    %5678 = vmatprep.subr.bf16.mxu0 %v4063
    %5679 = vmatpush1.bf16.msra.mxu0 %v4062
    %5680 = vmatprep.subr.bf16.mxu0 %v4071
    %5681 = vmatpush1.bf16.msra.mxu0 %v4070
    %5682 = vmatprep.subr.bf16.mxu0 %v4079
    %5683 = vmatpush1.bf16.msra.mxu0 %v4078
    %5684 = vmatprep.subr.bf16.mxu0 %v4087
    %5685 = vmatpush1.bf16.msra.mxu0 %v4086
    %5686 = vmatprep.subr.bf16.mxu0 %v4095
    %5687 = vmatpush1.bf16.msra.mxu0 %v4094
    %5688 = vmatprep.subr.bf16.mxu0 %v4103
    %5689 = vmatpush1.bf16.msra.mxu0 %v4102
    %5690 = vmatprep.mubr.bf16.mxu0 %v1148
    %5691 = vmatmul.mubr.bf16.gmra.mrb[0].mxu0 %v1140
    %v5692 = vpop.f32.mrb[0].mxu0
    %v5693 = vadd.f32 %v5652, %v5692
    %v5694 = vpop.f32.mrb[0].mxu0
    %v5695 = vadd.f32 %v5654, %v5694
    %v5696 = vpop.f32.mrb[0].mxu0
    %v5697 = vpop.f32.mrb[0].mxu0
    %5698 = vdwg.mxu0
    %5699 = vmatprep.subr.bf16.mxu0 %v4111
    %5700 = vmatpush1.bf16.msra.mxu0 %v4110
    %5701 = vmatprep.subr.bf16.mxu0 %v4119
    %5702 = vmatpush1.bf16.msra.mxu0 %v4118
    %5703 = vmatprep.subr.bf16.mxu0 %v4127
    %5704 = vmatpush1.bf16.msra.mxu0 %v4126
    %5705 = vmatprep.subr.bf16.mxu0 %v4135
    %5706 = vmatpush1.bf16.msra.mxu0 %v4134
    %5707 = vmatprep.subr.bf16.mxu0 %v4143
    %5708 = vmatpush1.bf16.msra.mxu0 %v4142
    %5709 = vmatprep.subr.bf16.mxu0 %v4151
    %5710 = vmatpush1.bf16.msra.mxu0 %v4150
    %5711 = vmatprep.subr.bf16.mxu0 %v4159
    %5712 = vmatpush1.bf16.msra.mxu0 %v4158
    %5713 = vmatprep.subr.bf16.mxu0 %v4167
    %5714 = vmatpush1.bf16.msra.mxu0 %v4166
    %5715 = vmatprep.subr.bf16.mxu0 %v4175
    %5716 = vmatpush1.bf16.msra.mxu0 %v4174
    %5717 = vmatprep.subr.bf16.mxu0 %v4183
    %5718 = vmatpush1.bf16.msra.mxu0 %v4182
    %5719 = vmatprep.subr.bf16.mxu0 %v4191
    %5720 = vmatpush1.bf16.msra.mxu0 %v4190
    %5721 = vmatprep.subr.bf16.mxu0 %v4199
    %5722 = vmatpush1.bf16.msra.mxu0 %v4198
    %5723 = vmatprep.subr.bf16.mxu0 %v4207
    %5724 = vmatpush1.bf16.msra.mxu0 %v4206
    %5725 = vmatprep.subr.bf16.mxu0 %v4215
    %5726 = vmatpush1.bf16.msra.mxu0 %v4214
    %5727 = vmatprep.subr.bf16.mxu0 %v4223
    %5728 = vmatpush1.bf16.msra.mxu0 %v4222
    %5729 = vmatprep.subr.bf16.mxu0 %v4231
    %5730 = vmatpush1.bf16.msra.mxu0 %v4230
    %5731 = vmatprep.mubr.bf16.mxu0 %v1149
    %5732 = vmatmul.mubr.bf16.gmra.mrb[0].mxu0 %v1147
    %v5733 = vpop.f32.mrb[0].mxu0
    %v5734 = vadd.f32 %v5693, %v5733
    %v5735 = vpop.f32.mrb[0].mxu0
    %v5736 = vadd.f32 %v5695, %v5735
    %v5737 = vpop.f32.mrb[0].mxu0
    %v5738 = vpop.f32.mrb[0].mxu0
    %5739 = vdwg.mxu0
    %5740 = vmatprep.subr.bf16.mxu0 %v3473
    %5741 = vmatpush1.bf16.msra.mxu0 %v3472
    %5742 = vmatprep.subr.bf16.mxu0 %v3481
    %5743 = vmatpush1.bf16.msra.mxu0 %v3480
    %5744 = vmatprep.subr.bf16.mxu0 %v3489
    %5745 = vmatpush1.bf16.msra.mxu0 %v3488
    %5746 = vmatprep.subr.bf16.mxu0 %v3497
    %5747 = vmatpush1.bf16.msra.mxu0 %v3496
    %5748 = vmatprep.subr.bf16.mxu0 %v3505
    %5749 = vmatpush1.bf16.msra.mxu0 %v3504
    %5750 = vmatprep.subr.bf16.mxu0 %v3513
    %5751 = vmatpush1.bf16.msra.mxu0 %v3512
    %5752 = vmatprep.subr.bf16.mxu0 %v3521
    %5753 = vmatpush1.bf16.msra.mxu0 %v3520
    %5754 = vmatprep.subr.bf16.mxu0 %v3529
    %5755 = vmatpush1.bf16.msra.mxu0 %v3528
    %5756 = vmatprep.subr.bf16.mxu0 %v3537
    %5757 = vmatpush1.bf16.msra.mxu0 %v3536
    %5758 = vmatprep.subr.bf16.mxu0 %v3545
    %5759 = vmatpush1.bf16.msra.mxu0 %v3544
    %5760 = vmatprep.subr.bf16.mxu0 %v3553
    %5761 = vmatpush1.bf16.msra.mxu0 %v3552
    %5762 = vmatprep.subr.bf16.mxu0 %v3561
    %5763 = vmatpush1.bf16.msra.mxu0 %v3560
    %5764 = vmatprep.subr.bf16.mxu0 %v3569
    %5765 = vmatpush1.bf16.msra.mxu0 %v3568
    %5766 = vmatprep.subr.bf16.mxu0 %v3577
    %5767 = vmatpush1.bf16.msra.mxu0 %v3576
    %5768 = vmatprep.subr.bf16.mxu0 %v3585
    %5769 = vmatpush1.bf16.msra.mxu0 %v3584
    %5770 = vmatprep.subr.bf16.mxu0 %v3593
    %5771 = vmatpush1.bf16.msra.mxu0 %v3592
    %5772 = vmatprep.mubr.bf16.mxu0 %v1114
    %5773 = vmatmul.mubr.bf16.gmra.mrb[0].mxu0 %v1106
    %v5774 = vpop.f32.mrb[0].mxu0
    %v5775 = vadd.f32 %v1083, %v5774
    %v5776 = vpop.f32.mrb[0].mxu0
    %v5777 = vadd.f32 %v1087, %v5776
    %v5778 = vpop.f32.mrb[0].mxu0
    %v5779 = vpop.f32.mrb[0].mxu0
    %5780 = vdwg.mxu0
    %5781 = vmatprep.subr.bf16.mxu0 %v3601
    %5782 = vmatpush1.bf16.msra.mxu0 %v3600
    %5783 = vmatprep.subr.bf16.mxu0 %v3609
    %5784 = vmatpush1.bf16.msra.mxu0 %v3608
    %5785 = vmatprep.subr.bf16.mxu0 %v3617
    %5786 = vmatpush1.bf16.msra.mxu0 %v3616
    %5787 = vmatprep.subr.bf16.mxu0 %v3625
    %5788 = vmatpush1.bf16.msra.mxu0 %v3624
    %5789 = vmatprep.subr.bf16.mxu0 %v3633
    %5790 = vmatpush1.bf16.msra.mxu0 %v3632
    %5791 = vmatprep.subr.bf16.mxu0 %v3641
    %5792 = vmatpush1.bf16.msra.mxu0 %v3640
    %5793 = vmatprep.subr.bf16.mxu0 %v3649
    %5794 = vmatpush1.bf16.msra.mxu0 %v3648
    %5795 = vmatprep.subr.bf16.mxu0 %v3657
    %5796 = vmatpush1.bf16.msra.mxu0 %v3656
    %5797 = vmatprep.subr.bf16.mxu0 %v3665
    %5798 = vmatpush1.bf16.msra.mxu0 %v3664
    %5799 = vmatprep.subr.bf16.mxu0 %v3673
    %5800 = vmatpush1.bf16.msra.mxu0 %v3672
    %5801 = vmatprep.subr.bf16.mxu0 %v3681
    %5802 = vmatpush1.bf16.msra.mxu0 %v3680
    %5803 = vmatprep.subr.bf16.mxu0 %v3689
    %5804 = vmatpush1.bf16.msra.mxu0 %v3688
    %5805 = vmatprep.subr.bf16.mxu0 %v3697
    %5806 = vmatpush1.bf16.msra.mxu0 %v3696
    %5807 = vmatprep.subr.bf16.mxu0 %v3705
    %5808 = vmatpush1.bf16.msra.mxu0 %v3704
    %5809 = vmatprep.subr.bf16.mxu0 %v3713
    %5810 = vmatpush1.bf16.msra.mxu0 %v3712
    %5811 = vmatprep.subr.bf16.mxu0 %v3721
    %5812 = vmatpush1.bf16.msra.mxu0 %v3720
    %5813 = vmatprep.mubr.bf16.mxu0 %v1115
    %5814 = vmatmul.mubr.bf16.gmra.mrb[0].mxu0 %v1113
    %v5815 = vpop.f32.mrb[0].mxu0
    %v5816 = vadd.f32 %v5775, %v5815
    %v5817 = vpop.f32.mrb[0].mxu0
    %v5818 = vadd.f32 %v5777, %v5817
    %v5819 = vpop.f32.mrb[0].mxu0
    %v5820 = vpop.f32.mrb[0].mxu0
    %5821 = vdwg.mxu0
    %5822 = vmatprep.subr.bf16.mxu0 %v3729
    %5823 = vmatpush1.bf16.msra.mxu0 %v3728
    %5824 = vmatprep.subr.bf16.mxu0 %v3737
    %5825 = vmatpush1.bf16.msra.mxu0 %v3736
    %5826 = vmatprep.subr.bf16.mxu0 %v3745
    %5827 = vmatpush1.bf16.msra.mxu0 %v3744
    %5828 = vmatprep.subr.bf16.mxu0 %v3753
    %5829 = vmatpush1.bf16.msra.mxu0 %v3752
    %5830 = vmatprep.subr.bf16.mxu0 %v3761
    %5831 = vmatpush1.bf16.msra.mxu0 %v3760
    %5832 = vmatprep.subr.bf16.mxu0 %v3769
    %5833 = vmatpush1.bf16.msra.mxu0 %v3768
    %5834 = vmatprep.subr.bf16.mxu0 %v3777
    %5835 = vmatpush1.bf16.msra.mxu0 %v3776
    %5836 = vmatprep.subr.bf16.mxu0 %v3785
    %5837 = vmatpush1.bf16.msra.mxu0 %v3784
    %5838 = vmatprep.subr.bf16.mxu0 %v3793
    %5839 = vmatpush1.bf16.msra.mxu0 %v3792
    %5840 = vmatprep.subr.bf16.mxu0 %v3801
    %5841 = vmatpush1.bf16.msra.mxu0 %v3800
    %5842 = vmatprep.subr.bf16.mxu0 %v3809
    %5843 = vmatpush1.bf16.msra.mxu0 %v3808
    %5844 = vmatprep.subr.bf16.mxu0 %v3817
    %5845 = vmatpush1.bf16.msra.mxu0 %v3816
    %5846 = vmatprep.subr.bf16.mxu0 %v3825
    %5847 = vmatpush1.bf16.msra.mxu0 %v3824
    %5848 = vmatprep.subr.bf16.mxu0 %v3833
    %5849 = vmatpush1.bf16.msra.mxu0 %v3832
    %5850 = vmatprep.subr.bf16.mxu0 %v3841
    %5851 = vmatpush1.bf16.msra.mxu0 %v3840
    %5852 = vmatprep.subr.bf16.mxu0 %v3849
    %5853 = vmatpush1.bf16.msra.mxu0 %v3848
    %5854 = vmatprep.mubr.bf16.mxu0 %v1131
    %5855 = vmatmul.mubr.bf16.gmra.mrb[0].mxu0 %v1123
    %v5856 = vpop.f32.mrb[0].mxu0
    %v5857 = vadd.f32 %v5816, %v5856
    %v5858 = vpop.f32.mrb[0].mxu0
    %v5859 = vadd.f32 %v5818, %v5858
    %v5860 = vpop.f32.mrb[0].mxu0
    %v5861 = vpop.f32.mrb[0].mxu0
    %5862 = vdwg.mxu0
    %5863 = vmatprep.subr.bf16.mxu0 %v3857
    %5864 = vmatpush1.bf16.msra.mxu0 %v3856
    %5865 = vmatprep.subr.bf16.mxu0 %v3865
    %5866 = vmatpush1.bf16.msra.mxu0 %v3864
    %5867 = vmatprep.subr.bf16.mxu0 %v3873
    %5868 = vmatpush1.bf16.msra.mxu0 %v3872
    %5869 = vmatprep.subr.bf16.mxu0 %v3881
    %5870 = vmatpush1.bf16.msra.mxu0 %v3880
    %5871 = vmatprep.subr.bf16.mxu0 %v3889
    %5872 = vmatpush1.bf16.msra.mxu0 %v3888
    %5873 = vmatprep.subr.bf16.mxu0 %v3897
    %5874 = vmatpush1.bf16.msra.mxu0 %v3896
    %5875 = vmatprep.subr.bf16.mxu0 %v3905
    %5876 = vmatpush1.bf16.msra.mxu0 %v3904
    %5877 = vmatprep.subr.bf16.mxu0 %v3913
    %5878 = vmatpush1.bf16.msra.mxu0 %v3912
    %5879 = vmatprep.subr.bf16.mxu0 %v3921
    %5880 = vmatpush1.bf16.msra.mxu0 %v3920
    %5881 = vmatprep.subr.bf16.mxu0 %v3929
    %5882 = vmatpush1.bf16.msra.mxu0 %v3928
    %5883 = vmatprep.subr.bf16.mxu0 %v3937
    %5884 = vmatpush1.bf16.msra.mxu0 %v3936
    %5885 = vmatprep.subr.bf16.mxu0 %v3945
    %5886 = vmatpush1.bf16.msra.mxu0 %v3944
    %5887 = vmatprep.subr.bf16.mxu0 %v3953
    %5888 = vmatpush1.bf16.msra.mxu0 %v3952
    %5889 = vmatprep.subr.bf16.mxu0 %v3961
    %5890 = vmatpush1.bf16.msra.mxu0 %v3960
    %5891 = vmatprep.subr.bf16.mxu0 %v3969
    %5892 = vmatpush1.bf16.msra.mxu0 %v3968
    %5893 = vmatprep.subr.bf16.mxu0 %v3977
    %5894 = vmatpush1.bf16.msra.mxu0 %v3976
    %5895 = vmatprep.mubr.bf16.mxu0 %v1132
    %5896 = vmatmul.mubr.bf16.gmra.mrb[0].mxu0 %v1130
    %v5897 = vpop.f32.mrb[0].mxu0
    %v5898 = vadd.f32 %v5857, %v5897
    %v5899 = vpop.f32.mrb[0].mxu0
    %v5900 = vadd.f32 %v5859, %v5899
    %v5901 = vpop.f32.mrb[0].mxu0
    %v5902 = vpop.f32.mrb[0].mxu0
    %5903 = vdwg.mxu0
    %5904 = vmatprep.subr.bf16.mxu0 %v3985
    %5905 = vmatpush1.bf16.msra.mxu0 %v3984
    %5906 = vmatprep.subr.bf16.mxu0 %v3993
    %5907 = vmatpush1.bf16.msra.mxu0 %v3992
    %5908 = vmatprep.subr.bf16.mxu0 %v4001
    %5909 = vmatpush1.bf16.msra.mxu0 %v4000
    %5910 = vmatprep.subr.bf16.mxu0 %v4009
    %5911 = vmatpush1.bf16.msra.mxu0 %v4008
    %5912 = vmatprep.subr.bf16.mxu0 %v4017
    %5913 = vmatpush1.bf16.msra.mxu0 %v4016
    %5914 = vmatprep.subr.bf16.mxu0 %v4025
    %5915 = vmatpush1.bf16.msra.mxu0 %v4024
    %5916 = vmatprep.subr.bf16.mxu0 %v4033
    %5917 = vmatpush1.bf16.msra.mxu0 %v4032
    %5918 = vmatprep.subr.bf16.mxu0 %v4041
    %5919 = vmatpush1.bf16.msra.mxu0 %v4040
    %5920 = vmatprep.subr.bf16.mxu0 %v4049
    %5921 = vmatpush1.bf16.msra.mxu0 %v4048
    %5922 = vmatprep.subr.bf16.mxu0 %v4057
    %5923 = vmatpush1.bf16.msra.mxu0 %v4056
    %5924 = vmatprep.subr.bf16.mxu0 %v4065
    %5925 = vmatpush1.bf16.msra.mxu0 %v4064
    %5926 = vmatprep.subr.bf16.mxu0 %v4073
    %5927 = vmatpush1.bf16.msra.mxu0 %v4072
    %5928 = vmatprep.subr.bf16.mxu0 %v4081
    %5929 = vmatpush1.bf16.msra.mxu0 %v4080
    %5930 = vmatprep.subr.bf16.mxu0 %v4089
    %5931 = vmatpush1.bf16.msra.mxu0 %v4088
    %5932 = vmatprep.subr.bf16.mxu0 %v4097
    %5933 = vmatpush1.bf16.msra.mxu0 %v4096
    %5934 = vmatprep.subr.bf16.mxu0 %v4105
    %5935 = vmatpush1.bf16.msra.mxu0 %v4104
    %5936 = vmatprep.mubr.bf16.mxu0 %v1148
    %5937 = vmatmul.mubr.bf16.gmra.mrb[0].mxu0 %v1140
    %v5938 = vpop.f32.mrb[0].mxu0
    %v5939 = vadd.f32 %v5898, %v5938
    %v5940 = vpop.f32.mrb[0].mxu0
    %v5941 = vadd.f32 %v5900, %v5940
    %v5942 = vpop.f32.mrb[0].mxu0
    %v5943 = vpop.f32.mrb[0].mxu0
    %5944 = vdwg.mxu0
    %5945 = vmatprep.subr.bf16.mxu0 %v4113
    %5946 = vmatpush1.bf16.msra.mxu0 %v4112
    %5947 = vmatprep.subr.bf16.mxu0 %v4121
    %5948 = vmatpush1.bf16.msra.mxu0 %v4120
    %5949 = vmatprep.subr.bf16.mxu0 %v4129
    %5950 = vmatpush1.bf16.msra.mxu0 %v4128
    %5951 = vmatprep.subr.bf16.mxu0 %v4137
    %5952 = vmatpush1.bf16.msra.mxu0 %v4136
    %5953 = vmatprep.subr.bf16.mxu0 %v4145
    %5954 = vmatpush1.bf16.msra.mxu0 %v4144
    %5955 = vmatprep.subr.bf16.mxu0 %v4153
    %5956 = vmatpush1.bf16.msra.mxu0 %v4152
    %5957 = vmatprep.subr.bf16.mxu0 %v4161
    %5958 = vmatpush1.bf16.msra.mxu0 %v4160
    %5959 = vmatprep.subr.bf16.mxu0 %v4169
    %5960 = vmatpush1.bf16.msra.mxu0 %v4168
    %5961 = vmatprep.subr.bf16.mxu0 %v4177
    %5962 = vmatpush1.bf16.msra.mxu0 %v4176
    %5963 = vmatprep.subr.bf16.mxu0 %v4185
    %5964 = vmatpush1.bf16.msra.mxu0 %v4184
    %5965 = vmatprep.subr.bf16.mxu0 %v4193
    %5966 = vmatpush1.bf16.msra.mxu0 %v4192
    %5967 = vmatprep.subr.bf16.mxu0 %v4201
    %5968 = vmatpush1.bf16.msra.mxu0 %v4200
    %5969 = vmatprep.subr.bf16.mxu0 %v4209
    %5970 = vmatpush1.bf16.msra.mxu0 %v4208
    %5971 = vmatprep.subr.bf16.mxu0 %v4217
    %5972 = vmatpush1.bf16.msra.mxu0 %v4216
    %5973 = vmatprep.subr.bf16.mxu0 %v4225
    %5974 = vmatpush1.bf16.msra.mxu0 %v4224
    %5975 = vmatprep.subr.bf16.mxu0 %v4233
    %5976 = vmatpush1.bf16.msra.mxu0 %v4232
    %5977 = vmatprep.mubr.bf16.mxu0 %v1149
    %5978 = vmatmul.mubr.bf16.gmra.mrb[0].mxu0 %v1147
    %v5979 = vpop.f32.mrb[0].mxu0
    %v5980 = vadd.f32 %v5939, %v5979
    %v5981 = vpop.f32.mrb[0].mxu0
    %v5982 = vadd.f32 %v5941, %v5981
    %v5983 = vpop.f32.mrb[0].mxu0
    %v5984 = vpop.f32.mrb[0].mxu0
    %5985 = vdwg.mxu0
    %vm5986 = vcmp.gt.f32.partialorder %v5242, 0.0
    %vm5987 = vcmp.gt.f32.partialorder %v5244, 0.0
    %vm5988 = vcmp.gt.f32.partialorder %v5488, 0.0
    %vm5989 = vcmp.gt.f32.partialorder %v5490, 0.0
    %vm5990 = vcmp.gt.f32.partialorder %v5734, 0.0
    %vm5991 = vcmp.gt.f32.partialorder %v5736, 0.0
    %vm5992 = vcmp.gt.f32.partialorder %v5980, 0.0
    %vm5993 = vcmp.gt.f32.partialorder %v5982, 0.0
    %v5994 = vmul.f32 %v5242, 0.1
    %v5995 = vmul.f32 %v5244, 0.1
    %v5996 = vmul.f32 %v5488, 0.1
    %v5997 = vmul.f32 %v5490, 0.1
    %v5998 = vmul.f32 %v5734, 0.1
    %v5999 = vmul.f32 %v5736, 0.1
    %v6000 = vmul.f32 %v5980, 0.1
    %v6001 = vmul.f32 %v5982, 0.1
    %v6002 = vsel %vm5986, %v5242, %v5994
    %v6003 = vsel %vm5987, %v5244, %v5995
    %v6004 = vsel %vm5988, %v5488, %v5996
    %v6005 = vsel %vm5989, %v5490, %v5997
    %v6006 = vsel %vm5990, %v5734, %v5998
    %v6007 = vsel %vm5991, %v5736, %v5999
    %v6008 = vsel %vm5992, %v5980, %v6000
    %v6009 = vsel %vm5993, %v5982, %v6001
    %v6010 = vpack.c.bf16 %v6002, %v6002
    %v6011 = vpack.c.bf16 %v6003, %v6003
    %v6012 = vpack.c.bf16 %v6004, %v6004
    %v6013 = vpack.c.bf16 %v6005, %v6005
    %v6014 = vpack.c.bf16 %v6006, %v6006
    %v6015 = vpack.c.bf16 %v6007, %v6007
    %v6016 = vpack.c.bf16 %v6008, %v6008
    %v6017 = vpack.c.bf16 %v6009, %v6009
    %v6018 = vld [vmem:[#allocation6] sm:$0xff]
    %v6019 = vld [vmem:[#allocation6 + $0x8] sm:$0xff]
    %v6020 = vld [vmem:[#allocation6 + $0x10] sm:$0xff]
    %v6021 = vld [vmem:[#allocation6 + $0x18] sm:$0xff]
    %v6022 = vld [vmem:[#allocation6 + $0x20] sm:$0xff]
    %v6023 = vld [vmem:[#allocation6 + $0x28] sm:$0xff]
    %v6024 = vld [vmem:[#allocation6 + $0x30] sm:$0xff]
    %v6025 = vld [vmem:[#allocation6 + $0x38] sm:$0xff]
    %v6026 = vld [vmem:[#allocation6 + $0x40] sm:$0xff]
    %v6027 = vld [vmem:[#allocation6 + $0x48] sm:$0xff]
    %v6028 = vld [vmem:[#allocation6 + $0x50] sm:$0xff]
    %v6029 = vld [vmem:[#allocation6 + $0x58] sm:$0xff]
    %v6030 = vld [vmem:[#allocation6 + $0x60] sm:$0xff]
    %v6031 = vld [vmem:[#allocation6 + $0x68] sm:$0xff]
    %v6032 = vld [vmem:[#allocation6 + $0x70] sm:$0xff]
    %v6033 = vld [vmem:[#allocation6 + $0x78] sm:$0xff]
    %v6034 = vld [vmem:[#allocation6 + $0x80] sm:$0xff]
    %v6035 = vld [vmem:[#allocation6 + $0x88] sm:$0xff]
    %v6036 = vld [vmem:[#allocation6 + $0x90] sm:$0xff]
    %v6037 = vld [vmem:[#allocation6 + $0x98] sm:$0xff]
    %v6038 = vld [vmem:[#allocation6 + $0xa0] sm:$0xff]
    %v6039 = vld [vmem:[#allocation6 + $0xa8] sm:$0xff]
    %v6040 = vld [vmem:[#allocation6 + $0xb0] sm:$0xff]
    %v6041 = vld [vmem:[#allocation6 + $0xb8] sm:$0xff]
    %v6042 = vld [vmem:[#allocation6 + $0xc0] sm:$0xff]
    %v6043 = vld [vmem:[#allocation6 + $0xc8] sm:$0xff]
    %v6044 = vld [vmem:[#allocation6 + $0xd0] sm:$0xff]
    %v6045 = vld [vmem:[#allocation6 + $0xd8] sm:$0xff]
    %v6046 = vld [vmem:[#allocation6 + $0xe0] sm:$0xff]
    %v6047 = vld [vmem:[#allocation6 + $0xe8] sm:$0xff]
    %v6048 = vld [vmem:[#allocation6 + $0xf0] sm:$0xff]
    %v6049 = vld [vmem:[#allocation6 + $0xf8] sm:$0xff]
    %v6050 = vld [vmem:[#allocation6 + $0x100] sm:$0xff]
    %v6051 = vld [vmem:[#allocation6 + $0x108] sm:$0xff]
    %v6052 = vld [vmem:[#allocation6 + $0x110] sm:$0xff]
    %v6053 = vld [vmem:[#allocation6 + $0x118] sm:$0xff]
    %v6054 = vld [vmem:[#allocation6 + $0x120] sm:$0xff]
    %v6055 = vld [vmem:[#allocation6 + $0x128] sm:$0xff]
    %v6056 = vld [vmem:[#allocation6 + $0x130] sm:$0xff]
    %v6057 = vld [vmem:[#allocation6 + $0x138] sm:$0xff]
    %v6058 = vld [vmem:[#allocation6 + $0x140] sm:$0xff]
    %v6059 = vld [vmem:[#allocation6 + $0x148] sm:$0xff]
    %v6060 = vld [vmem:[#allocation6 + $0x150] sm:$0xff]
    %v6061 = vld [vmem:[#allocation6 + $0x158] sm:$0xff]
    %v6062 = vld [vmem:[#allocation6 + $0x160] sm:$0xff]
    %v6063 = vld [vmem:[#allocation6 + $0x168] sm:$0xff]
    %v6064 = vld [vmem:[#allocation6 + $0x170] sm:$0xff]
    %v6065 = vld [vmem:[#allocation6 + $0x178] sm:$0xff]
    %v6066 = vld [vmem:[#allocation6 + $0x180] sm:$0xff]
    %v6067 = vld [vmem:[#allocation6 + $0x188] sm:$0xff]
    %v6068 = vld [vmem:[#allocation6 + $0x190] sm:$0xff]
    %v6069 = vld [vmem:[#allocation6 + $0x198] sm:$0xff]
    %v6070 = vld [vmem:[#allocation6 + $0x1a0] sm:$0xff]
    %v6071 = vld [vmem:[#allocation6 + $0x1a8] sm:$0xff]
    %v6072 = vld [vmem:[#allocation6 + $0x1b0] sm:$0xff]
    %v6073 = vld [vmem:[#allocation6 + $0x1b8] sm:$0xff]
    %v6074 = vld [vmem:[#allocation6 + $0x1c0] sm:$0xff]
    %v6075 = vld [vmem:[#allocation6 + $0x1c8] sm:$0xff]
    %v6076 = vld [vmem:[#allocation6 + $0x1d0] sm:$0xff]
    %v6077 = vld [vmem:[#allocation6 + $0x1d8] sm:$0xff]
    %v6078 = vld [vmem:[#allocation6 + $0x1e0] sm:$0xff]
    %v6079 = vld [vmem:[#allocation6 + $0x1e8] sm:$0xff]
    %v6080 = vld [vmem:[#allocation6 + $0x1f0] sm:$0xff]
    %v6081 = vld [vmem:[#allocation6 + $0x1f8] sm:$0xff]
    %v6082 = vld [vmem:[#allocation6 + $0x200] sm:$0xff]
    %v6083 = vld [vmem:[#allocation6 + $0x208] sm:$0xff]
    %v6084 = vld [vmem:[#allocation6 + $0x210] sm:$0xff]
    %v6085 = vld [vmem:[#allocation6 + $0x218] sm:$0xff]
    %v6086 = vld [vmem:[#allocation6 + $0x220] sm:$0xff]
    %v6087 = vld [vmem:[#allocation6 + $0x228] sm:$0xff]
    %v6088 = vld [vmem:[#allocation6 + $0x230] sm:$0xff]
    %v6089 = vld [vmem:[#allocation6 + $0x238] sm:$0xff]
    %v6090 = vld [vmem:[#allocation6 + $0x240] sm:$0xff]
    %v6091 = vld [vmem:[#allocation6 + $0x248] sm:$0xff]
    %v6092 = vld [vmem:[#allocation6 + $0x250] sm:$0xff]
    %v6093 = vld [vmem:[#allocation6 + $0x258] sm:$0xff]
    %v6094 = vld [vmem:[#allocation6 + $0x260] sm:$0xff]
    %v6095 = vld [vmem:[#allocation6 + $0x268] sm:$0xff]
    %v6096 = vld [vmem:[#allocation6 + $0x270] sm:$0xff]
    %v6097 = vld [vmem:[#allocation6 + $0x278] sm:$0xff]
    %v6098 = vld [vmem:[#allocation6 + $0x280] sm:$0xff]
    %v6099 = vld [vmem:[#allocation6 + $0x288] sm:$0xff]
    %v6100 = vld [vmem:[#allocation6 + $0x290] sm:$0xff]
    %v6101 = vld [vmem:[#allocation6 + $0x298] sm:$0xff]
    %v6102 = vld [vmem:[#allocation6 + $0x2a0] sm:$0xff]
    %v6103 = vld [vmem:[#allocation6 + $0x2a8] sm:$0xff]
    %v6104 = vld [vmem:[#allocation6 + $0x2b0] sm:$0xff]
    %v6105 = vld [vmem:[#allocation6 + $0x2b8] sm:$0xff]
    %v6106 = vld [vmem:[#allocation6 + $0x2c0] sm:$0xff]
    %v6107 = vld [vmem:[#allocation6 + $0x2c8] sm:$0xff]
    %v6108 = vld [vmem:[#allocation6 + $0x2d0] sm:$0xff]
    %v6109 = vld [vmem:[#allocation6 + $0x2d8] sm:$0xff]
    %v6110 = vld [vmem:[#allocation6 + $0x2e0] sm:$0xff]
    %v6111 = vld [vmem:[#allocation6 + $0x2e8] sm:$0xff]
    %v6112 = vld [vmem:[#allocation6 + $0x2f0] sm:$0xff]
    %v6113 = vld [vmem:[#allocation6 + $0x2f8] sm:$0xff]
    %v6114 = vld [vmem:[#allocation6 + $0x300] sm:$0xff]
    %v6115 = vld [vmem:[#allocation6 + $0x308] sm:$0xff]
    %v6116 = vld [vmem:[#allocation6 + $0x310] sm:$0xff]
    %v6117 = vld [vmem:[#allocation6 + $0x318] sm:$0xff]
    %v6118 = vld [vmem:[#allocation6 + $0x320] sm:$0xff]
    %v6119 = vld [vmem:[#allocation6 + $0x328] sm:$0xff]
    %v6120 = vld [vmem:[#allocation6 + $0x330] sm:$0xff]
    %v6121 = vld [vmem:[#allocation6 + $0x338] sm:$0xff]
    %v6122 = vld [vmem:[#allocation6 + $0x340] sm:$0xff]
    %v6123 = vld [vmem:[#allocation6 + $0x348] sm:$0xff]
    %v6124 = vld [vmem:[#allocation6 + $0x350] sm:$0xff]
    %v6125 = vld [vmem:[#allocation6 + $0x358] sm:$0xff]
    %v6126 = vld [vmem:[#allocation6 + $0x360] sm:$0xff]
    %v6127 = vld [vmem:[#allocation6 + $0x368] sm:$0xff]
    %v6128 = vld [vmem:[#allocation6 + $0x370] sm:$0xff]
    %v6129 = vld [vmem:[#allocation6 + $0x378] sm:$0xff]
    %v6130 = vld [vmem:[#allocation6 + $0x380] sm:$0xff]
    %v6131 = vld [vmem:[#allocation6 + $0x388] sm:$0xff]
    %v6132 = vld [vmem:[#allocation6 + $0x390] sm:$0xff]
    %v6133 = vld [vmem:[#allocation6 + $0x398] sm:$0xff]
    %v6134 = vld [vmem:[#allocation6 + $0x3a0] sm:$0xff]
    %v6135 = vld [vmem:[#allocation6 + $0x3a8] sm:$0xff]
    %v6136 = vld [vmem:[#allocation6 + $0x3b0] sm:$0xff]
    %v6137 = vld [vmem:[#allocation6 + $0x3b8] sm:$0xff]
    %v6138 = vld [vmem:[#allocation6 + $0x3c0] sm:$0xff]
    %v6139 = vld [vmem:[#allocation6 + $0x3c8] sm:$0xff]
    %v6140 = vld [vmem:[#allocation6 + $0x3d0] sm:$0xff]
    %v6141 = vld [vmem:[#allocation6 + $0x3d8] sm:$0xff]
    %v6142 = vld [vmem:[#allocation6 + $0x3e0] sm:$0xff]
    %v6143 = vld [vmem:[#allocation6 + $0x3e8] sm:$0xff]
    %v6144 = vld [vmem:[#allocation6 + $0x3f0] sm:$0xff]
    %v6145 = vld [vmem:[#allocation6 + $0x3f8] sm:$0xff]
    %v6146 = vld [vmem:[#allocation6 + $0x400] sm:$0xff]
    %v6147 = vld [vmem:[#allocation6 + $0x408] sm:$0xff]
    %v6148 = vld [vmem:[#allocation6 + $0x410] sm:$0xff]
    %v6149 = vld [vmem:[#allocation6 + $0x418] sm:$0xff]
    %v6150 = vld [vmem:[#allocation6 + $0x420] sm:$0xff]
    %v6151 = vld [vmem:[#allocation6 + $0x428] sm:$0xff]
    %v6152 = vld [vmem:[#allocation6 + $0x430] sm:$0xff]
    %v6153 = vld [vmem:[#allocation6 + $0x438] sm:$0xff]
    %v6154 = vld [vmem:[#allocation6 + $0x440] sm:$0xff]
    %v6155 = vld [vmem:[#allocation6 + $0x448] sm:$0xff]
    %v6156 = vld [vmem:[#allocation6 + $0x450] sm:$0xff]
    %v6157 = vld [vmem:[#allocation6 + $0x458] sm:$0xff]
    %v6158 = vld [vmem:[#allocation6 + $0x460] sm:$0xff]
    %v6159 = vld [vmem:[#allocation6 + $0x468] sm:$0xff]
    %v6160 = vld [vmem:[#allocation6 + $0x470] sm:$0xff]
    %v6161 = vld [vmem:[#allocation6 + $0x478] sm:$0xff]
    %v6162 = vld [vmem:[#allocation6 + $0x480] sm:$0xff]
    %v6163 = vld [vmem:[#allocation6 + $0x488] sm:$0xff]
    %v6164 = vld [vmem:[#allocation6 + $0x490] sm:$0xff]
    %v6165 = vld [vmem:[#allocation6 + $0x498] sm:$0xff]
    %v6166 = vld [vmem:[#allocation6 + $0x4a0] sm:$0xff]
    %v6167 = vld [vmem:[#allocation6 + $0x4a8] sm:$0xff]
    %v6168 = vld [vmem:[#allocation6 + $0x4b0] sm:$0xff]
    %v6169 = vld [vmem:[#allocation6 + $0x4b8] sm:$0xff]
    %v6170 = vld [vmem:[#allocation6 + $0x4c0] sm:$0xff]
    %v6171 = vld [vmem:[#allocation6 + $0x4c8] sm:$0xff]
    %v6172 = vld [vmem:[#allocation6 + $0x4d0] sm:$0xff]
    %v6173 = vld [vmem:[#allocation6 + $0x4d8] sm:$0xff]
    %v6174 = vld [vmem:[#allocation6 + $0x4e0] sm:$0xff]
    %v6175 = vld [vmem:[#allocation6 + $0x4e8] sm:$0xff]
    %v6176 = vld [vmem:[#allocation6 + $0x4f0] sm:$0xff]
    %v6177 = vld [vmem:[#allocation6 + $0x4f8] sm:$0xff]
    %v6178 = vld [vmem:[#allocation6 + $0x500] sm:$0xff]
    %v6179 = vld [vmem:[#allocation6 + $0x508] sm:$0xff]
    %v6180 = vld [vmem:[#allocation6 + $0x510] sm:$0xff]
    %v6181 = vld [vmem:[#allocation6 + $0x518] sm:$0xff]
    %v6182 = vld [vmem:[#allocation6 + $0x520] sm:$0xff]
    %v6183 = vld [vmem:[#allocation6 + $0x528] sm:$0xff]
    %v6184 = vld [vmem:[#allocation6 + $0x530] sm:$0xff]
    %v6185 = vld [vmem:[#allocation6 + $0x538] sm:$0xff]
    %v6186 = vld [vmem:[#allocation6 + $0x540] sm:$0xff]
    %v6187 = vld [vmem:[#allocation6 + $0x548] sm:$0xff]
    %v6188 = vld [vmem:[#allocation6 + $0x550] sm:$0xff]
    %v6189 = vld [vmem:[#allocation6 + $0x558] sm:$0xff]
    %v6190 = vld [vmem:[#allocation6 + $0x560] sm:$0xff]
    %v6191 = vld [vmem:[#allocation6 + $0x568] sm:$0xff]
    %v6192 = vld [vmem:[#allocation6 + $0x570] sm:$0xff]
    %v6193 = vld [vmem:[#allocation6 + $0x578] sm:$0xff]
    %v6194 = vld [vmem:[#allocation6 + $0x580] sm:$0xff]
    %v6195 = vld [vmem:[#allocation6 + $0x588] sm:$0xff]
    %v6196 = vld [vmem:[#allocation6 + $0x590] sm:$0xff]
    %v6197 = vld [vmem:[#allocation6 + $0x598] sm:$0xff]
    %v6198 = vld [vmem:[#allocation6 + $0x5a0] sm:$0xff]
    %v6199 = vld [vmem:[#allocation6 + $0x5a8] sm:$0xff]
    %v6200 = vld [vmem:[#allocation6 + $0x5b0] sm:$0xff]
    %v6201 = vld [vmem:[#allocation6 + $0x5b8] sm:$0xff]
    %v6202 = vld [vmem:[#allocation6 + $0x5c0] sm:$0xff]
    %v6203 = vld [vmem:[#allocation6 + $0x5c8] sm:$0xff]
    %v6204 = vld [vmem:[#allocation6 + $0x5d0] sm:$0xff]
    %v6205 = vld [vmem:[#allocation6 + $0x5d8] sm:$0xff]
    %v6206 = vld [vmem:[#allocation6 + $0x5e0] sm:$0xff]
    %v6207 = vld [vmem:[#allocation6 + $0x5e8] sm:$0xff]
    %v6208 = vld [vmem:[#allocation6 + $0x5f0] sm:$0xff]
    %v6209 = vld [vmem:[#allocation6 + $0x5f8] sm:$0xff]
    %v6210 = vld [vmem:[#allocation6 + $0x600] sm:$0xff]
    %v6211 = vld [vmem:[#allocation6 + $0x608] sm:$0xff]
    %v6212 = vld [vmem:[#allocation6 + $0x610] sm:$0xff]
    %v6213 = vld [vmem:[#allocation6 + $0x618] sm:$0xff]
    %v6214 = vld [vmem:[#allocation6 + $0x620] sm:$0xff]
    %v6215 = vld [vmem:[#allocation6 + $0x628] sm:$0xff]
    %v6216 = vld [vmem:[#allocation6 + $0x630] sm:$0xff]
    %v6217 = vld [vmem:[#allocation6 + $0x638] sm:$0xff]
    %v6218 = vld [vmem:[#allocation6 + $0x640] sm:$0xff]
    %v6219 = vld [vmem:[#allocation6 + $0x648] sm:$0xff]
    %v6220 = vld [vmem:[#allocation6 + $0x650] sm:$0xff]
    %v6221 = vld [vmem:[#allocation6 + $0x658] sm:$0xff]
    %v6222 = vld [vmem:[#allocation6 + $0x660] sm:$0xff]
    %v6223 = vld [vmem:[#allocation6 + $0x668] sm:$0xff]
    %v6224 = vld [vmem:[#allocation6 + $0x670] sm:$0xff]
    %v6225 = vld [vmem:[#allocation6 + $0x678] sm:$0xff]
    %v6226 = vld [vmem:[#allocation6 + $0x680] sm:$0xff]
    %v6227 = vld [vmem:[#allocation6 + $0x688] sm:$0xff]
    %v6228 = vld [vmem:[#allocation6 + $0x690] sm:$0xff]
    %v6229 = vld [vmem:[#allocation6 + $0x698] sm:$0xff]
    %v6230 = vld [vmem:[#allocation6 + $0x6a0] sm:$0xff]
    %v6231 = vld [vmem:[#allocation6 + $0x6a8] sm:$0xff]
    %v6232 = vld [vmem:[#allocation6 + $0x6b0] sm:$0xff]
    %v6233 = vld [vmem:[#allocation6 + $0x6b8] sm:$0xff]
    %v6234 = vld [vmem:[#allocation6 + $0x6c0] sm:$0xff]
    %v6235 = vld [vmem:[#allocation6 + $0x6c8] sm:$0xff]
    %v6236 = vld [vmem:[#allocation6 + $0x6d0] sm:$0xff]
    %v6237 = vld [vmem:[#allocation6 + $0x6d8] sm:$0xff]
    %v6238 = vld [vmem:[#allocation6 + $0x6e0] sm:$0xff]
    %v6239 = vld [vmem:[#allocation6 + $0x6e8] sm:$0xff]
    %v6240 = vld [vmem:[#allocation6 + $0x6f0] sm:$0xff]
    %v6241 = vld [vmem:[#allocation6 + $0x6f8] sm:$0xff]
    %v6242 = vld [vmem:[#allocation6 + $0x700] sm:$0xff]
    %v6243 = vld [vmem:[#allocation6 + $0x708] sm:$0xff]
    %v6244 = vld [vmem:[#allocation6 + $0x710] sm:$0xff]
    %v6245 = vld [vmem:[#allocation6 + $0x718] sm:$0xff]
    %v6246 = vld [vmem:[#allocation6 + $0x720] sm:$0xff]
    %v6247 = vld [vmem:[#allocation6 + $0x728] sm:$0xff]
    %v6248 = vld [vmem:[#allocation6 + $0x730] sm:$0xff]
    %v6249 = vld [vmem:[#allocation6 + $0x738] sm:$0xff]
    %v6250 = vld [vmem:[#allocation6 + $0x740] sm:$0xff]
    %v6251 = vld [vmem:[#allocation6 + $0x748] sm:$0xff]
    %v6252 = vld [vmem:[#allocation6 + $0x750] sm:$0xff]
    %v6253 = vld [vmem:[#allocation6 + $0x758] sm:$0xff]
    %v6254 = vld [vmem:[#allocation6 + $0x760] sm:$0xff]
    %v6255 = vld [vmem:[#allocation6 + $0x768] sm:$0xff]
    %v6256 = vld [vmem:[#allocation6 + $0x770] sm:$0xff]
    %v6257 = vld [vmem:[#allocation6 + $0x778] sm:$0xff]
    %v6258 = vld [vmem:[#allocation6 + $0x780] sm:$0xff]
    %v6259 = vld [vmem:[#allocation6 + $0x788] sm:$0xff]
    %v6260 = vld [vmem:[#allocation6 + $0x790] sm:$0xff]
    %v6261 = vld [vmem:[#allocation6 + $0x798] sm:$0xff]
    %v6262 = vld [vmem:[#allocation6 + $0x7a0] sm:$0xff]
    %v6263 = vld [vmem:[#allocation6 + $0x7a8] sm:$0xff]
    %v6264 = vld [vmem:[#allocation6 + $0x7b0] sm:$0xff]
    %v6265 = vld [vmem:[#allocation6 + $0x7b8] sm:$0xff]
    %v6266 = vld [vmem:[#allocation6 + $0x7c0] sm:$0xff]
    %v6267 = vld [vmem:[#allocation6 + $0x7c8] sm:$0xff]
    %v6268 = vld [vmem:[#allocation6 + $0x7d0] sm:$0xff]
    %v6269 = vld [vmem:[#allocation6 + $0x7d8] sm:$0xff]
    %v6270 = vld [vmem:[#allocation6 + $0x7e0] sm:$0xff]
    %v6271 = vld [vmem:[#allocation6 + $0x7e8] sm:$0xff]
    %v6272 = vld [vmem:[#allocation6 + $0x7f0] sm:$0xff]
    %v6273 = vld [vmem:[#allocation6 + $0x7f8] sm:$0xff]
    %v6274 = vld [vmem:[#allocation7] sm:$0xf]
    %v6276 = vlaneseq
    %v6277 = vshrl.u32 %v6276, 7
    %v6278 = vsub.s32 0, %v6277
    %v6279 = vrot.slane %v6274, %v6278
    %v6280 = vlaneseq
    %v6281 = vshrl.u32 %v6280, 7
    %v6282 = vsub.s32 1, %v6281
    %v6283 = vrot.slane %v6274, %v6282
    %v6284 = vlaneseq
    %v6285 = vshrl.u32 %v6284, 7
    %v6286 = vsub.s32 2, %v6285
    %v6287 = vrot.slane %v6274, %v6286
    %v6288 = vlaneseq
    %v6289 = vshrl.u32 %v6288, 7
    %v6290 = vsub.s32 3, %v6289
    %v6291 = vrot.slane %v6274, %v6290
    %v6552 = vunpack.c.l.b16 %v6018
    %v6553 = vunpack.c.h.b16 %v6018
    %v6554 = vunpack.c.l.b16 %v6019
    %v6555 = vunpack.c.h.b16 %v6019
    %v6556 = vunpack.c.l.b16 %v6020
    %v6557 = vunpack.c.h.b16 %v6020
    %v6558 = vunpack.c.l.b16 %v6021
    %v6559 = vunpack.c.h.b16 %v6021
    %v6560 = vunpack.c.l.b16 %v6022
    %v6561 = vunpack.c.h.b16 %v6022
    %v6562 = vunpack.c.l.b16 %v6023
    %v6563 = vunpack.c.h.b16 %v6023
    %v6564 = vunpack.c.l.b16 %v6024
    %v6565 = vunpack.c.h.b16 %v6024
    %v6566 = vunpack.c.l.b16 %v6025
    %v6567 = vunpack.c.h.b16 %v6025
    %v6568 = vunpack.c.l.b16 %v6026
    %v6569 = vunpack.c.h.b16 %v6026
    %v6570 = vunpack.c.l.b16 %v6027
    %v6571 = vunpack.c.h.b16 %v6027
    %v6572 = vunpack.c.l.b16 %v6028
    %v6573 = vunpack.c.h.b16 %v6028
    %v6574 = vunpack.c.l.b16 %v6029
    %v6575 = vunpack.c.h.b16 %v6029
    %v6576 = vunpack.c.l.b16 %v6030
    %v6577 = vunpack.c.h.b16 %v6030
    %v6578 = vunpack.c.l.b16 %v6031
    %v6579 = vunpack.c.h.b16 %v6031
    %v6580 = vunpack.c.l.b16 %v6032
    %v6581 = vunpack.c.h.b16 %v6032
    %v6582 = vunpack.c.l.b16 %v6033
    %v6583 = vunpack.c.h.b16 %v6033
    %v6584 = vunpack.c.l.b16 %v6034
    %v6585 = vunpack.c.h.b16 %v6034
    %v6586 = vunpack.c.l.b16 %v6035
    %v6587 = vunpack.c.h.b16 %v6035
    %v6588 = vunpack.c.l.b16 %v6036
    %v6589 = vunpack.c.h.b16 %v6036
    %v6590 = vunpack.c.l.b16 %v6037
    %v6591 = vunpack.c.h.b16 %v6037
    %v6592 = vunpack.c.l.b16 %v6038
    %v6593 = vunpack.c.h.b16 %v6038
    %v6594 = vunpack.c.l.b16 %v6039
    %v6595 = vunpack.c.h.b16 %v6039
    %v6596 = vunpack.c.l.b16 %v6040
    %v6597 = vunpack.c.h.b16 %v6040
    %v6598 = vunpack.c.l.b16 %v6041
    %v6599 = vunpack.c.h.b16 %v6041
    %v6600 = vunpack.c.l.b16 %v6042
    %v6601 = vunpack.c.h.b16 %v6042
    %v6602 = vunpack.c.l.b16 %v6043
    %v6603 = vunpack.c.h.b16 %v6043
    %v6604 = vunpack.c.l.b16 %v6044
    %v6605 = vunpack.c.h.b16 %v6044
    %v6606 = vunpack.c.l.b16 %v6045
    %v6607 = vunpack.c.h.b16 %v6045
    %v6608 = vunpack.c.l.b16 %v6046
    %v6609 = vunpack.c.h.b16 %v6046
    %v6610 = vunpack.c.l.b16 %v6047
    %v6611 = vunpack.c.h.b16 %v6047
    %v6612 = vunpack.c.l.b16 %v6048
    %v6613 = vunpack.c.h.b16 %v6048
    %v6614 = vunpack.c.l.b16 %v6049
    %v6615 = vunpack.c.h.b16 %v6049
    %v6616 = vunpack.c.l.b16 %v6050
    %v6617 = vunpack.c.h.b16 %v6050
    %v6618 = vunpack.c.l.b16 %v6051
    %v6619 = vunpack.c.h.b16 %v6051
    %v6620 = vunpack.c.l.b16 %v6052
    %v6621 = vunpack.c.h.b16 %v6052
    %v6622 = vunpack.c.l.b16 %v6053
    %v6623 = vunpack.c.h.b16 %v6053
    %v6624 = vunpack.c.l.b16 %v6054
    %v6625 = vunpack.c.h.b16 %v6054
    %v6626 = vunpack.c.l.b16 %v6055
    %v6627 = vunpack.c.h.b16 %v6055
    %v6628 = vunpack.c.l.b16 %v6056
    %v6629 = vunpack.c.h.b16 %v6056
    %v6630 = vunpack.c.l.b16 %v6057
    %v6631 = vunpack.c.h.b16 %v6057
    %v6632 = vunpack.c.l.b16 %v6058
    %v6633 = vunpack.c.h.b16 %v6058
    %v6634 = vunpack.c.l.b16 %v6059
    %v6635 = vunpack.c.h.b16 %v6059
    %v6636 = vunpack.c.l.b16 %v6060
    %v6637 = vunpack.c.h.b16 %v6060
    %v6638 = vunpack.c.l.b16 %v6061
    %v6639 = vunpack.c.h.b16 %v6061
    %v6640 = vunpack.c.l.b16 %v6062
    %v6641 = vunpack.c.h.b16 %v6062
    %v6642 = vunpack.c.l.b16 %v6063
    %v6643 = vunpack.c.h.b16 %v6063
    %v6644 = vunpack.c.l.b16 %v6064
    %v6645 = vunpack.c.h.b16 %v6064
    %v6646 = vunpack.c.l.b16 %v6065
    %v6647 = vunpack.c.h.b16 %v6065
    %v6648 = vunpack.c.l.b16 %v6066
    %v6649 = vunpack.c.h.b16 %v6066
    %v6650 = vunpack.c.l.b16 %v6067
    %v6651 = vunpack.c.h.b16 %v6067
    %v6652 = vunpack.c.l.b16 %v6068
    %v6653 = vunpack.c.h.b16 %v6068
    %v6654 = vunpack.c.l.b16 %v6069
    %v6655 = vunpack.c.h.b16 %v6069
    %v6656 = vunpack.c.l.b16 %v6070
    %v6657 = vunpack.c.h.b16 %v6070
    %v6658 = vunpack.c.l.b16 %v6071
    %v6659 = vunpack.c.h.b16 %v6071
    %v6660 = vunpack.c.l.b16 %v6072
    %v6661 = vunpack.c.h.b16 %v6072
    %v6662 = vunpack.c.l.b16 %v6073
    %v6663 = vunpack.c.h.b16 %v6073
    %v6664 = vunpack.c.l.b16 %v6074
    %v6665 = vunpack.c.h.b16 %v6074
    %v6666 = vunpack.c.l.b16 %v6075
    %v6667 = vunpack.c.h.b16 %v6075
    %v6668 = vunpack.c.l.b16 %v6076
    %v6669 = vunpack.c.h.b16 %v6076
    %v6670 = vunpack.c.l.b16 %v6077
    %v6671 = vunpack.c.h.b16 %v6077
    %v6672 = vunpack.c.l.b16 %v6078
    %v6673 = vunpack.c.h.b16 %v6078
    %v6674 = vunpack.c.l.b16 %v6079
    %v6675 = vunpack.c.h.b16 %v6079
    %v6676 = vunpack.c.l.b16 %v6080
    %v6677 = vunpack.c.h.b16 %v6080
    %v6678 = vunpack.c.l.b16 %v6081
    %v6679 = vunpack.c.h.b16 %v6081
    %v6680 = vunpack.c.l.b16 %v6082
    %v6681 = vunpack.c.h.b16 %v6082
    %v6682 = vunpack.c.l.b16 %v6083
    %v6683 = vunpack.c.h.b16 %v6083
    %v6684 = vunpack.c.l.b16 %v6084
    %v6685 = vunpack.c.h.b16 %v6084
    %v6686 = vunpack.c.l.b16 %v6085
    %v6687 = vunpack.c.h.b16 %v6085
    %v6688 = vunpack.c.l.b16 %v6086
    %v6689 = vunpack.c.h.b16 %v6086
    %v6690 = vunpack.c.l.b16 %v6087
    %v6691 = vunpack.c.h.b16 %v6087
    %v6692 = vunpack.c.l.b16 %v6088
    %v6693 = vunpack.c.h.b16 %v6088
    %v6694 = vunpack.c.l.b16 %v6089
    %v6695 = vunpack.c.h.b16 %v6089
    %v6696 = vunpack.c.l.b16 %v6090
    %v6697 = vunpack.c.h.b16 %v6090
    %v6698 = vunpack.c.l.b16 %v6091
    %v6699 = vunpack.c.h.b16 %v6091
    %v6700 = vunpack.c.l.b16 %v6092
    %v6701 = vunpack.c.h.b16 %v6092
    %v6702 = vunpack.c.l.b16 %v6093
    %v6703 = vunpack.c.h.b16 %v6093
    %v6704 = vunpack.c.l.b16 %v6094
    %v6705 = vunpack.c.h.b16 %v6094
    %v6706 = vunpack.c.l.b16 %v6095
    %v6707 = vunpack.c.h.b16 %v6095
    %v6708 = vunpack.c.l.b16 %v6096
    %v6709 = vunpack.c.h.b16 %v6096
    %v6710 = vunpack.c.l.b16 %v6097
    %v6711 = vunpack.c.h.b16 %v6097
    %v6712 = vunpack.c.l.b16 %v6098
    %v6713 = vunpack.c.h.b16 %v6098
    %v6714 = vunpack.c.l.b16 %v6099
    %v6715 = vunpack.c.h.b16 %v6099
    %v6716 = vunpack.c.l.b16 %v6100
    %v6717 = vunpack.c.h.b16 %v6100
    %v6718 = vunpack.c.l.b16 %v6101
    %v6719 = vunpack.c.h.b16 %v6101
    %v6720 = vunpack.c.l.b16 %v6102
    %v6721 = vunpack.c.h.b16 %v6102
    %v6722 = vunpack.c.l.b16 %v6103
    %v6723 = vunpack.c.h.b16 %v6103
    %v6724 = vunpack.c.l.b16 %v6104
    %v6725 = vunpack.c.h.b16 %v6104
    %v6726 = vunpack.c.l.b16 %v6105
    %v6727 = vunpack.c.h.b16 %v6105
    %v6728 = vunpack.c.l.b16 %v6106
    %v6729 = vunpack.c.h.b16 %v6106
    %v6730 = vunpack.c.l.b16 %v6107
    %v6731 = vunpack.c.h.b16 %v6107
    %v6732 = vunpack.c.l.b16 %v6108
    %v6733 = vunpack.c.h.b16 %v6108
    %v6734 = vunpack.c.l.b16 %v6109
    %v6735 = vunpack.c.h.b16 %v6109
    %v6736 = vunpack.c.l.b16 %v6110
    %v6737 = vunpack.c.h.b16 %v6110
    %v6738 = vunpack.c.l.b16 %v6111
    %v6739 = vunpack.c.h.b16 %v6111
    %v6740 = vunpack.c.l.b16 %v6112
    %v6741 = vunpack.c.h.b16 %v6112
    %v6742 = vunpack.c.l.b16 %v6113
    %v6743 = vunpack.c.h.b16 %v6113
    %v6744 = vunpack.c.l.b16 %v6114
    %v6745 = vunpack.c.h.b16 %v6114
    %v6746 = vunpack.c.l.b16 %v6115
    %v6747 = vunpack.c.h.b16 %v6115
    %v6748 = vunpack.c.l.b16 %v6116
    %v6749 = vunpack.c.h.b16 %v6116
    %v6750 = vunpack.c.l.b16 %v6117
    %v6751 = vunpack.c.h.b16 %v6117
    %v6752 = vunpack.c.l.b16 %v6118
    %v6753 = vunpack.c.h.b16 %v6118
    %v6754 = vunpack.c.l.b16 %v6119
    %v6755 = vunpack.c.h.b16 %v6119
    %v6756 = vunpack.c.l.b16 %v6120
    %v6757 = vunpack.c.h.b16 %v6120
    %v6758 = vunpack.c.l.b16 %v6121
    %v6759 = vunpack.c.h.b16 %v6121
    %v6760 = vunpack.c.l.b16 %v6122
    %v6761 = vunpack.c.h.b16 %v6122
    %v6762 = vunpack.c.l.b16 %v6123
    %v6763 = vunpack.c.h.b16 %v6123
    %v6764 = vunpack.c.l.b16 %v6124
    %v6765 = vunpack.c.h.b16 %v6124
    %v6766 = vunpack.c.l.b16 %v6125
    %v6767 = vunpack.c.h.b16 %v6125
    %v6768 = vunpack.c.l.b16 %v6126
    %v6769 = vunpack.c.h.b16 %v6126
    %v6770 = vunpack.c.l.b16 %v6127
    %v6771 = vunpack.c.h.b16 %v6127
    %v6772 = vunpack.c.l.b16 %v6128
    %v6773 = vunpack.c.h.b16 %v6128
    %v6774 = vunpack.c.l.b16 %v6129
    %v6775 = vunpack.c.h.b16 %v6129
    %v6776 = vunpack.c.l.b16 %v6130
    %v6777 = vunpack.c.h.b16 %v6130
    %v6778 = vunpack.c.l.b16 %v6131
    %v6779 = vunpack.c.h.b16 %v6131
    %v6780 = vunpack.c.l.b16 %v6132
    %v6781 = vunpack.c.h.b16 %v6132
    %v6782 = vunpack.c.l.b16 %v6133
    %v6783 = vunpack.c.h.b16 %v6133
    %v6784 = vunpack.c.l.b16 %v6134
    %v6785 = vunpack.c.h.b16 %v6134
    %v6786 = vunpack.c.l.b16 %v6135
    %v6787 = vunpack.c.h.b16 %v6135
    %v6788 = vunpack.c.l.b16 %v6136
    %v6789 = vunpack.c.h.b16 %v6136
    %v6790 = vunpack.c.l.b16 %v6137
    %v6791 = vunpack.c.h.b16 %v6137
    %v6792 = vunpack.c.l.b16 %v6138
    %v6793 = vunpack.c.h.b16 %v6138
    %v6794 = vunpack.c.l.b16 %v6139
    %v6795 = vunpack.c.h.b16 %v6139
    %v6796 = vunpack.c.l.b16 %v6140
    %v6797 = vunpack.c.h.b16 %v6140
    %v6798 = vunpack.c.l.b16 %v6141
    %v6799 = vunpack.c.h.b16 %v6141
    %v6800 = vunpack.c.l.b16 %v6142
    %v6801 = vunpack.c.h.b16 %v6142
    %v6802 = vunpack.c.l.b16 %v6143
    %v6803 = vunpack.c.h.b16 %v6143
    %v6804 = vunpack.c.l.b16 %v6144
    %v6805 = vunpack.c.h.b16 %v6144
    %v6806 = vunpack.c.l.b16 %v6145
    %v6807 = vunpack.c.h.b16 %v6145
    %v6808 = vunpack.c.l.b16 %v6146
    %v6809 = vunpack.c.h.b16 %v6146
    %v6810 = vunpack.c.l.b16 %v6147
    %v6811 = vunpack.c.h.b16 %v6147
    %v6812 = vunpack.c.l.b16 %v6148
    %v6813 = vunpack.c.h.b16 %v6148
    %v6814 = vunpack.c.l.b16 %v6149
    %v6815 = vunpack.c.h.b16 %v6149
    %v6816 = vunpack.c.l.b16 %v6150
    %v6817 = vunpack.c.h.b16 %v6150
    %v6818 = vunpack.c.l.b16 %v6151
    %v6819 = vunpack.c.h.b16 %v6151
    %v6820 = vunpack.c.l.b16 %v6152
    %v6821 = vunpack.c.h.b16 %v6152
    %v6822 = vunpack.c.l.b16 %v6153
    %v6823 = vunpack.c.h.b16 %v6153
    %v6824 = vunpack.c.l.b16 %v6154
    %v6825 = vunpack.c.h.b16 %v6154
    %v6826 = vunpack.c.l.b16 %v6155
    %v6827 = vunpack.c.h.b16 %v6155
    %v6828 = vunpack.c.l.b16 %v6156
    %v6829 = vunpack.c.h.b16 %v6156
    %v6830 = vunpack.c.l.b16 %v6157
    %v6831 = vunpack.c.h.b16 %v6157
    %v6832 = vunpack.c.l.b16 %v6158
    %v6833 = vunpack.c.h.b16 %v6158
    %v6834 = vunpack.c.l.b16 %v6159
    %v6835 = vunpack.c.h.b16 %v6159
    %v6836 = vunpack.c.l.b16 %v6160
    %v6837 = vunpack.c.h.b16 %v6160
    %v6838 = vunpack.c.l.b16 %v6161
    %v6839 = vunpack.c.h.b16 %v6161
    %v6840 = vunpack.c.l.b16 %v6162
    %v6841 = vunpack.c.h.b16 %v6162
    %v6842 = vunpack.c.l.b16 %v6163
    %v6843 = vunpack.c.h.b16 %v6163
    %v6844 = vunpack.c.l.b16 %v6164
    %v6845 = vunpack.c.h.b16 %v6164
    %v6846 = vunpack.c.l.b16 %v6165
    %v6847 = vunpack.c.h.b16 %v6165
    %v6848 = vunpack.c.l.b16 %v6166
    %v6849 = vunpack.c.h.b16 %v6166
    %v6850 = vunpack.c.l.b16 %v6167
    %v6851 = vunpack.c.h.b16 %v6167
    %v6852 = vunpack.c.l.b16 %v6168
    %v6853 = vunpack.c.h.b16 %v6168
    %v6854 = vunpack.c.l.b16 %v6169
    %v6855 = vunpack.c.h.b16 %v6169
    %v6856 = vunpack.c.l.b16 %v6170
    %v6857 = vunpack.c.h.b16 %v6170
    %v6858 = vunpack.c.l.b16 %v6171
    %v6859 = vunpack.c.h.b16 %v6171
    %v6860 = vunpack.c.l.b16 %v6172
    %v6861 = vunpack.c.h.b16 %v6172
    %v6862 = vunpack.c.l.b16 %v6173
    %v6863 = vunpack.c.h.b16 %v6173
    %v6864 = vunpack.c.l.b16 %v6174
    %v6865 = vunpack.c.h.b16 %v6174
    %v6866 = vunpack.c.l.b16 %v6175
    %v6867 = vunpack.c.h.b16 %v6175
    %v6868 = vunpack.c.l.b16 %v6176
    %v6869 = vunpack.c.h.b16 %v6176
    %v6870 = vunpack.c.l.b16 %v6177
    %v6871 = vunpack.c.h.b16 %v6177
    %v6872 = vunpack.c.l.b16 %v6178
    %v6873 = vunpack.c.h.b16 %v6178
    %v6874 = vunpack.c.l.b16 %v6179
    %v6875 = vunpack.c.h.b16 %v6179
    %v6876 = vunpack.c.l.b16 %v6180
    %v6877 = vunpack.c.h.b16 %v6180
    %v6878 = vunpack.c.l.b16 %v6181
    %v6879 = vunpack.c.h.b16 %v6181
    %v6880 = vunpack.c.l.b16 %v6182
    %v6881 = vunpack.c.h.b16 %v6182
    %v6882 = vunpack.c.l.b16 %v6183
    %v6883 = vunpack.c.h.b16 %v6183
    %v6884 = vunpack.c.l.b16 %v6184
    %v6885 = vunpack.c.h.b16 %v6184
    %v6886 = vunpack.c.l.b16 %v6185
    %v6887 = vunpack.c.h.b16 %v6185
    %v6888 = vunpack.c.l.b16 %v6186
    %v6889 = vunpack.c.h.b16 %v6186
    %v6890 = vunpack.c.l.b16 %v6187
    %v6891 = vunpack.c.h.b16 %v6187
    %v6892 = vunpack.c.l.b16 %v6188
    %v6893 = vunpack.c.h.b16 %v6188
    %v6894 = vunpack.c.l.b16 %v6189
    %v6895 = vunpack.c.h.b16 %v6189
    %v6896 = vunpack.c.l.b16 %v6190
    %v6897 = vunpack.c.h.b16 %v6190
    %v6898 = vunpack.c.l.b16 %v6191
    %v6899 = vunpack.c.h.b16 %v6191
    %v6900 = vunpack.c.l.b16 %v6192
    %v6901 = vunpack.c.h.b16 %v6192
    %v6902 = vunpack.c.l.b16 %v6193
    %v6903 = vunpack.c.h.b16 %v6193
    %v6904 = vunpack.c.l.b16 %v6194
    %v6905 = vunpack.c.h.b16 %v6194
    %v6906 = vunpack.c.l.b16 %v6195
    %v6907 = vunpack.c.h.b16 %v6195
    %v6908 = vunpack.c.l.b16 %v6196
    %v6909 = vunpack.c.h.b16 %v6196
    %v6910 = vunpack.c.l.b16 %v6197
    %v6911 = vunpack.c.h.b16 %v6197
    %v6912 = vunpack.c.l.b16 %v6198
    %v6913 = vunpack.c.h.b16 %v6198
    %v6914 = vunpack.c.l.b16 %v6199
    %v6915 = vunpack.c.h.b16 %v6199
    %v6916 = vunpack.c.l.b16 %v6200
    %v6917 = vunpack.c.h.b16 %v6200
    %v6918 = vunpack.c.l.b16 %v6201
    %v6919 = vunpack.c.h.b16 %v6201
    %v6920 = vunpack.c.l.b16 %v6202
    %v6921 = vunpack.c.h.b16 %v6202
    %v6922 = vunpack.c.l.b16 %v6203
    %v6923 = vunpack.c.h.b16 %v6203
    %v6924 = vunpack.c.l.b16 %v6204
    %v6925 = vunpack.c.h.b16 %v6204
    %v6926 = vunpack.c.l.b16 %v6205
    %v6927 = vunpack.c.h.b16 %v6205
    %v6928 = vunpack.c.l.b16 %v6206
    %v6929 = vunpack.c.h.b16 %v6206
    %v6930 = vunpack.c.l.b16 %v6207
    %v6931 = vunpack.c.h.b16 %v6207
    %v6932 = vunpack.c.l.b16 %v6208
    %v6933 = vunpack.c.h.b16 %v6208
    %v6934 = vunpack.c.l.b16 %v6209
    %v6935 = vunpack.c.h.b16 %v6209
    %v6936 = vunpack.c.l.b16 %v6210
    %v6937 = vunpack.c.h.b16 %v6210
    %v6938 = vunpack.c.l.b16 %v6211
    %v6939 = vunpack.c.h.b16 %v6211
    %v6940 = vunpack.c.l.b16 %v6212
    %v6941 = vunpack.c.h.b16 %v6212
    %v6942 = vunpack.c.l.b16 %v6213
    %v6943 = vunpack.c.h.b16 %v6213
    %v6944 = vunpack.c.l.b16 %v6214
    %v6945 = vunpack.c.h.b16 %v6214
    %v6946 = vunpack.c.l.b16 %v6215
    %v6947 = vunpack.c.h.b16 %v6215
    %v6948 = vunpack.c.l.b16 %v6216
    %v6949 = vunpack.c.h.b16 %v6216
    %v6950 = vunpack.c.l.b16 %v6217
    %v6951 = vunpack.c.h.b16 %v6217
    %v6952 = vunpack.c.l.b16 %v6218
    %v6953 = vunpack.c.h.b16 %v6218
    %v6954 = vunpack.c.l.b16 %v6219
    %v6955 = vunpack.c.h.b16 %v6219
    %v6956 = vunpack.c.l.b16 %v6220
    %v6957 = vunpack.c.h.b16 %v6220
    %v6958 = vunpack.c.l.b16 %v6221
    %v6959 = vunpack.c.h.b16 %v6221
    %v6960 = vunpack.c.l.b16 %v6222
    %v6961 = vunpack.c.h.b16 %v6222
    %v6962 = vunpack.c.l.b16 %v6223
    %v6963 = vunpack.c.h.b16 %v6223
    %v6964 = vunpack.c.l.b16 %v6224
    %v6965 = vunpack.c.h.b16 %v6224
    %v6966 = vunpack.c.l.b16 %v6225
    %v6967 = vunpack.c.h.b16 %v6225
    %v6968 = vunpack.c.l.b16 %v6226
    %v6969 = vunpack.c.h.b16 %v6226
    %v6970 = vunpack.c.l.b16 %v6227
    %v6971 = vunpack.c.h.b16 %v6227
    %v6972 = vunpack.c.l.b16 %v6228
    %v6973 = vunpack.c.h.b16 %v6228
    %v6974 = vunpack.c.l.b16 %v6229
    %v6975 = vunpack.c.h.b16 %v6229
    %v6976 = vunpack.c.l.b16 %v6230
    %v6977 = vunpack.c.h.b16 %v6230
    %v6978 = vunpack.c.l.b16 %v6231
    %v6979 = vunpack.c.h.b16 %v6231
    %v6980 = vunpack.c.l.b16 %v6232
    %v6981 = vunpack.c.h.b16 %v6232
    %v6982 = vunpack.c.l.b16 %v6233
    %v6983 = vunpack.c.h.b16 %v6233
    %v6984 = vunpack.c.l.b16 %v6234
    %v6985 = vunpack.c.h.b16 %v6234
    %v6986 = vunpack.c.l.b16 %v6235
    %v6987 = vunpack.c.h.b16 %v6235
    %v6988 = vunpack.c.l.b16 %v6236
    %v6989 = vunpack.c.h.b16 %v6236
    %v6990 = vunpack.c.l.b16 %v6237
    %v6991 = vunpack.c.h.b16 %v6237
    %v6992 = vunpack.c.l.b16 %v6238
    %v6993 = vunpack.c.h.b16 %v6238
    %v6994 = vunpack.c.l.b16 %v6239
    %v6995 = vunpack.c.h.b16 %v6239
    %v6996 = vunpack.c.l.b16 %v6240
    %v6997 = vunpack.c.h.b16 %v6240
    %v6998 = vunpack.c.l.b16 %v6241
    %v6999 = vunpack.c.h.b16 %v6241
    %v7000 = vunpack.c.l.b16 %v6242
    %v7001 = vunpack.c.h.b16 %v6242
    %v7002 = vunpack.c.l.b16 %v6243
    %v7003 = vunpack.c.h.b16 %v6243
    %v7004 = vunpack.c.l.b16 %v6244
    %v7005 = vunpack.c.h.b16 %v6244
    %v7006 = vunpack.c.l.b16 %v6245
    %v7007 = vunpack.c.h.b16 %v6245
    %v7008 = vunpack.c.l.b16 %v6246
    %v7009 = vunpack.c.h.b16 %v6246
    %v7010 = vunpack.c.l.b16 %v6247
    %v7011 = vunpack.c.h.b16 %v6247
    %v7012 = vunpack.c.l.b16 %v6248
    %v7013 = vunpack.c.h.b16 %v6248
    %v7014 = vunpack.c.l.b16 %v6249
    %v7015 = vunpack.c.h.b16 %v6249
    %v7016 = vunpack.c.l.b16 %v6250
    %v7017 = vunpack.c.h.b16 %v6250
    %v7018 = vunpack.c.l.b16 %v6251
    %v7019 = vunpack.c.h.b16 %v6251
    %v7020 = vunpack.c.l.b16 %v6252
    %v7021 = vunpack.c.h.b16 %v6252
    %v7022 = vunpack.c.l.b16 %v6253
    %v7023 = vunpack.c.h.b16 %v6253
    %v7024 = vunpack.c.l.b16 %v6254
    %v7025 = vunpack.c.h.b16 %v6254
    %v7026 = vunpack.c.l.b16 %v6255
    %v7027 = vunpack.c.h.b16 %v6255
    %v7028 = vunpack.c.l.b16 %v6256
    %v7029 = vunpack.c.h.b16 %v6256
    %v7030 = vunpack.c.l.b16 %v6257
    %v7031 = vunpack.c.h.b16 %v6257
    %v7032 = vunpack.c.l.b16 %v6258
    %v7033 = vunpack.c.h.b16 %v6258
    %v7034 = vunpack.c.l.b16 %v6259
    %v7035 = vunpack.c.h.b16 %v6259
    %v7036 = vunpack.c.l.b16 %v6260
    %v7037 = vunpack.c.h.b16 %v6260
    %v7038 = vunpack.c.l.b16 %v6261
    %v7039 = vunpack.c.h.b16 %v6261
    %v7040 = vunpack.c.l.b16 %v6262
    %v7041 = vunpack.c.h.b16 %v6262
    %v7042 = vunpack.c.l.b16 %v6263
    %v7043 = vunpack.c.h.b16 %v6263
    %v7044 = vunpack.c.l.b16 %v6264
    %v7045 = vunpack.c.h.b16 %v6264
    %v7046 = vunpack.c.l.b16 %v6265
    %v7047 = vunpack.c.h.b16 %v6265
    %v7048 = vunpack.c.l.b16 %v6266
    %v7049 = vunpack.c.h.b16 %v6266
    %v7050 = vunpack.c.l.b16 %v6267
    %v7051 = vunpack.c.h.b16 %v6267
    %v7052 = vunpack.c.l.b16 %v6268
    %v7053 = vunpack.c.h.b16 %v6268
    %v7054 = vunpack.c.l.b16 %v6269
    %v7055 = vunpack.c.h.b16 %v6269
    %v7056 = vunpack.c.l.b16 %v6270
    %v7057 = vunpack.c.h.b16 %v6270
    %v7058 = vunpack.c.l.b16 %v6271
    %v7059 = vunpack.c.h.b16 %v6271
    %v7060 = vunpack.c.l.b16 %v6272
    %v7061 = vunpack.c.h.b16 %v6272
    %v7062 = vunpack.c.l.b16 %v6273
    %v7063 = vunpack.c.h.b16 %v6273
    %v7064 = vpack.c.b16 %v6556, %v6552
    %v7065 = vpack.c.b16 %v6557, %v6553
    %v7066 = vpack.c.b16 %v6558, %v6554
    %v7067 = vpack.c.b16 %v6559, %v6555
    %v7068 = vpack.c.b16 %v6564, %v6560
    %v7069 = vpack.c.b16 %v6565, %v6561
    %v7070 = vpack.c.b16 %v6566, %v6562
    %v7071 = vpack.c.b16 %v6567, %v6563
    %v7072 = vpack.c.b16 %v6572, %v6568
    %v7073 = vpack.c.b16 %v6573, %v6569
    %v7074 = vpack.c.b16 %v6574, %v6570
    %v7075 = vpack.c.b16 %v6575, %v6571
    %v7076 = vpack.c.b16 %v6580, %v6576
    %v7077 = vpack.c.b16 %v6581, %v6577
    %v7078 = vpack.c.b16 %v6582, %v6578
    %v7079 = vpack.c.b16 %v6583, %v6579
    %v7080 = vpack.c.b16 %v6588, %v6584
    %v7081 = vpack.c.b16 %v6589, %v6585
    %v7082 = vpack.c.b16 %v6590, %v6586
    %v7083 = vpack.c.b16 %v6591, %v6587
    %v7084 = vpack.c.b16 %v6596, %v6592
    %v7085 = vpack.c.b16 %v6597, %v6593
    %v7086 = vpack.c.b16 %v6598, %v6594
    %v7087 = vpack.c.b16 %v6599, %v6595
    %v7088 = vpack.c.b16 %v6604, %v6600
    %v7089 = vpack.c.b16 %v6605, %v6601
    %v7090 = vpack.c.b16 %v6606, %v6602
    %v7091 = vpack.c.b16 %v6607, %v6603
    %v7092 = vpack.c.b16 %v6612, %v6608
    %v7093 = vpack.c.b16 %v6613, %v6609
    %v7094 = vpack.c.b16 %v6614, %v6610
    %v7095 = vpack.c.b16 %v6615, %v6611
    %v7096 = vpack.c.b16 %v6620, %v6616
    %v7097 = vpack.c.b16 %v6621, %v6617
    %v7098 = vpack.c.b16 %v6622, %v6618
    %v7099 = vpack.c.b16 %v6623, %v6619
    %v7100 = vpack.c.b16 %v6628, %v6624
    %v7101 = vpack.c.b16 %v6629, %v6625
    %v7102 = vpack.c.b16 %v6630, %v6626
    %v7103 = vpack.c.b16 %v6631, %v6627
    %v7104 = vpack.c.b16 %v6636, %v6632
    %v7105 = vpack.c.b16 %v6637, %v6633
    %v7106 = vpack.c.b16 %v6638, %v6634
    %v7107 = vpack.c.b16 %v6639, %v6635
    %v7108 = vpack.c.b16 %v6644, %v6640
    %v7109 = vpack.c.b16 %v6645, %v6641
    %v7110 = vpack.c.b16 %v6646, %v6642
    %v7111 = vpack.c.b16 %v6647, %v6643
    %v7112 = vpack.c.b16 %v6652, %v6648
    %v7113 = vpack.c.b16 %v6653, %v6649
    %v7114 = vpack.c.b16 %v6654, %v6650
    %v7115 = vpack.c.b16 %v6655, %v6651
    %v7116 = vpack.c.b16 %v6660, %v6656
    %v7117 = vpack.c.b16 %v6661, %v6657
    %v7118 = vpack.c.b16 %v6662, %v6658
    %v7119 = vpack.c.b16 %v6663, %v6659
    %v7120 = vpack.c.b16 %v6668, %v6664
    %v7121 = vpack.c.b16 %v6669, %v6665
    %v7122 = vpack.c.b16 %v6670, %v6666
    %v7123 = vpack.c.b16 %v6671, %v6667
    %v7124 = vpack.c.b16 %v6676, %v6672
    %v7125 = vpack.c.b16 %v6677, %v6673
    %v7126 = vpack.c.b16 %v6678, %v6674
    %v7127 = vpack.c.b16 %v6679, %v6675
    %v7128 = vpack.c.b16 %v6684, %v6680
    %v7129 = vpack.c.b16 %v6685, %v6681
    %v7130 = vpack.c.b16 %v6686, %v6682
    %v7131 = vpack.c.b16 %v6687, %v6683
    %v7132 = vpack.c.b16 %v6692, %v6688
    %v7133 = vpack.c.b16 %v6693, %v6689
    %v7134 = vpack.c.b16 %v6694, %v6690
    %v7135 = vpack.c.b16 %v6695, %v6691
    %v7136 = vpack.c.b16 %v6700, %v6696
    %v7137 = vpack.c.b16 %v6701, %v6697
    %v7138 = vpack.c.b16 %v6702, %v6698
    %v7139 = vpack.c.b16 %v6703, %v6699
    %v7140 = vpack.c.b16 %v6708, %v6704
    %v7141 = vpack.c.b16 %v6709, %v6705
    %v7142 = vpack.c.b16 %v6710, %v6706
    %v7143 = vpack.c.b16 %v6711, %v6707
    %v7144 = vpack.c.b16 %v6716, %v6712
    %v7145 = vpack.c.b16 %v6717, %v6713
    %v7146 = vpack.c.b16 %v6718, %v6714
    %v7147 = vpack.c.b16 %v6719, %v6715
    %v7148 = vpack.c.b16 %v6724, %v6720
    %v7149 = vpack.c.b16 %v6725, %v6721
    %v7150 = vpack.c.b16 %v6726, %v6722
    %v7151 = vpack.c.b16 %v6727, %v6723
    %v7152 = vpack.c.b16 %v6732, %v6728
    %v7153 = vpack.c.b16 %v6733, %v6729
    %v7154 = vpack.c.b16 %v6734, %v6730
    %v7155 = vpack.c.b16 %v6735, %v6731
    %v7156 = vpack.c.b16 %v6740, %v6736
    %v7157 = vpack.c.b16 %v6741, %v6737
    %v7158 = vpack.c.b16 %v6742, %v6738
    %v7159 = vpack.c.b16 %v6743, %v6739
    %v7160 = vpack.c.b16 %v6748, %v6744
    %v7161 = vpack.c.b16 %v6749, %v6745
    %v7162 = vpack.c.b16 %v6750, %v6746
    %v7163 = vpack.c.b16 %v6751, %v6747
    %v7164 = vpack.c.b16 %v6756, %v6752
    %v7165 = vpack.c.b16 %v6757, %v6753
    %v7166 = vpack.c.b16 %v6758, %v6754
    %v7167 = vpack.c.b16 %v6759, %v6755
    %v7168 = vpack.c.b16 %v6764, %v6760
    %v7169 = vpack.c.b16 %v6765, %v6761
    %v7170 = vpack.c.b16 %v6766, %v6762
    %v7171 = vpack.c.b16 %v6767, %v6763
    %v7172 = vpack.c.b16 %v6772, %v6768
    %v7173 = vpack.c.b16 %v6773, %v6769
    %v7174 = vpack.c.b16 %v6774, %v6770
    %v7175 = vpack.c.b16 %v6775, %v6771
    %v7176 = vpack.c.b16 %v6780, %v6776
    %v7177 = vpack.c.b16 %v6781, %v6777
    %v7178 = vpack.c.b16 %v6782, %v6778
    %v7179 = vpack.c.b16 %v6783, %v6779
    %v7180 = vpack.c.b16 %v6788, %v6784
    %v7181 = vpack.c.b16 %v6789, %v6785
    %v7182 = vpack.c.b16 %v6790, %v6786
    %v7183 = vpack.c.b16 %v6791, %v6787
    %v7184 = vpack.c.b16 %v6796, %v6792
    %v7185 = vpack.c.b16 %v6797, %v6793
    %v7186 = vpack.c.b16 %v6798, %v6794
    %v7187 = vpack.c.b16 %v6799, %v6795
    %v7188 = vpack.c.b16 %v6804, %v6800
    %v7189 = vpack.c.b16 %v6805, %v6801
    %v7190 = vpack.c.b16 %v6806, %v6802
    %v7191 = vpack.c.b16 %v6807, %v6803
    %v7192 = vpack.c.b16 %v6812, %v6808
    %v7193 = vpack.c.b16 %v6813, %v6809
    %v7194 = vpack.c.b16 %v6814, %v6810
    %v7195 = vpack.c.b16 %v6815, %v6811
    %v7196 = vpack.c.b16 %v6820, %v6816
    %v7197 = vpack.c.b16 %v6821, %v6817
    %v7198 = vpack.c.b16 %v6822, %v6818
    %v7199 = vpack.c.b16 %v6823, %v6819
    %v7200 = vpack.c.b16 %v6828, %v6824
    %v7201 = vpack.c.b16 %v6829, %v6825
    %v7202 = vpack.c.b16 %v6830, %v6826
    %v7203 = vpack.c.b16 %v6831, %v6827
    %v7204 = vpack.c.b16 %v6836, %v6832
    %v7205 = vpack.c.b16 %v6837, %v6833
    %v7206 = vpack.c.b16 %v6838, %v6834
    %v7207 = vpack.c.b16 %v6839, %v6835
    %v7208 = vpack.c.b16 %v6844, %v6840
    %v7209 = vpack.c.b16 %v6845, %v6841
    %v7210 = vpack.c.b16 %v6846, %v6842
    %v7211 = vpack.c.b16 %v6847, %v6843
    %v7212 = vpack.c.b16 %v6852, %v6848
    %v7213 = vpack.c.b16 %v6853, %v6849
    %v7214 = vpack.c.b16 %v6854, %v6850
    %v7215 = vpack.c.b16 %v6855, %v6851
    %v7216 = vpack.c.b16 %v6860, %v6856
    %v7217 = vpack.c.b16 %v6861, %v6857
    %v7218 = vpack.c.b16 %v6862, %v6858
    %v7219 = vpack.c.b16 %v6863, %v6859
    %v7220 = vpack.c.b16 %v6868, %v6864
    %v7221 = vpack.c.b16 %v6869, %v6865
    %v7222 = vpack.c.b16 %v6870, %v6866
    %v7223 = vpack.c.b16 %v6871, %v6867
    %v7224 = vpack.c.b16 %v6876, %v6872
    %v7225 = vpack.c.b16 %v6877, %v6873
    %v7226 = vpack.c.b16 %v6878, %v6874
    %v7227 = vpack.c.b16 %v6879, %v6875
    %v7228 = vpack.c.b16 %v6884, %v6880
    %v7229 = vpack.c.b16 %v6885, %v6881
    %v7230 = vpack.c.b16 %v6886, %v6882
    %v7231 = vpack.c.b16 %v6887, %v6883
    %v7232 = vpack.c.b16 %v6892, %v6888
    %v7233 = vpack.c.b16 %v6893, %v6889
    %v7234 = vpack.c.b16 %v6894, %v6890
    %v7235 = vpack.c.b16 %v6895, %v6891
    %v7236 = vpack.c.b16 %v6900, %v6896
    %v7237 = vpack.c.b16 %v6901, %v6897
    %v7238 = vpack.c.b16 %v6902, %v6898
    %v7239 = vpack.c.b16 %v6903, %v6899
    %v7240 = vpack.c.b16 %v6908, %v6904
    %v7241 = vpack.c.b16 %v6909, %v6905
    %v7242 = vpack.c.b16 %v6910, %v6906
    %v7243 = vpack.c.b16 %v6911, %v6907
    %v7244 = vpack.c.b16 %v6916, %v6912
    %v7245 = vpack.c.b16 %v6917, %v6913
    %v7246 = vpack.c.b16 %v6918, %v6914
    %v7247 = vpack.c.b16 %v6919, %v6915
    %v7248 = vpack.c.b16 %v6924, %v6920
    %v7249 = vpack.c.b16 %v6925, %v6921
    %v7250 = vpack.c.b16 %v6926, %v6922
    %v7251 = vpack.c.b16 %v6927, %v6923
    %v7252 = vpack.c.b16 %v6932, %v6928
    %v7253 = vpack.c.b16 %v6933, %v6929
    %v7254 = vpack.c.b16 %v6934, %v6930
    %v7255 = vpack.c.b16 %v6935, %v6931
    %v7256 = vpack.c.b16 %v6940, %v6936
    %v7257 = vpack.c.b16 %v6941, %v6937
    %v7258 = vpack.c.b16 %v6942, %v6938
    %v7259 = vpack.c.b16 %v6943, %v6939
    %v7260 = vpack.c.b16 %v6948, %v6944
    %v7261 = vpack.c.b16 %v6949, %v6945
    %v7262 = vpack.c.b16 %v6950, %v6946
    %v7263 = vpack.c.b16 %v6951, %v6947
    %v7264 = vpack.c.b16 %v6956, %v6952
    %v7265 = vpack.c.b16 %v6957, %v6953
    %v7266 = vpack.c.b16 %v6958, %v6954
    %v7267 = vpack.c.b16 %v6959, %v6955
    %v7268 = vpack.c.b16 %v6964, %v6960
    %v7269 = vpack.c.b16 %v6965, %v6961
    %v7270 = vpack.c.b16 %v6966, %v6962
    %v7271 = vpack.c.b16 %v6967, %v6963
    %v7272 = vpack.c.b16 %v6972, %v6968
    %v7273 = vpack.c.b16 %v6973, %v6969
    %v7274 = vpack.c.b16 %v6974, %v6970
    %v7275 = vpack.c.b16 %v6975, %v6971
    %v7276 = vpack.c.b16 %v6980, %v6976
    %v7277 = vpack.c.b16 %v6981, %v6977
    %v7278 = vpack.c.b16 %v6982, %v6978
    %v7279 = vpack.c.b16 %v6983, %v6979
    %v7280 = vpack.c.b16 %v6988, %v6984
    %v7281 = vpack.c.b16 %v6989, %v6985
    %v7282 = vpack.c.b16 %v6990, %v6986
    %v7283 = vpack.c.b16 %v6991, %v6987
    %v7284 = vpack.c.b16 %v6996, %v6992
    %v7285 = vpack.c.b16 %v6997, %v6993
    %v7286 = vpack.c.b16 %v6998, %v6994
    %v7287 = vpack.c.b16 %v6999, %v6995
    %v7288 = vpack.c.b16 %v7004, %v7000
    %v7289 = vpack.c.b16 %v7005, %v7001
    %v7290 = vpack.c.b16 %v7006, %v7002
    %v7291 = vpack.c.b16 %v7007, %v7003
    %v7292 = vpack.c.b16 %v7012, %v7008
    %v7293 = vpack.c.b16 %v7013, %v7009
    %v7294 = vpack.c.b16 %v7014, %v7010
    %v7295 = vpack.c.b16 %v7015, %v7011
    %v7296 = vpack.c.b16 %v7020, %v7016
    %v7297 = vpack.c.b16 %v7021, %v7017
    %v7298 = vpack.c.b16 %v7022, %v7018
    %v7299 = vpack.c.b16 %v7023, %v7019
    %v7300 = vpack.c.b16 %v7028, %v7024
    %v7301 = vpack.c.b16 %v7029, %v7025
    %v7302 = vpack.c.b16 %v7030, %v7026
    %v7303 = vpack.c.b16 %v7031, %v7027
    %v7304 = vpack.c.b16 %v7036, %v7032
    %v7305 = vpack.c.b16 %v7037, %v7033
    %v7306 = vpack.c.b16 %v7038, %v7034
    %v7307 = vpack.c.b16 %v7039, %v7035
    %v7308 = vpack.c.b16 %v7044, %v7040
    %v7309 = vpack.c.b16 %v7045, %v7041
    %v7310 = vpack.c.b16 %v7046, %v7042
    %v7311 = vpack.c.b16 %v7047, %v7043
    %v7312 = vpack.c.b16 %v7052, %v7048
    %v7313 = vpack.c.b16 %v7053, %v7049
    %v7314 = vpack.c.b16 %v7054, %v7050
    %v7315 = vpack.c.b16 %v7055, %v7051
    %v7316 = vpack.c.b16 %v7060, %v7056
    %v7317 = vpack.c.b16 %v7061, %v7057
    %v7318 = vpack.c.b16 %v7062, %v7058
    %v7319 = vpack.c.b16 %v7063, %v7059
    %7576 = vmatprep.subr.bf16.mxu0 %v7065
    %7577 = vmatpush1.bf16.msra.mxu0 %v7064
    %7578 = vmatprep.subr.bf16.mxu0 %v7069
    %7579 = vmatpush1.bf16.msra.mxu0 %v7068
    %7580 = vmatprep.subr.bf16.mxu0 %v7073
    %7581 = vmatpush1.bf16.msra.mxu0 %v7072
    %7582 = vmatprep.subr.bf16.mxu0 %v7077
    %7583 = vmatpush1.bf16.msra.mxu0 %v7076
    %7584 = vmatprep.subr.bf16.mxu0 %v7081
    %7585 = vmatpush1.bf16.msra.mxu0 %v7080
    %7586 = vmatprep.subr.bf16.mxu0 %v7085
    %7587 = vmatpush1.bf16.msra.mxu0 %v7084
    %7588 = vmatprep.subr.bf16.mxu0 %v7089
    %7589 = vmatpush1.bf16.msra.mxu0 %v7088
    %7590 = vmatprep.subr.bf16.mxu0 %v7093
    %7591 = vmatpush1.bf16.msra.mxu0 %v7092
    %7592 = vmatprep.subr.bf16.mxu0 %v7097
    %7593 = vmatpush1.bf16.msra.mxu0 %v7096
    %7594 = vmatprep.subr.bf16.mxu0 %v7101
    %7595 = vmatpush1.bf16.msra.mxu0 %v7100
    %7596 = vmatprep.subr.bf16.mxu0 %v7105
    %7597 = vmatpush1.bf16.msra.mxu0 %v7104
    %7598 = vmatprep.subr.bf16.mxu0 %v7109
    %7599 = vmatpush1.bf16.msra.mxu0 %v7108
    %7600 = vmatprep.subr.bf16.mxu0 %v7113
    %7601 = vmatpush1.bf16.msra.mxu0 %v7112
    %7602 = vmatprep.subr.bf16.mxu0 %v7117
    %7603 = vmatpush1.bf16.msra.mxu0 %v7116
    %7604 = vmatprep.subr.bf16.mxu0 %v7121
    %7605 = vmatpush1.bf16.msra.mxu0 %v7120
    %7606 = vmatprep.subr.bf16.mxu0 %v7125
    %7607 = vmatpush1.bf16.msra.mxu0 %v7124
    %7608 = vmatprep.mubr.bf16.mxu0 %v6011
    %7609 = vmatmul.mubr.bf16.gmra.mrb[0].mxu0 %v6010
    %v7610 = vpop.f32.mrb[0].mxu0
    %v7611 = vadd.f32 %v6279, %v7610
    %v7612 = vpop.f32.mrb[0].mxu0
    %v7613 = vadd.f32 %v6283, %v7612
    %v7614 = vpop.f32.mrb[0].mxu0
    %v7615 = vpop.f32.mrb[0].mxu0
    %7616 = vdwg.mxu0
    %7617 = vmatprep.subr.bf16.mxu0 %v7129
    %7618 = vmatpush1.bf16.msra.mxu0 %v7128
    %7619 = vmatprep.subr.bf16.mxu0 %v7133
    %7620 = vmatpush1.bf16.msra.mxu0 %v7132
    %7621 = vmatprep.subr.bf16.mxu0 %v7137
    %7622 = vmatpush1.bf16.msra.mxu0 %v7136
    %7623 = vmatprep.subr.bf16.mxu0 %v7141
    %7624 = vmatpush1.bf16.msra.mxu0 %v7140
    %7625 = vmatprep.subr.bf16.mxu0 %v7145
    %7626 = vmatpush1.bf16.msra.mxu0 %v7144
    %7627 = vmatprep.subr.bf16.mxu0 %v7149
    %7628 = vmatpush1.bf16.msra.mxu0 %v7148
    %7629 = vmatprep.subr.bf16.mxu0 %v7153
    %7630 = vmatpush1.bf16.msra.mxu0 %v7152
    %7631 = vmatprep.subr.bf16.mxu0 %v7157
    %7632 = vmatpush1.bf16.msra.mxu0 %v7156
    %7633 = vmatprep.subr.bf16.mxu0 %v7161
    %7634 = vmatpush1.bf16.msra.mxu0 %v7160
    %7635 = vmatprep.subr.bf16.mxu0 %v7165
    %7636 = vmatpush1.bf16.msra.mxu0 %v7164
    %7637 = vmatprep.subr.bf16.mxu0 %v7169
    %7638 = vmatpush1.bf16.msra.mxu0 %v7168
    %7639 = vmatprep.subr.bf16.mxu0 %v7173
    %7640 = vmatpush1.bf16.msra.mxu0 %v7172
    %7641 = vmatprep.subr.bf16.mxu0 %v7177
    %7642 = vmatpush1.bf16.msra.mxu0 %v7176
    %7643 = vmatprep.subr.bf16.mxu0 %v7181
    %7644 = vmatpush1.bf16.msra.mxu0 %v7180
    %7645 = vmatprep.subr.bf16.mxu0 %v7185
    %7646 = vmatpush1.bf16.msra.mxu0 %v7184
    %7647 = vmatprep.subr.bf16.mxu0 %v7189
    %7648 = vmatpush1.bf16.msra.mxu0 %v7188
    %7649 = vmatprep.mubr.bf16.mxu0 %v6013
    %7650 = vmatmul.mubr.bf16.gmra.mrb[0].mxu0 %v6012
    %v7651 = vpop.f32.mrb[0].mxu0
    %v7652 = vadd.f32 %v7611, %v7651
    %v7653 = vpop.f32.mrb[0].mxu0
    %v7654 = vadd.f32 %v7613, %v7653
    %v7655 = vpop.f32.mrb[0].mxu0
    %v7656 = vpop.f32.mrb[0].mxu0
    %7657 = vdwg.mxu0
    %7658 = vmatprep.subr.bf16.mxu0 %v7193
    %7659 = vmatpush1.bf16.msra.mxu0 %v7192
    %7660 = vmatprep.subr.bf16.mxu0 %v7197
    %7661 = vmatpush1.bf16.msra.mxu0 %v7196
    %7662 = vmatprep.subr.bf16.mxu0 %v7201
    %7663 = vmatpush1.bf16.msra.mxu0 %v7200
    %7664 = vmatprep.subr.bf16.mxu0 %v7205
    %7665 = vmatpush1.bf16.msra.mxu0 %v7204
    %7666 = vmatprep.subr.bf16.mxu0 %v7209
    %7667 = vmatpush1.bf16.msra.mxu0 %v7208
    %7668 = vmatprep.subr.bf16.mxu0 %v7213
    %7669 = vmatpush1.bf16.msra.mxu0 %v7212
    %7670 = vmatprep.subr.bf16.mxu0 %v7217
    %7671 = vmatpush1.bf16.msra.mxu0 %v7216
    %7672 = vmatprep.subr.bf16.mxu0 %v7221
    %7673 = vmatpush1.bf16.msra.mxu0 %v7220
    %7674 = vmatprep.subr.bf16.mxu0 %v7225
    %7675 = vmatpush1.bf16.msra.mxu0 %v7224
    %7676 = vmatprep.subr.bf16.mxu0 %v7229
    %7677 = vmatpush1.bf16.msra.mxu0 %v7228
    %7678 = vmatprep.subr.bf16.mxu0 %v7233
    %7679 = vmatpush1.bf16.msra.mxu0 %v7232
    %7680 = vmatprep.subr.bf16.mxu0 %v7237
    %7681 = vmatpush1.bf16.msra.mxu0 %v7236
    %7682 = vmatprep.subr.bf16.mxu0 %v7241
    %7683 = vmatpush1.bf16.msra.mxu0 %v7240
    %7684 = vmatprep.subr.bf16.mxu0 %v7245
    %7685 = vmatpush1.bf16.msra.mxu0 %v7244
    %7686 = vmatprep.subr.bf16.mxu0 %v7249
    %7687 = vmatpush1.bf16.msra.mxu0 %v7248
    %7688 = vmatprep.subr.bf16.mxu0 %v7253
    %7689 = vmatpush1.bf16.msra.mxu0 %v7252
    %7690 = vmatprep.mubr.bf16.mxu0 %v6015
    %7691 = vmatmul.mubr.bf16.gmra.mrb[0].mxu0 %v6014
    %v7692 = vpop.f32.mrb[0].mxu0
    %v7693 = vadd.f32 %v7652, %v7692
    %v7694 = vpop.f32.mrb[0].mxu0
    %v7695 = vadd.f32 %v7654, %v7694
    %v7696 = vpop.f32.mrb[0].mxu0
    %v7697 = vpop.f32.mrb[0].mxu0
    %7698 = vdwg.mxu0
    %7699 = vmatprep.subr.bf16.mxu0 %v7257
    %7700 = vmatpush1.bf16.msra.mxu0 %v7256
    %7701 = vmatprep.subr.bf16.mxu0 %v7261
    %7702 = vmatpush1.bf16.msra.mxu0 %v7260
    %7703 = vmatprep.subr.bf16.mxu0 %v7265
    %7704 = vmatpush1.bf16.msra.mxu0 %v7264
    %7705 = vmatprep.subr.bf16.mxu0 %v7269
    %7706 = vmatpush1.bf16.msra.mxu0 %v7268
    %7707 = vmatprep.subr.bf16.mxu0 %v7273
    %7708 = vmatpush1.bf16.msra.mxu0 %v7272
    %7709 = vmatprep.subr.bf16.mxu0 %v7277
    %7710 = vmatpush1.bf16.msra.mxu0 %v7276
    %7711 = vmatprep.subr.bf16.mxu0 %v7281
    %7712 = vmatpush1.bf16.msra.mxu0 %v7280
    %7713 = vmatprep.subr.bf16.mxu0 %v7285
    %7714 = vmatpush1.bf16.msra.mxu0 %v7284
    %7715 = vmatprep.subr.bf16.mxu0 %v7289
    %7716 = vmatpush1.bf16.msra.mxu0 %v7288
    %7717 = vmatprep.subr.bf16.mxu0 %v7293
    %7718 = vmatpush1.bf16.msra.mxu0 %v7292
    %7719 = vmatprep.subr.bf16.mxu0 %v7297
    %7720 = vmatpush1.bf16.msra.mxu0 %v7296
    %7721 = vmatprep.subr.bf16.mxu0 %v7301
    %7722 = vmatpush1.bf16.msra.mxu0 %v7300
    %7723 = vmatprep.subr.bf16.mxu0 %v7305
    %7724 = vmatpush1.bf16.msra.mxu0 %v7304
    %7725 = vmatprep.subr.bf16.mxu0 %v7309
    %7726 = vmatpush1.bf16.msra.mxu0 %v7308
    %7727 = vmatprep.subr.bf16.mxu0 %v7313
    %7728 = vmatpush1.bf16.msra.mxu0 %v7312
    %7729 = vmatprep.subr.bf16.mxu0 %v7317
    %7730 = vmatpush1.bf16.msra.mxu0 %v7316
    %7731 = vmatprep.mubr.bf16.mxu0 %v6017
    %7732 = vmatmul.mubr.bf16.gmra.mrb[0].mxu0 %v6016
    %v7733 = vpop.f32.mrb[0].mxu0
    %v7734 = vadd.f32 %v7693, %v7733
    %v7735 = vpop.f32.mrb[0].mxu0
    %v7736 = vadd.f32 %v7695, %v7735
    %v7737 = vpop.f32.mrb[0].mxu0
    %v7738 = vpop.f32.mrb[0].mxu0
    %7739 = vdwg.mxu0
    %7740 = vmatprep.subr.bf16.mxu0 %v7067
    %7741 = vmatpush1.bf16.msra.mxu0 %v7066
    %7742 = vmatprep.subr.bf16.mxu0 %v7071
    %7743 = vmatpush1.bf16.msra.mxu0 %v7070
    %7744 = vmatprep.subr.bf16.mxu0 %v7075
    %7745 = vmatpush1.bf16.msra.mxu0 %v7074
    %7746 = vmatprep.subr.bf16.mxu0 %v7079
    %7747 = vmatpush1.bf16.msra.mxu0 %v7078
    %7748 = vmatprep.subr.bf16.mxu0 %v7083
    %7749 = vmatpush1.bf16.msra.mxu0 %v7082
    %7750 = vmatprep.subr.bf16.mxu0 %v7087
    %7751 = vmatpush1.bf16.msra.mxu0 %v7086
    %7752 = vmatprep.subr.bf16.mxu0 %v7091
    %7753 = vmatpush1.bf16.msra.mxu0 %v7090
    %7754 = vmatprep.subr.bf16.mxu0 %v7095
    %7755 = vmatpush1.bf16.msra.mxu0 %v7094
    %7756 = vmatprep.subr.bf16.mxu0 %v7099
    %7757 = vmatpush1.bf16.msra.mxu0 %v7098
    %7758 = vmatprep.subr.bf16.mxu0 %v7103
    %7759 = vmatpush1.bf16.msra.mxu0 %v7102
    %7760 = vmatprep.subr.bf16.mxu0 %v7107
    %7761 = vmatpush1.bf16.msra.mxu0 %v7106
    %7762 = vmatprep.subr.bf16.mxu0 %v7111
    %7763 = vmatpush1.bf16.msra.mxu0 %v7110
    %7764 = vmatprep.subr.bf16.mxu0 %v7115
    %7765 = vmatpush1.bf16.msra.mxu0 %v7114
    %7766 = vmatprep.subr.bf16.mxu0 %v7119
    %7767 = vmatpush1.bf16.msra.mxu0 %v7118
    %7768 = vmatprep.subr.bf16.mxu0 %v7123
    %7769 = vmatpush1.bf16.msra.mxu0 %v7122
    %7770 = vmatprep.subr.bf16.mxu0 %v7127
    %7771 = vmatpush1.bf16.msra.mxu0 %v7126
    %7772 = vmatprep.mubr.bf16.mxu0 %v6011
    %7773 = vmatmul.mubr.bf16.gmra.mrb[0].mxu0 %v6010
    %v7774 = vpop.f32.mrb[0].mxu0
    %v7775 = vadd.f32 %v6287, %v7774
    %v7776 = vpop.f32.mrb[0].mxu0
    %v7777 = vadd.f32 %v6291, %v7776
    %v7778 = vpop.f32.mrb[0].mxu0
    %v7779 = vpop.f32.mrb[0].mxu0
    %7780 = vdwg.mxu0
    %7781 = vmatprep.subr.bf16.mxu0 %v7131
    %7782 = vmatpush1.bf16.msra.mxu0 %v7130
    %7783 = vmatprep.subr.bf16.mxu0 %v7135
    %7784 = vmatpush1.bf16.msra.mxu0 %v7134
    %7785 = vmatprep.subr.bf16.mxu0 %v7139
    %7786 = vmatpush1.bf16.msra.mxu0 %v7138
    %7787 = vmatprep.subr.bf16.mxu0 %v7143
    %7788 = vmatpush1.bf16.msra.mxu0 %v7142
    %7789 = vmatprep.subr.bf16.mxu0 %v7147
    %7790 = vmatpush1.bf16.msra.mxu0 %v7146
    %7791 = vmatprep.subr.bf16.mxu0 %v7151
    %7792 = vmatpush1.bf16.msra.mxu0 %v7150
    %7793 = vmatprep.subr.bf16.mxu0 %v7155
    %7794 = vmatpush1.bf16.msra.mxu0 %v7154
    %7795 = vmatprep.subr.bf16.mxu0 %v7159
    %7796 = vmatpush1.bf16.msra.mxu0 %v7158
    %7797 = vmatprep.subr.bf16.mxu0 %v7163
    %7798 = vmatpush1.bf16.msra.mxu0 %v7162
    %7799 = vmatprep.subr.bf16.mxu0 %v7167
    %7800 = vmatpush1.bf16.msra.mxu0 %v7166
    %7801 = vmatprep.subr.bf16.mxu0 %v7171
    %7802 = vmatpush1.bf16.msra.mxu0 %v7170
    %7803 = vmatprep.subr.bf16.mxu0 %v7175
    %7804 = vmatpush1.bf16.msra.mxu0 %v7174
    %7805 = vmatprep.subr.bf16.mxu0 %v7179
    %7806 = vmatpush1.bf16.msra.mxu0 %v7178
    %7807 = vmatprep.subr.bf16.mxu0 %v7183
    %7808 = vmatpush1.bf16.msra.mxu0 %v7182
    %7809 = vmatprep.subr.bf16.mxu0 %v7187
    %7810 = vmatpush1.bf16.msra.mxu0 %v7186
    %7811 = vmatprep.subr.bf16.mxu0 %v7191
    %7812 = vmatpush1.bf16.msra.mxu0 %v7190
    %7813 = vmatprep.mubr.bf16.mxu0 %v6013
    %7814 = vmatmul.mubr.bf16.gmra.mrb[0].mxu0 %v6012
    %v7815 = vpop.f32.mrb[0].mxu0
    %v7816 = vadd.f32 %v7775, %v7815
    %v7817 = vpop.f32.mrb[0].mxu0
    %v7818 = vadd.f32 %v7777, %v7817
    %v7819 = vpop.f32.mrb[0].mxu0
    %v7820 = vpop.f32.mrb[0].mxu0
    %7821 = vdwg.mxu0
    %7822 = vmatprep.subr.bf16.mxu0 %v7195
    %7823 = vmatpush1.bf16.msra.mxu0 %v7194
    %7824 = vmatprep.subr.bf16.mxu0 %v7199
    %7825 = vmatpush1.bf16.msra.mxu0 %v7198
    %7826 = vmatprep.subr.bf16.mxu0 %v7203
    %7827 = vmatpush1.bf16.msra.mxu0 %v7202
    %7828 = vmatprep.subr.bf16.mxu0 %v7207
    %7829 = vmatpush1.bf16.msra.mxu0 %v7206
    %7830 = vmatprep.subr.bf16.mxu0 %v7211
    %7831 = vmatpush1.bf16.msra.mxu0 %v7210
    %7832 = vmatprep.subr.bf16.mxu0 %v7215
    %7833 = vmatpush1.bf16.msra.mxu0 %v7214
    %7834 = vmatprep.subr.bf16.mxu0 %v7219
    %7835 = vmatpush1.bf16.msra.mxu0 %v7218
    %7836 = vmatprep.subr.bf16.mxu0 %v7223
    %7837 = vmatpush1.bf16.msra.mxu0 %v7222
    %7838 = vmatprep.subr.bf16.mxu0 %v7227
    %7839 = vmatpush1.bf16.msra.mxu0 %v7226
    %7840 = vmatprep.subr.bf16.mxu0 %v7231
    %7841 = vmatpush1.bf16.msra.mxu0 %v7230
    %7842 = vmatprep.subr.bf16.mxu0 %v7235
    %7843 = vmatpush1.bf16.msra.mxu0 %v7234
    %7844 = vmatprep.subr.bf16.mxu0 %v7239
    %7845 = vmatpush1.bf16.msra.mxu0 %v7238
    %7846 = vmatprep.subr.bf16.mxu0 %v7243
    %7847 = vmatpush1.bf16.msra.mxu0 %v7242
    %7848 = vmatprep.subr.bf16.mxu0 %v7247
    %7849 = vmatpush1.bf16.msra.mxu0 %v7246
    %7850 = vmatprep.subr.bf16.mxu0 %v7251
    %7851 = vmatpush1.bf16.msra.mxu0 %v7250
    %7852 = vmatprep.subr.bf16.mxu0 %v7255
    %7853 = vmatpush1.bf16.msra.mxu0 %v7254
    %7854 = vmatprep.mubr.bf16.mxu0 %v6015
    %7855 = vmatmul.mubr.bf16.gmra.mrb[0].mxu0 %v6014
    %v7856 = vpop.f32.mrb[0].mxu0
    %v7857 = vadd.f32 %v7816, %v7856
    %v7858 = vpop.f32.mrb[0].mxu0
    %v7859 = vadd.f32 %v7818, %v7858
    %v7860 = vpop.f32.mrb[0].mxu0
    %v7861 = vpop.f32.mrb[0].mxu0
    %7862 = vdwg.mxu0
    %7863 = vmatprep.subr.bf16.mxu0 %v7259
    %7864 = vmatpush1.bf16.msra.mxu0 %v7258
    %7865 = vmatprep.subr.bf16.mxu0 %v7263
    %7866 = vmatpush1.bf16.msra.mxu0 %v7262
    %7867 = vmatprep.subr.bf16.mxu0 %v7267
    %7868 = vmatpush1.bf16.msra.mxu0 %v7266
    %7869 = vmatprep.subr.bf16.mxu0 %v7271
    %7870 = vmatpush1.bf16.msra.mxu0 %v7270
    %7871 = vmatprep.subr.bf16.mxu0 %v7275
    %7872 = vmatpush1.bf16.msra.mxu0 %v7274
    %7873 = vmatprep.subr.bf16.mxu0 %v7279
    %7874 = vmatpush1.bf16.msra.mxu0 %v7278
    %7875 = vmatprep.subr.bf16.mxu0 %v7283
    %7876 = vmatpush1.bf16.msra.mxu0 %v7282
    %7877 = vmatprep.subr.bf16.mxu0 %v7287
    %7878 = vmatpush1.bf16.msra.mxu0 %v7286
    %7879 = vmatprep.subr.bf16.mxu0 %v7291
    %7880 = vmatpush1.bf16.msra.mxu0 %v7290
    %7881 = vmatprep.subr.bf16.mxu0 %v7295
    %7882 = vmatpush1.bf16.msra.mxu0 %v7294
    %7883 = vmatprep.subr.bf16.mxu0 %v7299
    %7884 = vmatpush1.bf16.msra.mxu0 %v7298
    %7885 = vmatprep.subr.bf16.mxu0 %v7303
    %7886 = vmatpush1.bf16.msra.mxu0 %v7302
    %7887 = vmatprep.subr.bf16.mxu0 %v7307
    %7888 = vmatpush1.bf16.msra.mxu0 %v7306
    %7889 = vmatprep.subr.bf16.mxu0 %v7311
    %7890 = vmatpush1.bf16.msra.mxu0 %v7310
    %7891 = vmatprep.subr.bf16.mxu0 %v7315
    %7892 = vmatpush1.bf16.msra.mxu0 %v7314
    %7893 = vmatprep.subr.bf16.mxu0 %v7319
    %7894 = vmatpush1.bf16.msra.mxu0 %v7318
    %7895 = vmatprep.mubr.bf16.mxu0 %v6017
    %7896 = vmatmul.mubr.bf16.gmra.mrb[0].mxu0 %v6016
    %v7897 = vpop.f32.mrb[0].mxu0
    %v7898 = vadd.f32 %v7857, %v7897
    %v7899 = vpop.f32.mrb[0].mxu0
    %v7900 = vadd.f32 %v7859, %v7899
    %v7901 = vpop.f32.mrb[0].mxu0
    %v7902 = vpop.f32.mrb[0].mxu0
    %7903 = vdwg.mxu0
    %vm7904 = vcmp.gt.f32.partialorder %v7734, 0.0
    %vm7905 = vcmp.gt.f32.partialorder %v7736, 0.0
    %vm7906 = vcmp.gt.f32.partialorder %v7898, 0.0
    %vm7907 = vcmp.gt.f32.partialorder %v7900, 0.0
    %v7908 = vmul.f32 %v7734, 0.1
    %v7909 = vmul.f32 %v7736, 0.1
    %v7910 = vmul.f32 %v7898, 0.1
    %v7911 = vmul.f32 %v7900, 0.1
    %v7912 = vsel %vm7904, %v7734, %v7908
    %v7913 = vsel %vm7905, %v7736, %v7909
    %v7914 = vsel %vm7906, %v7898, %v7910
    %v7915 = vsel %vm7907, %v7900, %v7911
    %v7916 = vpack.c.bf16 %v7912, %v7912
    %v7917 = vpack.c.bf16 %v7913, %v7913
    %v7918 = vpack.c.bf16 %v7914, %v7914
    %v7919 = vpack.c.bf16 %v7915, %v7915
    %v7920 = vld [vmem:[#allocation9] sm:$0xff]
    %v7921 = vld [vmem:[#allocation9 + $0x8] sm:$0xff]
    %v7922 = vld [vmem:[#allocation9 + $0x10] sm:$0xff]
    %v7923 = vld [vmem:[#allocation9 + $0x18] sm:$0xff]
    %v7924 = vld [vmem:[#allocation9 + $0x20] sm:$0xff]
    %v7925 = vld [vmem:[#allocation9 + $0x28] sm:$0xff]
    %v7926 = vld [vmem:[#allocation9 + $0x30] sm:$0xff]
    %v7927 = vld [vmem:[#allocation9 + $0x38] sm:$0xff]
    %v7928 = vld [vmem:[#allocation9 + $0x40] sm:$0xff]
    %v7929 = vld [vmem:[#allocation9 + $0x48] sm:$0xff]
    %v7930 = vld [vmem:[#allocation9 + $0x50] sm:$0xff]
    %v7931 = vld [vmem:[#allocation9 + $0x58] sm:$0xff]
    %v7932 = vld [vmem:[#allocation9 + $0x60] sm:$0xff]
    %v7933 = vld [vmem:[#allocation9 + $0x68] sm:$0xff]
    %v7934 = vld [vmem:[#allocation9 + $0x70] sm:$0xff]
    %v7935 = vld [vmem:[#allocation9 + $0x78] sm:$0xff]
    %v7936 = vld [vmem:[#allocation9 + $0x80] sm:$0xff]
    %v7937 = vld [vmem:[#allocation9 + $0x88] sm:$0xff]
    %v7938 = vld [vmem:[#allocation9 + $0x90] sm:$0xff]
    %v7939 = vld [vmem:[#allocation9 + $0x98] sm:$0xff]
    %v7940 = vld [vmem:[#allocation9 + $0xa0] sm:$0xff]
    %v7941 = vld [vmem:[#allocation9 + $0xa8] sm:$0xff]
    %v7942 = vld [vmem:[#allocation9 + $0xb0] sm:$0xff]
    %v7943 = vld [vmem:[#allocation9 + $0xb8] sm:$0xff]
    %v7944 = vld [vmem:[#allocation9 + $0xc0] sm:$0xff]
    %v7945 = vld [vmem:[#allocation9 + $0xc8] sm:$0xff]
    %v7946 = vld [vmem:[#allocation9 + $0xd0] sm:$0xff]
    %v7947 = vld [vmem:[#allocation9 + $0xd8] sm:$0xff]
    %v7948 = vld [vmem:[#allocation9 + $0xe0] sm:$0xff]
    %v7949 = vld [vmem:[#allocation9 + $0xe8] sm:$0xff]
    %v7950 = vld [vmem:[#allocation9 + $0xf0] sm:$0xff]
    %v7951 = vld [vmem:[#allocation9 + $0xf8] sm:$0xff]
    %v7952 = vld [vmem:[#allocation9 + $0x100] sm:$0xff]
    %v7953 = vld [vmem:[#allocation9 + $0x108] sm:$0xff]
    %v7954 = vld [vmem:[#allocation9 + $0x110] sm:$0xff]
    %v7955 = vld [vmem:[#allocation9 + $0x118] sm:$0xff]
    %v7956 = vld [vmem:[#allocation9 + $0x120] sm:$0xff]
    %v7957 = vld [vmem:[#allocation9 + $0x128] sm:$0xff]
    %v7958 = vld [vmem:[#allocation9 + $0x130] sm:$0xff]
    %v7959 = vld [vmem:[#allocation9 + $0x138] sm:$0xff]
    %v7960 = vld [vmem:[#allocation9 + $0x140] sm:$0xff]
    %v7961 = vld [vmem:[#allocation9 + $0x148] sm:$0xff]
    %v7962 = vld [vmem:[#allocation9 + $0x150] sm:$0xff]
    %v7963 = vld [vmem:[#allocation9 + $0x158] sm:$0xff]
    %v7964 = vld [vmem:[#allocation9 + $0x160] sm:$0xff]
    %v7965 = vld [vmem:[#allocation9 + $0x168] sm:$0xff]
    %v7966 = vld [vmem:[#allocation9 + $0x170] sm:$0xff]
    %v7967 = vld [vmem:[#allocation9 + $0x178] sm:$0xff]
    %v7968 = vld [vmem:[#allocation9 + $0x180] sm:$0xff]
    %v7969 = vld [vmem:[#allocation9 + $0x188] sm:$0xff]
    %v7970 = vld [vmem:[#allocation9 + $0x190] sm:$0xff]
    %v7971 = vld [vmem:[#allocation9 + $0x198] sm:$0xff]
    %v7972 = vld [vmem:[#allocation9 + $0x1a0] sm:$0xff]
    %v7973 = vld [vmem:[#allocation9 + $0x1a8] sm:$0xff]
    %v7974 = vld [vmem:[#allocation9 + $0x1b0] sm:$0xff]
    %v7975 = vld [vmem:[#allocation9 + $0x1b8] sm:$0xff]
    %v7976 = vld [vmem:[#allocation9 + $0x1c0] sm:$0xff]
    %v7977 = vld [vmem:[#allocation9 + $0x1c8] sm:$0xff]
    %v7978 = vld [vmem:[#allocation9 + $0x1d0] sm:$0xff]
    %v7979 = vld [vmem:[#allocation9 + $0x1d8] sm:$0xff]
    %v7980 = vld [vmem:[#allocation9 + $0x1e0] sm:$0xff]
    %v7981 = vld [vmem:[#allocation9 + $0x1e8] sm:$0xff]
    %v7982 = vld [vmem:[#allocation9 + $0x1f0] sm:$0xff]
    %v7983 = vld [vmem:[#allocation9 + $0x1f8] sm:$0xff]
    %v7984 = vld [vmem:[#allocation10] sm:$0x3]
    %v7986 = vlaneseq
    %v7987 = vshrl.u32 %v7986, 7
    %v7988 = vsub.s32 0, %v7987
    %v7989 = vrot.slane %v7984, %v7988
    %v7990 = vlaneseq
    %v7991 = vshrl.u32 %v7990, 7
    %v7992 = vsub.s32 1, %v7991
    %v7993 = vrot.slane %v7984, %v7992
    %v8060 = vunpack.c.l.b16 %v7920
    %v8061 = vunpack.c.h.b16 %v7920
    %v8062 = vunpack.c.l.b16 %v7921
    %v8063 = vunpack.c.h.b16 %v7921
    %v8064 = vunpack.c.l.b16 %v7922
    %v8065 = vunpack.c.h.b16 %v7922
    %v8066 = vunpack.c.l.b16 %v7923
    %v8067 = vunpack.c.h.b16 %v7923
    %v8068 = vunpack.c.l.b16 %v7924
    %v8069 = vunpack.c.h.b16 %v7924
    %v8070 = vunpack.c.l.b16 %v7925
    %v8071 = vunpack.c.h.b16 %v7925
    %v8072 = vunpack.c.l.b16 %v7926
    %v8073 = vunpack.c.h.b16 %v7926
    %v8074 = vunpack.c.l.b16 %v7927
    %v8075 = vunpack.c.h.b16 %v7927
    %v8076 = vunpack.c.l.b16 %v7928
    %v8077 = vunpack.c.h.b16 %v7928
    %v8078 = vunpack.c.l.b16 %v7929
    %v8079 = vunpack.c.h.b16 %v7929
    %v8080 = vunpack.c.l.b16 %v7930
    %v8081 = vunpack.c.h.b16 %v7930
    %v8082 = vunpack.c.l.b16 %v7931
    %v8083 = vunpack.c.h.b16 %v7931
    %v8084 = vunpack.c.l.b16 %v7932
    %v8085 = vunpack.c.h.b16 %v7932
    %v8086 = vunpack.c.l.b16 %v7933
    %v8087 = vunpack.c.h.b16 %v7933
    %v8088 = vunpack.c.l.b16 %v7934
    %v8089 = vunpack.c.h.b16 %v7934
    %v8090 = vunpack.c.l.b16 %v7935
    %v8091 = vunpack.c.h.b16 %v7935
    %v8092 = vunpack.c.l.b16 %v7936
    %v8093 = vunpack.c.h.b16 %v7936
    %v8094 = vunpack.c.l.b16 %v7937
    %v8095 = vunpack.c.h.b16 %v7937
    %v8096 = vunpack.c.l.b16 %v7938
    %v8097 = vunpack.c.h.b16 %v7938
    %v8098 = vunpack.c.l.b16 %v7939
    %v8099 = vunpack.c.h.b16 %v7939
    %v8100 = vunpack.c.l.b16 %v7940
    %v8101 = vunpack.c.h.b16 %v7940
    %v8102 = vunpack.c.l.b16 %v7941
    %v8103 = vunpack.c.h.b16 %v7941
    %v8104 = vunpack.c.l.b16 %v7942
    %v8105 = vunpack.c.h.b16 %v7942
    %v8106 = vunpack.c.l.b16 %v7943
    %v8107 = vunpack.c.h.b16 %v7943
    %v8108 = vunpack.c.l.b16 %v7944
    %v8109 = vunpack.c.h.b16 %v7944
    %v8110 = vunpack.c.l.b16 %v7945
    %v8111 = vunpack.c.h.b16 %v7945
    %v8112 = vunpack.c.l.b16 %v7946
    %v8113 = vunpack.c.h.b16 %v7946
    %v8114 = vunpack.c.l.b16 %v7947
    %v8115 = vunpack.c.h.b16 %v7947
    %v8116 = vunpack.c.l.b16 %v7948
    %v8117 = vunpack.c.h.b16 %v7948
    %v8118 = vunpack.c.l.b16 %v7949
    %v8119 = vunpack.c.h.b16 %v7949
    %v8120 = vunpack.c.l.b16 %v7950
    %v8121 = vunpack.c.h.b16 %v7950
    %v8122 = vunpack.c.l.b16 %v7951
    %v8123 = vunpack.c.h.b16 %v7951
    %v8124 = vunpack.c.l.b16 %v7952
    %v8125 = vunpack.c.h.b16 %v7952
    %v8126 = vunpack.c.l.b16 %v7953
    %v8127 = vunpack.c.h.b16 %v7953
    %v8128 = vunpack.c.l.b16 %v7954
    %v8129 = vunpack.c.h.b16 %v7954
    %v8130 = vunpack.c.l.b16 %v7955
    %v8131 = vunpack.c.h.b16 %v7955
    %v8132 = vunpack.c.l.b16 %v7956
    %v8133 = vunpack.c.h.b16 %v7956
    %v8134 = vunpack.c.l.b16 %v7957
    %v8135 = vunpack.c.h.b16 %v7957
    %v8136 = vunpack.c.l.b16 %v7958
    %v8137 = vunpack.c.h.b16 %v7958
    %v8138 = vunpack.c.l.b16 %v7959
    %v8139 = vunpack.c.h.b16 %v7959
    %v8140 = vunpack.c.l.b16 %v7960
    %v8141 = vunpack.c.h.b16 %v7960
    %v8142 = vunpack.c.l.b16 %v7961
    %v8143 = vunpack.c.h.b16 %v7961
    %v8144 = vunpack.c.l.b16 %v7962
    %v8145 = vunpack.c.h.b16 %v7962
    %v8146 = vunpack.c.l.b16 %v7963
    %v8147 = vunpack.c.h.b16 %v7963
    %v8148 = vunpack.c.l.b16 %v7964
    %v8149 = vunpack.c.h.b16 %v7964
    %v8150 = vunpack.c.l.b16 %v7965
    %v8151 = vunpack.c.h.b16 %v7965
    %v8152 = vunpack.c.l.b16 %v7966
    %v8153 = vunpack.c.h.b16 %v7966
    %v8154 = vunpack.c.l.b16 %v7967
    %v8155 = vunpack.c.h.b16 %v7967
    %v8156 = vunpack.c.l.b16 %v7968
    %v8157 = vunpack.c.h.b16 %v7968
    %v8158 = vunpack.c.l.b16 %v7969
    %v8159 = vunpack.c.h.b16 %v7969
    %v8160 = vunpack.c.l.b16 %v7970
    %v8161 = vunpack.c.h.b16 %v7970
    %v8162 = vunpack.c.l.b16 %v7971
    %v8163 = vunpack.c.h.b16 %v7971
    %v8164 = vunpack.c.l.b16 %v7972
    %v8165 = vunpack.c.h.b16 %v7972
    %v8166 = vunpack.c.l.b16 %v7973
    %v8167 = vunpack.c.h.b16 %v7973
    %v8168 = vunpack.c.l.b16 %v7974
    %v8169 = vunpack.c.h.b16 %v7974
    %v8170 = vunpack.c.l.b16 %v7975
    %v8171 = vunpack.c.h.b16 %v7975
    %v8172 = vunpack.c.l.b16 %v7976
    %v8173 = vunpack.c.h.b16 %v7976
    %v8174 = vunpack.c.l.b16 %v7977
    %v8175 = vunpack.c.h.b16 %v7977
    %v8176 = vunpack.c.l.b16 %v7978
    %v8177 = vunpack.c.h.b16 %v7978
    %v8178 = vunpack.c.l.b16 %v7979
    %v8179 = vunpack.c.h.b16 %v7979
    %v8180 = vunpack.c.l.b16 %v7980
    %v8181 = vunpack.c.h.b16 %v7980
    %v8182 = vunpack.c.l.b16 %v7981
    %v8183 = vunpack.c.h.b16 %v7981
    %v8184 = vunpack.c.l.b16 %v7982
    %v8185 = vunpack.c.h.b16 %v7982
    %v8186 = vunpack.c.l.b16 %v7983
    %v8187 = vunpack.c.h.b16 %v7983
    %v8188 = vpack.c.b16 %v8062, %v8060
    %v8189 = vpack.c.b16 %v8063, %v8061
    %v8190 = vpack.c.b16 %v8066, %v8064
    %v8191 = vpack.c.b16 %v8067, %v8065
    %v8192 = vpack.c.b16 %v8070, %v8068
    %v8193 = vpack.c.b16 %v8071, %v8069
    %v8194 = vpack.c.b16 %v8074, %v8072
    %v8195 = vpack.c.b16 %v8075, %v8073
    %v8196 = vpack.c.b16 %v8078, %v8076
    %v8197 = vpack.c.b16 %v8079, %v8077
    %v8198 = vpack.c.b16 %v8082, %v8080
    %v8199 = vpack.c.b16 %v8083, %v8081
    %v8200 = vpack.c.b16 %v8086, %v8084
    %v8201 = vpack.c.b16 %v8087, %v8085
    %v8202 = vpack.c.b16 %v8090, %v8088
    %v8203 = vpack.c.b16 %v8091, %v8089
    %v8204 = vpack.c.b16 %v8094, %v8092
    %v8205 = vpack.c.b16 %v8095, %v8093
    %v8206 = vpack.c.b16 %v8098, %v8096
    %v8207 = vpack.c.b16 %v8099, %v8097
    %v8208 = vpack.c.b16 %v8102, %v8100
    %v8209 = vpack.c.b16 %v8103, %v8101
    %v8210 = vpack.c.b16 %v8106, %v8104
    %v8211 = vpack.c.b16 %v8107, %v8105
    %v8212 = vpack.c.b16 %v8110, %v8108
    %v8213 = vpack.c.b16 %v8111, %v8109
    %v8214 = vpack.c.b16 %v8114, %v8112
    %v8215 = vpack.c.b16 %v8115, %v8113
    %v8216 = vpack.c.b16 %v8118, %v8116
    %v8217 = vpack.c.b16 %v8119, %v8117
    %v8218 = vpack.c.b16 %v8122, %v8120
    %v8219 = vpack.c.b16 %v8123, %v8121
    %v8220 = vpack.c.b16 %v8126, %v8124
    %v8221 = vpack.c.b16 %v8127, %v8125
    %v8222 = vpack.c.b16 %v8130, %v8128
    %v8223 = vpack.c.b16 %v8131, %v8129
    %v8224 = vpack.c.b16 %v8134, %v8132
    %v8225 = vpack.c.b16 %v8135, %v8133
    %v8226 = vpack.c.b16 %v8138, %v8136
    %v8227 = vpack.c.b16 %v8139, %v8137
    %v8228 = vpack.c.b16 %v8142, %v8140
    %v8229 = vpack.c.b16 %v8143, %v8141
    %v8230 = vpack.c.b16 %v8146, %v8144
    %v8231 = vpack.c.b16 %v8147, %v8145
    %v8232 = vpack.c.b16 %v8150, %v8148
    %v8233 = vpack.c.b16 %v8151, %v8149
    %v8234 = vpack.c.b16 %v8154, %v8152
    %v8235 = vpack.c.b16 %v8155, %v8153
    %v8236 = vpack.c.b16 %v8158, %v8156
    %v8237 = vpack.c.b16 %v8159, %v8157
    %v8238 = vpack.c.b16 %v8162, %v8160
    %v8239 = vpack.c.b16 %v8163, %v8161
    %v8240 = vpack.c.b16 %v8166, %v8164
    %v8241 = vpack.c.b16 %v8167, %v8165
    %v8242 = vpack.c.b16 %v8170, %v8168
    %v8243 = vpack.c.b16 %v8171, %v8169
    %v8244 = vpack.c.b16 %v8174, %v8172
    %v8245 = vpack.c.b16 %v8175, %v8173
    %v8246 = vpack.c.b16 %v8178, %v8176
    %v8247 = vpack.c.b16 %v8179, %v8177
    %v8248 = vpack.c.b16 %v8182, %v8180
    %v8249 = vpack.c.b16 %v8183, %v8181
    %v8250 = vpack.c.b16 %v8186, %v8184
    %v8251 = vpack.c.b16 %v8187, %v8185
    %8316 = vmatprep.subr.bf16.mxu0 %v8189
    %8317 = vmatpush1.bf16.msra.mxu0 %v8188
    %8318 = vmatprep.subr.bf16.mxu0 %v8191
    %8319 = vmatpush1.bf16.msra.mxu0 %v8190
    %8320 = vmatprep.subr.bf16.mxu0 %v8193
    %8321 = vmatpush1.bf16.msra.mxu0 %v8192
    %8322 = vmatprep.subr.bf16.mxu0 %v8195
    %8323 = vmatpush1.bf16.msra.mxu0 %v8194
    %8324 = vmatprep.subr.bf16.mxu0 %v8197
    %8325 = vmatpush1.bf16.msra.mxu0 %v8196
    %8326 = vmatprep.subr.bf16.mxu0 %v8199
    %8327 = vmatpush1.bf16.msra.mxu0 %v8198
    %8328 = vmatprep.subr.bf16.mxu0 %v8201
    %8329 = vmatpush1.bf16.msra.mxu0 %v8200
    %8330 = vmatprep.subr.bf16.mxu0 %v8203
    %8331 = vmatpush1.bf16.msra.mxu0 %v8202
    %8332 = vmatprep.subr.bf16.mxu0 %v8205
    %8333 = vmatpush1.bf16.msra.mxu0 %v8204
    %8334 = vmatprep.subr.bf16.mxu0 %v8207
    %8335 = vmatpush1.bf16.msra.mxu0 %v8206
    %8336 = vmatprep.subr.bf16.mxu0 %v8209
    %8337 = vmatpush1.bf16.msra.mxu0 %v8208
    %8338 = vmatprep.subr.bf16.mxu0 %v8211
    %8339 = vmatpush1.bf16.msra.mxu0 %v8210
    %8340 = vmatprep.subr.bf16.mxu0 %v8213
    %8341 = vmatpush1.bf16.msra.mxu0 %v8212
    %8342 = vmatprep.subr.bf16.mxu0 %v8215
    %8343 = vmatpush1.bf16.msra.mxu0 %v8214
    %8344 = vmatprep.subr.bf16.mxu0 %v8217
    %8345 = vmatpush1.bf16.msra.mxu0 %v8216
    %8346 = vmatprep.subr.bf16.mxu0 %v8219
    %8347 = vmatpush1.bf16.msra.mxu0 %v8218
    %8348 = vmatprep.mubr.bf16.mxu0 %v7917
    %8349 = vmatmul.mubr.bf16.gmra.mrb[0].mxu0 %v7916
    %v8350 = vpop.f32.mrb[0].mxu0
    %v8351 = vadd.f32 %v7989, %v8350
    %v8352 = vpop.f32.mrb[0].mxu0
    %v8353 = vadd.f32 %v7993, %v8352
    %v8354 = vpop.f32.mrb[0].mxu0
    %v8355 = vpop.f32.mrb[0].mxu0
    %8356 = vdwg.mxu0
    %8357 = vmatprep.subr.bf16.mxu0 %v8221
    %8358 = vmatpush1.bf16.msra.mxu0 %v8220
    %8359 = vmatprep.subr.bf16.mxu0 %v8223
    %8360 = vmatpush1.bf16.msra.mxu0 %v8222
    %8361 = vmatprep.subr.bf16.mxu0 %v8225
    %8362 = vmatpush1.bf16.msra.mxu0 %v8224
    %8363 = vmatprep.subr.bf16.mxu0 %v8227
    %8364 = vmatpush1.bf16.msra.mxu0 %v8226
    %8365 = vmatprep.subr.bf16.mxu0 %v8229
    %8366 = vmatpush1.bf16.msra.mxu0 %v8228
    %8367 = vmatprep.subr.bf16.mxu0 %v8231
    %8368 = vmatpush1.bf16.msra.mxu0 %v8230
    %8369 = vmatprep.subr.bf16.mxu0 %v8233
    %8370 = vmatpush1.bf16.msra.mxu0 %v8232
    %8371 = vmatprep.subr.bf16.mxu0 %v8235
    %8372 = vmatpush1.bf16.msra.mxu0 %v8234
    %8373 = vmatprep.subr.bf16.mxu0 %v8237
    %8374 = vmatpush1.bf16.msra.mxu0 %v8236
    %8375 = vmatprep.subr.bf16.mxu0 %v8239
    %8376 = vmatpush1.bf16.msra.mxu0 %v8238
    %8377 = vmatprep.subr.bf16.mxu0 %v8241
    %8378 = vmatpush1.bf16.msra.mxu0 %v8240
    %8379 = vmatprep.subr.bf16.mxu0 %v8243
    %8380 = vmatpush1.bf16.msra.mxu0 %v8242
    %8381 = vmatprep.subr.bf16.mxu0 %v8245
    %8382 = vmatpush1.bf16.msra.mxu0 %v8244
    %8383 = vmatprep.subr.bf16.mxu0 %v8247
    %8384 = vmatpush1.bf16.msra.mxu0 %v8246
    %8385 = vmatprep.subr.bf16.mxu0 %v8249
    %8386 = vmatpush1.bf16.msra.mxu0 %v8248
    %8387 = vmatprep.subr.bf16.mxu0 %v8251
    %8388 = vmatpush1.bf16.msra.mxu0 %v8250
    %8389 = vmatprep.mubr.bf16.mxu0 %v7919
    %8390 = vmatmul.mubr.bf16.gmra.mrb[0].mxu0 %v7918
    %v8391 = vpop.f32.mrb[0].mxu0
    %v8392 = vadd.f32 %v8351, %v8391
    %v8393 = vpop.f32.mrb[0].mxu0
    %v8394 = vadd.f32 %v8353, %v8393
    %v8395 = vpop.f32.mrb[0].mxu0
    %v8396 = vpop.f32.mrb[0].mxu0
    %8397 = vdwg.mxu0
    %vm8398 = vcmp.gt.f32.partialorder %v8392, 0.0
    %vm8399 = vcmp.gt.f32.partialorder %v8394, 0.0
    %v8400 = vmul.f32 %v8392, 0.1
    %v8401 = vmul.f32 %v8394, 0.1
    %v8402 = vsel %vm8398, %v8392, %v8400
    %v8403 = vsel %vm8399, %v8394, %v8401
    %v8404 = vpack.c.bf16 %v8402, %v8402
    %v8405 = vpack.c.bf16 %v8403, %v8403
    %v8406 = vld [vmem:[#allocation12] sm:$0xf]
    %v8407 = vld [vmem:[#allocation12 + $0x4] sm:$0xf]
    %v8408 = vld [vmem:[#allocation12 + $0x8] sm:$0xf]
    %v8409 = vld [vmem:[#allocation12 + $0xc] sm:$0xf]
    %v8410 = vld [vmem:[#allocation12 + $0x10] sm:$0xf]
    %v8411 = vld [vmem:[#allocation12 + $0x14] sm:$0xf]
    %v8412 = vld [vmem:[#allocation12 + $0x18] sm:$0xf]
    %v8413 = vld [vmem:[#allocation12 + $0x1c] sm:$0xf]
    %v8414 = vld [vmem:[#allocation12 + $0x20] sm:$0xf]
    %v8415 = vld [vmem:[#allocation12 + $0x24] sm:$0xf]
    %v8416 = vld [vmem:[#allocation12 + $0x28] sm:$0xf]
    %v8417 = vld [vmem:[#allocation12 + $0x2c] sm:$0xf]
    %v8418 = vld [vmem:[#allocation12 + $0x30] sm:$0xf]
    %v8419 = vld [vmem:[#allocation12 + $0x34] sm:$0xf]
    %v8420 = vld [vmem:[#allocation12 + $0x38] sm:$0xf]
    %v8421 = vld [vmem:[#allocation12 + $0x3c] sm:$0xf]
    %v8422 = vld [vmem:[#allocation12 + $0x40] sm:$0xf]
    %v8423 = vld [vmem:[#allocation12 + $0x44] sm:$0xf]
    %v8424 = vld [vmem:[#allocation12 + $0x48] sm:$0xf]
    %v8425 = vld [vmem:[#allocation12 + $0x4c] sm:$0xf]
    %v8426 = vld [vmem:[#allocation12 + $0x50] sm:$0xf]
    %v8427 = vld [vmem:[#allocation12 + $0x54] sm:$0xf]
    %v8428 = vld [vmem:[#allocation12 + $0x58] sm:$0xf]
    %v8429 = vld [vmem:[#allocation12 + $0x5c] sm:$0xf]
    %v8430 = vld [vmem:[#allocation12 + $0x60] sm:$0xf]
    %v8431 = vld [vmem:[#allocation12 + $0x64] sm:$0xf]
    %v8432 = vld [vmem:[#allocation12 + $0x68] sm:$0xf]
    %v8433 = vld [vmem:[#allocation12 + $0x6c] sm:$0xf]
    %v8434 = vld [vmem:[#allocation12 + $0x70] sm:$0xf]
    %v8435 = vld [vmem:[#allocation12 + $0x74] sm:$0xf]
    %v8436 = vld [vmem:[#allocation12 + $0x78] sm:$0xf]
    %v8437 = vld [vmem:[#allocation12 + $0x7c] sm:$0xf]
    %v8438 = vld [vmem:[#allocation13] sm:$0x1]
    %v8440 = vlaneseq
    %v8441 = vshrl.u32 %v8440, 7
    %v8442 = vsub.s32 0, %v8441
    %v8443 = vrot.slane %v8438, %v8442
    %v8477 = vunpack.c.l.b16 %v8406
    %v8478 = vunpack.c.l.b16 %v8407
    %v8479 = vunpack.c.l.b16 %v8408
    %v8480 = vunpack.c.l.b16 %v8409
    %v8481 = vunpack.c.l.b16 %v8410
    %v8482 = vunpack.c.l.b16 %v8411
    %v8483 = vunpack.c.l.b16 %v8412
    %v8484 = vunpack.c.l.b16 %v8413
    %v8485 = vunpack.c.l.b16 %v8414
    %v8486 = vunpack.c.l.b16 %v8415
    %v8487 = vunpack.c.l.b16 %v8416
    %v8488 = vunpack.c.l.b16 %v8417
    %v8489 = vunpack.c.l.b16 %v8418
    %v8490 = vunpack.c.l.b16 %v8419
    %v8491 = vunpack.c.l.b16 %v8420
    %v8492 = vunpack.c.l.b16 %v8421
    %v8493 = vunpack.c.l.b16 %v8422
    %v8494 = vunpack.c.l.b16 %v8423
    %v8495 = vunpack.c.l.b16 %v8424
    %v8496 = vunpack.c.l.b16 %v8425
    %v8497 = vunpack.c.l.b16 %v8426
    %v8498 = vunpack.c.l.b16 %v8427
    %v8499 = vunpack.c.l.b16 %v8428
    %v8500 = vunpack.c.l.b16 %v8429
    %v8501 = vunpack.c.l.b16 %v8430
    %v8502 = vunpack.c.l.b16 %v8431
    %v8503 = vunpack.c.l.b16 %v8432
    %v8504 = vunpack.c.l.b16 %v8433
    %v8505 = vunpack.c.l.b16 %v8434
    %v8506 = vunpack.c.l.b16 %v8435
    %v8507 = vunpack.c.l.b16 %v8436
    %v8508 = vunpack.c.l.b16 %v8437
    %v8509 = vpack.c.b16 %v8478, %v8477
    %v8510 = vpack.c.b16 %v8480, %v8479
    %v8511 = vpack.c.b16 %v8482, %v8481
    %v8512 = vpack.c.b16 %v8484, %v8483
    %v8513 = vpack.c.b16 %v8486, %v8485
    %v8514 = vpack.c.b16 %v8488, %v8487
    %v8515 = vpack.c.b16 %v8490, %v8489
    %v8516 = vpack.c.b16 %v8492, %v8491
    %v8517 = vpack.c.b16 %v8494, %v8493
    %v8518 = vpack.c.b16 %v8496, %v8495
    %v8519 = vpack.c.b16 %v8498, %v8497
    %v8520 = vpack.c.b16 %v8500, %v8499
    %v8521 = vpack.c.b16 %v8502, %v8501
    %v8522 = vpack.c.b16 %v8504, %v8503
    %v8523 = vpack.c.b16 %v8506, %v8505
    %v8524 = vpack.c.b16 %v8508, %v8507
    %8541 = vmatprep.subr.bf16.mxu0 0
    %8542 = vmatpush1.bf16.msra.mxu0 %v8509
    %8543 = vmatprep.subr.bf16.mxu0 0
    %8544 = vmatpush1.bf16.msra.mxu0 %v8510
    %8545 = vmatprep.subr.bf16.mxu0 0
    %8546 = vmatpush1.bf16.msra.mxu0 %v8511
    %8547 = vmatprep.subr.bf16.mxu0 0
    %8548 = vmatpush1.bf16.msra.mxu0 %v8512
    %8549 = vmatprep.subr.bf16.mxu0 0
    %8550 = vmatpush1.bf16.msra.mxu0 %v8513
    %8551 = vmatprep.subr.bf16.mxu0 0
    %8552 = vmatpush1.bf16.msra.mxu0 %v8514
    %8553 = vmatprep.subr.bf16.mxu0 0
    %8554 = vmatpush1.bf16.msra.mxu0 %v8515
    %8555 = vmatprep.subr.bf16.mxu0 0
    %8556 = vmatpush1.bf16.msra.mxu0 %v8516
    %8557 = vmatprep.subr.bf16.mxu0 0
    %8558 = vmatpush1.bf16.msra.mxu0 %v8517
    %8559 = vmatprep.subr.bf16.mxu0 0
    %8560 = vmatpush1.bf16.msra.mxu0 %v8518
    %8561 = vmatprep.subr.bf16.mxu0 0
    %8562 = vmatpush1.bf16.msra.mxu0 %v8519
    %8563 = vmatprep.subr.bf16.mxu0 0
    %8564 = vmatpush1.bf16.msra.mxu0 %v8520
    %8565 = vmatprep.subr.bf16.mxu0 0
    %8566 = vmatpush1.bf16.msra.mxu0 %v8521
    %8567 = vmatprep.subr.bf16.mxu0 0
    %8568 = vmatpush1.bf16.msra.mxu0 %v8522
    %8569 = vmatprep.subr.bf16.mxu0 0
    %8570 = vmatpush1.bf16.msra.mxu0 %v8523
    %8571 = vmatprep.subr.bf16.mxu0 0
    %8572 = vmatpush1.bf16.msra.mxu0 %v8524
    %8573 = vmatprep.mubr.bf16.mxu0 %v8405
    %8574 = vmatmul.mubr.bf16.gmra.mrb[0].mxu0 %v8404
    %v8575 = vpop.f32.mrb[0].mxu0
    %v8576 = vadd.f32 %v8443, %v8575
    %v8577 = vpop.f32.mrb[0].mxu0
    %v8578 = vpop.f32.mrb[0].mxu0
    %v8579 = vpop.f32.mrb[0].mxu0
    %8580 = vdwg.mxu0
    %v8581 = vld [vmem:[#allocation15] sm:$0xff]
    %v8582 = vld [vmem:[#allocation15 + $0x8] sm:$0xff]
    %v8583 = vld [vmem:[#allocation15 + $0x10] sm:$0xff]
    %v8584 = vld [vmem:[#allocation15 + $0x18] sm:$0xff]
    %v8585 = vld [vmem:[#allocation15 + $0x20] sm:$0xff]
    %v8586 = vld [vmem:[#allocation15 + $0x28] sm:$0xff]
    %v8587 = vld [vmem:[#allocation15 + $0x30] sm:$0xff]
    %v8588 = vld [vmem:[#allocation15 + $0x38] sm:$0xff]
    %v8589 = vld [vmem:[#allocation15 + $0x40] sm:$0xff]
    %v8590 = vld [vmem:[#allocation15 + $0x48] sm:$0xff]
    %v8591 = vld [vmem:[#allocation15 + $0x50] sm:$0xff]
    %v8592 = vld [vmem:[#allocation15 + $0x58] sm:$0xff]
    %v8593 = vld [vmem:[#allocation15 + $0x60] sm:$0xff]
    %v8594 = vld [vmem:[#allocation15 + $0x68] sm:$0xff]
    %v8595 = vld [vmem:[#allocation15 + $0x70] sm:$0xff]
    %v8596 = vld [vmem:[#allocation15 + $0x78] sm:$0xff]
    %v8597 = vld [vmem:[#allocation16] sm:$0x1]
    %v8599 = vlaneseq
    %v8600 = vshrl.u32 %v8599, 7
    %v8601 = vsub.s32 0, %v8600
    %v8602 = vrot.slane %v8597, %v8601
    %8604 = vmatprep.subr.mxu0 0.0
    %8605 = vmatpush1.msra.mxu0 %v8581
    %8606 = vmatprep.subr.mxu0 0.0
    %8607 = vmatpush1.msra.mxu0 %v8582
    %8608 = vmatprep.subr.mxu0 0.0
    %8609 = vmatpush1.msra.mxu0 %v8583
    %8610 = vmatprep.subr.mxu0 0.0
    %8611 = vmatpush1.msra.mxu0 %v8584
    %8612 = vmatprep.subr.mxu0 0.0
    %8613 = vmatpush1.msra.mxu0 %v8585
    %8614 = vmatprep.subr.mxu0 0.0
    %8615 = vmatpush1.msra.mxu0 %v8586
    %8616 = vmatprep.subr.mxu0 0.0
    %8617 = vmatpush1.msra.mxu0 %v8587
    %8618 = vmatprep.subr.mxu0 0.0
    %8619 = vmatpush1.msra.mxu0 %v8588
    %8620 = vmatprep.subr.mxu0 0.0
    %8621 = vmatpush1.msra.mxu0 %v8589
    %8622 = vmatprep.subr.mxu0 0.0
    %8623 = vmatpush1.msra.mxu0 %v8590
    %8624 = vmatprep.subr.mxu0 0.0
    %8625 = vmatpush1.msra.mxu0 %v8591
    %8626 = vmatprep.subr.mxu0 0.0
    %8627 = vmatpush1.msra.mxu0 %v8592
    %8628 = vmatprep.subr.mxu0 0.0
    %8629 = vmatpush1.msra.mxu0 %v8593
    %8630 = vmatprep.subr.mxu0 0.0
    %8631 = vmatpush1.msra.mxu0 %v8594
    %8632 = vmatprep.subr.mxu0 0.0
    %8633 = vmatpush1.msra.mxu0 %v8595
    %8634 = vmatprep.subr.mxu0 0.0
    %8635 = vmatpush1.msra.mxu0 %v8596
    %8636 = vmatprep.subr.mxu0 0.0
    %8637 = vmatpush1.msra.mxu0 0.0
    %8638 = vmatprep.subr.mxu0 0.0
    %8639 = vmatpush1.msra.mxu0 0.0
    %8640 = vmatprep.subr.mxu0 0.0
    %8641 = vmatpush1.msra.mxu0 0.0
    %8642 = vmatprep.subr.mxu0 0.0
    %8643 = vmatpush1.msra.mxu0 0.0
    %8644 = vmatprep.subr.mxu0 0.0
    %8645 = vmatpush1.msra.mxu0 0.0
    %8646 = vmatprep.subr.mxu0 0.0
    %8647 = vmatpush1.msra.mxu0 0.0
    %8648 = vmatprep.subr.mxu0 0.0
    %8649 = vmatpush1.msra.mxu0 0.0
    %8650 = vmatprep.subr.mxu0 0.0
    %8651 = vmatpush1.msra.mxu0 0.0
    %8652 = vmatprep.subr.mxu0 0.0
    %8653 = vmatpush1.msra.mxu0 0.0
    %8654 = vmatprep.subr.mxu0 0.0
    %8655 = vmatpush1.msra.mxu0 0.0
    %8656 = vmatprep.subr.mxu0 0.0
    %8657 = vmatpush1.msra.mxu0 0.0
    %8658 = vmatprep.subr.mxu0 0.0
    %8659 = vmatpush1.msra.mxu0 0.0
    %8660 = vmatprep.subr.mxu0 0.0
    %8661 = vmatpush1.msra.mxu0 0.0
    %8662 = vmatprep.subr.mxu0 0.0
    %8663 = vmatpush1.msra.mxu0 0.0
    %8664 = vmatprep.subr.mxu0 0.0
    %8665 = vmatpush1.msra.mxu0 0.0
    %8666 = vmatprep.subr.mxu0 0.0
    %8667 = vmatpush1.msra.mxu0 0.0
    %8668 = vmatprep.mubr.f32.mxu0 0.0
    %8669 = vmatmul.mubr.f32.gmra.mrb[0].mxu0 %v8576
    %v8670 = vpop.f32.mrb[0].mxu0
    %v8671 = vadd.f32 %v8602, %v8670
    %v8672 = vpop.f32.mrb[0].mxu0
    %8673 = vdwg.mxu0
    %v8674 = vld [vmem:[%s19] sm:$0x3]
    %s8675 = scalar_lea.vmem %s19, 2
    %v8676 = vld [vmem:[%s8675] sm:$0x3]
    %v8677 = vld [vmem:[%s20] sm:$0x3]
    %s8678 = scalar_lea.vmem %s20, 2
    %v8679 = vld [vmem:[%s8678] sm:$0x3]
    %v8680 = vld [vmem:[#allocation18] sm:$0xff]
    %v8681 = vld [vmem:[#allocation18 + $0x8] sm:$0xff]
    %v8682 = vld [vmem:[#allocation18 + $0x10] sm:$0xff]
    %v8683 = vld [vmem:[#allocation18 + $0x18] sm:$0xff]
    %vm8684 = vcmask 261120
    %v8686 = vsel %vm8684, %v8674, 0
    %8688 = vmatprep.subr.mxu0 0.0
    %8689 = vmatpush1.msra.mxu0 %v8680
    %8690 = vmatprep.subr.mxu0 0.0
    %8691 = vmatpush1.msra.mxu0 %v8681
    %8692 = vmatprep.subr.mxu0 0.0
    %8693 = vmatpush1.msra.mxu0 %v8682
    %8694 = vmatprep.subr.mxu0 0.0
    %8695 = vmatpush1.msra.mxu0 %v8683
    %8696 = vmatprep.subr.mxu0 0.0
    %8697 = vmatpush1.msra.mxu0 0.0
    %8698 = vmatprep.subr.mxu0 0.0
    %8699 = vmatpush1.msra.mxu0 0.0
    %8700 = vmatprep.subr.mxu0 0.0
    %8701 = vmatpush1.msra.mxu0 0.0
    %8702 = vmatprep.subr.mxu0 0.0
    %8703 = vmatpush1.msra.mxu0 0.0
    %8704 = vmatprep.subr.mxu0 0.0
    %8705 = vmatpush1.msra.mxu0 0.0
    %8706 = vmatprep.subr.mxu0 0.0
    %8707 = vmatpush1.msra.mxu0 0.0
    %8708 = vmatprep.subr.mxu0 0.0
    %8709 = vmatpush1.msra.mxu0 0.0
    %8710 = vmatprep.subr.mxu0 0.0
    %8711 = vmatpush1.msra.mxu0 0.0
    %8712 = vmatprep.subr.mxu0 0.0
    %8713 = vmatpush1.msra.mxu0 0.0
    %8714 = vmatprep.subr.mxu0 0.0
    %8715 = vmatpush1.msra.mxu0 0.0
    %8716 = vmatprep.subr.mxu0 0.0
    %8717 = vmatpush1.msra.mxu0 0.0
    %8718 = vmatprep.subr.mxu0 0.0
    %8719 = vmatpush1.msra.mxu0 0.0
    %8720 = vmatprep.subr.mxu0 0.0
    %8721 = vmatpush1.msra.mxu0 0.0
    %8722 = vmatprep.subr.mxu0 0.0
    %8723 = vmatpush1.msra.mxu0 0.0
    %8724 = vmatprep.subr.mxu0 0.0
    %8725 = vmatpush1.msra.mxu0 0.0
    %8726 = vmatprep.subr.mxu0 0.0
    %8727 = vmatpush1.msra.mxu0 0.0
    %8728 = vmatprep.subr.mxu0 0.0
    %8729 = vmatpush1.msra.mxu0 0.0
    %8730 = vmatprep.subr.mxu0 0.0
    %8731 = vmatpush1.msra.mxu0 0.0
    %8732 = vmatprep.subr.mxu0 0.0
    %8733 = vmatpush1.msra.mxu0 0.0
    %8734 = vmatprep.subr.mxu0 0.0
    %8735 = vmatpush1.msra.mxu0 0.0
    %8736 = vmatprep.subr.mxu0 0.0
    %8737 = vmatpush1.msra.mxu0 0.0
    %8738 = vmatprep.subr.mxu0 0.0
    %8739 = vmatpush1.msra.mxu0 0.0
    %8740 = vmatprep.subr.mxu0 0.0
    %8741 = vmatpush1.msra.mxu0 0.0
    %8742 = vmatprep.subr.mxu0 0.0
    %8743 = vmatpush1.msra.mxu0 0.0
    %8744 = vmatprep.subr.mxu0 0.0
    %8745 = vmatpush1.msra.mxu0 0.0
    %8746 = vmatprep.subr.mxu0 0.0
    %8747 = vmatpush1.msra.mxu0 0.0
    %8748 = vmatprep.subr.mxu0 0.0
    %8749 = vmatpush1.msra.mxu0 0.0
    %8750 = vmatprep.subr.mxu0 0.0
    %8751 = vmatpush1.msra.mxu0 0.0
    %8752 = vmatprep.mubr.f32.mxu0 0.0
    %8753 = vmatmul.mubr.f32.gmra.mrb[0].mxu0 %v8686
    %v8754 = vpop.f32.mrb[0].mxu0
    %v8755 = vadd.f32 0.0, %v8754
    %v8756 = vpop.f32.mrb[0].mxu0
    %8757 = vdwg.mxu0
    %v8758 = vadd.f32 %v8671, %v8755
    %v8759 = vxor.u32 %v8758, 2147483648
    %v8760 = vmul.f32 %v8759, 1.442695
    %v8761 = vpow.pop %v8760
    %v8762 = vadd.f32 %v8761, 1.0
    %v8763 = vrcp.pop %v8762
    %v8764 = vmul.f32 1.0, %v8763
    %v8765 = vtanh.pop %v8758
    %8767 = vrot.lane.b32.xlu0 %v8677, 32
    %v8768 = vpop.permute.xlu0 %8767
    %v8770 = vmul.f32 %v8764, %v8768
    %8772 = vrot.lane.b32.xlu0 %v8765, 64
    %v8773 = vpop.permute.xlu0 %8772
    %v8775 = vmul.f32 %v8764, %v8773
    %8777 = vrot.lane.b32.xlu0 %v8775, 32
    %v8778 = vpop.permute.xlu0 %8777
    %v8780 = vadd.f32 %v8770, %v8778
    %v8781 = vtanh.pop %v8780
    %8783 = vrot.lane.b32.xlu0 %v8781, 64
    %v8784 = vpop.permute.xlu0 %8783
    %v8786 = vmul.f32 %v8764, %v8784
    %v8787 = vld [vmem:[#allocation19] sm:$0xff]
    %v8788 = vld [vmem:[#allocation19 + $0x8] sm:$0xff]
    %v8789 = vld [vmem:[#allocation19 + $0x10] sm:$0xff]
    %v8790 = vld [vmem:[#allocation19 + $0x18] sm:$0xff]
    %v8791 = vld [vmem:[#allocation21] sm:$0xff]
    %v8792 = vld [vmem:[#allocation21 + $0x8] sm:$0xff]
    %v8793 = vld [vmem:[#allocation21 + $0x10] sm:$0xff]
    %v8794 = vld [vmem:[#allocation21 + $0x18] sm:$0xff]
    %v8796 = vsel %vm8684, %v8676, 0
    %8798 = vmatprep.subr.mxu0 0.0
    %8799 = vmatpush1.msra.mxu0 %v8791
    %8800 = vmatprep.subr.mxu0 0.0
    %8801 = vmatpush1.msra.mxu0 %v8792
    %8802 = vmatprep.subr.mxu0 0.0
    %8803 = vmatpush1.msra.mxu0 %v8793
    %8804 = vmatprep.subr.mxu0 0.0
    %8805 = vmatpush1.msra.mxu0 %v8794
    %8806 = vmatprep.subr.mxu0 0.0
    %8807 = vmatpush1.msra.mxu0 0.0
    %8808 = vmatprep.subr.mxu0 0.0
    %8809 = vmatpush1.msra.mxu0 0.0
    %8810 = vmatprep.subr.mxu0 0.0
    %8811 = vmatpush1.msra.mxu0 0.0
    %8812 = vmatprep.subr.mxu0 0.0
    %8813 = vmatpush1.msra.mxu0 0.0
    %8814 = vmatprep.subr.mxu0 0.0
    %8815 = vmatpush1.msra.mxu0 0.0
    %8816 = vmatprep.subr.mxu0 0.0
    %8817 = vmatpush1.msra.mxu0 0.0
    %8818 = vmatprep.subr.mxu0 0.0
    %8819 = vmatpush1.msra.mxu0 0.0
    %8820 = vmatprep.subr.mxu0 0.0
    %8821 = vmatpush1.msra.mxu0 0.0
    %8822 = vmatprep.subr.mxu0 0.0
    %8823 = vmatpush1.msra.mxu0 0.0
    %8824 = vmatprep.subr.mxu0 0.0
    %8825 = vmatpush1.msra.mxu0 0.0
    %8826 = vmatprep.subr.mxu0 0.0
    %8827 = vmatpush1.msra.mxu0 0.0
    %8828 = vmatprep.subr.mxu0 0.0
    %8829 = vmatpush1.msra.mxu0 0.0
    %8830 = vmatprep.subr.mxu0 0.0
    %8831 = vmatpush1.msra.mxu0 0.0
    %8832 = vmatprep.subr.mxu0 0.0
    %8833 = vmatpush1.msra.mxu0 0.0
    %8834 = vmatprep.subr.mxu0 0.0
    %8835 = vmatpush1.msra.mxu0 0.0
    %8836 = vmatprep.subr.mxu0 0.0
    %8837 = vmatpush1.msra.mxu0 0.0
    %8838 = vmatprep.subr.mxu0 0.0
    %8839 = vmatpush1.msra.mxu0 0.0
    %8840 = vmatprep.subr.mxu0 0.0
    %8841 = vmatpush1.msra.mxu0 0.0
    %8842 = vmatprep.subr.mxu0 0.0
    %8843 = vmatpush1.msra.mxu0 0.0
    %8844 = vmatprep.subr.mxu0 0.0
    %8845 = vmatpush1.msra.mxu0 0.0
    %8846 = vmatprep.subr.mxu0 0.0
    %8847 = vmatpush1.msra.mxu0 0.0
    %8848 = vmatprep.subr.mxu0 0.0
    %8849 = vmatpush1.msra.mxu0 0.0
    %8850 = vmatprep.subr.mxu0 0.0
    %8851 = vmatpush1.msra.mxu0 0.0
    %8852 = vmatprep.subr.mxu0 0.0
    %8853 = vmatpush1.msra.mxu0 0.0
    %8854 = vmatprep.subr.mxu0 0.0
    %8855 = vmatpush1.msra.mxu0 0.0
    %8856 = vmatprep.subr.mxu0 0.0
    %8857 = vmatpush1.msra.mxu0 0.0
    %8858 = vmatprep.subr.mxu0 0.0
    %8859 = vmatpush1.msra.mxu0 0.0
    %8860 = vmatprep.subr.mxu0 0.0
    %8861 = vmatpush1.msra.mxu0 0.0
    %8862 = vmatprep.mubr.f32.mxu0 0.0
    %8863 = vmatmul.mubr.f32.gmra.mrb[0].mxu0 %v8796
    %v8864 = vpop.f32.mrb[0].mxu0
    %v8865 = vadd.f32 0.0, %v8864
    %v8866 = vpop.f32.mrb[0].mxu0
    %8867 = vdwg.mxu0
    %8869 = vrot.lane.b32.xlu0 %v8786, 32
    %v8870 = vpop.permute.xlu0 %8869
    %v8871 = vsel %vm8684, %v8870, 0
    %8873 = vmatprep.subr.mxu0 0.0
    %8874 = vmatpush1.msra.mxu0 %v8787
    %8875 = vmatprep.subr.mxu0 0.0
    %8876 = vmatpush1.msra.mxu0 %v8788
    %8877 = vmatprep.subr.mxu0 0.0
    %8878 = vmatpush1.msra.mxu0 %v8789
    %8879 = vmatprep.subr.mxu0 0.0
    %8880 = vmatpush1.msra.mxu0 %v8790
    %8881 = vmatprep.subr.mxu0 0.0
    %8882 = vmatpush1.msra.mxu0 0.0
    %8883 = vmatprep.subr.mxu0 0.0
    %8884 = vmatpush1.msra.mxu0 0.0
    %8885 = vmatprep.subr.mxu0 0.0
    %8886 = vmatpush1.msra.mxu0 0.0
    %8887 = vmatprep.subr.mxu0 0.0
    %8888 = vmatpush1.msra.mxu0 0.0
    %8889 = vmatprep.subr.mxu0 0.0
    %8890 = vmatpush1.msra.mxu0 0.0
    %8891 = vmatprep.subr.mxu0 0.0
    %8892 = vmatpush1.msra.mxu0 0.0
    %8893 = vmatprep.subr.mxu0 0.0
    %8894 = vmatpush1.msra.mxu0 0.0
    %8895 = vmatprep.subr.mxu0 0.0
    %8896 = vmatpush1.msra.mxu0 0.0
    %8897 = vmatprep.subr.mxu0 0.0
    %8898 = vmatpush1.msra.mxu0 0.0
    %8899 = vmatprep.subr.mxu0 0.0
    %8900 = vmatpush1.msra.mxu0 0.0
    %8901 = vmatprep.subr.mxu0 0.0
    %8902 = vmatpush1.msra.mxu0 0.0
    %8903 = vmatprep.subr.mxu0 0.0
    %8904 = vmatpush1.msra.mxu0 0.0
    %8905 = vmatprep.subr.mxu0 0.0
    %8906 = vmatpush1.msra.mxu0 0.0
    %8907 = vmatprep.subr.mxu0 0.0
    %8908 = vmatpush1.msra.mxu0 0.0
    %8909 = vmatprep.subr.mxu0 0.0
    %8910 = vmatpush1.msra.mxu0 0.0
    %8911 = vmatprep.subr.mxu0 0.0
    %8912 = vmatpush1.msra.mxu0 0.0
    %8913 = vmatprep.subr.mxu0 0.0
    %8914 = vmatpush1.msra.mxu0 0.0
    %8915 = vmatprep.subr.mxu0 0.0
    %8916 = vmatpush1.msra.mxu0 0.0
    %8917 = vmatprep.subr.mxu0 0.0
    %8918 = vmatpush1.msra.mxu0 0.0
    %8919 = vmatprep.subr.mxu0 0.0
    %8920 = vmatpush1.msra.mxu0 0.0
    %8921 = vmatprep.subr.mxu0 0.0
    %8922 = vmatpush1.msra.mxu0 0.0
    %8923 = vmatprep.subr.mxu0 0.0
    %8924 = vmatpush1.msra.mxu0 0.0
    %8925 = vmatprep.subr.mxu0 0.0
    %8926 = vmatpush1.msra.mxu0 0.0
    %8927 = vmatprep.subr.mxu0 0.0
    %8928 = vmatpush1.msra.mxu0 0.0
    %8929 = vmatprep.subr.mxu0 0.0
    %8930 = vmatpush1.msra.mxu0 0.0
    %8931 = vmatprep.subr.mxu0 0.0
    %8932 = vmatpush1.msra.mxu0 0.0
    %8933 = vmatprep.subr.mxu0 0.0
    %8934 = vmatpush1.msra.mxu0 0.0
    %8935 = vmatprep.subr.mxu0 0.0
    %8936 = vmatpush1.msra.mxu0 0.0
    %8937 = vmatprep.mubr.f32.mxu0 0.0
    %8938 = vmatmul.mubr.f32.gmra.mrb[0].mxu0 %v8871
    %v8939 = vpop.f32.mrb[0].mxu0
    %v8940 = vadd.f32 %v8865, %v8939
    %v8941 = vpop.f32.mrb[0].mxu0
    %8942 = vdwg.mxu0
    %v8943 = vld [vmem:[#allocation22] sm:$0x1]
    %v8945 = vlaneseq
    %v8946 = vshrl.u32 %v8945, 7
    %v8947 = vsub.s32 0, %v8946
    %v8948 = vrot.slane %v8943, %v8947
    %v8950 = vadd.f32 %v8940, %v8948
    %v8951 = vxor.u32 %v8950, 2147483648
    %v8952 = vmul.f32 %v8951, 1.442695
    %v8953 = vpow.pop %v8952
    %v8954 = vadd.f32 %v8953, 1.0
    %v8955 = vrcp.pop %v8954
    %v8956 = vmul.f32 1.0, %v8955
    %v8957 = vtanh.pop %v8950
    %8959 = vrot.lane.b32.xlu0 %v8679, 32
    %v8960 = vpop.permute.xlu0 %8959
    %v8962 = vmul.f32 %v8956, %v8960
    %8964 = vrot.lane.b32.xlu0 %v8957, 64
    %v8965 = vpop.permute.xlu0 %8964
    %v8967 = vmul.f32 %v8956, %v8965
    %8969 = vrot.lane.b32.xlu0 %v8967, 32
    %v8970 = vpop.permute.xlu0 %8969
    %v8972 = vadd.f32 %v8962, %v8970
    %v8973 = vtanh.pop %v8972
    %8975 = vrot.lane.b32.xlu0 %v8973, 64
    %v8976 = vpop.permute.xlu0 %8975
    %v8978 = vmul.f32 %v8956, %v8976
    %v8979 = vld [vmem:[#allocation24] sm:$0xff]
    %v8980 = vld [vmem:[#allocation24 + $0x8] sm:$0xff]
    %v8981 = vld [vmem:[#allocation24 + $0x10] sm:$0xff]
    %v8982 = vld [vmem:[#allocation24 + $0x18] sm:$0xff]
    %v8983 = vld [vmem:[#allocation25] sm:$0x1]
    %v8985 = vlaneseq
    %v8986 = vshrl.u32 %v8985, 7
    %v8987 = vsub.s32 0, %v8986
    %v8988 = vrot.slane %v8983, %v8987
    %8991 = vrot.lane.b32.xlu0 %v8978, 32
    %v8992 = vpop.permute.xlu0 %8991
    %v8993 = vsel %vm8684, %v8992, 0
    %8995 = vmatprep.subr.mxu0 0.0
    %8996 = vmatpush1.msra.mxu0 %v8979
    %8997 = vmatprep.subr.mxu0 0.0
    %8998 = vmatpush1.msra.mxu0 %v8980
    %8999 = vmatprep.subr.mxu0 0.0
    %9000 = vmatpush1.msra.mxu0 %v8981
    %9001 = vmatprep.subr.mxu0 0.0
    %9002 = vmatpush1.msra.mxu0 %v8982
    %9003 = vmatprep.subr.mxu0 0.0
    %9004 = vmatpush1.msra.mxu0 0.0
    %9005 = vmatprep.subr.mxu0 0.0
    %9006 = vmatpush1.msra.mxu0 0.0
    %9007 = vmatprep.subr.mxu0 0.0
    %9008 = vmatpush1.msra.mxu0 0.0
    %9009 = vmatprep.subr.mxu0 0.0
    %9010 = vmatpush1.msra.mxu0 0.0
    %9011 = vmatprep.subr.mxu0 0.0
    %9012 = vmatpush1.msra.mxu0 0.0
    %9013 = vmatprep.subr.mxu0 0.0
    %9014 = vmatpush1.msra.mxu0 0.0
    %9015 = vmatprep.subr.mxu0 0.0
    %9016 = vmatpush1.msra.mxu0 0.0
    %9017 = vmatprep.subr.mxu0 0.0
    %9018 = vmatpush1.msra.mxu0 0.0
    %9019 = vmatprep.subr.mxu0 0.0
    %9020 = vmatpush1.msra.mxu0 0.0
    %9021 = vmatprep.subr.mxu0 0.0
    %9022 = vmatpush1.msra.mxu0 0.0
    %9023 = vmatprep.subr.mxu0 0.0
    %9024 = vmatpush1.msra.mxu0 0.0
    %9025 = vmatprep.subr.mxu0 0.0
    %9026 = vmatpush1.msra.mxu0 0.0
    %9027 = vmatprep.subr.mxu0 0.0
    %9028 = vmatpush1.msra.mxu0 0.0
    %9029 = vmatprep.subr.mxu0 0.0
    %9030 = vmatpush1.msra.mxu0 0.0
    %9031 = vmatprep.subr.mxu0 0.0
    %9032 = vmatpush1.msra.mxu0 0.0
    %9033 = vmatprep.subr.mxu0 0.0
    %9034 = vmatpush1.msra.mxu0 0.0
    %9035 = vmatprep.subr.mxu0 0.0
    %9036 = vmatpush1.msra.mxu0 0.0
    %9037 = vmatprep.subr.mxu0 0.0
    %9038 = vmatpush1.msra.mxu0 0.0
    %9039 = vmatprep.subr.mxu0 0.0
    %9040 = vmatpush1.msra.mxu0 0.0
    %9041 = vmatprep.subr.mxu0 0.0
    %9042 = vmatpush1.msra.mxu0 0.0
    %9043 = vmatprep.subr.mxu0 0.0
    %9044 = vmatpush1.msra.mxu0 0.0
    %9045 = vmatprep.subr.mxu0 0.0
    %9046 = vmatpush1.msra.mxu0 0.0
    %9047 = vmatprep.subr.mxu0 0.0
    %9048 = vmatpush1.msra.mxu0 0.0
    %9049 = vmatprep.subr.mxu0 0.0
    %9050 = vmatpush1.msra.mxu0 0.0
    %9051 = vmatprep.subr.mxu0 0.0
    %9052 = vmatpush1.msra.mxu0 0.0
    %9053 = vmatprep.subr.mxu0 0.0
    %9054 = vmatpush1.msra.mxu0 0.0
    %9055 = vmatprep.subr.mxu0 0.0
    %9056 = vmatpush1.msra.mxu0 0.0
    %9057 = vmatprep.subr.mxu0 0.0
    %9058 = vmatpush1.msra.mxu0 0.0
    %9059 = vmatprep.mubr.f32.mxu0 0.0
    %9060 = vmatmul.mubr.f32.gmra.mrb[0].mxu0 %v8993
    %v9061 = vpop.f32.mrb[0].mxu0
    %v9062 = vadd.f32 %v8988, %v9061
    %v9063 = vpop.f32.mrb[0].mxu0
    %9064 = vdwg.mxu0
    %vm9065 = vcmp.gt.f32.partialorder %v9062, 0.0
    %v9066 = vmul.f32 %v9062, 0.1
    %v9067 = vsel %vm9065, %v9062, %v9066
    %v9068 = vld [vmem:[%s17] sm:$0xff]
    %v9069 = vld [vmem:[%s17 + $0x8] sm:$0xff]
    %v9070 = vld [vmem:[%s17 + $0x10] sm:$0xff]
    %v9071 = vld [vmem:[%s17 + $0x18] sm:$0xff]
    %v9072 = vld [vmem:[%s17 + $0x20] sm:$0xff]
    %v9073 = vld [vmem:[%s17 + $0x28] sm:$0xff]
    %v9074 = vld [vmem:[%s17 + $0x30] sm:$0xff]
    %v9075 = vld [vmem:[%s17 + $0x38] sm:$0xff]
    %v9076 = vld [vmem:[%s17 + $0x40] sm:$0xff]
    %v9077 = vld [vmem:[%s17 + $0x48] sm:$0xff]
    %v9078 = vld [vmem:[%s17 + $0x50] sm:$0xff]
    %v9079 = vld [vmem:[%s17 + $0x58] sm:$0xff]
    %v9080 = vld [vmem:[%s17 + $0x60] sm:$0xff]
    %v9081 = vld [vmem:[%s17 + $0x68] sm:$0xff]
    %v9082 = vld [vmem:[%s17 + $0x70] sm:$0xff]
    %v9083 = vld [vmem:[%s17 + $0x78] sm:$0xff]
    %v9084 = vld [vmem:[#allocation27] sm:$0x1]
    %v9086 = vlaneseq
    %v9087 = vshrl.u32 %v9086, 7
    %v9088 = vsub.s32 0, %v9087
    %v9089 = vrot.slane %v9084, %v9088
    %9091 = vmatprep.subr.mxu0 0.0
    %9092 = vmatpush1.msra.mxu0 %v9068
    %9093 = vmatprep.subr.mxu0 0.0
    %9094 = vmatpush1.msra.mxu0 %v9069
    %9095 = vmatprep.subr.mxu0 0.0
    %9096 = vmatpush1.msra.mxu0 %v9070
    %9097 = vmatprep.subr.mxu0 0.0
    %9098 = vmatpush1.msra.mxu0 %v9071
    %9099 = vmatprep.subr.mxu0 0.0
    %9100 = vmatpush1.msra.mxu0 %v9072
    %9101 = vmatprep.subr.mxu0 0.0
    %9102 = vmatpush1.msra.mxu0 %v9073
    %9103 = vmatprep.subr.mxu0 0.0
    %9104 = vmatpush1.msra.mxu0 %v9074
    %9105 = vmatprep.subr.mxu0 0.0
    %9106 = vmatpush1.msra.mxu0 %v9075
    %9107 = vmatprep.subr.mxu0 0.0
    %9108 = vmatpush1.msra.mxu0 %v9076
    %9109 = vmatprep.subr.mxu0 0.0
    %9110 = vmatpush1.msra.mxu0 %v9077
    %9111 = vmatprep.subr.mxu0 0.0
    %9112 = vmatpush1.msra.mxu0 %v9078
    %9113 = vmatprep.subr.mxu0 0.0
    %9114 = vmatpush1.msra.mxu0 %v9079
    %9115 = vmatprep.subr.mxu0 0.0
    %9116 = vmatpush1.msra.mxu0 %v9080
    %9117 = vmatprep.subr.mxu0 0.0
    %9118 = vmatpush1.msra.mxu0 %v9081
    %9119 = vmatprep.subr.mxu0 0.0
    %9120 = vmatpush1.msra.mxu0 %v9082
    %9121 = vmatprep.subr.mxu0 0.0
    %9122 = vmatpush1.msra.mxu0 %v9083
    %9123 = vmatprep.subr.mxu0 0.0
    %9124 = vmatpush1.msra.mxu0 0.0
    %9125 = vmatprep.subr.mxu0 0.0
    %9126 = vmatpush1.msra.mxu0 0.0
    %9127 = vmatprep.subr.mxu0 0.0
    %9128 = vmatpush1.msra.mxu0 0.0
    %9129 = vmatprep.subr.mxu0 0.0
    %9130 = vmatpush1.msra.mxu0 0.0
    %9131 = vmatprep.subr.mxu0 0.0
    %9132 = vmatpush1.msra.mxu0 0.0
    %9133 = vmatprep.subr.mxu0 0.0
    %9134 = vmatpush1.msra.mxu0 0.0
    %9135 = vmatprep.subr.mxu0 0.0
    %9136 = vmatpush1.msra.mxu0 0.0
    %9137 = vmatprep.subr.mxu0 0.0
    %9138 = vmatpush1.msra.mxu0 0.0
    %9139 = vmatprep.subr.mxu0 0.0
    %9140 = vmatpush1.msra.mxu0 0.0
    %9141 = vmatprep.subr.mxu0 0.0
    %9142 = vmatpush1.msra.mxu0 0.0
    %9143 = vmatprep.subr.mxu0 0.0
    %9144 = vmatpush1.msra.mxu0 0.0
    %9145 = vmatprep.subr.mxu0 0.0
    %9146 = vmatpush1.msra.mxu0 0.0
    %9147 = vmatprep.subr.mxu0 0.0
    %9148 = vmatpush1.msra.mxu0 0.0
    %9149 = vmatprep.subr.mxu0 0.0
    %9150 = vmatpush1.msra.mxu0 0.0
    %9151 = vmatprep.subr.mxu0 0.0
    %9152 = vmatpush1.msra.mxu0 0.0
    %9153 = vmatprep.subr.mxu0 0.0
    %9154 = vmatpush1.msra.mxu0 0.0
    %9155 = vmatprep.mubr.f32.mxu0 0.0
    %9156 = vmatmul.mubr.f32.gmra.mrb[0].mxu0 %v9067
    %v9157 = vpop.f32.mrb[0].mxu0
    %v9158 = vadd.f32 %v9089, %v9157
    %v9159 = vpop.f32.mrb[0].mxu0
    %9160 = vdwg.mxu0
    %vm9161 = vcmask 41984
    %9162 = vst.msk [vmem:[%s21] sm:$0x3] %vm9161, %v9158
    %v9163 = vld [vmem:[#allocation18] sm:$0xff]
    %v9164 = vld [vmem:[#allocation18 + $0x8] sm:$0xff]
    %v9165 = vld [vmem:[#allocation18 + $0x10] sm:$0xff]
    %v9166 = vld [vmem:[#allocation18 + $0x18] sm:$0xff]
    %9167 = vmatprep.subr.mxu0 0.0
    %9168 = vmatpush1.msra.mxu0 %v9163
    %9169 = vmatprep.subr.mxu0 0.0
    %9170 = vmatpush1.msra.mxu0 %v9164
    %9171 = vmatprep.subr.mxu0 0.0
    %9172 = vmatpush1.msra.mxu0 %v9165
    %9173 = vmatprep.subr.mxu0 0.0
    %9174 = vmatpush1.msra.mxu0 %v9166
    %9175 = vmatprep.subr.mxu0 0.0
    %9176 = vmatpush1.msra.mxu0 0.0
    %9177 = vmatprep.subr.mxu0 0.0
    %9178 = vmatpush1.msra.mxu0 0.0
    %9179 = vmatprep.subr.mxu0 0.0
    %9180 = vmatpush1.msra.mxu0 0.0
    %9181 = vmatprep.subr.mxu0 0.0
    %9182 = vmatpush1.msra.mxu0 0.0
    %9183 = vmatprep.subr.mxu0 0.0
    %9184 = vmatpush1.msra.mxu0 0.0
    %9185 = vmatprep.subr.mxu0 0.0
    %9186 = vmatpush1.msra.mxu0 0.0
    %9187 = vmatprep.subr.mxu0 0.0
    %9188 = vmatpush1.msra.mxu0 0.0
    %9189 = vmatprep.subr.mxu0 0.0
    %9190 = vmatpush1.msra.mxu0 0.0
    %9191 = vmatprep.subr.mxu0 0.0
    %9192 = vmatpush1.msra.mxu0 0.0
    %9193 = vmatprep.subr.mxu0 0.0
    %9194 = vmatpush1.msra.mxu0 0.0
    %9195 = vmatprep.subr.mxu0 0.0
    %9196 = vmatpush1.msra.mxu0 0.0
    %9197 = vmatprep.subr.mxu0 0.0
    %9198 = vmatpush1.msra.mxu0 0.0
    %9199 = vmatprep.subr.mxu0 0.0
    %9200 = vmatpush1.msra.mxu0 0.0
    %9201 = vmatprep.subr.mxu0 0.0
    %9202 = vmatpush1.msra.mxu0 0.0
    %9203 = vmatprep.subr.mxu0 0.0
    %9204 = vmatpush1.msra.mxu0 0.0
    %9205 = vmatprep.subr.mxu0 0.0
    %9206 = vmatpush1.msra.mxu0 0.0
    %9207 = vmatprep.subr.mxu0 0.0
    %9208 = vmatpush1.msra.mxu0 0.0
    %9209 = vmatprep.subr.mxu0 0.0
    %9210 = vmatpush1.msra.mxu0 0.0
    %9211 = vmatprep.subr.mxu0 0.0
    %9212 = vmatpush1.msra.mxu0 0.0
    %9213 = vmatprep.subr.mxu0 0.0
    %9214 = vmatpush1.msra.mxu0 0.0
    %9215 = vmatprep.subr.mxu0 0.0
    %9216 = vmatpush1.msra.mxu0 0.0
    %9217 = vmatprep.subr.mxu0 0.0
    %9218 = vmatpush1.msra.mxu0 0.0
    %9219 = vmatprep.subr.mxu0 0.0
    %9220 = vmatpush1.msra.mxu0 0.0
    %9221 = vmatprep.subr.mxu0 0.0
    %9222 = vmatpush1.msra.mxu0 0.0
    %9223 = vmatprep.subr.mxu0 0.0
    %9224 = vmatpush1.msra.mxu0 0.0
    %9225 = vmatprep.subr.mxu0 0.0
    %9226 = vmatpush1.msra.mxu0 0.0
    %9227 = vmatprep.subr.mxu0 0.0
    %9228 = vmatpush1.msra.mxu0 0.0
    %9229 = vmatprep.subr.mxu0 0.0
    %9230 = vmatpush1.msra.mxu0 0.0
    %9231 = vmatprep.mubr.f32.mxu0 0.0
    %9232 = vmatmul.mubr.f32.gmra.mrb[0].mxu0 %v8871
    %v9233 = vpop.f32.mrb[0].mxu0
    %v9234 = vadd.f32 0.0, %v9233
    %v9235 = vpop.f32.mrb[0].mxu0
    %9236 = vdwg.mxu0
    %v9238 = vrot.slane %v9234, 6
    %v9240 = vadd.f32 %v8671, %v9238
    %v9241 = vxor.u32 %v9240, 2147483648
    %v9242 = vmul.f32 %v9241, 1.442695
    %v9243 = vpow.pop %v9242
    %v9244 = vadd.f32 %v9243, 1.0
    %v9245 = vrcp.pop %v9244
    %v9246 = vmul.f32 1.0, %v9245
    %v9247 = vtanh.pop %v9240
    %v9249 = vrot.slane %v8780, 6
    %v9251 = vmul.f32 %v9246, %v9249
    %9253 = vrot.lane.b32.xlu0 %v9247, 64
    %v9254 = vpop.permute.xlu0 %9253
    %v9256 = vmul.f32 %v9246, %v9254
    %9258 = vrot.lane.b32.xlu0 %v9256, 32
    %v9259 = vpop.permute.xlu0 %9258
    %v9261 = vadd.f32 %v9251, %v9259
    %v9262 = vtanh.pop %v9261
    %9264 = vrot.lane.b32.xlu0 %v9262, 64
    %v9265 = vpop.permute.xlu0 %9264
    %v9267 = vmul.f32 %v9246, %v9265
    %v9268 = vld [vmem:[#allocation19] sm:$0xff]
    %v9269 = vld [vmem:[#allocation19 + $0x8] sm:$0xff]
    %v9270 = vld [vmem:[#allocation19 + $0x10] sm:$0xff]
    %v9271 = vld [vmem:[#allocation19 + $0x18] sm:$0xff]
    %v9272 = vld [vmem:[#allocation21] sm:$0xff]
    %v9273 = vld [vmem:[#allocation21 + $0x8] sm:$0xff]
    %v9274 = vld [vmem:[#allocation21 + $0x10] sm:$0xff]
    %v9275 = vld [vmem:[#allocation21 + $0x18] sm:$0xff]
    %9276 = vmatprep.subr.mxu0 0.0
    %9277 = vmatpush1.msra.mxu0 %v9272
    %9278 = vmatprep.subr.mxu0 0.0
    %9279 = vmatpush1.msra.mxu0 %v9273
    %9280 = vmatprep.subr.mxu0 0.0
    %9281 = vmatpush1.msra.mxu0 %v9274
    %9282 = vmatprep.subr.mxu0 0.0
    %9283 = vmatpush1.msra.mxu0 %v9275
    %9284 = vmatprep.subr.mxu0 0.0
    %9285 = vmatpush1.msra.mxu0 0.0
    %9286 = vmatprep.subr.mxu0 0.0
    %9287 = vmatpush1.msra.mxu0 0.0
    %9288 = vmatprep.subr.mxu0 0.0
    %9289 = vmatpush1.msra.mxu0 0.0
    %9290 = vmatprep.subr.mxu0 0.0
    %9291 = vmatpush1.msra.mxu0 0.0
    %9292 = vmatprep.subr.mxu0 0.0
    %9293 = vmatpush1.msra.mxu0 0.0
    %9294 = vmatprep.subr.mxu0 0.0
    %9295 = vmatpush1.msra.mxu0 0.0
    %9296 = vmatprep.subr.mxu0 0.0
    %9297 = vmatpush1.msra.mxu0 0.0
    %9298 = vmatprep.subr.mxu0 0.0
    %9299 = vmatpush1.msra.mxu0 0.0
    %9300 = vmatprep.subr.mxu0 0.0
    %9301 = vmatpush1.msra.mxu0 0.0
    %9302 = vmatprep.subr.mxu0 0.0
    %9303 = vmatpush1.msra.mxu0 0.0
    %9304 = vmatprep.subr.mxu0 0.0
    %9305 = vmatpush1.msra.mxu0 0.0
    %9306 = vmatprep.subr.mxu0 0.0
    %9307 = vmatpush1.msra.mxu0 0.0
    %9308 = vmatprep.subr.mxu0 0.0
    %9309 = vmatpush1.msra.mxu0 0.0
    %9310 = vmatprep.subr.mxu0 0.0
    %9311 = vmatpush1.msra.mxu0 0.0
    %9312 = vmatprep.subr.mxu0 0.0
    %9313 = vmatpush1.msra.mxu0 0.0
    %9314 = vmatprep.subr.mxu0 0.0
    %9315 = vmatpush1.msra.mxu0 0.0
    %9316 = vmatprep.subr.mxu0 0.0
    %9317 = vmatpush1.msra.mxu0 0.0
    %9318 = vmatprep.subr.mxu0 0.0
    %9319 = vmatpush1.msra.mxu0 0.0
    %9320 = vmatprep.subr.mxu0 0.0
    %9321 = vmatpush1.msra.mxu0 0.0
    %9322 = vmatprep.subr.mxu0 0.0
    %9323 = vmatpush1.msra.mxu0 0.0
    %9324 = vmatprep.subr.mxu0 0.0
    %9325 = vmatpush1.msra.mxu0 0.0
    %9326 = vmatprep.subr.mxu0 0.0
    %9327 = vmatpush1.msra.mxu0 0.0
    %9328 = vmatprep.subr.mxu0 0.0
    %9329 = vmatpush1.msra.mxu0 0.0
    %9330 = vmatprep.subr.mxu0 0.0
    %9331 = vmatpush1.msra.mxu0 0.0
    %9332 = vmatprep.subr.mxu0 0.0
    %9333 = vmatpush1.msra.mxu0 0.0
    %9334 = vmatprep.subr.mxu0 0.0
    %9335 = vmatpush1.msra.mxu0 0.0
    %9336 = vmatprep.subr.mxu0 0.0
    %9337 = vmatpush1.msra.mxu0 0.0
    %9338 = vmatprep.subr.mxu0 0.0
    %9339 = vmatpush1.msra.mxu0 0.0
    %9340 = vmatprep.mubr.f32.mxu0 0.0
    %9341 = vmatmul.mubr.f32.gmra.mrb[0].mxu0 %v8993
    %v9342 = vpop.f32.mrb[0].mxu0
    %v9343 = vadd.f32 0.0, %v9342
    %v9344 = vpop.f32.mrb[0].mxu0
    %9345 = vdwg.mxu0
    %v9347 = vrot.slane %v9267, 2
    %9348 = vrot.lane.b32.xlu0 %v9347, 32
    %v9349 = vpop.permute.xlu0 %9348
    %v9350 = vsel %vm8684, %v9349, 0
    %9352 = vmatprep.subr.mxu0 0.0
    %9353 = vmatpush1.msra.mxu0 %v9268
    %9354 = vmatprep.subr.mxu0 0.0
    %9355 = vmatpush1.msra.mxu0 %v9269
    %9356 = vmatprep.subr.mxu0 0.0
    %9357 = vmatpush1.msra.mxu0 %v9270
    %9358 = vmatprep.subr.mxu0 0.0
    %9359 = vmatpush1.msra.mxu0 %v9271
    %9360 = vmatprep.subr.mxu0 0.0
    %9361 = vmatpush1.msra.mxu0 0.0
    %9362 = vmatprep.subr.mxu0 0.0
    %9363 = vmatpush1.msra.mxu0 0.0
    %9364 = vmatprep.subr.mxu0 0.0
    %9365 = vmatpush1.msra.mxu0 0.0
    %9366 = vmatprep.subr.mxu0 0.0
    %9367 = vmatpush1.msra.mxu0 0.0
    %9368 = vmatprep.subr.mxu0 0.0
    %9369 = vmatpush1.msra.mxu0 0.0
    %9370 = vmatprep.subr.mxu0 0.0
    %9371 = vmatpush1.msra.mxu0 0.0
    %9372 = vmatprep.subr.mxu0 0.0
    %9373 = vmatpush1.msra.mxu0 0.0
    %9374 = vmatprep.subr.mxu0 0.0
    %9375 = vmatpush1.msra.mxu0 0.0
    %9376 = vmatprep.subr.mxu0 0.0
    %9377 = vmatpush1.msra.mxu0 0.0
    %9378 = vmatprep.subr.mxu0 0.0
    %9379 = vmatpush1.msra.mxu0 0.0
    %9380 = vmatprep.subr.mxu0 0.0
    %9381 = vmatpush1.msra.mxu0 0.0
    %9382 = vmatprep.subr.mxu0 0.0
    %9383 = vmatpush1.msra.mxu0 0.0
    %9384 = vmatprep.subr.mxu0 0.0
    %9385 = vmatpush1.msra.mxu0 0.0
    %9386 = vmatprep.subr.mxu0 0.0
    %9387 = vmatpush1.msra.mxu0 0.0
    %9388 = vmatprep.subr.mxu0 0.0
    %9389 = vmatpush1.msra.mxu0 0.0
    %9390 = vmatprep.subr.mxu0 0.0
    %9391 = vmatpush1.msra.mxu0 0.0
    %9392 = vmatprep.subr.mxu0 0.0
    %9393 = vmatpush1.msra.mxu0 0.0
    %9394 = vmatprep.subr.mxu0 0.0
    %9395 = vmatpush1.msra.mxu0 0.0
    %9396 = vmatprep.subr.mxu0 0.0
    %9397 = vmatpush1.msra.mxu0 0.0
    %9398 = vmatprep.subr.mxu0 0.0
    %9399 = vmatpush1.msra.mxu0 0.0
    %9400 = vmatprep.subr.mxu0 0.0
    %9401 = vmatpush1.msra.mxu0 0.0
    %9402 = vmatprep.subr.mxu0 0.0
    %9403 = vmatpush1.msra.mxu0 0.0
    %9404 = vmatprep.subr.mxu0 0.0
    %9405 = vmatpush1.msra.mxu0 0.0
    %9406 = vmatprep.subr.mxu0 0.0
    %9407 = vmatpush1.msra.mxu0 0.0
    %9408 = vmatprep.subr.mxu0 0.0
    %9409 = vmatpush1.msra.mxu0 0.0
    %9410 = vmatprep.subr.mxu0 0.0
    %9411 = vmatpush1.msra.mxu0 0.0
    %9412 = vmatprep.subr.mxu0 0.0
    %9413 = vmatpush1.msra.mxu0 0.0
    %9414 = vmatprep.subr.mxu0 0.0
    %9415 = vmatpush1.msra.mxu0 0.0
    %9416 = vmatprep.mubr.f32.mxu0 0.0
    %9417 = vmatmul.mubr.f32.gmra.mrb[0].mxu0 %v9350
    %v9418 = vpop.f32.mrb[0].mxu0
    %v9419 = vadd.f32 %v9343, %v9418
    %v9420 = vpop.f32.mrb[0].mxu0
    %9421 = vdwg.mxu0
    %v9422 = vld [vmem:[#allocation22] sm:$0x1]
    %v9424 = vlaneseq
    %v9425 = vshrl.u32 %v9424, 7
    %v9426 = vsub.s32 0, %v9425
    %v9427 = vrot.slane %v9422, %v9426
    %v9429 = vadd.f32 %v9419, %v9427
    %v9430 = vxor.u32 %v9429, 2147483648
    %v9431 = vmul.f32 %v9430, 1.442695
    %v9432 = vpow.pop %v9431
    %v9433 = vadd.f32 %v9432, 1.0
    %v9434 = vrcp.pop %v9433
    %v9435 = vmul.f32 1.0, %v9434
    %v9436 = vtanh.pop %v9429
    %v9437 = vmul.f32 %v9435, %v8972
    %9439 = vrot.lane.b32.xlu0 %v9436, 64
    %v9440 = vpop.permute.xlu0 %9439
    %v9442 = vmul.f32 %v9435, %v9440
    %9444 = vrot.lane.b32.xlu0 %v9442, 32
    %v9445 = vpop.permute.xlu0 %9444
    %v9447 = vadd.f32 %v9437, %v9445
    %v9448 = vtanh.pop %v9447
    %9450 = vrot.lane.b32.xlu0 %v9448, 64
    %v9451 = vpop.permute.xlu0 %9450
    %v9453 = vmul.f32 %v9435, %v9451
    %v9454 = vld [vmem:[#allocation24] sm:$0xff]
    %v9455 = vld [vmem:[#allocation24 + $0x8] sm:$0xff]
    %v9456 = vld [vmem:[#allocation24 + $0x10] sm:$0xff]
    %v9457 = vld [vmem:[#allocation24 + $0x18] sm:$0xff]
    %v9458 = vld [vmem:[#allocation25] sm:$0x1]
    %v9460 = vlaneseq
    %v9461 = vshrl.u32 %v9460, 7
    %v9462 = vsub.s32 0, %v9461
    %v9463 = vrot.slane %v9458, %v9462
    %9466 = vrot.lane.b32.xlu0 %v9453, 32
    %v9467 = vpop.permute.xlu0 %9466
    %v9468 = vsel %vm8684, %v9467, 0
    %9470 = vmatprep.subr.mxu0 0.0
    %9471 = vmatpush1.msra.mxu0 %v9454
    %9472 = vmatprep.subr.mxu0 0.0
    %9473 = vmatpush1.msra.mxu0 %v9455
    %9474 = vmatprep.subr.mxu0 0.0
    %9475 = vmatpush1.msra.mxu0 %v9456
    %9476 = vmatprep.subr.mxu0 0.0
    %9477 = vmatpush1.msra.mxu0 %v9457
    %9478 = vmatprep.subr.mxu0 0.0
    %9479 = vmatpush1.msra.mxu0 0.0
    %9480 = vmatprep.subr.mxu0 0.0
    %9481 = vmatpush1.msra.mxu0 0.0
    %9482 = vmatprep.subr.mxu0 0.0
    %9483 = vmatpush1.msra.mxu0 0.0
    %9484 = vmatprep.subr.mxu0 0.0
    %9485 = vmatpush1.msra.mxu0 0.0
    %9486 = vmatprep.subr.mxu0 0.0
    %9487 = vmatpush1.msra.mxu0 0.0
    %9488 = vmatprep.subr.mxu0 0.0
    %9489 = vmatpush1.msra.mxu0 0.0
    %9490 = vmatprep.subr.mxu0 0.0
    %9491 = vmatpush1.msra.mxu0 0.0
    %9492 = vmatprep.subr.mxu0 0.0
    %9493 = vmatpush1.msra.mxu0 0.0
    %9494 = vmatprep.subr.mxu0 0.0
    %9495 = vmatpush1.msra.mxu0 0.0
    %9496 = vmatprep.subr.mxu0 0.0
    %9497 = vmatpush1.msra.mxu0 0.0
    %9498 = vmatprep.subr.mxu0 0.0
    %9499 = vmatpush1.msra.mxu0 0.0
    %9500 = vmatprep.subr.mxu0 0.0
    %9501 = vmatpush1.msra.mxu0 0.0
    %9502 = vmatprep.subr.mxu0 0.0
    %9503 = vmatpush1.msra.mxu0 0.0
    %9504 = vmatprep.subr.mxu0 0.0
    %9505 = vmatpush1.msra.mxu0 0.0
    %9506 = vmatprep.subr.mxu0 0.0
    %9507 = vmatpush1.msra.mxu0 0.0
    %9508 = vmatprep.subr.mxu0 0.0
    %9509 = vmatpush1.msra.mxu0 0.0
    %9510 = vmatprep.subr.mxu0 0.0
    %9511 = vmatpush1.msra.mxu0 0.0
    %9512 = vmatprep.subr.mxu0 0.0
    %9513 = vmatpush1.msra.mxu0 0.0
    %9514 = vmatprep.subr.mxu0 0.0
    %9515 = vmatpush1.msra.mxu0 0.0
    %9516 = vmatprep.subr.mxu0 0.0
    %9517 = vmatpush1.msra.mxu0 0.0
    %9518 = vmatprep.subr.mxu0 0.0
    %9519 = vmatpush1.msra.mxu0 0.0
    %9520 = vmatprep.subr.mxu0 0.0
    %9521 = vmatpush1.msra.mxu0 0.0
    %9522 = vmatprep.subr.mxu0 0.0
    %9523 = vmatpush1.msra.mxu0 0.0
    %9524 = vmatprep.subr.mxu0 0.0
    %9525 = vmatpush1.msra.mxu0 0.0
    %9526 = vmatprep.subr.mxu0 0.0
    %9527 = vmatpush1.msra.mxu0 0.0
    %9528 = vmatprep.subr.mxu0 0.0
    %9529 = vmatpush1.msra.mxu0 0.0
    %9530 = vmatprep.subr.mxu0 0.0
    %9531 = vmatpush1.msra.mxu0 0.0
    %9532 = vmatprep.subr.mxu0 0.0
    %9533 = vmatpush1.msra.mxu0 0.0
    %9534 = vmatprep.mubr.f32.mxu0 0.0
    %9535 = vmatmul.mubr.f32.gmra.mrb[0].mxu0 %v9468
    %v9536 = vpop.f32.mrb[0].mxu0
    %v9537 = vadd.f32 %v9463, %v9536
    %v9538 = vpop.f32.mrb[0].mxu0
    %9539 = vdwg.mxu0
    %vm9540 = vcmp.gt.f32.partialorder %v9537, 0.0
    %v9541 = vmul.f32 %v9537, 0.1
    %v9542 = vsel %vm9540, %v9537, %v9541
    %v9543 = vld [vmem:[%s17] sm:$0xff]
    %v9544 = vld [vmem:[%s17 + $0x8] sm:$0xff]
    %v9545 = vld [vmem:[%s17 + $0x10] sm:$0xff]
    %v9546 = vld [vmem:[%s17 + $0x18] sm:$0xff]
    %v9547 = vld [vmem:[%s17 + $0x20] sm:$0xff]
    %v9548 = vld [vmem:[%s17 + $0x28] sm:$0xff]
    %v9549 = vld [vmem:[%s17 + $0x30] sm:$0xff]
    %v9550 = vld [vmem:[%s17 + $0x38] sm:$0xff]
    %v9551 = vld [vmem:[%s17 + $0x40] sm:$0xff]
    %v9552 = vld [vmem:[%s17 + $0x48] sm:$0xff]
    %v9553 = vld [vmem:[%s17 + $0x50] sm:$0xff]
    %v9554 = vld [vmem:[%s17 + $0x58] sm:$0xff]
    %v9555 = vld [vmem:[%s17 + $0x60] sm:$0xff]
    %v9556 = vld [vmem:[%s17 + $0x68] sm:$0xff]
    %v9557 = vld [vmem:[%s17 + $0x70] sm:$0xff]
    %v9558 = vld [vmem:[%s17 + $0x78] sm:$0xff]
    %v9559 = vld [vmem:[#allocation27] sm:$0x1]
    %v9561 = vlaneseq
    %v9562 = vshrl.u32 %v9561, 7
    %v9563 = vsub.s32 0, %v9562
    %v9564 = vrot.slane %v9559, %v9563
    %9566 = vmatprep.subr.mxu0 0.0
    %9567 = vmatpush1.msra.mxu0 %v9543
    %9568 = vmatprep.subr.mxu0 0.0
    %9569 = vmatpush1.msra.mxu0 %v9544
    %9570 = vmatprep.subr.mxu0 0.0
    %9571 = vmatpush1.msra.mxu0 %v9545
    %9572 = vmatprep.subr.mxu0 0.0
    %9573 = vmatpush1.msra.mxu0 %v9546
    %9574 = vmatprep.subr.mxu0 0.0
    %9575 = vmatpush1.msra.mxu0 %v9547
    %9576 = vmatprep.subr.mxu0 0.0
    %9577 = vmatpush1.msra.mxu0 %v9548
    %9578 = vmatprep.subr.mxu0 0.0
    %9579 = vmatpush1.msra.mxu0 %v9549
    %9580 = vmatprep.subr.mxu0 0.0
    %9581 = vmatpush1.msra.mxu0 %v9550
    %9582 = vmatprep.subr.mxu0 0.0
    %9583 = vmatpush1.msra.mxu0 %v9551
    %9584 = vmatprep.subr.mxu0 0.0
    %9585 = vmatpush1.msra.mxu0 %v9552
    %9586 = vmatprep.subr.mxu0 0.0
    %9587 = vmatpush1.msra.mxu0 %v9553
    %9588 = vmatprep.subr.mxu0 0.0
    %9589 = vmatpush1.msra.mxu0 %v9554
    %9590 = vmatprep.subr.mxu0 0.0
    %9591 = vmatpush1.msra.mxu0 %v9555
    %9592 = vmatprep.subr.mxu0 0.0
    %9593 = vmatpush1.msra.mxu0 %v9556
    %9594 = vmatprep.subr.mxu0 0.0
    %9595 = vmatpush1.msra.mxu0 %v9557
    %9596 = vmatprep.subr.mxu0 0.0
    %9597 = vmatpush1.msra.mxu0 %v9558
    %9598 = vmatprep.subr.mxu0 0.0
    %9599 = vmatpush1.msra.mxu0 0.0
    %9600 = vmatprep.subr.mxu0 0.0
    %9601 = vmatpush1.msra.mxu0 0.0
    %9602 = vmatprep.subr.mxu0 0.0
    %9603 = vmatpush1.msra.mxu0 0.0
    %9604 = vmatprep.subr.mxu0 0.0
    %9605 = vmatpush1.msra.mxu0 0.0
    %9606 = vmatprep.subr.mxu0 0.0
    %9607 = vmatpush1.msra.mxu0 0.0
    %9608 = vmatprep.subr.mxu0 0.0
    %9609 = vmatpush1.msra.mxu0 0.0
    %9610 = vmatprep.subr.mxu0 0.0
    %9611 = vmatpush1.msra.mxu0 0.0
    %9612 = vmatprep.subr.mxu0 0.0
    %9613 = vmatpush1.msra.mxu0 0.0
    %9614 = vmatprep.subr.mxu0 0.0
    %9615 = vmatpush1.msra.mxu0 0.0
    %9616 = vmatprep.subr.mxu0 0.0
    %9617 = vmatpush1.msra.mxu0 0.0
    %9618 = vmatprep.subr.mxu0 0.0
    %9619 = vmatpush1.msra.mxu0 0.0
    %9620 = vmatprep.subr.mxu0 0.0
    %9621 = vmatpush1.msra.mxu0 0.0
    %9622 = vmatprep.subr.mxu0 0.0
    %9623 = vmatpush1.msra.mxu0 0.0
    %9624 = vmatprep.subr.mxu0 0.0
    %9625 = vmatpush1.msra.mxu0 0.0
    %9626 = vmatprep.subr.mxu0 0.0
    %9627 = vmatpush1.msra.mxu0 0.0
    %9628 = vmatprep.subr.mxu0 0.0
    %9629 = vmatpush1.msra.mxu0 0.0
    %9630 = vmatprep.mubr.f32.mxu0 0.0
    %9631 = vmatmul.mubr.f32.gmra.mrb[0].mxu0 %v9542
    %v9632 = vpop.f32.mrb[0].mxu0
    %v9633 = vadd.f32 %v9564, %v9632
    %v9634 = vpop.f32.mrb[0].mxu0
    %9635 = vdwg.mxu0
    %9637 = vrot.lane.b32.xlu0 %v9633, 6
    %v9638 = vpop.permute.xlu0 %9637
    %vm9640 = vcmask 91184
    %9641 = vst.msk [vmem:[%s21] sm:$0x3] %vm9640, %v9638
    // Predicated region
    $region154: #{svio_vo_c_forward.1} parent=1 // pred_check
      _
    $region155: #{svio_vo_c_forward.1} parent=1 // pred_check_branch
      %9643 = sbr.rel (0) target = $region157
    $region156: #{svio_vo_c_forward.1} parent=1 // pred_region
      _
    $region157: #{svio_vo_c_forward.1} parent=1 // pred_fallthru
      _
    // Predicated region
    $region158: #{svio_vo_c_forward.1} parent=1 // pred_check
      _
    $region159: #{svio_vo_c_forward.1} parent=1 // pred_check_branch
      %9645 = sbr.rel (0) target = $region161
    $region160: #{svio_vo_c_forward.1} parent=1 // pred_region
      _
    $region161: #{svio_vo_c_forward.1} parent=1 // pred_fallthru
      _
    %9646 = vsyncpa [#allocation3], 1
    %9647 = vsyncpa [#allocation5], 1
    %9648 = vsyncpa [#allocation8], 1
    %9649 = vsyncpa [#allocation11], 1
    %9650 = vsyncpa [#allocation14], 1
    %9651 = vsyncpa [#allocation17], 1
    %9652 = vsyncpa [#allocation20], 1
    %9653 = vsyncpa [#allocation23], 1
    %9654 = vsyncpa [#allocation26], 1

</llo_original>
